<compile_context>
chip_gen: v7x
topology: tpu7x:2x2x1
jax: 0.10.0
libtpu: 0.0.40
codegen_flags: <defaults>
</compile_context>

<pallas_src>
import jax
import jax.numpy as jnp
import numpy as np
from jax.experimental import pallas as pl
from jax.experimental.pallas import tpu as pltpu

LANE = 128  # TPU lane width; channel dims are padded to a multiple of this.


# ---------------- small helpers ----------------

def _round_up(x, m):
    return ((x + m - 1) // m) * m


def _pad_axis(a, axis, size):
    if a.shape[axis] == size:
        return a
    pads = [(0, 0)] * a.ndim
    pads[axis] = (0, size - a.shape[axis])
    return jnp.pad(a, pads)


def _parity_stack(x, kh, kw, stride, pad):
    """Spatially pad x and fold stride into parity planes stacked along rows.

    x: (N, H, W, C)  ->  (N, s*s*Hq, Wq, C), plus (Ho, Wo, Hq).
    Tap (dy, dx) of a (kh,kw)/stride conv reads rows
    [par*Hq + dy//s, par*Hq + dy//s + Ho) with par = (dy%s)*s + dx%s and cols
    [dx//s, dx//s + Wo)  -- unstrided, static windows.
    """
    n, h, w, c = x.shape
    s = stride
    hp, wp = h + 2 * pad, w + 2 * pad
    ho = (hp - kh) // s + 1
    wo = (wp - kw) // s + 1
    xp = jnp.pad(x, ((0, 0), (pad, pad), (pad, pad), (0, 0)))
    if s == 1:
        return xp, ho, wo, hp
    hq = -(-hp // s)
    wq = -(-wp // s)
    planes = []
    for py in range(s):
        for px in range(s):
            pp = xp[:, py::s, px::s, :]
            pp = jnp.pad(pp, ((0, 0), (0, hq - pp.shape[1]),
                              (0, wq - pp.shape[2]), (0, 0)))
            planes.append(pp)
    xs = jnp.stack(planes, axis=1)                       # (N, s*s, Hq, Wq, C)
    return xs.reshape(n, s * s * hq, wq, c), ho, wo, hq


def _pick_bb(n, batch_tile, howo, r_target=2048):
    """Pick a batch tile so R = bb*Ho*Wo is a healthy MXU M dim (mult of 8)."""
    bb = 1
    for d in range(1, min(n, batch_tile) + 1):
        if n % d == 0 and d * howo <= max(r_target, howo):
            bb = d
    if (bb * howo) % 8 != 0 and bb != n:
        bb = n          # single batch block -> block rows == full array rows
    return bb


def _compiler_params(live_bytes):
    kwargs = dict(dimension_semantics=("parallel", "parallel"))
    # Only raise the scoped-VMEM limit when the working set needs it; cap well
    # below v7x's 64 MiB physical VMEM.
    if live_bytes > 12 * 2**20:
        kwargs["vmem_limit_bytes"] = int(min(2 * live_bytes, 40 * 2**20))
    return pltpu.CompilerParams(**kwargs)


# ---------------- Pallas kernels ----------------

def _make_conv_bn_kernel(kh, kw, stride, ho, wo, hq, with_shortcut, mxu_dtype):
    """h = relu(bn2(conv_{kh x kw, stride}(a)))  [+ r = conv1x1_stride(a)].

    `a` is already relu(bn1(x)) and zero-padded spatially; stride is pre-folded
    into parity planes stacked along the row axis of the input block.
    """
    T = kh * kw
    s = stride
    centre = ((kh - 1) // 2) * kw + (kw - 1) // 2   # tap of the 1x1 shortcut

    def kernel(x_ref, w_ref, s2_ref, t2_ref, *rest):
        if with_shortcut:
            ws_ref, h_ref, r_ref = rest
        else:
            (h_ref,) = rest

        bb = x_ref.shape[0]
        cin = x_ref.shape[-1]
        tn = h_ref.shape[-1]
        R = bb * ho * wo

        acc = jnp.zeros((R, tn), jnp.float32)
        for t in range(T):                              # static, unrolled taps
            dy, dx = divmod(t, kw)
            par = (dy % s) * s + (dx % s)               # parity plane
            a = x_ref[:, pl.ds(par * hq + dy // s, ho), pl.ds(dx // s, wo), :]
            a = a.reshape(R, cin).astype(mxu_dtype)
            acc = acc + jnp.dot(a, w_ref[t], preferred_element_type=jnp.float32)
            if with_shortcut and t == centre:           # 1x1 strided shortcut
                r_ref[...] = jnp.dot(
                    a, ws_ref[...],
                    preferred_element_type=jnp.float32).astype(r_ref.dtype)

        h = acc * s2_ref[...] + t2_ref[...]             # fused BN2
        h_ref[...] = jnp.maximum(h, 0.0).astype(h_ref.dtype)

    return kernel


def _make_conv_add_kernel(kh, kw, ho, wo, mxu_dtype):
    """out = conv_{kh x kw, stride 1}(h) + residual  (h already activated)."""
    T = kh * kw

    def kernel(x_ref, w_ref, res_ref, o_ref):
        bb = x_ref.shape[0]
        cin = x_ref.shape[-1]
        tn = o_ref.shape[-1]
        R = bb * ho * wo

        acc = jnp.zeros((R, tn), jnp.float32)
        for t in range(T):                              # static, unrolled taps
            dy, dx = divmod(t, kw)
            a = x_ref[:, pl.ds(dy, ho), pl.ds(dx, wo), :]
            a = a.reshape(R, cin).astype(mxu_dtype)
            acc = acc + jnp.dot(a, w_ref[t], preferred_element_type=jnp.float32)
        o_ref[...] = (acc
                      + res_ref[...].astype(jnp.float32)).astype(o_ref.dtype)

    return kernel


# ---------------- pallas_call wrappers ----------------

def _conv_bn_call(a, w, bn2_scale, bn2_shift, ws, *, stride, pad, batch_tile,
                  compute_dtype):
    """h = relu(bn2(conv(a)))  [, r = conv1x1_stride(a)]  with a = relu(bn1(x))."""
    n, _, _, cinp = a.shape
    kh, kw, _, coutp = w.shape
    T = kh * kw
    xs, ho, wo, hq = _parity_stack(a, kh, kw, stride, pad)
    _, s2hq, wq, _ = xs.shape
    bb = _pick_bb(n, batch_tile, ho * wo)
    nb = n // bb
    R = bb * ho * wo
    tn = 256 if coutp % 256 == 0 else LANE
    grid = (nb, coutp // tn)

    wt = w.reshape(T, cinp, coutp).astype(compute_dtype)
    s2m = bn2_scale.reshape(1, coutp).astype(jnp.float32)
    t2m = bn2_shift.reshape(1, coutp).astype(jnp.float32)

    in_specs = [
        pl.BlockSpec((bb, s2hq, wq, cinp), lambda b, j: (b, 0, 0, 0)),
        pl.BlockSpec((T, cinp, tn), lambda b, j: (0, 0, j)),
        pl.BlockSpec((1, tn), lambda b, j: (0, j)),
        pl.BlockSpec((1, tn), lambda b, j: (0, j)),
    ]
    args = [xs, wt, s2m, t2m]

    with_shortcut = ws is not None
    out_shape = jax.ShapeDtypeStruct((n * ho * wo, coutp), compute_dtype)
    out_specs = pl.BlockSpec((R, tn), lambda b, j: (b, j))
    n_outs = 1
    if with_shortcut:
        in_specs.append(pl.BlockSpec((cinp, tn), lambda b, j: (0, j)))
        args.append(ws.astype(compute_dtype))
        out_shape = (out_shape,
                     jax.ShapeDtypeStruct((n * ho * wo, coutp), compute_dtype))
        out_specs = (out_specs, pl.BlockSpec((R, tn), lambda b, j: (b, j)))
        n_outs = 2

    itm = jnp.dtype(compute_dtype).itemsize
    live = (2 * bb * s2hq * wq * cinp * itm + 2 * T * cinp * tn * itm
            + 2 * n_outs * R * tn * itm + R * tn * 4)
    flops = 2 * n * ho * wo * cinp * coutp * (T + (1 if with_shortcut else 0))
    bytes_acc = (xs.size * itm * (coutp // tn) + wt.size * itm * nb
                 + n_outs * n * ho * wo * coutp * itm)

    outs = pl.pallas_call(
        _make_conv_bn_kernel(kh, kw, stride, ho, wo, hq, with_shortcut,
                             compute_dtype),
        out_shape=out_shape,
        grid=grid,
        in_specs=in_specs,
        out_specs=out_specs,
        compiler_params=_compiler_params(live),
        cost_estimate=pl.CostEstimate(flops=int(flops), transcendentals=0,
                                      bytes_accessed=int(bytes_acc)),
    )(*args)

    if with_shortcut:
        h, r = outs
        return h.reshape(n, ho, wo, coutp), r.reshape(n, ho, wo, coutp)
    return outs.reshape(n, ho, wo, coutp)


def _conv_add_call(h, w, res, *, pad, batch_tile, compute_dtype):
    """out = conv3x3(h) + res  (h already activated, stride 1)."""
    n, _, _, cinp = h.shape
    kh, kw, _, coutp = w.shape
    T = kh * kw
    xs, ho, wo, _ = _parity_stack(h, kh, kw, 1, pad)
    _, hpad, wq, _ = xs.shape
    bb = _pick_bb(n, batch_tile, ho * wo)
    nb = n // bb
    R = bb * ho * wo
    tn = 256 if coutp % 256 == 0 else LANE
    grid = (nb, coutp // tn)

    wt = w.reshape(T, cinp, coutp).astype(compute_dtype)
    res2 = res.astype(compute_dtype).reshape(n * ho * wo, coutp)

    itm = jnp.dtype(compute_dtype).itemsize
    live = (2 * bb * hpad * wq * cinp * itm + 2 * T * cinp * tn * itm
            + 4 * R * tn * itm + R * tn * 4)
    flops = 2 * n * ho * wo * cinp * coutp * T
    bytes_acc = (xs.size * itm * (coutp // tn) + wt.size * itm * nb
                 + 2 * n * ho * wo * coutp * itm)

    out = pl.pallas_call(
        _make_conv_add_kernel(kh, kw, ho, wo, compute_dtype),
        out_shape=jax.ShapeDtypeStruct((n * ho * wo, coutp), compute_dtype),
        grid=grid,
        in_specs=[pl.BlockSpec((bb, hpad, wq, cinp), lambda b, j: (b, 0, 0, 0)),
                  pl.BlockSpec((T, cinp, tn), lambda b, j: (0, 0, j)),
                  pl.BlockSpec((R, tn), lambda b, j: (b, j))],
        out_specs=pl.BlockSpec((R, tn), lambda b, j: (b, j)),
        compiler_params=_compiler_params(live),
        cost_estimate=pl.CostEstimate(flops=int(flops), transcendentals=0,
                                      bytes_accessed=int(bytes_acc)),
    )(xs, wt, res2)
    return out.reshape(n, ho, wo, coutp)


# ---------------- parameters (deterministic, synthetic) ----------------

def _fold_bn(gamma, beta, mean, var, eps=1e-5):
    scale = gamma / jnp.sqrt(var + eps)
    shift = beta - mean * scale
    return scale.astype(jnp.float32), shift.astype(jnp.float32)


def init_basic_block(key, cin, cout, stride):
    ks = jax.random.split(key, 10)
    p = {"equal": (cin == cout), "stride": stride, "cin": cin, "cout": cout}
    g1 = 1.0 + 0.1 * jax.random.normal(ks[0], (cin,))
    b1 = 0.1 * jax.random.normal(ks[1], (cin,))
    m1 = 0.1 * jax.random.normal(ks[2], (cin,))
    v1 = 1.0 + 0.1 * jnp.abs(jax.random.normal(ks[3], (cin,)))
    p["scale1"], p["shift1"] = _fold_bn(g1, b1, m1, v1)
    p["w1"] = (jax.random.normal(ks[4], (3, 3, cin, cout))
               * jnp.sqrt(2.0 / (9 * cin))).astype(jnp.float32)
    g2 = 1.0 + 0.1 * jax.random.normal(ks[5], (cout,))
    b2 = 0.1 * jax.random.normal(ks[6], (cout,))
    m2 = 0.1 * jax.random.normal(ks[7], (cout,))
    v2 = 1.0 + 0.1 * jnp.abs(jax.random.normal(ks[8], (cout,)))
    p["scale2"], p["shift2"] = _fold_bn(g2, b2, m2, v2)
    p["w2"] = (jax.random.normal(ks[9], (3, 3, cout, cout))
               * jnp.sqrt(2.0 / (9 * cout))).astype(jnp.float32)
    if not p["equal"]:
        p["ws"] = (jax.random.normal(jax.random.fold_in(key, 99), (1, 1, cin, cout))
                   * jnp.sqrt(2.0 / cin)).astype(jnp.float32)
    return p


def init_network_block(key, nb_layers, in_planes, out_planes, stride):
    params = []
    for i in range(int(nb_layers)):
        k = jax.random.fold_in(key, i)
        cin = in_planes if i == 0 else out_planes
        s = stride if i == 0 else 1
        params.append(init_basic_block(k, cin, out_planes, s))
    return params


# ---------------- forward ----------------

def basic_block_forward(x, p, *, compute_dtype=jnp.bfloat16, batch_tile=8):
    """x: NHWC, channels already lane-padded, dtype == compute_dtype."""
    _, _, _, cinp = x.shape
    coutp = _round_up(p["cout"], LANE)
    stride = p["stride"]

    w1 = _pad_axis(_pad_axis(p["w1"], 2, cinp), 3, coutp)
    w2 = _pad_axis(_pad_axis(p["w2"], 2, coutp), 3, coutp)
    s1 = _pad_axis(p["scale1"], 0, cinp)
    t1 = _pad_axis(p["shift1"], 0, cinp)
    s2 = _pad_axis(p["scale2"], 0, coutp)
    t2 = _pad_axis(p["shift2"], 0, coutp)
    ws = None
    if not p["equal"]:
        ws = _pad_axis(_pad_axis(p["ws"], 2, cinp), 3, coutp)[0, 0]

    # BN1 + ReLU hoisted out of the conv kernels: applied once per block (XLA
    # fuses it with the spatial pad / parity stack), so the conv kernels see an
    # already-activated, correctly zero-padded tensor and need no mask.
    a = jnp.maximum(x.astype(jnp.float32) * s1 + t1, 0.0).astype(compute_dtype)

    outs = _conv_bn_call(a, w1, s2, t2, ws, stride=stride, pad=1,
                         batch_tile=batch_tile, compute_dtype=compute_dtype)
    if p["equal"]:
        h, res = outs, x            # identity shortcut (raw input)
    else:
        h, res = outs               # 1x1 strided shortcut (fused into kernel 1)

    return _conv_add_call(h, w2, res, pad=1, batch_tile=batch_tile,
                          compute_dtype=compute_dtype)


def network_block_forward(x_nchw, params, *, compute_dtype=jnp.bfloat16,
                          batch_tile=8):
    orig_dtype = x_nchw.dtype
    x = jnp.transpose(x_nchw, (0, 2, 3, 1))                 # NCHW -> NHWC
    cinp = _round_up(x.shape[-1], LANE)
    x = _pad_axis(x.astype(compute_dtype), 3, cinp)         # lane-pad channels once
    for p in params:
        x = basic_block_forward(x, p, compute_dtype=compute_dtype,
                                batch_tile=batch_tile)
    x = x[..., :params[-1]["cout"]].astype(orig_dtype)
    return jnp.transpose(x, (0, 3, 1, 2))                   # NHWC -> NCHW


# ---------------- pure-JAX reference (for a sanity check) ----------------

def _ref_basic_block(x, p):
    def conv(a, w, stride, pad):
        return jax.lax.conv_general_dilated(
            a, w, (stride, stride), ((pad, pad), (pad, pad)),
            dimension_numbers=("NHWC", "HWIO", "NHWC"))
    a = jnp.maximum(x * p["scale1"] + p["shift1"], 0.0)
    h = conv(a, p["w1"], p["stride"], 1)
    h = jnp.maximum(h * p["scale2"] + p["shift2"], 0.0)
    out = conv(h, p["w2"], 1, 1)
    res = x if p["equal"] else conv(a, p["ws"], p["stride"], 0)
    return out + res


def _ref_forward(x_nchw, params):
    x = jnp.transpose(x_nchw, (0, 2, 3, 1))
    for p in params:
        x = _ref_basic_block(x, p)
    return jnp.transpose(x, (0, 3, 1, 2))


if __name__ == "__main__":
    # NetworkBlock(nb_layers=2, in_planes=4, out_planes=8, block=BasicBlock, stride=2)
    nb_layers, in_planes, out_planes, stride = 2, 4, 8, 2
    x = jax.random.normal(jax.random.PRNGKey(0), (2, in_planes, 16, 16), jnp.float32)
    params = init_network_block(jax.random.PRNGKey(42),
                                nb_layers, in_planes, out_planes, stride)

    fwd = jax.jit(lambda xx: network_block_forward(xx, params))
    y = fwd(x)
    jax.block_until_ready(y)
    assert y.shape == (2, out_planes, 8, 8), y.shape

    # Loose tolerance: kernels run activations/weights in bf16 (f32 accumulation).
    y_ref = _ref_forward(x, params)
    np.testing.assert_allclose(np.asarray(y, np.float32),
                               np.asarray(y_ref, np.float32),
                               rtol=0.1, atol=0.1)
    print("KERNEL_OK")
</pallas_src>

<mosaic_0001>
module attributes {stable_mosaic.version = 11 : i64} {
  func.func @kernel(%arg0: i32, %arg1: i32, %arg2: memref<2x36x9x128xbf16, #tpu.memory_space<vmem>>, %arg3: memref<9x128x128xbf16, #tpu.memory_space<vmem>>, %arg4: memref<1x128xf32, #tpu.memory_space<vmem>>, %arg5: memref<1x128xf32, #tpu.memory_space<vmem>>, %arg6: memref<128x128xbf16, #tpu.memory_space<vmem>>, %arg7: memref<128x128xbf16, #tpu.memory_space<vmem>>, %arg8: memref<128x128xbf16, #tpu.memory_space<vmem>>) attributes {dimension_semantics = [#tpu.dimension_semantics<parallel>, #tpu.dimension_semantics<parallel>], iteration_bounds = array<i64: 1, 1>, scalar_prefetch = 0 : i64, scratch_operands = 0 : i64, tpu.core_type = #tpu.core_type<tc>, window_params = [{transform_indices = @transform_0, window_bounds = array<i64: 2, 36, 9, 128>}, {transform_indices = @transform_1, window_bounds = array<i64: 9, 128, 128>}, {transform_indices = @transform_2, window_bounds = array<i64: 1, 128>}, {transform_indices = @transform_3, window_bounds = array<i64: 1, 128>}, {transform_indices = @transform_4, window_bounds = array<i64: 128, 128>}, {transform_indices = @transform_5, window_bounds = array<i64: 128, 128>}, {transform_indices = @transform_6, window_bounds = array<i64: 128, 128>}]} {
    %cst = arith.constant 0.000000e+00 : f32
    %0 = vector.broadcast %cst : f32 to vector<128x128xf32>
    %c0 = arith.constant 0 : index
    %c0_0 = arith.constant 0 : index
    %c0_1 = arith.constant 0 : index
    %c0_2 = arith.constant 0 : index
    %1 = vector.load %arg2[%c0, %c0_0, %c0_1, %c0_2] : memref<2x36x9x128xbf16, #tpu.memory_space<vmem>>, vector<2x8x8x128xbf16>
    %2 = vector.shape_cast %1 : vector<2x8x8x128xbf16> to vector<128x128xbf16>
    %c0_3 = arith.constant 0 : index
    %c0_4 = arith.constant 0 : index
    %c0_5 = arith.constant 0 : index
    %3 = vector.load %arg3[%c0_3, %c0_4, %c0_5] : memref<9x128x128xbf16, #tpu.memory_space<vmem>>, vector<1x128x128xbf16>
    %4 = vector.shape_cast %3 : vector<1x128x128xbf16> to vector<128x128xbf16>
    %cst_6 = arith.constant dense<0.000000e+00> : vector<128x128xf32>
    %5 = tpu.matmul %2, %4, %cst_6 {dimension_numbers = #tpu.dot_dimension_numbers<[1], [0], [0], [1], [0, 0, 1, 1], [], []>} : vector<128x128xbf16>, vector<128x128xbf16>, vector<128x128xf32> -> vector<128x128xf32>
    %6 = arith.addf %0, %5 : vector<128x128xf32>
    %c0_7 = arith.constant 0 : index
    %c9 = arith.constant 9 : index
    %c0_8 = arith.constant 0 : index
    %c0_9 = arith.constant 0 : index
    %7 = vector.load %arg2[%c0_7, %c9, %c0_8, %c0_9] : memref<2x36x9x128xbf16, #tpu.memory_space<vmem>>, vector<2x8x8x128xbf16>
    %8 = vector.shape_cast %7 : vector<2x8x8x128xbf16> to vector<128x128xbf16>
    %c1 = arith.constant 1 : index
    %c0_10 = arith.constant 0 : index
    %c0_11 = arith.constant 0 : index
    %9 = vector.load %arg3[%c1, %c0_10, %c0_11] : memref<9x128x128xbf16, #tpu.memory_space<vmem>>, vector<1x128x128xbf16>
    %10 = vector.shape_cast %9 : vector<1x128x128xbf16> to vector<128x128xbf16>
    %cst_12 = arith.constant dense<0.000000e+00> : vector<128x128xf32>
    %11 = tpu.matmul %8, %10, %cst_12 {dimension_numbers = #tpu.dot_dimension_numbers<[1], [0], [0], [1], [0, 0, 1, 1], [], []>} : vector<128x128xbf16>, vector<128x128xbf16>, vector<128x128xf32> -> vector<128x128xf32>
    %12 = arith.addf %6, %11 : vector<128x128xf32>
    %c0_13 = arith.constant 0 : index
    %c0_14 = arith.constant 0 : index
    %c1_15 = arith.constant 1 : index
    %c0_16 = arith.constant 0 : index
    %13 = vector.load %arg2[%c0_13, %c0_14, %c1_15, %c0_16] : memref<2x36x9x128xbf16, #tpu.memory_space<vmem>>, vector<2x8x8x128xbf16>
    %14 = vector.shape_cast %13 : vector<2x8x8x128xbf16> to vector<128x128xbf16>
    %c2 = arith.constant 2 : index
    %c0_17 = arith.constant 0 : index
    %c0_18 = arith.constant 0 : index
    %15 = vector.load %arg3[%c2, %c0_17, %c0_18] : memref<9x128x128xbf16, #tpu.memory_space<vmem>>, vector<1x128x128xbf16>
    %16 = vector.shape_cast %15 : vector<1x128x128xbf16> to vector<128x128xbf16>
    %cst_19 = arith.constant dense<0.000000e+00> : vector<128x128xf32>
    %17 = tpu.matmul %14, %16, %cst_19 {dimension_numbers = #tpu.dot_dimension_numbers<[1], [0], [0], [1], [0, 0, 1, 1], [], []>} : vector<128x128xbf16>, vector<128x128xbf16>, vector<128x128xf32> -> vector<128x128xf32>
    %18 = arith.addf %12, %17 : vector<128x128xf32>
    %c0_20 = arith.constant 0 : index
    %c18 = arith.constant 18 : index
    %c0_21 = arith.constant 0 : index
    %c0_22 = arith.constant 0 : index
    %19 = vector.load %arg2[%c0_20, %c18, %c0_21, %c0_22] : memref<2x36x9x128xbf16, #tpu.memory_space<vmem>>, vector<2x8x8x128xbf16>
    %20 = vector.shape_cast %19 : vector<2x8x8x128xbf16> to vector<128x128xbf16>
    %c3 = arith.constant 3 : index
    %c0_23 = arith.constant 0 : index
    %c0_24 = arith.constant 0 : index
    %21 = vector.load %arg3[%c3, %c0_23, %c0_24] : memref<9x128x128xbf16, #tpu.memory_space<vmem>>, vector<1x128x128xbf16>
    %22 = vector.shape_cast %21 : vector<1x128x128xbf16> to vector<128x128xbf16>
    %cst_25 = arith.constant dense<0.000000e+00> : vector<128x128xf32>
    %23 = tpu.matmul %20, %22, %cst_25 {dimension_numbers = #tpu.dot_dimension_numbers<[1], [0], [0], [1], [0, 0, 1, 1], [], []>} : vector<128x128xbf16>, vector<128x128xbf16>, vector<128x128xf32> -> vector<128x128xf32>
    %24 = arith.addf %18, %23 : vector<128x128xf32>
    %c0_26 = arith.constant 0 : index
    %c27 = arith.constant 27 : index
    %c0_27 = arith.constant 0 : index
    %c0_28 = arith.constant 0 : index
    %25 = vector.load %arg2[%c0_26, %c27, %c0_27, %c0_28] : memref<2x36x9x128xbf16, #tpu.memory_space<vmem>>, vector<2x8x8x128xbf16>
    %26 = vector.shape_cast %25 : vector<2x8x8x128xbf16> to vector<128x128xbf16>
    %c4 = arith.constant 4 : index
    %c0_29 = arith.constant 0 : index
    %c0_30 = arith.constant 0 : index
    %27 = vector.load %arg3[%c4, %c0_29, %c0_30] : memref<9x128x128xbf16, #tpu.memory_space<vmem>>, vector<1x128x128xbf16>
    %28 = vector.shape_cast %27 : vector<1x128x128xbf16> to vector<128x128xbf16>
    %cst_31 = arith.constant dense<0.000000e+00> : vector<128x128xf32>
    %29 = tpu.matmul %26, %28, %cst_31 {dimension_numbers = #tpu.dot_dimension_numbers<[1], [0], [0], [1], [0, 0, 1, 1], [], []>} : vector<128x128xbf16>, vector<128x128xbf16>, vector<128x128xf32> -> vector<128x128xf32>
    %30 = arith.addf %24, %29 : vector<128x128xf32>
    %c0_32 = arith.constant 0 : index
    %c0_33 = arith.constant 0 : index
    %31 = vector.load %arg6[%c0_32, %c0_33] : memref<128x128xbf16, #tpu.memory_space<vmem>>, vector<128x128xbf16>
    %cst_34 = arith.constant dense<0.000000e+00> : vector<128x128xf32>
    %32 = tpu.matmul %26, %31, %cst_34 {dimension_numbers = #tpu.dot_dimension_numbers<[1], [0], [0], [1], [0, 0, 1, 1], [], []>} : vector<128x128xbf16>, vector<128x128xbf16>, vector<128x128xf32> -> vector<128x128xf32>
    %33 = arith.truncf %32 : vector<128x128xf32> to vector<128x128xbf16>
    %c0_35 = arith.constant 0 : index
    %c0_36 = arith.constant 0 : index
    %34 = vector.load %arg8[%c0_35, %c0_36] : memref<128x128xbf16, #tpu.memory_space<vmem>>, vector<128x128xbf16>
    tpu.vector_store %arg8[%c0_35, %c0_36], %33 {strides = array<i32>} : memref<128x128xbf16, #tpu.memory_space<vmem>>, vector<128x128xbf16>,
    %c0_37 = arith.constant 0 : index
    %c18_38 = arith.constant 18 : index
    %c1_39 = arith.constant 1 : index
    %c0_40 = arith.constant 0 : index
    %35 = vector.load %arg2[%c0_37, %c18_38, %c1_39, %c0_40] : memref<2x36x9x128xbf16, #tpu.memory_space<vmem>>, vector<2x8x8x128xbf16>
    %36 = vector.shape_cast %35 : vector<2x8x8x128xbf16> to vector<128x128xbf16>
    %c5 = arith.constant 5 : index
    %c0_41 = arith.constant 0 : index
    %c0_42 = arith.constant 0 : index
    %37 = vector.load %arg3[%c5, %c0_41, %c0_42] : memref<9x128x128xbf16, #tpu.memory_space<vmem>>, vector<1x128x128xbf16>
    %38 = vector.shape_cast %37 : vector<1x128x128xbf16> to vector<128x128xbf16>
    %cst_43 = arith.constant dense<0.000000e+00> : vector<128x128xf32>
    %39 = tpu.matmul %36, %38, %cst_43 {dimension_numbers = #tpu.dot_dimension_numbers<[1], [0], [0], [1], [0, 0, 1, 1], [], []>} : vector<128x128xbf16>, vector<128x128xbf16>, vector<128x128xf32> -> vector<128x128xf32>
    %40 = arith.addf %30, %39 : vector<128x128xf32>
    %c0_44 = arith.constant 0 : index
    %c1_45 = arith.constant 1 : index
    %c0_46 = arith.constant 0 : index
    %c0_47 = arith.constant 0 : index
    %41 = vector.load %arg2[%c0_44, %c1_45, %c0_46, %c0_47] : memref<2x36x9x128xbf16, #tpu.memory_space<vmem>>, vector<2x8x8x128xbf16>
    %42 = vector.shape_cast %41 : vector<2x8x8x128xbf16> to vector<128x128xbf16>
    %c6 = arith.constant 6 : index
    %c0_48 = arith.constant 0 : index
    %c0_49 = arith.constant 0 : index
    %43 = vector.load %arg3[%c6, %c0_48, %c0_49] : memref<9x128x128xbf16, #tpu.memory_space<vmem>>, vector<1x128x128xbf16>
    %44 = vector.shape_cast %43 : vector<1x128x128xbf16> to vector<128x128xbf16>
    %cst_50 = arith.constant dense<0.000000e+00> : vector<128x128xf32>
    %45 = tpu.matmul %42, %44, %cst_50 {dimension_numbers = #tpu.dot_dimension_numbers<[1], [0], [0], [1], [0, 0, 1, 1], [], []>} : vector<128x128xbf16>, vector<128x128xbf16>, vector<128x128xf32> -> vector<128x128xf32>
    %46 = arith.addf %40, %45 : vector<128x128xf32>
    %c0_51 = arith.constant 0 : index
    %c10 = arith.constant 10 : index
    %c0_52 = arith.constant 0 : index
    %c0_53 = arith.constant 0 : index
    %47 = vector.load %arg2[%c0_51, %c10, %c0_52, %c0_53] : memref<2x36x9x128xbf16, #tpu.memory_space<vmem>>, vector<2x8x8x128xbf16>
    %48 = vector.shape_cast %47 : vector<2x8x8x128xbf16> to vector<128x128xbf16>
    %c7 = arith.constant 7 : index
    %c0_54 = arith.constant 0 : index
    %c0_55 = arith.constant 0 : index
    %49 = vector.load %arg3[%c7, %c0_54, %c0_55] : memref<9x128x128xbf16, #tpu.memory_space<vmem>>, vector<1x128x128xbf16>
    %50 = vector.shape_cast %49 : vector<1x128x128xbf16> to vector<128x128xbf16>
    %cst_56 = arith.constant dense<0.000000e+00> : vector<128x128xf32>
    %51 = tpu.matmul %48, %50, %cst_56 {dimension_numbers = #tpu.dot_dimension_numbers<[1], [0], [0], [1], [0, 0, 1, 1], [], []>} : vector<128x128xbf16>, vector<128x128xbf16>, vector<128x128xf32> -> vector<128x128xf32>
    %52 = arith.addf %46, %51 : vector<128x128xf32>
    %c0_57 = arith.constant 0 : index
    %c1_58 = arith.constant 1 : index
    %c1_59 = arith.constant 1 : index
    %c0_60 = arith.constant 0 : index
    %53 = vector.load %arg2[%c0_57, %c1_58, %c1_59, %c0_60] : memref<2x36x9x128xbf16, #tpu.memory_space<vmem>>, vector<2x8x8x128xbf16>
    %54 = vector.shape_cast %53 : vector<2x8x8x128xbf16> to vector<128x128xbf16>
    %c8 = arith.constant 8 : index
    %c0_61 = arith.constant 0 : index
    %c0_62 = arith.constant 0 : index
    %55 = vector.load %arg3[%c8, %c0_61, %c0_62] : memref<9x128x128xbf16, #tpu.memory_space<vmem>>, vector<1x128x128xbf16>
    %56 = vector.shape_cast %55 : vector<1x128x128xbf16> to vector<128x128xbf16>
    %cst_63 = arith.constant dense<0.000000e+00> : vector<128x128xf32>
    %57 = tpu.matmul %54, %56, %cst_63 {dimension_numbers = #tpu.dot_dimension_numbers<[1], [0], [0], [1], [0, 0, 1, 1], [], []>} : vector<128x128xbf16>, vector<128x128xbf16>, vector<128x128xf32> -> vector<128x128xf32>
    %58 = arith.addf %52, %57 : vector<128x128xf32>
    %c0_64 = arith.constant 0 : index
    %c0_65 = arith.constant 0 : index
    %59 = vector.load %arg4[%c0_64, %c0_65] : memref<1x128xf32, #tpu.memory_space<vmem>>, vector<1x128xf32>
    %60 = vector.broadcast %59 : vector<1x128xf32> to vector<128x128xf32>
    %61 = arith.mulf %58, %60 : vector<128x128xf32>
    %c0_66 = arith.constant 0 : index
    %c0_67 = arith.constant 0 : index
    %62 = vector.load %arg5[%c0_66, %c0_67] : memref<1x128xf32, #tpu.memory_space<vmem>>, vector<1x128xf32>
    %63 = vector.broadcast %62 : vector<1x128xf32> to vector<128x128xf32>
    %64 = arith.addf %61, %63 : vector<128x128xf32>
    %cst_68 = arith.constant 0.000000e+00 : f32
    %65 = vector.broadcast %cst_68 : f32 to vector<128x128xf32>
    %66 = arith.maximumf %64, %65 : vector<128x128xf32>
    %67 = arith.truncf %66 : vector<128x128xf32> to vector<128x128xbf16>
    %c0_69 = arith.constant 0 : index
    %c0_70 = arith.constant 0 : index
    %68 = vector.load %arg7[%c0_69, %c0_70] : memref<128x128xbf16, #tpu.memory_space<vmem>>, vector<128x128xbf16>
    tpu.vector_store %arg7[%c0_69, %c0_70], %67 {strides = array<i32>} : memref<128x128xbf16, #tpu.memory_space<vmem>>, vector<128x128xbf16>,
    return
  }
  func.func @transform_0(%arg0: i32, %arg1: i32) -> (i32, i32, i32, i32) {
    %c0_i32 = arith.constant 0 : i32
    %c0_i32_0 = arith.constant 0 : i32
    %c0_i32_1 = arith.constant 0 : i32
    %c0_i32_2 = arith.constant 0 : i32
    return %arg0, %c0_i32, %c0_i32_0, %c0_i32_1 : i32, i32, i32, i32
  }
  func.func @transform_1(%arg0: i32, %arg1: i32) -> (i32, i32, i32) {
    %c0_i32 = arith.constant 0 : i32
    %c0_i32_0 = arith.constant 0 : i32
    %c0_i32_1 = arith.constant 0 : i32
    return %c0_i32, %c0_i32_0, %arg1 : i32, i32, i32
  }
  func.func @transform_2(%arg0: i32, %arg1: i32) -> (i32, i32) {
    %c0_i32 = arith.constant 0 : i32
    %c0_i32_0 = arith.constant 0 : i32
    return %c0_i32, %arg1 : i32, i32
  }
  func.func @transform_3(%arg0: i32, %arg1: i32) -> (i32, i32) {
    %c0_i32 = arith.constant 0 : i32
    %c0_i32_0 = arith.constant 0 : i32
    return %c0_i32, %arg1 : i32, i32
  }
  func.func @transform_4(%arg0: i32, %arg1: i32) -> (i32, i32) {
    %c0_i32 = arith.constant 0 : i32
    %c0_i32_0 = arith.constant 0 : i32
    return %c0_i32, %arg1 : i32, i32
  }
  func.func @transform_5(%arg0: i32, %arg1: i32) -> (i32, i32) {
    %c0_i32 = arith.constant 0 : i32
    return %arg0, %arg1 : i32, i32
  }
  func.func @transform_6(%arg0: i32, %arg1: i32) -> (i32, i32) {
    %c0_i32 = arith.constant 0 : i32
    return %arg0, %arg1 : i32, i32
  }
}

module attributes {stable_mosaic.version = 11 : i64} {
  func.func @kernel(%arg0: i32, %arg1: i32, %arg2: memref<2x10x10x128xbf16, #tpu.memory_space<vmem>>, %arg3: memref<9x128x128xbf16, #tpu.memory_space<vmem>>, %arg4: memref<128x128xbf16, #tpu.memory_space<vmem>>, %arg5: memref<128x128xbf16, #tpu.memory_space<vmem>>) attributes {dimension_semantics = [#tpu.dimension_semantics<parallel>, #tpu.dimension_semantics<parallel>], iteration_bounds = array<i64: 1, 1>, scalar_prefetch = 0 : i64, scratch_operands = 0 : i64, tpu.core_type = #tpu.core_type<tc>, window_params = [{transform_indices = @transform_0, window_bounds = array<i64: 2, 10, 10, 128>}, {transform_indices = @transform_1, window_bounds = array<i64: 9, 128, 128>}, {transform_indices = @transform_2, window_bounds = array<i64: 128, 128>}, {transform_indices = @transform_3, window_bounds = array<i64: 128, 128>}]} {
    %cst = arith.constant 0.000000e+00 : f32
    %0 = vector.broadcast %cst : f32 to vector<128x128xf32>
    %c0 = arith.constant 0 : index
    %c0_0 = arith.constant 0 : index
    %c0_1 = arith.constant 0 : index
    %c0_2 = arith.constant 0 : index
    %1 = vector.load %arg2[%c0, %c0_0, %c0_1, %c0_2] : memref<2x10x10x128xbf16, #tpu.memory_space<vmem>>, vector<2x8x8x128xbf16>
    %2 = vector.shape_cast %1 : vector<2x8x8x128xbf16> to vector<128x128xbf16>
    %c0_3 = arith.constant 0 : index
    %c0_4 = arith.constant 0 : index
    %c0_5 = arith.constant 0 : index
    %3 = vector.load %arg3[%c0_3, %c0_4, %c0_5] : memref<9x128x128xbf16, #tpu.memory_space<vmem>>, vector<1x128x128xbf16>
    %4 = vector.shape_cast %3 : vector<1x128x128xbf16> to vector<128x128xbf16>
    %cst_6 = arith.constant dense<0.000000e+00> : vector<128x128xf32>
    %5 = tpu.matmul %2, %4, %cst_6 {dimension_numbers = #tpu.dot_dimension_numbers<[1], [0], [0], [1], [0, 0, 1, 1], [], []>} : vector<128x128xbf16>, vector<128x128xbf16>, vector<128x128xf32> -> vector<128x128xf32>
    %6 = arith.addf %0, %5 : vector<128x128xf32>
    %c0_7 = arith.constant 0 : index
    %c0_8 = arith.constant 0 : index
    %c1 = arith.constant 1 : index
    %c0_9 = arith.constant 0 : index
    %7 = vector.load %arg2[%c0_7, %c0_8, %c1, %c0_9] : memref<2x10x10x128xbf16, #tpu.memory_space<vmem>>, vector<2x8x8x128xbf16>
    %8 = vector.shape_cast %7 : vector<2x8x8x128xbf16> to vector<128x128xbf16>
    %c1_10 = arith.constant 1 : index
    %c0_11 = arith.constant 0 : index
    %c0_12 = arith.constant 0 : index
    %9 = vector.load %arg3[%c1_10, %c0_11, %c0_12] : memref<9x128x128xbf16, #tpu.memory_space<vmem>>, vector<1x128x128xbf16>
    %10 = vector.shape_cast %9 : vector<1x128x128xbf16> to vector<128x128xbf16>
    %cst_13 = arith.constant dense<0.000000e+00> : vector<128x128xf32>
    %11 = tpu.matmul %8, %10, %cst_13 {dimension_numbers = #tpu.dot_dimension_numbers<[1], [0], [0], [1], [0, 0, 1, 1], [], []>} : vector<128x128xbf16>, vector<128x128xbf16>, vector<128x128xf32> -> vector<128x128xf32>
    %12 = arith.addf %6, %11 : vector<128x128xf32>
    %c0_14 = arith.constant 0 : index
    %c0_15 = arith.constant 0 : index
    %c2 = arith.constant 2 : index
    %c0_16 = arith.constant 0 : index
    %13 = vector.load %arg2[%c0_14, %c0_15, %c2, %c0_16] : memref<2x10x10x128xbf16, #tpu.memory_space<vmem>>, vector<2x8x8x128xbf16>
    %14 = vector.shape_cast %13 : vector<2x8x8x128xbf16> to vector<128x128xbf16>
    %c2_17 = arith.constant 2 : index
    %c0_18 = arith.constant 0 : index
    %c0_19 = arith.constant 0 : index
    %15 = vector.load %arg3[%c2_17, %c0_18, %c0_19] : memref<9x128x128xbf16, #tpu.memory_space<vmem>>, vector<1x128x128xbf16>
    %16 = vector.shape_cast %15 : vector<1x128x128xbf16> to vector<128x128xbf16>
    %cst_20 = arith.constant dense<0.000000e+00> : vector<128x128xf32>
    %17 = tpu.matmul %14, %16, %cst_20 {dimension_numbers = #tpu.dot_dimension_numbers<[1], [0], [0], [1], [0, 0, 1, 1], [], []>} : vector<128x128xbf16>, vector<128x128xbf16>, vector<128x128xf32> -> vector<128x128xf32>
    %18 = arith.addf %12, %17 : vector<128x128xf32>
    %c0_21 = arith.constant 0 : index
    %c1_22 = arith.constant 1 : index
    %c0_23 = arith.constant 0 : index
    %c0_24 = arith.constant 0 : index
    %19 = vector.load %arg2[%c0_21, %c1_22, %c0_23, %c0_24] : memref<2x10x10x128xbf16, #tpu.memory_space<vmem>>, vector<2x8x8x128xbf16>
    %20 = vector.shape_cast %19 : vector<2x8x8x128xbf16> to vector<128x128xbf16>
    %c3 = arith.constant 3 : index
    %c0_25 = arith.constant 0 : index
    %c0_26 = arith.constant 0 : index
    %21 = vector.load %arg3[%c3, %c0_25, %c0_26] : memref<9x128x128xbf16, #tpu.memory_space<vmem>>, vector<1x128x128xbf16>
    %22 = vector.shape_cast %21 : vector<1x128x128xbf16> to vector<128x128xbf16>
    %cst_27 = arith.constant dense<0.000000e+00> : vector<128x128xf32>
    %23 = tpu.matmul %20, %22, %cst_27 {dimension_numbers = #tpu.dot_dimension_numbers<[1], [0], [0], [1], [0, 0, 1, 1], [], []>} : vector<128x128xbf16>, vector<128x128xbf16>, vector<128x128xf32> -> vector<128x128xf32>
    %24 = arith.addf %18, %23 : vector<128x128xf32>
    %c0_28 = arith.constant 0 : index
    %c1_29 = arith.constant 1 : index
    %c1_30 = arith.constant 1 : index
    %c0_31 = arith.constant 0 : index
    %25 = vector.load %arg2[%c0_28, %c1_29, %c1_30, %c0_31] : memref<2x10x10x128xbf16, #tpu.memory_space<vmem>>, vector<2x8x8x128xbf16>
    %26 = vector.shape_cast %25 : vector<2x8x8x128xbf16> to vector<128x128xbf16>
    %c4 = arith.constant 4 : index
    %c0_32 = arith.constant 0 : index
    %c0_33 = arith.constant 0 : index
    %27 = vector.load %arg3[%c4, %c0_32, %c0_33] : memref<9x128x128xbf16, #tpu.memory_space<vmem>>, vector<1x128x128xbf16>
    %28 = vector.shape_cast %27 : vector<1x128x128xbf16> to vector<128x128xbf16>
    %cst_34 = arith.constant dense<0.000000e+00> : vector<128x128xf32>
    %29 = tpu.matmul %26, %28, %cst_34 {dimension_numbers = #tpu.dot_dimension_numbers<[1], [0], [0], [1], [0, 0, 1, 1], [], []>} : vector<128x128xbf16>, vector<128x128xbf16>, vector<128x128xf32> -> vector<128x128xf32>
    %30 = arith.addf %24, %29 : vector<128x128xf32>
    %c0_35 = arith.constant 0 : index
    %c1_36 = arith.constant 1 : index
    %c2_37 = arith.constant 2 : index
    %c0_38 = arith.constant 0 : index
    %31 = vector.load %arg2[%c0_35, %c1_36, %c2_37, %c0_38] : memref<2x10x10x128xbf16, #tpu.memory_space<vmem>>, vector<2x8x8x128xbf16>
    %32 = vector.shape_cast %31 : vector<2x8x8x128xbf16> to vector<128x128xbf16>
    %c5 = arith.constant 5 : index
    %c0_39 = arith.constant 0 : index
    %c0_40 = arith.constant 0 : index
    %33 = vector.load %arg3[%c5, %c0_39, %c0_40] : memref<9x128x128xbf16, #tpu.memory_space<vmem>>, vector<1x128x128xbf16>
    %34 = vector.shape_cast %33 : vector<1x128x128xbf16> to vector<128x128xbf16>
    %cst_41 = arith.constant dense<0.000000e+00> : vector<128x128xf32>
    %35 = tpu.matmul %32, %34, %cst_41 {dimension_numbers = #tpu.dot_dimension_numbers<[1], [0], [0], [1], [0, 0, 1, 1], [], []>} : vector<128x128xbf16>, vector<128x128xbf16>, vector<128x128xf32> -> vector<128x128xf32>
    %36 = arith.addf %30, %35 : vector<128x128xf32>
    %c0_42 = arith.constant 0 : index
    %c2_43 = arith.constant 2 : index
    %c0_44 = arith.constant 0 : index
    %c0_45 = arith.constant 0 : index
    %37 = vector.load %arg2[%c0_42, %c2_43, %c0_44, %c0_45] : memref<2x10x10x128xbf16, #tpu.memory_space<vmem>>, vector<2x8x8x128xbf16>
    %38 = vector.shape_cast %37 : vector<2x8x8x128xbf16> to vector<128x128xbf16>
    %c6 = arith.constant 6 : index
    %c0_46 = arith.constant 0 : index
    %c0_47 = arith.constant 0 : index
    %39 = vector.load %arg3[%c6, %c0_46, %c0_47] : memref<9x128x128xbf16, #tpu.memory_space<vmem>>, vector<1x128x128xbf16>
    %40 = vector.shape_cast %39 : vector<1x128x128xbf16> to vector<128x128xbf16>
    %cst_48 = arith.constant dense<0.000000e+00> : vector<128x128xf32>
    %41 = tpu.matmul %38, %40, %cst_48 {dimension_numbers = #tpu.dot_dimension_numbers<[1], [0], [0], [1], [0, 0, 1, 1], [], []>} : vector<128x128xbf16>, vector<128x128xbf16>, vector<128x128xf32> -> vector<128x128xf32>
    %42 = arith.addf %36, %41 : vector<128x128xf32>
    %c0_49 = arith.constant 0 : index
    %c2_50 = arith.constant 2 : index
    %c1_51 = arith.constant 1 : index
    %c0_52 = arith.constant 0 : index
    %43 = vector.load %arg2[%c0_49, %c2_50, %c1_51, %c0_52] : memref<2x10x10x128xbf16, #tpu.memory_space<vmem>>, vector<2x8x8x128xbf16>
    %44 = vector.shape_cast %43 : vector<2x8x8x128xbf16> to vector<128x128xbf16>
    %c7 = arith.constant 7 : index
    %c0_53 = arith.constant 0 : index
    %c0_54 = arith.constant 0 : index
    %45 = vector.load %arg3[%c7, %c0_53, %c0_54] : memref<9x128x128xbf16, #tpu.memory_space<vmem>>, vector<1x128x128xbf16>
    %46 = vector.shape_cast %45 : vector<1x128x128xbf16> to vector<128x128xbf16>
    %cst_55 = arith.constant dense<0.000000e+00> : vector<128x128xf32>
    %47 = tpu.matmul %44, %46, %cst_55 {dimension_numbers = #tpu.dot_dimension_numbers<[1], [0], [0], [1], [0, 0, 1, 1], [], []>} : vector<128x128xbf16>, vector<128x128xbf16>, vector<128x128xf32> -> vector<128x128xf32>
    %48 = arith.addf %42, %47 : vector<128x128xf32>
    %c0_56 = arith.constant 0 : index
    %c2_57 = arith.constant 2 : index
    %c2_58 = arith.constant 2 : index
    %c0_59 = arith.constant 0 : index
    %49 = vector.load %arg2[%c0_56, %c2_57, %c2_58, %c0_59] : memref<2x10x10x128xbf16, #tpu.memory_space<vmem>>, vector<2x8x8x128xbf16>
    %50 = vector.shape_cast %49 : vector<2x8x8x128xbf16> to vector<128x128xbf16>
    %c8 = arith.constant 8 : index
    %c0_60 = arith.constant 0 : index
    %c0_61 = arith.constant 0 : index
    %51 = vector.load %arg3[%c8, %c0_60, %c0_61] : memref<9x128x128xbf16, #tpu.memory_space<vmem>>, vector<1x128x128xbf16>
    %52 = vector.shape_cast %51 : vector<1x128x128xbf16> to vector<128x128xbf16>
    %cst_62 = arith.constant dense<0.000000e+00> : vector<128x128xf32>
    %53 = tpu.matmul %50, %52, %cst_62 {dimension_numbers = #tpu.dot_dimension_numbers<[1], [0], [0], [1], [0, 0, 1, 1], [], []>} : vector<128x128xbf16>, vector<128x128xbf16>, vector<128x128xf32> -> vector<128x128xf32>
    %54 = arith.addf %48, %53 : vector<128x128xf32>
    %c0_63 = arith.constant 0 : index
    %c0_64 = arith.constant 0 : index
    %55 = vector.load %arg4[%c0_63, %c0_64] : memref<128x128xbf16, #tpu.memory_space<vmem>>, vector<128x128xbf16>
    %56 = arith.extf %55 : vector<128x128xbf16> to vector<128x128xf32>
    %57 = arith.addf %54, %56 : vector<128x128xf32>
    %58 = arith.truncf %57 : vector<128x128xf32> to vector<128x128xbf16>
    %c0_65 = arith.constant 0 : index
    %c0_66 = arith.constant 0 : index
    %59 = vector.load %arg5[%c0_65, %c0_66] : memref<128x128xbf16, #tpu.memory_space<vmem>>, vector<128x128xbf16>
    tpu.vector_store %arg5[%c0_65, %c0_66], %58 {strides = array<i32>} : memref<128x128xbf16, #tpu.memory_space<vmem>>, vector<128x128xbf16>,
    return
  }
  func.func @transform_0(%arg0: i32, %arg1: i32) -> (i32, i32, i32, i32) {
    %c0_i32 = arith.constant 0 : i32
    %c0_i32_0 = arith.constant 0 : i32
    %c0_i32_1 = arith.constant 0 : i32
    %c0_i32_2 = arith.constant 0 : i32
    return %arg0, %c0_i32, %c0_i32_0, %c0_i32_1 : i32, i32, i32, i32
  }
  func.func @transform_1(%arg0: i32, %arg1: i32) -> (i32, i32, i32) {
    %c0_i32 = arith.constant 0 : i32
    %c0_i32_0 = arith.constant 0 : i32
    %c0_i32_1 = arith.constant 0 : i32
    return %c0_i32, %c0_i32_0, %arg1 : i32, i32, i32
  }
  func.func @transform_2(%arg0: i32, %arg1: i32) -> (i32, i32) {
    %c0_i32 = arith.constant 0 : i32
    return %arg0, %arg1 : i32, i32
  }
  func.func @transform_3(%arg0: i32, %arg1: i32) -> (i32, i32) {
    %c0_i32 = arith.constant 0 : i32
    return %arg0, %arg1 : i32, i32
  }
}

module attributes {stable_mosaic.version = 11 : i64} {
  func.func @kernel(%arg0: i32, %arg1: i32, %arg2: memref<2x10x10x128xbf16, #tpu.memory_space<vmem>>, %arg3: memref<9x128x128xbf16, #tpu.memory_space<vmem>>, %arg4: memref<1x128xf32, #tpu.memory_space<vmem>>, %arg5: memref<1x128xf32, #tpu.memory_space<vmem>>, %arg6: memref<128x128xbf16, #tpu.memory_space<vmem>>) attributes {dimension_semantics = [#tpu.dimension_semantics<parallel>, #tpu.dimension_semantics<parallel>], iteration_bounds = array<i64: 1, 1>, scalar_prefetch = 0 : i64, scratch_operands = 0 : i64, tpu.core_type = #tpu.core_type<tc>, window_params = [{transform_indices = @transform_0, window_bounds = array<i64: 2, 10, 10, 128>}, {transform_indices = @transform_1, window_bounds = array<i64: 9, 128, 128>}, {transform_indices = @transform_2, window_bounds = array<i64: 1, 128>}, {transform_indices = @transform_3, window_bounds = array<i64: 1, 128>}, {transform_indices = @transform_4, window_bounds = array<i64: 128, 128>}]} {
    %cst = arith.constant 0.000000e+00 : f32
    %0 = vector.broadcast %cst : f32 to vector<128x128xf32>
    %c0 = arith.constant 0 : index
    %c0_0 = arith.constant 0 : index
    %c0_1 = arith.constant 0 : index
    %c0_2 = arith.constant 0 : index
    %1 = vector.load %arg2[%c0, %c0_0, %c0_1, %c0_2] : memref<2x10x10x128xbf16, #tpu.memory_space<vmem>>, vector<2x8x8x128xbf16>
    %2 = vector.shape_cast %1 : vector<2x8x8x128xbf16> to vector<128x128xbf16>
    %c0_3 = arith.constant 0 : index
    %c0_4 = arith.constant 0 : index
    %c0_5 = arith.constant 0 : index
    %3 = vector.load %arg3[%c0_3, %c0_4, %c0_5] : memref<9x128x128xbf16, #tpu.memory_space<vmem>>, vector<1x128x128xbf16>
    %4 = vector.shape_cast %3 : vector<1x128x128xbf16> to vector<128x128xbf16>
    %cst_6 = arith.constant dense<0.000000e+00> : vector<128x128xf32>
    %5 = tpu.matmul %2, %4, %cst_6 {dimension_numbers = #tpu.dot_dimension_numbers<[1], [0], [0], [1], [0, 0, 1, 1], [], []>} : vector<128x128xbf16>, vector<128x128xbf16>, vector<128x128xf32> -> vector<128x128xf32>
    %6 = arith.addf %0, %5 : vector<128x128xf32>
    %c0_7 = arith.constant 0 : index
    %c0_8 = arith.constant 0 : index
    %c1 = arith.constant 1 : index
    %c0_9 = arith.constant 0 : index
    %7 = vector.load %arg2[%c0_7, %c0_8, %c1, %c0_9] : memref<2x10x10x128xbf16, #tpu.memory_space<vmem>>, vector<2x8x8x128xbf16>
    %8 = vector.shape_cast %7 : vector<2x8x8x128xbf16> to vector<128x128xbf16>
    %c1_10 = arith.constant 1 : index
    %c0_11 = arith.constant 0 : index
    %c0_12 = arith.constant 0 : index
    %9 = vector.load %arg3[%c1_10, %c0_11, %c0_12] : memref<9x128x128xbf16, #tpu.memory_space<vmem>>, vector<1x128x128xbf16>
    %10 = vector.shape_cast %9 : vector<1x128x128xbf16> to vector<128x128xbf16>
    %cst_13 = arith.constant dense<0.000000e+00> : vector<128x128xf32>
    %11 = tpu.matmul %8, %10, %cst_13 {dimension_numbers = #tpu.dot_dimension_numbers<[1], [0], [0], [1], [0, 0, 1, 1], [], []>} : vector<128x128xbf16>, vector<128x128xbf16>, vector<128x128xf32> -> vector<128x128xf32>
    %12 = arith.addf %6, %11 : vector<128x128xf32>
    %c0_14 = arith.constant 0 : index
    %c0_15 = arith.constant 0 : index
    %c2 = arith.constant 2 : index
    %c0_16 = arith.constant 0 : index
    %13 = vector.load %arg2[%c0_14, %c0_15, %c2, %c0_16] : memref<2x10x10x128xbf16, #tpu.memory_space<vmem>>, vector<2x8x8x128xbf16>
    %14 = vector.shape_cast %13 : vector<2x8x8x128xbf16> to vector<128x128xbf16>
    %c2_17 = arith.constant 2 : index
    %c0_18 = arith.constant 0 : index
    %c0_19 = arith.constant 0 : index
    %15 = vector.load %arg3[%c2_17, %c0_18, %c0_19] : memref<9x128x128xbf16, #tpu.memory_space<vmem>>, vector<1x128x128xbf16>
    %16 = vector.shape_cast %15 : vector<1x128x128xbf16> to vector<128x128xbf16>
    %cst_20 = arith.constant dense<0.000000e+00> : vector<128x128xf32>
    %17 = tpu.matmul %14, %16, %cst_20 {dimension_numbers = #tpu.dot_dimension_numbers<[1], [0], [0], [1], [0, 0, 1, 1], [], []>} : vector<128x128xbf16>, vector<128x128xbf16>, vector<128x128xf32> -> vector<128x128xf32>
    %18 = arith.addf %12, %17 : vector<128x128xf32>
    %c0_21 = arith.constant 0 : index
    %c1_22 = arith.constant 1 : index
    %c0_23 = arith.constant 0 : index
    %c0_24 = arith.constant 0 : index
    %19 = vector.load %arg2[%c0_21, %c1_22, %c0_23, %c0_24] : memref<2x10x10x128xbf16, #tpu.memory_space<vmem>>, vector<2x8x8x128xbf16>
    %20 = vector.shape_cast %19 : vector<2x8x8x128xbf16> to vector<128x128xbf16>
    %c3 = arith.constant 3 : index
    %c0_25 = arith.constant 0 : index
    %c0_26 = arith.constant 0 : index
    %21 = vector.load %arg3[%c3, %c0_25, %c0_26] : memref<9x128x128xbf16, #tpu.memory_space<vmem>>, vector<1x128x128xbf16>
    %22 = vector.shape_cast %21 : vector<1x128x128xbf16> to vector<128x128xbf16>
    %cst_27 = arith.constant dense<0.000000e+00> : vector<128x128xf32>
    %23 = tpu.matmul %20, %22, %cst_27 {dimension_numbers = #tpu.dot_dimension_numbers<[1], [0], [0], [1], [0, 0, 1, 1], [], []>} : vector<128x128xbf16>, vector<128x128xbf16>, vector<128x128xf32> -> vector<128x128xf32>
    %24 = arith.addf %18, %23 : vector<128x128xf32>
    %c0_28 = arith.constant 0 : index
    %c1_29 = arith.constant 1 : index
    %c1_30 = arith.constant 1 : index
    %c0_31 = arith.constant 0 : index
    %25 = vector.load %arg2[%c0_28, %c1_29, %c1_30, %c0_31] : memref<2x10x10x128xbf16, #tpu.memory_space<vmem>>, vector<2x8x8x128xbf16>
    %26 = vector.shape_cast %25 : vector<2x8x8x128xbf16> to vector<128x128xbf16>
    %c4 = arith.constant 4 : index
    %c0_32 = arith.constant 0 : index
    %c0_33 = arith.constant 0 : index
    %27 = vector.load %arg3[%c4, %c0_32, %c0_33] : memref<9x128x128xbf16, #tpu.memory_space<vmem>>, vector<1x128x128xbf16>
    %28 = vector.shape_cast %27 : vector<1x128x128xbf16> to vector<128x128xbf16>
    %cst_34 = arith.constant dense<0.000000e+00> : vector<128x128xf32>
    %29 = tpu.matmul %26, %28, %cst_34 {dimension_numbers = #tpu.dot_dimension_numbers<[1], [0], [0], [1], [0, 0, 1, 1], [], []>} : vector<128x128xbf16>, vector<128x128xbf16>, vector<128x128xf32> -> vector<128x128xf32>
    %30 = arith.addf %24, %29 : vector<128x128xf32>
    %c0_35 = arith.constant 0 : index
    %c1_36 = arith.constant 1 : index
    %c2_37 = arith.constant 2 : index
    %c0_38 = arith.constant 0 : index
    %31 = vector.load %arg2[%c0_35, %c1_36, %c2_37, %c0_38] : memref<2x10x10x128xbf16, #tpu.memory_space<vmem>>, vector<2x8x8x128xbf16>
    %32 = vector.shape_cast %31 : vector<2x8x8x128xbf16> to vector<128x128xbf16>
    %c5 = arith.constant 5 : index
    %c0_39 = arith.constant 0 : index
    %c0_40 = arith.constant 0 : index
    %33 = vector.load %arg3[%c5, %c0_39, %c0_40] : memref<9x128x128xbf16, #tpu.memory_space<vmem>>, vector<1x128x128xbf16>
    %34 = vector.shape_cast %33 : vector<1x128x128xbf16> to vector<128x128xbf16>
    %cst_41 = arith.constant dense<0.000000e+00> : vector<128x128xf32>
    %35 = tpu.matmul %32, %34, %cst_41 {dimension_numbers = #tpu.dot_dimension_numbers<[1], [0], [0], [1], [0, 0, 1, 1], [], []>} : vector<128x128xbf16>, vector<128x128xbf16>, vector<128x128xf32> -> vector<128x128xf32>
    %36 = arith.addf %30, %35 : vector<128x128xf32>
    %c0_42 = arith.constant 0 : index
    %c2_43 = arith.constant 2 : index
    %c0_44 = arith.constant 0 : index
    %c0_45 = arith.constant 0 : index
    %37 = vector.load %arg2[%c0_42, %c2_43, %c0_44, %c0_45] : memref<2x10x10x128xbf16, #tpu.memory_space<vmem>>, vector<2x8x8x128xbf16>
    %38 = vector.shape_cast %37 : vector<2x8x8x128xbf16> to vector<128x128xbf16>
    %c6 = arith.constant 6 : index
    %c0_46 = arith.constant 0 : index
    %c0_47 = arith.constant 0 : index
    %39 = vector.load %arg3[%c6, %c0_46, %c0_47] : memref<9x128x128xbf16, #tpu.memory_space<vmem>>, vector<1x128x128xbf16>
    %40 = vector.shape_cast %39 : vector<1x128x128xbf16> to vector<128x128xbf16>
    %cst_48 = arith.constant dense<0.000000e+00> : vector<128x128xf32>
    %41 = tpu.matmul %38, %40, %cst_48 {dimension_numbers = #tpu.dot_dimension_numbers<[1], [0], [0], [1], [0, 0, 1, 1], [], []>} : vector<128x128xbf16>, vector<128x128xbf16>, vector<128x128xf32> -> vector<128x128xf32>
    %42 = arith.addf %36, %41 : vector<128x128xf32>
    %c0_49 = arith.constant 0 : index
    %c2_50 = arith.constant 2 : index
    %c1_51 = arith.constant 1 : index
    %c0_52 = arith.constant 0 : index
    %43 = vector.load %arg2[%c0_49, %c2_50, %c1_51, %c0_52] : memref<2x10x10x128xbf16, #tpu.memory_space<vmem>>, vector<2x8x8x128xbf16>
    %44 = vector.shape_cast %43 : vector<2x8x8x128xbf16> to vector<128x128xbf16>
    %c7 = arith.constant 7 : index
    %c0_53 = arith.constant 0 : index
    %c0_54 = arith.constant 0 : index
    %45 = vector.load %arg3[%c7, %c0_53, %c0_54] : memref<9x128x128xbf16, #tpu.memory_space<vmem>>, vector<1x128x128xbf16>
    %46 = vector.shape_cast %45 : vector<1x128x128xbf16> to vector<128x128xbf16>
    %cst_55 = arith.constant dense<0.000000e+00> : vector<128x128xf32>
    %47 = tpu.matmul %44, %46, %cst_55 {dimension_numbers = #tpu.dot_dimension_numbers<[1], [0], [0], [1], [0, 0, 1, 1], [], []>} : vector<128x128xbf16>, vector<128x128xbf16>, vector<128x128xf32> -> vector<128x128xf32>
    %48 = arith.addf %42, %47 : vector<128x128xf32>
    %c0_56 = arith.constant 0 : index
    %c2_57 = arith.constant 2 : index
    %c2_58 = arith.constant 2 : index
    %c0_59 = arith.constant 0 : index
    %49 = vector.load %arg2[%c0_56, %c2_57, %c2_58, %c0_59] : memref<2x10x10x128xbf16, #tpu.memory_space<vmem>>, vector<2x8x8x128xbf16>
    %50 = vector.shape_cast %49 : vector<2x8x8x128xbf16> to vector<128x128xbf16>
    %c8 = arith.constant 8 : index
    %c0_60 = arith.constant 0 : index
    %c0_61 = arith.constant 0 : index
    %51 = vector.load %arg3[%c8, %c0_60, %c0_61] : memref<9x128x128xbf16, #tpu.memory_space<vmem>>, vector<1x128x128xbf16>
    %52 = vector.shape_cast %51 : vector<1x128x128xbf16> to vector<128x128xbf16>
    %cst_62 = arith.constant dense<0.000000e+00> : vector<128x128xf32>
    %53 = tpu.matmul %50, %52, %cst_62 {dimension_numbers = #tpu.dot_dimension_numbers<[1], [0], [0], [1], [0, 0, 1, 1], [], []>} : vector<128x128xbf16>, vector<128x128xbf16>, vector<128x128xf32> -> vector<128x128xf32>
    %54 = arith.addf %48, %53 : vector<128x128xf32>
    %c0_63 = arith.constant 0 : index
    %c0_64 = arith.constant 0 : index
    %55 = vector.load %arg4[%c0_63, %c0_64] : memref<1x128xf32, #tpu.memory_space<vmem>>, vector<1x128xf32>
    %56 = vector.broadcast %55 : vector<1x128xf32> to vector<128x128xf32>
    %57 = arith.mulf %54, %56 : vector<128x128xf32>
    %c0_65 = arith.constant 0 : index
    %c0_66 = arith.constant 0 : index
    %58 = vector.load %arg5[%c0_65, %c0_66] : memref<1x128xf32, #tpu.memory_space<vmem>>, vector<1x128xf32>
    %59 = vector.broadcast %58 : vector<1x128xf32> to vector<128x128xf32>
    %60 = arith.addf %57, %59 : vector<128x128xf32>
    %cst_67 = arith.constant 0.000000e+00 : f32
    %61 = vector.broadcast %cst_67 : f32 to vector<128x128xf32>
    %62 = arith.maximumf %60, %61 : vector<128x128xf32>
    %63 = arith.truncf %62 : vector<128x128xf32> to vector<128x128xbf16>
    %c0_68 = arith.constant 0 : index
    %c0_69 = arith.constant 0 : index
    %64 = vector.load %arg6[%c0_68, %c0_69] : memref<128x128xbf16, #tpu.memory_space<vmem>>, vector<128x128xbf16>
    tpu.vector_store %arg6[%c0_68, %c0_69], %63 {strides = array<i32>} : memref<128x128xbf16, #tpu.memory_space<vmem>>, vector<128x128xbf16>,
    return
  }
  func.func @transform_0(%arg0: i32, %arg1: i32) -> (i32, i32, i32, i32) {
    %c0_i32 = arith.constant 0 : i32
    %c0_i32_0 = arith.constant 0 : i32
    %c0_i32_1 = arith.constant 0 : i32
    %c0_i32_2 = arith.constant 0 : i32
    return %arg0, %c0_i32, %c0_i32_0, %c0_i32_1 : i32, i32, i32, i32
  }
  func.func @transform_1(%arg0: i32, %arg1: i32) -> (i32, i32, i32) {
    %c0_i32 = arith.constant 0 : i32
    %c0_i32_0 = arith.constant 0 : i32
    %c0_i32_1 = arith.constant 0 : i32
    return %c0_i32, %c0_i32_0, %arg1 : i32, i32, i32
  }
  func.func @transform_2(%arg0: i32, %arg1: i32) -> (i32, i32) {
    %c0_i32 = arith.constant 0 : i32
    %c0_i32_0 = arith.constant 0 : i32
    return %c0_i32, %arg1 : i32, i32
  }
  func.func @transform_3(%arg0: i32, %arg1: i32) -> (i32, i32) {
    %c0_i32 = arith.constant 0 : i32
    %c0_i32_0 = arith.constant 0 : i32
    return %c0_i32, %arg1 : i32, i32
  }
  func.func @transform_4(%arg0: i32, %arg1: i32) -> (i32, i32) {
    %c0_i32 = arith.constant 0 : i32
    return %arg0, %arg1 : i32, i32
  }
}

</mosaic_0001>

<llo_original>
// kernel: _lambda_.5
$region0: #{_lambda_.5}
  #allocation0 [shape = 'u32[]', space=smem, size = 0x4, offset = 0x4, fixed_abs, tag = 'smem constant byte address 0x4 - core index']
  #allocation1 [shape = 'u32[144,128]{1,0:T(1,128)}', space=vmem, size = 0x12000, scoped, tag = 'internal scratch']
  %s0 = inlined_call_operand.vmem [shape: bf16[2,10,10,128], index: 0, kind: input, shape index: {}]
  %s1 = inlined_call_operand.vmem [shape: bf16[9,128,128], index: 1, kind: input, shape index: {}]
  %s2 = inlined_call_operand.vmem [shape: bf16[128,128], index: 2, kind: input, shape index: {}]
  %s3 = inlined_call_operand.vmem [shape: bf16[128,128], index: 3, kind: output, shape index: {}]
  %s4 = sld [smem:[#allocation0]]
  $region22: #{_lambda_.5} parent=0
    _
  %s6 = ssub.s32 1, %s4
  %s7 = scalar_select 0, %s6, %s4
  // Predicated region
  $region2: #{_lambda_.5} parent=0 // pred_check
    _
  $region3: #{_lambda_.5} parent=0 // pred_check_branch
    %9 = sbr.rel (0) target = $region5
  $region4: #{_lambda_.5} parent=0 // pred_region
    _
  $region5: #{_lambda_.5} parent=0 // pred_fallthru
    _
  // Predicated region
  $region6: #{_lambda_.5} parent=0 // pred_check
    _
  $region7: #{_lambda_.5} parent=0 // pred_check_branch
    %11 = sbr.rel (0) target = $region9
  $region8: #{_lambda_.5} parent=0 // pred_region
    _
  $region9: #{_lambda_.5} parent=0 // pred_fallthru
    _
  // Predicated region
  $region10: #{_lambda_.5} parent=0 // pred_check
    _
  $region11: #{_lambda_.5} parent=0 // pred_check_branch
    %13 = sbr.rel (0) target = $region13
  $region12: #{_lambda_.5} parent=0 // pred_region
    _
  $region13: #{_lambda_.5} parent=0 // pred_fallthru
    _
  %v15 = vld [vmem:[%s0] sm:$0xf]
  %v16 = vld [vmem:[%s0 + $0x8] sm:$0xf]
  %v17 = vld [vmem:[%s0 + $0x10] sm:$0xf]
  %v18 = vld [vmem:[%s0 + $0x18] sm:$0xf]
  %v19 = vld [vmem:[%s0 + $0x20] sm:$0xf]
  %v20 = vld [vmem:[%s0 + $0x28] sm:$0xf]
  %v21 = vld [vmem:[%s0 + $0x30] sm:$0xf]
  %v22 = vld [vmem:[%s0 + $0x38] sm:$0xf]
  %v23 = vld [vmem:[%s0 + $0x50] sm:$0xf]
  %v24 = vld [vmem:[%s0 + $0x58] sm:$0xf]
  %v25 = vld [vmem:[%s0 + $0x60] sm:$0xf]
  %v26 = vld [vmem:[%s0 + $0x68] sm:$0xf]
  %v27 = vld [vmem:[%s0 + $0x70] sm:$0xf]
  %v28 = vld [vmem:[%s0 + $0x78] sm:$0xf]
  %v29 = vld [vmem:[%s0 + $0x80] sm:$0xf]
  %v30 = vld [vmem:[%s0 + $0x88] sm:$0xf]
  %v31 = vld [vmem:[%s1] sm:$0xf]
  %v32 = vld [vmem:[%s1 + $0x4] sm:$0xf]
  %v33 = vld [vmem:[%s1 + $0x8] sm:$0xf]
  %v34 = vld [vmem:[%s1 + $0xc] sm:$0xf]
  %v35 = vld [vmem:[%s1 + $0x10] sm:$0xf]
  %v36 = vld [vmem:[%s1 + $0x14] sm:$0xf]
  %v37 = vld [vmem:[%s1 + $0x18] sm:$0xf]
  %v38 = vld [vmem:[%s1 + $0x1c] sm:$0xf]
  %v39 = vld [vmem:[%s1 + $0x20] sm:$0xf]
  %v40 = vld [vmem:[%s1 + $0x24] sm:$0xf]
  %v41 = vld [vmem:[%s1 + $0x28] sm:$0xf]
  %v42 = vld [vmem:[%s1 + $0x2c] sm:$0xf]
  %v43 = vld [vmem:[%s1 + $0x30] sm:$0xf]
  %v44 = vld [vmem:[%s1 + $0x34] sm:$0xf]
  %v45 = vld [vmem:[%s1 + $0x38] sm:$0xf]
  %v46 = vld [vmem:[%s1 + $0x3c] sm:$0xf]
  %v47 = vld [vmem:[%s0 + $0x4] sm:$0x1]
  %v48 = vld [vmem:[%s0 + $0xc] sm:$0x1]
  %v49 = vld [vmem:[%s0 + $0x14] sm:$0x1]
  %v50 = vld [vmem:[%s0 + $0x1c] sm:$0x1]
  %v51 = vld [vmem:[%s0 + $0x24] sm:$0x1]
  %v52 = vld [vmem:[%s0 + $0x2c] sm:$0x1]
  %v53 = vld [vmem:[%s0 + $0x34] sm:$0x1]
  %v54 = vld [vmem:[%s0 + $0x3c] sm:$0x1]
  %v55 = vld [vmem:[%s0 + $0x54] sm:$0x1]
  %v56 = vld [vmem:[%s0 + $0x5c] sm:$0x1]
  %v57 = vld [vmem:[%s0 + $0x64] sm:$0x1]
  %v58 = vld [vmem:[%s0 + $0x6c] sm:$0x1]
  %v59 = vld [vmem:[%s0 + $0x74] sm:$0x1]
  %v60 = vld [vmem:[%s0 + $0x7c] sm:$0x1]
  %v61 = vld [vmem:[%s0 + $0x84] sm:$0x1]
  %v62 = vld [vmem:[%s0 + $0x8c] sm:$0x1]
  %vm63 = vsmask.f32 3328
  %vm64 = vsmask.f32 7440
  %vm65 = vmor %vm63, %vm64
  %v67 = vshrl.u32 %v15, 16
  %v69 = vrot.slane %v67, 4
  %v70 = vshll.u32 %v15, 16
  %v72 = vrot.slane %v70, 5
  %v73 = vor.u32 %v69, %v72
  %v74 = vrot.slane %v73, 4
  %v76 = vshll.u32 %v47, 16
  %v78 = vrot.slane %v76, 5
  %v79 = vsel %vm65, %v74, %v78
  %v81 = vshrl.u32 %v16, 16
  %v83 = vrot.slane %v81, 4
  %v84 = vshll.u32 %v16, 16
  %v86 = vrot.slane %v84, 5
  %v87 = vor.u32 %v83, %v86
  %v88 = vrot.slane %v87, 4
  %v90 = vshll.u32 %v48, 16
  %v92 = vrot.slane %v90, 5
  %v93 = vsel %vm65, %v88, %v92
  %v95 = vshrl.u32 %v17, 16
  %v97 = vrot.slane %v95, 4
  %v98 = vshll.u32 %v17, 16
  %v100 = vrot.slane %v98, 5
  %v101 = vor.u32 %v97, %v100
  %v102 = vrot.slane %v101, 4
  %v104 = vshll.u32 %v49, 16
  %v106 = vrot.slane %v104, 5
  %v107 = vsel %vm65, %v102, %v106
  %v109 = vshrl.u32 %v18, 16
  %v111 = vrot.slane %v109, 4
  %v112 = vshll.u32 %v18, 16
  %v114 = vrot.slane %v112, 5
  %v115 = vor.u32 %v111, %v114
  %v116 = vrot.slane %v115, 4
  %v118 = vshll.u32 %v50, 16
  %v120 = vrot.slane %v118, 5
  %v121 = vsel %vm65, %v116, %v120
  %v123 = vshrl.u32 %v19, 16
  %v125 = vrot.slane %v123, 4
  %v126 = vshll.u32 %v19, 16
  %v128 = vrot.slane %v126, 5
  %v129 = vor.u32 %v125, %v128
  %v130 = vrot.slane %v129, 4
  %v132 = vshll.u32 %v51, 16
  %v134 = vrot.slane %v132, 5
  %v135 = vsel %vm65, %v130, %v134
  %v137 = vshrl.u32 %v20, 16
  %v139 = vrot.slane %v137, 4
  %v140 = vshll.u32 %v20, 16
  %v142 = vrot.slane %v140, 5
  %v143 = vor.u32 %v139, %v142
  %v144 = vrot.slane %v143, 4
  %v146 = vshll.u32 %v52, 16
  %v148 = vrot.slane %v146, 5
  %v149 = vsel %vm65, %v144, %v148
  %v151 = vshrl.u32 %v21, 16
  %v153 = vrot.slane %v151, 4
  %v154 = vshll.u32 %v21, 16
  %v156 = vrot.slane %v154, 5
  %v157 = vor.u32 %v153, %v156
  %v158 = vrot.slane %v157, 4
  %v160 = vshll.u32 %v53, 16
  %v162 = vrot.slane %v160, 5
  %v163 = vsel %vm65, %v158, %v162
  %v165 = vshrl.u32 %v22, 16
  %v167 = vrot.slane %v165, 4
  %v168 = vshll.u32 %v22, 16
  %v170 = vrot.slane %v168, 5
  %v171 = vor.u32 %v167, %v170
  %v172 = vrot.slane %v171, 4
  %v174 = vshll.u32 %v54, 16
  %v176 = vrot.slane %v174, 5
  %v177 = vsel %vm65, %v172, %v176
  %v179 = vshrl.u32 %v23, 16
  %v181 = vrot.slane %v179, 4
  %v182 = vshll.u32 %v23, 16
  %v184 = vrot.slane %v182, 5
  %v185 = vor.u32 %v181, %v184
  %v186 = vrot.slane %v185, 4
  %v188 = vshll.u32 %v55, 16
  %v190 = vrot.slane %v188, 5
  %v191 = vsel %vm65, %v186, %v190
  %v193 = vshrl.u32 %v24, 16
  %v195 = vrot.slane %v193, 4
  %v196 = vshll.u32 %v24, 16
  %v198 = vrot.slane %v196, 5
  %v199 = vor.u32 %v195, %v198
  %v200 = vrot.slane %v199, 4
  %v202 = vshll.u32 %v56, 16
  %v204 = vrot.slane %v202, 5
  %v205 = vsel %vm65, %v200, %v204
  %v207 = vshrl.u32 %v25, 16
  %v209 = vrot.slane %v207, 4
  %v210 = vshll.u32 %v25, 16
  %v212 = vrot.slane %v210, 5
  %v213 = vor.u32 %v209, %v212
  %v214 = vrot.slane %v213, 4
  %v216 = vshll.u32 %v57, 16
  %v218 = vrot.slane %v216, 5
  %v219 = vsel %vm65, %v214, %v218
  %v221 = vshrl.u32 %v26, 16
  %v223 = vrot.slane %v221, 4
  %v224 = vshll.u32 %v26, 16
  %v226 = vrot.slane %v224, 5
  %v227 = vor.u32 %v223, %v226
  %v228 = vrot.slane %v227, 4
  %v230 = vshll.u32 %v58, 16
  %v232 = vrot.slane %v230, 5
  %v233 = vsel %vm65, %v228, %v232
  %v235 = vshrl.u32 %v27, 16
  %v237 = vrot.slane %v235, 4
  %v238 = vshll.u32 %v27, 16
  %v240 = vrot.slane %v238, 5
  %v241 = vor.u32 %v237, %v240
  %v242 = vrot.slane %v241, 4
  %v244 = vshll.u32 %v59, 16
  %v246 = vrot.slane %v244, 5
  %v247 = vsel %vm65, %v242, %v246
  %v249 = vshrl.u32 %v28, 16
  %v251 = vrot.slane %v249, 4
  %v252 = vshll.u32 %v28, 16
  %v254 = vrot.slane %v252, 5
  %v255 = vor.u32 %v251, %v254
  %v256 = vrot.slane %v255, 4
  %v258 = vshll.u32 %v60, 16
  %v260 = vrot.slane %v258, 5
  %v261 = vsel %vm65, %v256, %v260
  %v263 = vshrl.u32 %v29, 16
  %v265 = vrot.slane %v263, 4
  %v266 = vshll.u32 %v29, 16
  %v268 = vrot.slane %v266, 5
  %v269 = vor.u32 %v265, %v268
  %v270 = vrot.slane %v269, 4
  %v272 = vshll.u32 %v61, 16
  %v274 = vrot.slane %v272, 5
  %v275 = vsel %vm65, %v270, %v274
  %v277 = vshrl.u32 %v30, 16
  %v279 = vrot.slane %v277, 4
  %v280 = vshll.u32 %v30, 16
  %v282 = vrot.slane %v280, 5
  %v283 = vor.u32 %v279, %v282
  %v284 = vrot.slane %v283, 4
  %v286 = vshll.u32 %v62, 16
  %v288 = vrot.slane %v286, 5
  %v289 = vsel %vm65, %v284, %v288
  %s290 = scalar_lea.vmem %s1, 64
  %v291 = vld [vmem:[%s290] sm:$0xf]
  %v292 = vld [vmem:[%s290 + $0x4] sm:$0xf]
  %v293 = vld [vmem:[%s290 + $0x8] sm:$0xf]
  %v294 = vld [vmem:[%s290 + $0xc] sm:$0xf]
  %v295 = vld [vmem:[%s290 + $0x10] sm:$0xf]
  %v296 = vld [vmem:[%s290 + $0x14] sm:$0xf]
  %v297 = vld [vmem:[%s290 + $0x18] sm:$0xf]
  %v298 = vld [vmem:[%s290 + $0x1c] sm:$0xf]
  %v299 = vld [vmem:[%s290 + $0x20] sm:$0xf]
  %v300 = vld [vmem:[%s290 + $0x24] sm:$0xf]
  %v301 = vld [vmem:[%s290 + $0x28] sm:$0xf]
  %v302 = vld [vmem:[%s290 + $0x2c] sm:$0xf]
  %v303 = vld [vmem:[%s290 + $0x30] sm:$0xf]
  %v304 = vld [vmem:[%s290 + $0x34] sm:$0xf]
  %v305 = vld [vmem:[%s290 + $0x38] sm:$0xf]
  %v306 = vld [vmem:[%s290 + $0x3c] sm:$0xf]
  %v307 = vunpack.c.l.b16 %v79
  %v308 = vunpack.c.l.b16 %v93
  %v309 = vunpack.c.l.b16 %v107
  %v310 = vunpack.c.l.b16 %v121
  %v311 = vunpack.c.l.b16 %v135
  %v312 = vunpack.c.l.b16 %v149
  %v313 = vunpack.c.l.b16 %v163
  %v314 = vunpack.c.l.b16 %v177
  %v315 = vunpack.c.l.b16 %v191
  %v316 = vunpack.c.l.b16 %v205
  %v317 = vunpack.c.l.b16 %v219
  %v318 = vunpack.c.l.b16 %v233
  %v319 = vunpack.c.l.b16 %v247
  %v320 = vunpack.c.l.b16 %v261
  %v321 = vunpack.c.l.b16 %v275
  %v322 = vunpack.c.l.b16 %v289
  %v323 = vpack.c.b16 %v308, %v307
  %v324 = vpack.c.b16 %v310, %v309
  %v325 = vpack.c.b16 %v312, %v311
  %v326 = vpack.c.b16 %v314, %v313
  %v327 = vpack.c.b16 %v316, %v315
  %v328 = vpack.c.b16 %v318, %v317
  %v329 = vpack.c.b16 %v320, %v319
  %v330 = vpack.c.b16 %v322, %v321
  %v355 = vunpack.c.l.b16 %v291
  %v356 = vunpack.c.l.b16 %v292
  %v357 = vunpack.c.l.b16 %v293
  %v358 = vunpack.c.l.b16 %v294
  %v359 = vunpack.c.l.b16 %v295
  %v360 = vunpack.c.l.b16 %v296
  %v361 = vunpack.c.l.b16 %v297
  %v362 = vunpack.c.l.b16 %v298
  %v363 = vunpack.c.l.b16 %v299
  %v364 = vunpack.c.l.b16 %v300
  %v365 = vunpack.c.l.b16 %v301
  %v366 = vunpack.c.l.b16 %v302
  %v367 = vunpack.c.l.b16 %v303
  %v368 = vunpack.c.l.b16 %v304
  %v369 = vunpack.c.l.b16 %v305
  %v370 = vunpack.c.l.b16 %v306
  %v371 = vpack.c.b16 %v356, %v355
  %v372 = vpack.c.b16 %v358, %v357
  %v373 = vpack.c.b16 %v360, %v359
  %v374 = vpack.c.b16 %v362, %v361
  %v375 = vpack.c.b16 %v364, %v363
  %v376 = vpack.c.b16 %v366, %v365
  %v377 = vpack.c.b16 %v368, %v367
  %v378 = vpack.c.b16 %v370, %v369
  %387 = vmatprep.subr.bf16.mxu0 0
  %388 = vmatpush1.bf16.msra.mxu0 %v371
  %389 = vmatprep.subr.bf16.mxu0 0
  %390 = vmatpush1.bf16.msra.mxu0 %v372
  %391 = vmatprep.subr.bf16.mxu0 0
  %392 = vmatpush1.bf16.msra.mxu0 %v373
  %393 = vmatprep.subr.bf16.mxu0 0
  %394 = vmatpush1.bf16.msra.mxu0 %v374
  %395 = vmatprep.subr.bf16.mxu0 0
  %396 = vmatpush1.bf16.msra.mxu0 %v375
  %397 = vmatprep.subr.bf16.mxu0 0
  %398 = vmatpush1.bf16.msra.mxu0 %v376
  %399 = vmatprep.subr.bf16.mxu0 0
  %400 = vmatpush1.bf16.msra.mxu0 %v377
  %401 = vmatprep.subr.bf16.mxu0 0
  %402 = vmatpush1.bf16.msra.mxu0 %v378
  %403 = vmatprep.subr.bf16.mxu0 0
  %404 = vmatpush1.bf16.msra.mxu0 0
  %405 = vmatprep.subr.bf16.mxu0 0
  %406 = vmatpush1.bf16.msra.mxu0 0
  %407 = vmatprep.subr.bf16.mxu0 0
  %408 = vmatpush1.bf16.msra.mxu0 0
  %409 = vmatprep.subr.bf16.mxu0 0
  %410 = vmatpush1.bf16.msra.mxu0 0
  %411 = vmatprep.subr.bf16.mxu0 0
  %412 = vmatpush1.bf16.msra.mxu0 0
  %413 = vmatprep.subr.bf16.mxu0 0
  %414 = vmatpush1.bf16.msra.mxu0 0
  %415 = vmatprep.subr.bf16.mxu0 0
  %416 = vmatpush1.bf16.msra.mxu0 0
  %417 = vmatprep.subr.bf16.mxu0 0
  %418 = vmatpush1.bf16.msra.mxu0 0
  %419 = vmatprep.mubr.bf16.mxu0 0
  %420 = vmatmul.mubr.bf16.gmra.mrb[0].mxu0 %v323
  %v421 = vpop.f32.mrb[0].mxu0
  %v422 = vadd.f32 0.0, %v421
  %v423 = vpop.f32.mrb[0].mxu0
  %v424 = vpop.f32.mrb[0].mxu0
  %v425 = vadd.f32 0.0, %v424
  %v426 = vpop.f32.mrb[0].mxu0
  %427 = vmatprep.mubr.bf16.mxu0 0
  %428 = vmatmul.mubr.bf16.gmra.mrb[0].mxu0 %v324
  %v429 = vpop.f32.mrb[0].mxu0
  %v430 = vadd.f32 0.0, %v429
  %v431 = vpop.f32.mrb[0].mxu0
  %v432 = vpop.f32.mrb[0].mxu0
  %v433 = vadd.f32 0.0, %v432
  %v434 = vpop.f32.mrb[0].mxu0
  %435 = vmatprep.mubr.bf16.mxu0 0
  %436 = vmatmul.mubr.bf16.gmra.mrb[0].mxu0 %v325
  %v437 = vpop.f32.mrb[0].mxu0
  %v438 = vadd.f32 0.0, %v437
  %v439 = vpop.f32.mrb[0].mxu0
  %v440 = vpop.f32.mrb[0].mxu0
  %v441 = vadd.f32 0.0, %v440
  %v442 = vpop.f32.mrb[0].mxu0
  %443 = vmatprep.mubr.bf16.mxu0 0
  %444 = vmatmul.mubr.bf16.gmra.mrb[0].mxu0 %v326
  %v445 = vpop.f32.mrb[0].mxu0
  %v446 = vadd.f32 0.0, %v445
  %v447 = vpop.f32.mrb[0].mxu0
  %v448 = vpop.f32.mrb[0].mxu0
  %v449 = vadd.f32 0.0, %v448
  %v450 = vpop.f32.mrb[0].mxu0
  %451 = vmatprep.mubr.bf16.mxu0 0
  %452 = vmatmul.mubr.bf16.gmra.mrb[0].mxu0 %v327
  %v453 = vpop.f32.mrb[0].mxu0
  %v454 = vadd.f32 0.0, %v453
  %v455 = vpop.f32.mrb[0].mxu0
  %v456 = vpop.f32.mrb[0].mxu0
  %v457 = vadd.f32 0.0, %v456
  %v458 = vpop.f32.mrb[0].mxu0
  %459 = vmatprep.mubr.bf16.mxu0 0
  %460 = vmatmul.mubr.bf16.gmra.mrb[0].mxu0 %v328
  %v461 = vpop.f32.mrb[0].mxu0
  %v462 = vadd.f32 0.0, %v461
  %v463 = vpop.f32.mrb[0].mxu0
  %v464 = vpop.f32.mrb[0].mxu0
  %v465 = vadd.f32 0.0, %v464
  %v466 = vpop.f32.mrb[0].mxu0
  %467 = vmatprep.mubr.bf16.mxu0 0
  %468 = vmatmul.mubr.bf16.gmra.mrb[0].mxu0 %v329
  %v469 = vpop.f32.mrb[0].mxu0
  %v470 = vadd.f32 0.0, %v469
  %v471 = vpop.f32.mrb[0].mxu0
  %v472 = vpop.f32.mrb[0].mxu0
  %v473 = vadd.f32 0.0, %v472
  %v474 = vpop.f32.mrb[0].mxu0
  %475 = vmatprep.mubr.bf16.mxu0 0
  %476 = vmatmul.mubr.bf16.gmra.mrb[0].mxu0 %v330
  %v477 = vpop.f32.mrb[0].mxu0
  %v478 = vadd.f32 0.0, %v477
  %v479 = vpop.f32.mrb[0].mxu0
  %v480 = vpop.f32.mrb[0].mxu0
  %v481 = vadd.f32 0.0, %v480
  %v482 = vpop.f32.mrb[0].mxu0
  %483 = vdwg.mxu0
  %v500 = vunpack.c.l.b16 %v15
  %v501 = vunpack.c.l.b16 %v16
  %v502 = vunpack.c.l.b16 %v17
  %v503 = vunpack.c.l.b16 %v18
  %v504 = vunpack.c.l.b16 %v19
  %v505 = vunpack.c.l.b16 %v20
  %v506 = vunpack.c.l.b16 %v21
  %v507 = vunpack.c.l.b16 %v22
  %v508 = vunpack.c.l.b16 %v23
  %v509 = vunpack.c.l.b16 %v24
  %v510 = vunpack.c.l.b16 %v25
  %v511 = vunpack.c.l.b16 %v26
  %v512 = vunpack.c.l.b16 %v27
  %v513 = vunpack.c.l.b16 %v28
  %v514 = vunpack.c.l.b16 %v29
  %v515 = vunpack.c.l.b16 %v30
  %v516 = vpack.c.b16 %v501, %v500
  %v517 = vpack.c.b16 %v503, %v502
  %v518 = vpack.c.b16 %v505, %v504
  %v519 = vpack.c.b16 %v507, %v506
  %v520 = vpack.c.b16 %v509, %v508
  %v521 = vpack.c.b16 %v511, %v510
  %v522 = vpack.c.b16 %v513, %v512
  %v523 = vpack.c.b16 %v515, %v514
  %v548 = vunpack.c.l.b16 %v31
  %v549 = vunpack.c.l.b16 %v32
  %v550 = vunpack.c.l.b16 %v33
  %v551 = vunpack.c.l.b16 %v34
  %v552 = vunpack.c.l.b16 %v35
  %v553 = vunpack.c.l.b16 %v36
  %v554 = vunpack.c.l.b16 %v37
  %v555 = vunpack.c.l.b16 %v38
  %v556 = vunpack.c.l.b16 %v39
  %v557 = vunpack.c.l.b16 %v40
  %v558 = vunpack.c.l.b16 %v41
  %v559 = vunpack.c.l.b16 %v42
  %v560 = vunpack.c.l.b16 %v43
  %v561 = vunpack.c.l.b16 %v44
  %v562 = vunpack.c.l.b16 %v45
  %v563 = vunpack.c.l.b16 %v46
  %v564 = vpack.c.b16 %v549, %v548
  %v565 = vpack.c.b16 %v551, %v550
  %v566 = vpack.c.b16 %v553, %v552
  %v567 = vpack.c.b16 %v555, %v554
  %v568 = vpack.c.b16 %v557, %v556
  %v569 = vpack.c.b16 %v559, %v558
  %v570 = vpack.c.b16 %v561, %v560
  %v571 = vpack.c.b16 %v563, %v562
  %580 = vmatprep.subr.bf16.mxu0 0
  %581 = vmatpush1.bf16.msra.mxu0 %v564
  %582 = vmatprep.subr.bf16.mxu0 0
  %583 = vmatpush1.bf16.msra.mxu0 %v565
  %584 = vmatprep.subr.bf16.mxu0 0
  %585 = vmatpush1.bf16.msra.mxu0 %v566
  %586 = vmatprep.subr.bf16.mxu0 0
  %587 = vmatpush1.bf16.msra.mxu0 %v567
  %588 = vmatprep.subr.bf16.mxu0 0
  %589 = vmatpush1.bf16.msra.mxu0 %v568
  %590 = vmatprep.subr.bf16.mxu0 0
  %591 = vmatpush1.bf16.msra.mxu0 %v569
  %592 = vmatprep.subr.bf16.mxu0 0
  %593 = vmatpush1.bf16.msra.mxu0 %v570
  %594 = vmatprep.subr.bf16.mxu0 0
  %595 = vmatpush1.bf16.msra.mxu0 %v571
  %596 = vmatprep.subr.bf16.mxu0 0
  %597 = vmatpush1.bf16.msra.mxu0 0
  %598 = vmatprep.subr.bf16.mxu0 0
  %599 = vmatpush1.bf16.msra.mxu0 0
  %600 = vmatprep.subr.bf16.mxu0 0
  %601 = vmatpush1.bf16.msra.mxu0 0
  %602 = vmatprep.subr.bf16.mxu0 0
  %603 = vmatpush1.bf16.msra.mxu0 0
  %604 = vmatprep.subr.bf16.mxu0 0
  %605 = vmatpush1.bf16.msra.mxu0 0
  %606 = vmatprep.subr.bf16.mxu0 0
  %607 = vmatpush1.bf16.msra.mxu0 0
  %608 = vmatprep.subr.bf16.mxu0 0
  %609 = vmatpush1.bf16.msra.mxu0 0
  %610 = vmatprep.subr.bf16.mxu0 0
  %611 = vmatpush1.bf16.msra.mxu0 0
  %612 = vmatprep.mubr.bf16.mxu0 0
  %613 = vmatmul.mubr.bf16.gmra.mrb[0].mxu0 %v516
  %v614 = vpop.f32.mrb[0].mxu0
  %v615 = vadd.f32 %v422, %v614
  %v616 = vpop.f32.mrb[0].mxu0
  %v617 = vpop.f32.mrb[0].mxu0
  %v618 = vadd.f32 %v425, %v617
  %v619 = vpop.f32.mrb[0].mxu0
  %620 = vmatprep.mubr.bf16.mxu0 0
  %621 = vmatmul.mubr.bf16.gmra.mrb[0].mxu0 %v517
  %v622 = vpop.f32.mrb[0].mxu0
  %v623 = vadd.f32 %v430, %v622
  %v624 = vpop.f32.mrb[0].mxu0
  %v625 = vpop.f32.mrb[0].mxu0
  %v626 = vadd.f32 %v433, %v625
  %v627 = vpop.f32.mrb[0].mxu0
  %628 = vmatprep.mubr.bf16.mxu0 0
  %629 = vmatmul.mubr.bf16.gmra.mrb[0].mxu0 %v518
  %v630 = vpop.f32.mrb[0].mxu0
  %v631 = vadd.f32 %v438, %v630
  %v632 = vpop.f32.mrb[0].mxu0
  %v633 = vpop.f32.mrb[0].mxu0
  %v634 = vadd.f32 %v441, %v633
  %v635 = vpop.f32.mrb[0].mxu0
  %636 = vmatprep.mubr.bf16.mxu0 0
  %637 = vmatmul.mubr.bf16.gmra.mrb[0].mxu0 %v519
  %v638 = vpop.f32.mrb[0].mxu0
  %v639 = vadd.f32 %v446, %v638
  %v640 = vpop.f32.mrb[0].mxu0
  %v641 = vpop.f32.mrb[0].mxu0
  %v642 = vadd.f32 %v449, %v641
  %v643 = vpop.f32.mrb[0].mxu0
  %644 = vmatprep.mubr.bf16.mxu0 0
  %645 = vmatmul.mubr.bf16.gmra.mrb[0].mxu0 %v520
  %v646 = vpop.f32.mrb[0].mxu0
  %v647 = vadd.f32 %v454, %v646
  %v648 = vpop.f32.mrb[0].mxu0
  %v649 = vpop.f32.mrb[0].mxu0
  %v650 = vadd.f32 %v457, %v649
  %v651 = vpop.f32.mrb[0].mxu0
  %652 = vmatprep.mubr.bf16.mxu0 0
  %653 = vmatmul.mubr.bf16.gmra.mrb[0].mxu0 %v521
  %v654 = vpop.f32.mrb[0].mxu0
  %v655 = vadd.f32 %v462, %v654
  %v656 = vpop.f32.mrb[0].mxu0
  %v657 = vpop.f32.mrb[0].mxu0
  %v658 = vadd.f32 %v465, %v657
  %v659 = vpop.f32.mrb[0].mxu0
  %660 = vmatprep.mubr.bf16.mxu0 0
  %661 = vmatmul.mubr.bf16.gmra.mrb[0].mxu0 %v522
  %v662 = vpop.f32.mrb[0].mxu0
  %v663 = vadd.f32 %v470, %v662
  %v664 = vpop.f32.mrb[0].mxu0
  %v665 = vpop.f32.mrb[0].mxu0
  %v666 = vadd.f32 %v473, %v665
  %v667 = vpop.f32.mrb[0].mxu0
  %668 = vmatprep.mubr.bf16.mxu0 0
  %669 = vmatmul.mubr.bf16.gmra.mrb[0].mxu0 %v523
  %v670 = vpop.f32.mrb[0].mxu0
  %v671 = vadd.f32 %v478, %v670
  %v672 = vpop.f32.mrb[0].mxu0
  %v673 = vpop.f32.mrb[0].mxu0
  %v674 = vadd.f32 %v481, %v673
  %v675 = vpop.f32.mrb[0].mxu0
  %676 = vdwg.mxu0
  %v677 = vld [vmem:[%s0] sm:$0xe]
  %v678 = vld [vmem:[%s0 + $0x8] sm:$0xe]
  %v679 = vld [vmem:[%s0 + $0x10] sm:$0xe]
  %v680 = vld [vmem:[%s0 + $0x18] sm:$0xe]
  %v681 = vld [vmem:[%s0 + $0x20] sm:$0xe]
  %v682 = vld [vmem:[%s0 + $0x28] sm:$0xe]
  %v683 = vld [vmem:[%s0 + $0x30] sm:$0xe]
  %v684 = vld [vmem:[%s0 + $0x38] sm:$0xe]
  %v685 = vld [vmem:[%s0 + $0x50] sm:$0xe]
  %v686 = vld [vmem:[%s0 + $0x58] sm:$0xe]
  %v687 = vld [vmem:[%s0 + $0x60] sm:$0xe]
  %v688 = vld [vmem:[%s0 + $0x68] sm:$0xe]
  %v689 = vld [vmem:[%s0 + $0x70] sm:$0xe]
  %v690 = vld [vmem:[%s0 + $0x78] sm:$0xe]
  %v691 = vld [vmem:[%s0 + $0x80] sm:$0xe]
  %v692 = vld [vmem:[%s0 + $0x88] sm:$0xe]
  %vm725 = vcmask 1042432
  %vm726 = vcmask 1046532
  %vm727 = vmor %vm725, %vm726
  %v728 = vrot.slane %v677, 5
  %v729 = vrot.slane %v728, 4
  %v730 = vrot.slane %v47, 5
  %v731 = vsel %vm727, %v729, %v730
  %v732 = vrot.slane %v678, 5
  %v733 = vrot.slane %v732, 4
  %v734 = vrot.slane %v48, 5
  %v735 = vsel %vm727, %v733, %v734
  %v736 = vrot.slane %v679, 5
  %v737 = vrot.slane %v736, 4
  %v738 = vrot.slane %v49, 5
  %v739 = vsel %vm727, %v737, %v738
  %v740 = vrot.slane %v680, 5
  %v741 = vrot.slane %v740, 4
  %v742 = vrot.slane %v50, 5
  %v743 = vsel %vm727, %v741, %v742
  %v744 = vrot.slane %v681, 5
  %v745 = vrot.slane %v744, 4
  %v746 = vrot.slane %v51, 5
  %v747 = vsel %vm727, %v745, %v746
  %v748 = vrot.slane %v682, 5
  %v749 = vrot.slane %v748, 4
  %v750 = vrot.slane %v52, 5
  %v751 = vsel %vm727, %v749, %v750
  %v752 = vrot.slane %v683, 5
  %v753 = vrot.slane %v752, 4
  %v754 = vrot.slane %v53, 5
  %v755 = vsel %vm727, %v753, %v754
  %v756 = vrot.slane %v684, 5
  %v757 = vrot.slane %v756, 4
  %v758 = vrot.slane %v54, 5
  %v759 = vsel %vm727, %v757, %v758
  %v760 = vrot.slane %v685, 5
  %v761 = vrot.slane %v760, 4
  %v762 = vrot.slane %v55, 5
  %v763 = vsel %vm727, %v761, %v762
  %v764 = vrot.slane %v686, 5
  %v765 = vrot.slane %v764, 4
  %v766 = vrot.slane %v56, 5
  %v767 = vsel %vm727, %v765, %v766
  %v768 = vrot.slane %v687, 5
  %v769 = vrot.slane %v768, 4
  %v770 = vrot.slane %v57, 5
  %v771 = vsel %vm727, %v769, %v770
  %v772 = vrot.slane %v688, 5
  %v773 = vrot.slane %v772, 4
  %v774 = vrot.slane %v58, 5
  %v775 = vsel %vm727, %v773, %v774
  %v776 = vrot.slane %v689, 5
  %v777 = vrot.slane %v776, 4
  %v778 = vrot.slane %v59, 5
  %v779 = vsel %vm727, %v777, %v778
  %v780 = vrot.slane %v690, 5
  %v781 = vrot.slane %v780, 4
  %v782 = vrot.slane %v60, 5
  %v783 = vsel %vm727, %v781, %v782
  %v784 = vrot.slane %v691, 5
  %v785 = vrot.slane %v784, 4
  %v786 = vrot.slane %v61, 5
  %v787 = vsel %vm727, %v785, %v786
  %v788 = vrot.slane %v692, 5
  %v789 = vrot.slane %v788, 4
  %v790 = vrot.slane %v62, 5
  %v791 = vsel %vm727, %v789, %v790
  %s792 = scalar_lea.vmem %s1, 128
  %v793 = vld [vmem:[%s792] sm:$0xf]
  %v794 = vld [vmem:[%s792 + $0x4] sm:$0xf]
  %v795 = vld [vmem:[%s792 + $0x8] sm:$0xf]
  %v796 = vld [vmem:[%s792 + $0xc] sm:$0xf]
  %v797 = vld [vmem:[%s792 + $0x10] sm:$0xf]
  %v798 = vld [vmem:[%s792 + $0x14] sm:$0xf]
  %v799 = vld [vmem:[%s792 + $0x18] sm:$0xf]
  %v800 = vld [vmem:[%s792 + $0x1c] sm:$0xf]
  %v801 = vld [vmem:[%s792 + $0x20] sm:$0xf]
  %v802 = vld [vmem:[%s792 + $0x24] sm:$0xf]
  %v803 = vld [vmem:[%s792 + $0x28] sm:$0xf]
  %v804 = vld [vmem:[%s792 + $0x2c] sm:$0xf]
  %v805 = vld [vmem:[%s792 + $0x30] sm:$0xf]
  %v806 = vld [vmem:[%s792 + $0x34] sm:$0xf]
  %v807 = vld [vmem:[%s792 + $0x38] sm:$0xf]
  %v808 = vld [vmem:[%s792 + $0x3c] sm:$0xf]
  %v809 = vunpack.c.l.b16 %v731
  %v810 = vunpack.c.l.b16 %v735
  %v811 = vunpack.c.l.b16 %v739
  %v812 = vunpack.c.l.b16 %v743
  %v813 = vunpack.c.l.b16 %v747
  %v814 = vunpack.c.l.b16 %v751
  %v815 = vunpack.c.l.b16 %v755
  %v816 = vunpack.c.l.b16 %v759
  %v817 = vunpack.c.l.b16 %v763
  %v818 = vunpack.c.l.b16 %v767
  %v819 = vunpack.c.l.b16 %v771
  %v820 = vunpack.c.l.b16 %v775
  %v821 = vunpack.c.l.b16 %v779
  %v822 = vunpack.c.l.b16 %v783
  %v823 = vunpack.c.l.b16 %v787
  %v824 = vunpack.c.l.b16 %v791
  %v825 = vpack.c.b16 %v810, %v809
  %v826 = vpack.c.b16 %v812, %v811
  %v827 = vpack.c.b16 %v814, %v813
  %v828 = vpack.c.b16 %v816, %v815
  %v829 = vpack.c.b16 %v818, %v817
  %v830 = vpack.c.b16 %v820, %v819
  %v831 = vpack.c.b16 %v822, %v821
  %v832 = vpack.c.b16 %v824, %v823
  %v857 = vunpack.c.l.b16 %v793
  %v858 = vunpack.c.l.b16 %v794
  %v859 = vunpack.c.l.b16 %v795
  %v860 = vunpack.c.l.b16 %v796
  %v861 = vunpack.c.l.b16 %v797
  %v862 = vunpack.c.l.b16 %v798
  %v863 = vunpack.c.l.b16 %v799
  %v864 = vunpack.c.l.b16 %v800
  %v865 = vunpack.c.l.b16 %v801
  %v866 = vunpack.c.l.b16 %v802
  %v867 = vunpack.c.l.b16 %v803
  %v868 = vunpack.c.l.b16 %v804
  %v869 = vunpack.c.l.b16 %v805
  %v870 = vunpack.c.l.b16 %v806
  %v871 = vunpack.c.l.b16 %v807
  %v872 = vunpack.c.l.b16 %v808
  %v873 = vpack.c.b16 %v858, %v857
  %v874 = vpack.c.b16 %v860, %v859
  %v875 = vpack.c.b16 %v862, %v861
  %v876 = vpack.c.b16 %v864, %v863
  %v877 = vpack.c.b16 %v866, %v865
  %v878 = vpack.c.b16 %v868, %v867
  %v879 = vpack.c.b16 %v870, %v869
  %v880 = vpack.c.b16 %v872, %v871
  %889 = vmatprep.subr.bf16.mxu0 0
  %890 = vmatpush1.bf16.msra.mxu0 %v873
  %891 = vmatprep.subr.bf16.mxu0 0
  %892 = vmatpush1.bf16.msra.mxu0 %v874
  %893 = vmatprep.subr.bf16.mxu0 0
  %894 = vmatpush1.bf16.msra.mxu0 %v875
  %895 = vmatprep.subr.bf16.mxu0 0
  %896 = vmatpush1.bf16.msra.mxu0 %v876
  %897 = vmatprep.subr.bf16.mxu0 0
  %898 = vmatpush1.bf16.msra.mxu0 %v877
  %899 = vmatprep.subr.bf16.mxu0 0
  %900 = vmatpush1.bf16.msra.mxu0 %v878
  %901 = vmatprep.subr.bf16.mxu0 0
  %902 = vmatpush1.bf16.msra.mxu0 %v879
  %903 = vmatprep.subr.bf16.mxu0 0
  %904 = vmatpush1.bf16.msra.mxu0 %v880
  %905 = vmatprep.subr.bf16.mxu0 0
  %906 = vmatpush1.bf16.msra.mxu0 0
  %907 = vmatprep.subr.bf16.mxu0 0
  %908 = vmatpush1.bf16.msra.mxu0 0
  %909 = vmatprep.subr.bf16.mxu0 0
  %910 = vmatpush1.bf16.msra.mxu0 0
  %911 = vmatprep.subr.bf16.mxu0 0
  %912 = vmatpush1.bf16.msra.mxu0 0
  %913 = vmatprep.subr.bf16.mxu0 0
  %914 = vmatpush1.bf16.msra.mxu0 0
  %915 = vmatprep.subr.bf16.mxu0 0
  %916 = vmatpush1.bf16.msra.mxu0 0
  %917 = vmatprep.subr.bf16.mxu0 0
  %918 = vmatpush1.bf16.msra.mxu0 0
  %919 = vmatprep.subr.bf16.mxu0 0
  %920 = vmatpush1.bf16.msra.mxu0 0
  %921 = vmatprep.mubr.bf16.mxu0 0
  %922 = vmatmul.mubr.bf16.gmra.mrb[0].mxu0 %v825
  %v923 = vpop.f32.mrb[0].mxu0
  %v924 = vadd.f32 0.0, %v923
  %v925 = vpop.f32.mrb[0].mxu0
  %v926 = vpop.f32.mrb[0].mxu0
  %v927 = vadd.f32 0.0, %v926
  %v928 = vpop.f32.mrb[0].mxu0
  %929 = vmatprep.mubr.bf16.mxu0 0
  %930 = vmatmul.mubr.bf16.gmra.mrb[0].mxu0 %v826
  %v931 = vpop.f32.mrb[0].mxu0
  %v932 = vadd.f32 0.0, %v931
  %v933 = vpop.f32.mrb[0].mxu0
  %v934 = vpop.f32.mrb[0].mxu0
  %v935 = vadd.f32 0.0, %v934
  %v936 = vpop.f32.mrb[0].mxu0
  %937 = vmatprep.mubr.bf16.mxu0 0
  %938 = vmatmul.mubr.bf16.gmra.mrb[0].mxu0 %v827
  %v939 = vpop.f32.mrb[0].mxu0
  %v940 = vadd.f32 0.0, %v939
  %v941 = vpop.f32.mrb[0].mxu0
  %v942 = vpop.f32.mrb[0].mxu0
  %v943 = vadd.f32 0.0, %v942
  %v944 = vpop.f32.mrb[0].mxu0
  %945 = vmatprep.mubr.bf16.mxu0 0
  %946 = vmatmul.mubr.bf16.gmra.mrb[0].mxu0 %v828
  %v947 = vpop.f32.mrb[0].mxu0
  %v948 = vadd.f32 0.0, %v947
  %v949 = vpop.f32.mrb[0].mxu0
  %v950 = vpop.f32.mrb[0].mxu0
  %v951 = vadd.f32 0.0, %v950
  %v952 = vpop.f32.mrb[0].mxu0
  %953 = vmatprep.mubr.bf16.mxu0 0
  %954 = vmatmul.mubr.bf16.gmra.mrb[0].mxu0 %v829
  %v955 = vpop.f32.mrb[0].mxu0
  %v956 = vadd.f32 0.0, %v955
  %v957 = vpop.f32.mrb[0].mxu0
  %v958 = vpop.f32.mrb[0].mxu0
  %v959 = vadd.f32 0.0, %v958
  %v960 = vpop.f32.mrb[0].mxu0
  %961 = vmatprep.mubr.bf16.mxu0 0
  %962 = vmatmul.mubr.bf16.gmra.mrb[0].mxu0 %v830
  %v963 = vpop.f32.mrb[0].mxu0
  %v964 = vadd.f32 0.0, %v963
  %v965 = vpop.f32.mrb[0].mxu0
  %v966 = vpop.f32.mrb[0].mxu0
  %v967 = vadd.f32 0.0, %v966
  %v968 = vpop.f32.mrb[0].mxu0
  %969 = vmatprep.mubr.bf16.mxu0 0
  %970 = vmatmul.mubr.bf16.gmra.mrb[0].mxu0 %v831
  %v971 = vpop.f32.mrb[0].mxu0
  %v972 = vadd.f32 0.0, %v971
  %v973 = vpop.f32.mrb[0].mxu0
  %v974 = vpop.f32.mrb[0].mxu0
  %v975 = vadd.f32 0.0, %v974
  %v976 = vpop.f32.mrb[0].mxu0
  %977 = vmatprep.mubr.bf16.mxu0 0
  %978 = vmatmul.mubr.bf16.gmra.mrb[0].mxu0 %v832
  %v979 = vpop.f32.mrb[0].mxu0
  %v980 = vadd.f32 0.0, %v979
  %v981 = vpop.f32.mrb[0].mxu0
  %v982 = vpop.f32.mrb[0].mxu0
  %v983 = vadd.f32 0.0, %v982
  %v984 = vpop.f32.mrb[0].mxu0
  %985 = vdwg.mxu0
  %v986 = vadd.f32 %v615, %v924
  %v987 = vadd.f32 %v618, %v927
  %v988 = vadd.f32 %v623, %v932
  %v989 = vadd.f32 %v626, %v935
  %v990 = vadd.f32 %v631, %v940
  %v991 = vadd.f32 %v634, %v943
  %v992 = vadd.f32 %v639, %v948
  %v993 = vadd.f32 %v642, %v951
  %v994 = vadd.f32 %v647, %v956
  %v995 = vadd.f32 %v650, %v959
  %v996 = vadd.f32 %v655, %v964
  %v997 = vadd.f32 %v658, %v967
  %v998 = vadd.f32 %v663, %v972
  %v999 = vadd.f32 %v666, %v975
  %v1000 = vadd.f32 %v671, %v980
  %v1001 = vadd.f32 %v674, %v983
  %s1002 = scalar_lea.vmem %s0, 8
  %v1003 = vld [vmem:[%s1002] sm:$0xf]
  %v1004 = vld [vmem:[%s1002 + $0x8] sm:$0xf]
  %v1005 = vld [vmem:[%s1002 + $0x10] sm:$0xf]
  %v1006 = vld [vmem:[%s1002 + $0x18] sm:$0xf]
  %v1007 = vld [vmem:[%s1002 + $0x20] sm:$0xf]
  %v1008 = vld [vmem:[%s1002 + $0x28] sm:$0xf]
  %v1009 = vld [vmem:[%s1002 + $0x30] sm:$0xf]
  %v1010 = vld [vmem:[%s1002 + $0x38] sm:$0xf]
  %v1011 = vld [vmem:[%s1002 + $0x50] sm:$0xf]
  %v1012 = vld [vmem:[%s1002 + $0x58] sm:$0xf]
  %v1013 = vld [vmem:[%s1002 + $0x60] sm:$0xf]
  %v1014 = vld [vmem:[%s1002 + $0x68] sm:$0xf]
  %v1015 = vld [vmem:[%s1002 + $0x70] sm:$0xf]
  %v1016 = vld [vmem:[%s1002 + $0x78] sm:$0xf]
  %v1017 = vld [vmem:[%s1002 + $0x80] sm:$0xf]
  %v1018 = vld [vmem:[%s1002 + $0x88] sm:$0xf]
  %s1019 = scalar_lea.vmem %s1, 192
  %v1020 = vld [vmem:[%s1019] sm:$0xf]
  %v1021 = vld [vmem:[%s1019 + $0x4] sm:$0xf]
  %v1022 = vld [vmem:[%s1019 + $0x8] sm:$0xf]
  %v1023 = vld [vmem:[%s1019 + $0xc] sm:$0xf]
  %v1024 = vld [vmem:[%s1019 + $0x10] sm:$0xf]
  %v1025 = vld [vmem:[%s1019 + $0x14] sm:$0xf]
  %v1026 = vld [vmem:[%s1019 + $0x18] sm:$0xf]
  %v1027 = vld [vmem:[%s1019 + $0x1c] sm:$0xf]
  %v1028 = vld [vmem:[%s1019 + $0x20] sm:$0xf]
  %v1029 = vld [vmem:[%s1019 + $0x24] sm:$0xf]
  %v1030 = vld [vmem:[%s1019 + $0x28] sm:$0xf]
  %v1031 = vld [vmem:[%s1019 + $0x2c] sm:$0xf]
  %v1032 = vld [vmem:[%s1019 + $0x30] sm:$0xf]
  %v1033 = vld [vmem:[%s1019 + $0x34] sm:$0xf]
  %v1034 = vld [vmem:[%s1019 + $0x38] sm:$0xf]
  %v1035 = vld [vmem:[%s1019 + $0x3c] sm:$0xf]
  %v1052 = vunpack.c.l.b16 %v1003
  %v1053 = vunpack.c.l.b16 %v1004
  %v1054 = vunpack.c.l.b16 %v1005
  %v1055 = vunpack.c.l.b16 %v1006
  %v1056 = vunpack.c.l.b16 %v1007
  %v1057 = vunpack.c.l.b16 %v1008
  %v1058 = vunpack.c.l.b16 %v1009
  %v1059 = vunpack.c.l.b16 %v1010
  %v1060 = vunpack.c.l.b16 %v1011
  %v1061 = vunpack.c.l.b16 %v1012
  %v1062 = vunpack.c.l.b16 %v1013
  %v1063 = vunpack.c.l.b16 %v1014
  %v1064 = vunpack.c.l.b16 %v1015
  %v1065 = vunpack.c.l.b16 %v1016
  %v1066 = vunpack.c.l.b16 %v1017
  %v1067 = vunpack.c.l.b16 %v1018
  %v1068 = vpack.c.b16 %v1053, %v1052
  %v1069 = vpack.c.b16 %v1055, %v1054
  %v1070 = vpack.c.b16 %v1057, %v1056
  %v1071 = vpack.c.b16 %v1059, %v1058
  %v1072 = vpack.c.b16 %v1061, %v1060
  %v1073 = vpack.c.b16 %v1063, %v1062
  %v1074 = vpack.c.b16 %v1065, %v1064
  %v1075 = vpack.c.b16 %v1067, %v1066
  %v1100 = vunpack.c.l.b16 %v1020
  %v1101 = vunpack.c.l.b16 %v1021
  %v1102 = vunpack.c.l.b16 %v1022
  %v1103 = vunpack.c.l.b16 %v1023
  %v1104 = vunpack.c.l.b16 %v1024
  %v1105 = vunpack.c.l.b16 %v1025
  %v1106 = vunpack.c.l.b16 %v1026
  %v1107 = vunpack.c.l.b16 %v1027
  %v1108 = vunpack.c.l.b16 %v1028
  %v1109 = vunpack.c.l.b16 %v1029
  %v1110 = vunpack.c.l.b16 %v1030
  %v1111 = vunpack.c.l.b16 %v1031
  %v1112 = vunpack.c.l.b16 %v1032
  %v1113 = vunpack.c.l.b16 %v1033
  %v1114 = vunpack.c.l.b16 %v1034
  %v1115 = vunpack.c.l.b16 %v1035
  %v1116 = vpack.c.b16 %v1101, %v1100
  %v1117 = vpack.c.b16 %v1103, %v1102
  %v1118 = vpack.c.b16 %v1105, %v1104
  %v1119 = vpack.c.b16 %v1107, %v1106
  %v1120 = vpack.c.b16 %v1109, %v1108
  %v1121 = vpack.c.b16 %v1111, %v1110
  %v1122 = vpack.c.b16 %v1113, %v1112
  %v1123 = vpack.c.b16 %v1115, %v1114
  %1132 = vmatprep.subr.bf16.mxu0 0
  %1133 = vmatpush1.bf16.msra.mxu0 %v1116
  %1134 = vmatprep.subr.bf16.mxu0 0
  %1135 = vmatpush1.bf16.msra.mxu0 %v1117
  %1136 = vmatprep.subr.bf16.mxu0 0
  %1137 = vmatpush1.bf16.msra.mxu0 %v1118
  %1138 = vmatprep.subr.bf16.mxu0 0
  %1139 = vmatpush1.bf16.msra.mxu0 %v1119
  %1140 = vmatprep.subr.bf16.mxu0 0
  %1141 = vmatpush1.bf16.msra.mxu0 %v1120
  %1142 = vmatprep.subr.bf16.mxu0 0
  %1143 = vmatpush1.bf16.msra.mxu0 %v1121
  %1144 = vmatprep.subr.bf16.mxu0 0
  %1145 = vmatpush1.bf16.msra.mxu0 %v1122
  %1146 = vmatprep.subr.bf16.mxu0 0
  %1147 = vmatpush1.bf16.msra.mxu0 %v1123
  %1148 = vmatprep.subr.bf16.mxu0 0
  %1149 = vmatpush1.bf16.msra.mxu0 0
  %1150 = vmatprep.subr.bf16.mxu0 0
  %1151 = vmatpush1.bf16.msra.mxu0 0
  %1152 = vmatprep.subr.bf16.mxu0 0
  %1153 = vmatpush1.bf16.msra.mxu0 0
  %1154 = vmatprep.subr.bf16.mxu0 0
  %1155 = vmatpush1.bf16.msra.mxu0 0
  %1156 = vmatprep.subr.bf16.mxu0 0
  %1157 = vmatpush1.bf16.msra.mxu0 0
  %1158 = vmatprep.subr.bf16.mxu0 0
  %1159 = vmatpush1.bf16.msra.mxu0 0
  %1160 = vmatprep.subr.bf16.mxu0 0
  %1161 = vmatpush1.bf16.msra.mxu0 0
  %1162 = vmatprep.subr.bf16.mxu0 0
  %1163 = vmatpush1.bf16.msra.mxu0 0
  %1164 = vmatprep.mubr.bf16.mxu0 0
  %1165 = vmatmul.mubr.bf16.gmra.mrb[0].mxu0 %v1068
  %v1166 = vpop.f32.mrb[0].mxu0
  %v1167 = vadd.f32 0.0, %v1166
  %v1168 = vpop.f32.mrb[0].mxu0
  %v1169 = vpop.f32.mrb[0].mxu0
  %v1170 = vadd.f32 0.0, %v1169
  %v1171 = vpop.f32.mrb[0].mxu0
  %1172 = vmatprep.mubr.bf16.mxu0 0
  %1173 = vmatmul.mubr.bf16.gmra.mrb[0].mxu0 %v1069
  %v1174 = vpop.f32.mrb[0].mxu0
  %v1175 = vadd.f32 0.0, %v1174
  %v1176 = vpop.f32.mrb[0].mxu0
  %v1177 = vpop.f32.mrb[0].mxu0
  %v1178 = vadd.f32 0.0, %v1177
  %v1179 = vpop.f32.mrb[0].mxu0
  %1180 = vmatprep.mubr.bf16.mxu0 0
  %1181 = vmatmul.mubr.bf16.gmra.mrb[0].mxu0 %v1070
  %v1182 = vpop.f32.mrb[0].mxu0
  %v1183 = vadd.f32 0.0, %v1182
  %v1184 = vpop.f32.mrb[0].mxu0
  %v1185 = vpop.f32.mrb[0].mxu0
  %v1186 = vadd.f32 0.0, %v1185
  %v1187 = vpop.f32.mrb[0].mxu0
  %1188 = vmatprep.mubr.bf16.mxu0 0
  %1189 = vmatmul.mubr.bf16.gmra.mrb[0].mxu0 %v1071
  %v1190 = vpop.f32.mrb[0].mxu0
  %v1191 = vadd.f32 0.0, %v1190
  %v1192 = vpop.f32.mrb[0].mxu0
  %v1193 = vpop.f32.mrb[0].mxu0
  %v1194 = vadd.f32 0.0, %v1193
  %v1195 = vpop.f32.mrb[0].mxu0
  %1196 = vmatprep.mubr.bf16.mxu0 0
  %1197 = vmatmul.mubr.bf16.gmra.mrb[0].mxu0 %v1072
  %v1198 = vpop.f32.mrb[0].mxu0
  %v1199 = vadd.f32 0.0, %v1198
  %v1200 = vpop.f32.mrb[0].mxu0
  %v1201 = vpop.f32.mrb[0].mxu0
  %v1202 = vadd.f32 0.0, %v1201
  %v1203 = vpop.f32.mrb[0].mxu0
  %1204 = vmatprep.mubr.bf16.mxu0 0
  %1205 = vmatmul.mubr.bf16.gmra.mrb[0].mxu0 %v1073
  %v1206 = vpop.f32.mrb[0].mxu0
  %v1207 = vadd.f32 0.0, %v1206
  %v1208 = vpop.f32.mrb[0].mxu0
  %v1209 = vpop.f32.mrb[0].mxu0
  %v1210 = vadd.f32 0.0, %v1209
  %v1211 = vpop.f32.mrb[0].mxu0
  %1212 = vmatprep.mubr.bf16.mxu0 0
  %1213 = vmatmul.mubr.bf16.gmra.mrb[0].mxu0 %v1074
  %v1214 = vpop.f32.mrb[0].mxu0
  %v1215 = vadd.f32 0.0, %v1214
  %v1216 = vpop.f32.mrb[0].mxu0
  %v1217 = vpop.f32.mrb[0].mxu0
  %v1218 = vadd.f32 0.0, %v1217
  %v1219 = vpop.f32.mrb[0].mxu0
  %1220 = vmatprep.mubr.bf16.mxu0 0
  %1221 = vmatmul.mubr.bf16.gmra.mrb[0].mxu0 %v1075
  %v1222 = vpop.f32.mrb[0].mxu0
  %v1223 = vadd.f32 0.0, %v1222
  %v1224 = vpop.f32.mrb[0].mxu0
  %v1225 = vpop.f32.mrb[0].mxu0
  %v1226 = vadd.f32 0.0, %v1225
  %v1227 = vpop.f32.mrb[0].mxu0
  %1228 = vdwg.mxu0
  %v1229 = vadd.f32 %v986, %v1167
  %v1230 = vadd.f32 %v987, %v1170
  %v1231 = vadd.f32 %v988, %v1175
  %v1232 = vadd.f32 %v989, %v1178
  %v1233 = vadd.f32 %v990, %v1183
  %v1234 = vadd.f32 %v991, %v1186
  %v1235 = vadd.f32 %v992, %v1191
  %v1236 = vadd.f32 %v993, %v1194
  %v1237 = vadd.f32 %v994, %v1199
  %v1238 = vadd.f32 %v995, %v1202
  %v1239 = vadd.f32 %v996, %v1207
  %v1240 = vadd.f32 %v997, %v1210
  %v1241 = vadd.f32 %v998, %v1215
  %v1242 = vadd.f32 %v999, %v1218
  %v1243 = vadd.f32 %v1000, %v1223
  %v1244 = vadd.f32 %v1001, %v1226
  %v1245 = vld [vmem:[%s1002] sm:$0xf]
  %v1246 = vld [vmem:[%s1002 + $0x4] sm:$0x1]
  %v1247 = vld [vmem:[%s1002 + $0x8] sm:$0xf]
  %v1248 = vld [vmem:[%s1002 + $0xc] sm:$0x1]
  %v1249 = vld [vmem:[%s1002 + $0x10] sm:$0xf]
  %v1250 = vld [vmem:[%s1002 + $0x14] sm:$0x1]
  %v1251 = vld [vmem:[%s1002 + $0x18] sm:$0xf]
  %v1252 = vld [vmem:[%s1002 + $0x1c] sm:$0x1]
  %v1253 = vld [vmem:[%s1002 + $0x20] sm:$0xf]
  %v1254 = vld [vmem:[%s1002 + $0x24] sm:$0x1]
  %v1255 = vld [vmem:[%s1002 + $0x28] sm:$0xf]
  %v1256 = vld [vmem:[%s1002 + $0x2c] sm:$0x1]
  %v1257 = vld [vmem:[%s1002 + $0x30] sm:$0xf]
  %v1258 = vld [vmem:[%s1002 + $0x34] sm:$0x1]
  %v1259 = vld [vmem:[%s1002 + $0x38] sm:$0xf]
  %v1260 = vld [vmem:[%s1002 + $0x3c] sm:$0x1]
  %v1261 = vld [vmem:[%s1002 + $0x50] sm:$0xf]
  %v1262 = vld [vmem:[%s1002 + $0x54] sm:$0x1]
  %v1263 = vld [vmem:[%s1002 + $0x58] sm:$0xf]
  %v1264 = vld [vmem:[%s1002 + $0x5c] sm:$0x1]
  %v1265 = vld [vmem:[%s1002 + $0x60] sm:$0xf]
  %v1266 = vld [vmem:[%s1002 + $0x64] sm:$0x1]
  %v1267 = vld [vmem:[%s1002 + $0x68] sm:$0xf]
  %v1268 = vld [vmem:[%s1002 + $0x6c] sm:$0x1]
  %v1269 = vld [vmem:[%s1002 + $0x70] sm:$0xf]
  %v1270 = vld [vmem:[%s1002 + $0x74] sm:$0x1]
  %v1271 = vld [vmem:[%s1002 + $0x78] sm:$0xf]
  %v1272 = vld [vmem:[%s1002 + $0x7c] sm:$0x1]
  %v1273 = vld [vmem:[%s1002 + $0x80] sm:$0xf]
  %v1274 = vld [vmem:[%s1002 + $0x84] sm:$0x1]
  %v1275 = vld [vmem:[%s1002 + $0x88] sm:$0xf]
  %v1276 = vld [vmem:[%s1002 + $0x8c] sm:$0x1]
  %v1278 = vshrl.u32 %v1245, 16
  %v1280 = vrot.slane %v1278, 4
  %v1281 = vshll.u32 %v1245, 16
  %v1283 = vrot.slane %v1281, 5
  %v1284 = vor.u32 %v1280, %v1283
  %v1285 = vrot.slane %v1284, 4
  %v1287 = vshll.u32 %v1246, 16
  %v1289 = vrot.slane %v1287, 5
  %v1290 = vsel %vm65, %v1285, %v1289
  %v1292 = vshrl.u32 %v1247, 16
  %v1294 = vrot.slane %v1292, 4
  %v1295 = vshll.u32 %v1247, 16
  %v1297 = vrot.slane %v1295, 5
  %v1298 = vor.u32 %v1294, %v1297
  %v1299 = vrot.slane %v1298, 4
  %v1301 = vshll.u32 %v1248, 16
  %v1303 = vrot.slane %v1301, 5
  %v1304 = vsel %vm65, %v1299, %v1303
  %v1306 = vshrl.u32 %v1249, 16
  %v1308 = vrot.slane %v1306, 4
  %v1309 = vshll.u32 %v1249, 16
  %v1311 = vrot.slane %v1309, 5
  %v1312 = vor.u32 %v1308, %v1311
  %v1313 = vrot.slane %v1312, 4
  %v1315 = vshll.u32 %v1250, 16
  %v1317 = vrot.slane %v1315, 5
  %v1318 = vsel %vm65, %v1313, %v1317
  %v1320 = vshrl.u32 %v1251, 16
  %v1322 = vrot.slane %v1320, 4
  %v1323 = vshll.u32 %v1251, 16
  %v1325 = vrot.slane %v1323, 5
  %v1326 = vor.u32 %v1322, %v1325
  %v1327 = vrot.slane %v1326, 4
  %v1329 = vshll.u32 %v1252, 16
  %v1331 = vrot.slane %v1329, 5
  %v1332 = vsel %vm65, %v1327, %v1331
  %v1334 = vshrl.u32 %v1253, 16
  %v1336 = vrot.slane %v1334, 4
  %v1337 = vshll.u32 %v1253, 16
  %v1339 = vrot.slane %v1337, 5
  %v1340 = vor.u32 %v1336, %v1339
  %v1341 = vrot.slane %v1340, 4
  %v1343 = vshll.u32 %v1254, 16
  %v1345 = vrot.slane %v1343, 5
  %v1346 = vsel %vm65, %v1341, %v1345
  %v1348 = vshrl.u32 %v1255, 16
  %v1350 = vrot.slane %v1348, 4
  %v1351 = vshll.u32 %v1255, 16
  %v1353 = vrot.slane %v1351, 5
  %v1354 = vor.u32 %v1350, %v1353
  %v1355 = vrot.slane %v1354, 4
  %v1357 = vshll.u32 %v1256, 16
  %v1359 = vrot.slane %v1357, 5
  %v1360 = vsel %vm65, %v1355, %v1359
  %v1362 = vshrl.u32 %v1257, 16
  %v1364 = vrot.slane %v1362, 4
  %v1365 = vshll.u32 %v1257, 16
  %v1367 = vrot.slane %v1365, 5
  %v1368 = vor.u32 %v1364, %v1367
  %v1369 = vrot.slane %v1368, 4
  %v1371 = vshll.u32 %v1258, 16
  %v1373 = vrot.slane %v1371, 5
  %v1374 = vsel %vm65, %v1369, %v1373
  %v1376 = vshrl.u32 %v1259, 16
  %v1378 = vrot.slane %v1376, 4
  %v1379 = vshll.u32 %v1259, 16
  %v1381 = vrot.slane %v1379, 5
  %v1382 = vor.u32 %v1378, %v1381
  %v1383 = vrot.slane %v1382, 4
  %v1385 = vshll.u32 %v1260, 16
  %v1387 = vrot.slane %v1385, 5
  %v1388 = vsel %vm65, %v1383, %v1387
  %v1390 = vshrl.u32 %v1261, 16
  %v1392 = vrot.slane %v1390, 4
  %v1393 = vshll.u32 %v1261, 16
  %v1395 = vrot.slane %v1393, 5
  %v1396 = vor.u32 %v1392, %v1395
  %v1397 = vrot.slane %v1396, 4
  %v1399 = vshll.u32 %v1262, 16
  %v1401 = vrot.slane %v1399, 5
  %v1402 = vsel %vm65, %v1397, %v1401
  %v1404 = vshrl.u32 %v1263, 16
  %v1406 = vrot.slane %v1404, 4
  %v1407 = vshll.u32 %v1263, 16
  %v1409 = vrot.slane %v1407, 5
  %v1410 = vor.u32 %v1406, %v1409
  %v1411 = vrot.slane %v1410, 4
  %v1413 = vshll.u32 %v1264, 16
  %v1415 = vrot.slane %v1413, 5
  %v1416 = vsel %vm65, %v1411, %v1415
  %v1418 = vshrl.u32 %v1265, 16
  %v1420 = vrot.slane %v1418, 4
  %v1421 = vshll.u32 %v1265, 16
  %v1423 = vrot.slane %v1421, 5
  %v1424 = vor.u32 %v1420, %v1423
  %v1425 = vrot.slane %v1424, 4
  %v1427 = vshll.u32 %v1266, 16
  %v1429 = vrot.slane %v1427, 5
  %v1430 = vsel %vm65, %v1425, %v1429
  %v1432 = vshrl.u32 %v1267, 16
  %v1434 = vrot.slane %v1432, 4
  %v1435 = vshll.u32 %v1267, 16
  %v1437 = vrot.slane %v1435, 5
  %v1438 = vor.u32 %v1434, %v1437
  %v1439 = vrot.slane %v1438, 4
  %v1441 = vshll.u32 %v1268, 16
  %v1443 = vrot.slane %v1441, 5
  %v1444 = vsel %vm65, %v1439, %v1443
  %v1446 = vshrl.u32 %v1269, 16
  %v1448 = vrot.slane %v1446, 4
  %v1449 = vshll.u32 %v1269, 16
  %v1451 = vrot.slane %v1449, 5
  %v1452 = vor.u32 %v1448, %v1451
  %v1453 = vrot.slane %v1452, 4
  %v1455 = vshll.u32 %v1270, 16
  %v1457 = vrot.slane %v1455, 5
  %v1458 = vsel %vm65, %v1453, %v1457
  %v1460 = vshrl.u32 %v1271, 16
  %v1462 = vrot.slane %v1460, 4
  %v1463 = vshll.u32 %v1271, 16
  %v1465 = vrot.slane %v1463, 5
  %v1466 = vor.u32 %v1462, %v1465
  %v1467 = vrot.slane %v1466, 4
  %v1469 = vshll.u32 %v1272, 16
  %v1471 = vrot.slane %v1469, 5
  %v1472 = vsel %vm65, %v1467, %v1471
  %v1474 = vshrl.u32 %v1273, 16
  %v1476 = vrot.slane %v1474, 4
  %v1477 = vshll.u32 %v1273, 16
  %v1479 = vrot.slane %v1477, 5
  %v1480 = vor.u32 %v1476, %v1479
  %v1481 = vrot.slane %v1480, 4
  %v1483 = vshll.u32 %v1274, 16
  %v1485 = vrot.slane %v1483, 5
  %v1486 = vsel %vm65, %v1481, %v1485
  %v1488 = vshrl.u32 %v1275, 16
  %v1490 = vrot.slane %v1488, 4
  %v1491 = vshll.u32 %v1275, 16
  %v1493 = vrot.slane %v1491, 5
  %v1494 = vor.u32 %v1490, %v1493
  %v1495 = vrot.slane %v1494, 4
  %v1497 = vshll.u32 %v1276, 16
  %v1499 = vrot.slane %v1497, 5
  %v1500 = vsel %vm65, %v1495, %v1499
  %s1501 = scalar_lea.vmem %s1, 256
  %v1502 = vld [vmem:[%s1501] sm:$0xf]
  %v1503 = vld [vmem:[%s1501 + $0x4] sm:$0xf]
  %v1504 = vld [vmem:[%s1501 + $0x8] sm:$0xf]
  %v1505 = vld [vmem:[%s1501 + $0xc] sm:$0xf]
  %v1506 = vld [vmem:[%s1501 + $0x10] sm:$0xf]
  %v1507 = vld [vmem:[%s1501 + $0x14] sm:$0xf]
  %v1508 = vld [vmem:[%s1501 + $0x18] sm:$0xf]
  %v1509 = vld [vmem:[%s1501 + $0x1c] sm:$0xf]
  %v1510 = vld [vmem:[%s1501 + $0x20] sm:$0xf]
  %v1511 = vld [vmem:[%s1501 + $0x24] sm:$0xf]
  %v1512 = vld [vmem:[%s1501 + $0x28] sm:$0xf]
  %v1513 = vld [vmem:[%s1501 + $0x2c] sm:$0xf]
  %v1514 = vld [vmem:[%s1501 + $0x30] sm:$0xf]
  %v1515 = vld [vmem:[%s1501 + $0x34] sm:$0xf]
  %v1516 = vld [vmem:[%s1501 + $0x38] sm:$0xf]
  %v1517 = vld [vmem:[%s1501 + $0x3c] sm:$0xf]
  %v1518 = vunpack.c.l.b16 %v1290
  %v1519 = vunpack.c.l.b16 %v1304
  %v1520 = vunpack.c.l.b16 %v1318
  %v1521 = vunpack.c.l.b16 %v1332
  %v1522 = vunpack.c.l.b16 %v1346
  %v1523 = vunpack.c.l.b16 %v1360
  %v1524 = vunpack.c.l.b16 %v1374
  %v1525 = vunpack.c.l.b16 %v1388
  %v1526 = vunpack.c.l.b16 %v1402
  %v1527 = vunpack.c.l.b16 %v1416
  %v1528 = vunpack.c.l.b16 %v1430
  %v1529 = vunpack.c.l.b16 %v1444
  %v1530 = vunpack.c.l.b16 %v1458
  %v1531 = vunpack.c.l.b16 %v1472
  %v1532 = vunpack.c.l.b16 %v1486
  %v1533 = vunpack.c.l.b16 %v1500
  %v1534 = vpack.c.b16 %v1519, %v1518
  %v1535 = vpack.c.b16 %v1521, %v1520
  %v1536 = vpack.c.b16 %v1523, %v1522
  %v1537 = vpack.c.b16 %v1525, %v1524
  %v1538 = vpack.c.b16 %v1527, %v1526
  %v1539 = vpack.c.b16 %v1529, %v1528
  %v1540 = vpack.c.b16 %v1531, %v1530
  %v1541 = vpack.c.b16 %v1533, %v1532
  %v1566 = vunpack.c.l.b16 %v1502
  %v1567 = vunpack.c.l.b16 %v1503
  %v1568 = vunpack.c.l.b16 %v1504
  %v1569 = vunpack.c.l.b16 %v1505
  %v1570 = vunpack.c.l.b16 %v1506
  %v1571 = vunpack.c.l.b16 %v1507
  %v1572 = vunpack.c.l.b16 %v1508
  %v1573 = vunpack.c.l.b16 %v1509
  %v1574 = vunpack.c.l.b16 %v1510
  %v1575 = vunpack.c.l.b16 %v1511
  %v1576 = vunpack.c.l.b16 %v1512
  %v1577 = vunpack.c.l.b16 %v1513
  %v1578 = vunpack.c.l.b16 %v1514
  %v1579 = vunpack.c.l.b16 %v1515
  %v1580 = vunpack.c.l.b16 %v1516
  %v1581 = vunpack.c.l.b16 %v1517
  %v1582 = vpack.c.b16 %v1567, %v1566
  %v1583 = vpack.c.b16 %v1569, %v1568
  %v1584 = vpack.c.b16 %v1571, %v1570
  %v1585 = vpack.c.b16 %v1573, %v1572
  %v1586 = vpack.c.b16 %v1575, %v1574
  %v1587 = vpack.c.b16 %v1577, %v1576
  %v1588 = vpack.c.b16 %v1579, %v1578
  %v1589 = vpack.c.b16 %v1581, %v1580
  %1598 = vmatprep.subr.bf16.mxu0 0
  %1599 = vmatpush1.bf16.msra.mxu0 %v1582
  %1600 = vmatprep.subr.bf16.mxu0 0
  %1601 = vmatpush1.bf16.msra.mxu0 %v1583
  %1602 = vmatprep.subr.bf16.mxu0 0
  %1603 = vmatpush1.bf16.msra.mxu0 %v1584
  %1604 = vmatprep.subr.bf16.mxu0 0
  %1605 = vmatpush1.bf16.msra.mxu0 %v1585
  %1606 = vmatprep.subr.bf16.mxu0 0
  %1607 = vmatpush1.bf16.msra.mxu0 %v1586
  %1608 = vmatprep.subr.bf16.mxu0 0
  %1609 = vmatpush1.bf16.msra.mxu0 %v1587
  %1610 = vmatprep.subr.bf16.mxu0 0
  %1611 = vmatpush1.bf16.msra.mxu0 %v1588
  %1612 = vmatprep.subr.bf16.mxu0 0
  %1613 = vmatpush1.bf16.msra.mxu0 %v1589
  %1614 = vmatprep.subr.bf16.mxu0 0
  %1615 = vmatpush1.bf16.msra.mxu0 0
  %1616 = vmatprep.subr.bf16.mxu0 0
  %1617 = vmatpush1.bf16.msra.mxu0 0
  %1618 = vmatprep.subr.bf16.mxu0 0
  %1619 = vmatpush1.bf16.msra.mxu0 0
  %1620 = vmatprep.subr.bf16.mxu0 0
  %1621 = vmatpush1.bf16.msra.mxu0 0
  %1622 = vmatprep.subr.bf16.mxu0 0
  %1623 = vmatpush1.bf16.msra.mxu0 0
  %1624 = vmatprep.subr.bf16.mxu0 0
  %1625 = vmatpush1.bf16.msra.mxu0 0
  %1626 = vmatprep.subr.bf16.mxu0 0
  %1627 = vmatpush1.bf16.msra.mxu0 0
  %1628 = vmatprep.subr.bf16.mxu0 0
  %1629 = vmatpush1.bf16.msra.mxu0 0
  %1630 = vmatprep.mubr.bf16.mxu0 0
  %1631 = vmatmul.mubr.bf16.gmra.mrb[0].mxu0 %v1534
  %v1632 = vpop.f32.mrb[0].mxu0
  %v1633 = vadd.f32 0.0, %v1632
  %v1634 = vpop.f32.mrb[0].mxu0
  %v1635 = vpop.f32.mrb[0].mxu0
  %v1636 = vadd.f32 0.0, %v1635
  %v1637 = vpop.f32.mrb[0].mxu0
  %1638 = vmatprep.mubr.bf16.mxu0 0
  %1639 = vmatmul.mubr.bf16.gmra.mrb[0].mxu0 %v1535
  %v1640 = vpop.f32.mrb[0].mxu0
  %v1641 = vadd.f32 0.0, %v1640
  %v1642 = vpop.f32.mrb[0].mxu0
  %v1643 = vpop.f32.mrb[0].mxu0
  %v1644 = vadd.f32 0.0, %v1643
  %v1645 = vpop.f32.mrb[0].mxu0
  %1646 = vmatprep.mubr.bf16.mxu0 0
  %1647 = vmatmul.mubr.bf16.gmra.mrb[0].mxu0 %v1536
  %v1648 = vpop.f32.mrb[0].mxu0
  %v1649 = vadd.f32 0.0, %v1648
  %v1650 = vpop.f32.mrb[0].mxu0
  %v1651 = vpop.f32.mrb[0].mxu0
  %v1652 = vadd.f32 0.0, %v1651
  %v1653 = vpop.f32.mrb[0].mxu0
  %1654 = vmatprep.mubr.bf16.mxu0 0
  %1655 = vmatmul.mubr.bf16.gmra.mrb[0].mxu0 %v1537
  %v1656 = vpop.f32.mrb[0].mxu0
  %v1657 = vadd.f32 0.0, %v1656
  %v1658 = vpop.f32.mrb[0].mxu0
  %v1659 = vpop.f32.mrb[0].mxu0
  %v1660 = vadd.f32 0.0, %v1659
  %v1661 = vpop.f32.mrb[0].mxu0
  %1662 = vmatprep.mubr.bf16.mxu0 0
  %1663 = vmatmul.mubr.bf16.gmra.mrb[0].mxu0 %v1538
  %v1664 = vpop.f32.mrb[0].mxu0
  %v1665 = vadd.f32 0.0, %v1664
  %v1666 = vpop.f32.mrb[0].mxu0
  %v1667 = vpop.f32.mrb[0].mxu0
  %v1668 = vadd.f32 0.0, %v1667
  %v1669 = vpop.f32.mrb[0].mxu0
  %1670 = vmatprep.mubr.bf16.mxu0 0
  %1671 = vmatmul.mubr.bf16.gmra.mrb[0].mxu0 %v1539
  %v1672 = vpop.f32.mrb[0].mxu0
  %v1673 = vadd.f32 0.0, %v1672
  %v1674 = vpop.f32.mrb[0].mxu0
  %v1675 = vpop.f32.mrb[0].mxu0
  %v1676 = vadd.f32 0.0, %v1675
  %v1677 = vpop.f32.mrb[0].mxu0
  %1678 = vmatprep.mubr.bf16.mxu0 0
  %1679 = vmatmul.mubr.bf16.gmra.mrb[0].mxu0 %v1540
  %v1680 = vpop.f32.mrb[0].mxu0
  %v1681 = vadd.f32 0.0, %v1680
  %v1682 = vpop.f32.mrb[0].mxu0
  %v1683 = vpop.f32.mrb[0].mxu0
  %v1684 = vadd.f32 0.0, %v1683
  %v1685 = vpop.f32.mrb[0].mxu0
  %1686 = vmatprep.mubr.bf16.mxu0 0
  %1687 = vmatmul.mubr.bf16.gmra.mrb[0].mxu0 %v1541
  %v1688 = vpop.f32.mrb[0].mxu0
  %v1689 = vadd.f32 0.0, %v1688
  %v1690 = vpop.f32.mrb[0].mxu0
  %v1691 = vpop.f32.mrb[0].mxu0
  %v1692 = vadd.f32 0.0, %v1691
  %v1693 = vpop.f32.mrb[0].mxu0
  %1694 = vdwg.mxu0
  %v1695 = vadd.f32 %v1229, %v1633
  %v1696 = vadd.f32 %v1230, %v1636
  %v1697 = vadd.f32 %v1231, %v1641
  %v1698 = vadd.f32 %v1232, %v1644
  %v1699 = vadd.f32 %v1233, %v1649
  %v1700 = vadd.f32 %v1234, %v1652
  %v1701 = vadd.f32 %v1235, %v1657
  %v1702 = vadd.f32 %v1236, %v1660
  %v1703 = vadd.f32 %v1237, %v1665
  %v1704 = vadd.f32 %v1238, %v1668
  %v1705 = vadd.f32 %v1239, %v1673
  %v1706 = vadd.f32 %v1240, %v1676
  %v1707 = vadd.f32 %v1241, %v1681
  %v1708 = vadd.f32 %v1242, %v1684
  %v1709 = vadd.f32 %v1243, %v1689
  %v1710 = vadd.f32 %v1244, %v1692
  %v1711 = vld [vmem:[%s1002] sm:$0xe]
  %v1712 = vld [vmem:[%s1002 + $0x8] sm:$0xe]
  %v1713 = vld [vmem:[%s1002 + $0x10] sm:$0xe]
  %v1714 = vld [vmem:[%s1002 + $0x18] sm:$0xe]
  %v1715 = vld [vmem:[%s1002 + $0x20] sm:$0xe]
  %v1716 = vld [vmem:[%s1002 + $0x28] sm:$0xe]
  %v1717 = vld [vmem:[%s1002 + $0x30] sm:$0xe]
  %v1718 = vld [vmem:[%s1002 + $0x38] sm:$0xe]
  %v1719 = vld [vmem:[%s1002 + $0x50] sm:$0xe]
  %v1720 = vld [vmem:[%s1002 + $0x58] sm:$0xe]
  %v1721 = vld [vmem:[%s1002 + $0x60] sm:$0xe]
  %v1722 = vld [vmem:[%s1002 + $0x68] sm:$0xe]
  %v1723 = vld [vmem:[%s1002 + $0x70] sm:$0xe]
  %v1724 = vld [vmem:[%s1002 + $0x78] sm:$0xe]
  %v1725 = vld [vmem:[%s1002 + $0x80] sm:$0xe]
  %v1726 = vld [vmem:[%s1002 + $0x88] sm:$0xe]
  %v1759 = vrot.slane %v1711, 5
  %v1760 = vrot.slane %v1759, 4
  %v1761 = vrot.slane %v1246, 5
  %v1762 = vsel %vm727, %v1760, %v1761
  %v1763 = vrot.slane %v1712, 5
  %v1764 = vrot.slane %v1763, 4
  %v1765 = vrot.slane %v1248, 5
  %v1766 = vsel %vm727, %v1764, %v1765
  %v1767 = vrot.slane %v1713, 5
  %v1768 = vrot.slane %v1767, 4
  %v1769 = vrot.slane %v1250, 5
  %v1770 = vsel %vm727, %v1768, %v1769
  %v1771 = vrot.slane %v1714, 5
  %v1772 = vrot.slane %v1771, 4
  %v1773 = vrot.slane %v1252, 5
  %v1774 = vsel %vm727, %v1772, %v1773
  %v1775 = vrot.slane %v1715, 5
  %v1776 = vrot.slane %v1775, 4
  %v1777 = vrot.slane %v1254, 5
  %v1778 = vsel %vm727, %v1776, %v1777
  %v1779 = vrot.slane %v1716, 5
  %v1780 = vrot.slane %v1779, 4
  %v1781 = vrot.slane %v1256, 5
  %v1782 = vsel %vm727, %v1780, %v1781
  %v1783 = vrot.slane %v1717, 5
  %v1784 = vrot.slane %v1783, 4
  %v1785 = vrot.slane %v1258, 5
  %v1786 = vsel %vm727, %v1784, %v1785
  %v1787 = vrot.slane %v1718, 5
  %v1788 = vrot.slane %v1787, 4
  %v1789 = vrot.slane %v1260, 5
  %v1790 = vsel %vm727, %v1788, %v1789
  %v1791 = vrot.slane %v1719, 5
  %v1792 = vrot.slane %v1791, 4
  %v1793 = vrot.slane %v1262, 5
  %v1794 = vsel %vm727, %v1792, %v1793
  %v1795 = vrot.slane %v1720, 5
  %v1796 = vrot.slane %v1795, 4
  %v1797 = vrot.slane %v1264, 5
  %v1798 = vsel %vm727, %v1796, %v1797
  %v1799 = vrot.slane %v1721, 5
  %v1800 = vrot.slane %v1799, 4
  %v1801 = vrot.slane %v1266, 5
  %v1802 = vsel %vm727, %v1800, %v1801
  %v1803 = vrot.slane %v1722, 5
  %v1804 = vrot.slane %v1803, 4
  %v1805 = vrot.slane %v1268, 5
  %v1806 = vsel %vm727, %v1804, %v1805
  %v1807 = vrot.slane %v1723, 5
  %v1808 = vrot.slane %v1807, 4
  %v1809 = vrot.slane %v1270, 5
  %v1810 = vsel %vm727, %v1808, %v1809
  %v1811 = vrot.slane %v1724, 5
  %v1812 = vrot.slane %v1811, 4
  %v1813 = vrot.slane %v1272, 5
  %v1814 = vsel %vm727, %v1812, %v1813
  %v1815 = vrot.slane %v1725, 5
  %v1816 = vrot.slane %v1815, 4
  %v1817 = vrot.slane %v1274, 5
  %v1818 = vsel %vm727, %v1816, %v1817
  %v1819 = vrot.slane %v1726, 5
  %v1820 = vrot.slane %v1819, 4
  %v1821 = vrot.slane %v1276, 5
  %v1822 = vsel %vm727, %v1820, %v1821
  %s1823 = scalar_lea.vmem %s1, 320
  %v1824 = vld [vmem:[%s1823] sm:$0xf]
  %v1825 = vld [vmem:[%s1823 + $0x4] sm:$0xf]
  %v1826 = vld [vmem:[%s1823 + $0x8] sm:$0xf]
  %v1827 = vld [vmem:[%s1823 + $0xc] sm:$0xf]
  %v1828 = vld [vmem:[%s1823 + $0x10] sm:$0xf]
  %v1829 = vld [vmem:[%s1823 + $0x14] sm:$0xf]
  %v1830 = vld [vmem:[%s1823 + $0x18] sm:$0xf]
  %v1831 = vld [vmem:[%s1823 + $0x1c] sm:$0xf]
  %v1832 = vld [vmem:[%s1823 + $0x20] sm:$0xf]
  %v1833 = vld [vmem:[%s1823 + $0x24] sm:$0xf]
  %v1834 = vld [vmem:[%s1823 + $0x28] sm:$0xf]
  %v1835 = vld [vmem:[%s1823 + $0x2c] sm:$0xf]
  %v1836 = vld [vmem:[%s1823 + $0x30] sm:$0xf]
  %v1837 = vld [vmem:[%s1823 + $0x34] sm:$0xf]
  %v1838 = vld [vmem:[%s1823 + $0x38] sm:$0xf]
  %v1839 = vld [vmem:[%s1823 + $0x3c] sm:$0xf]
  %v1840 = vunpack.c.l.b16 %v1762
  %v1841 = vunpack.c.l.b16 %v1766
  %v1842 = vunpack.c.l.b16 %v1770
  %v1843 = vunpack.c.l.b16 %v1774
  %v1844 = vunpack.c.l.b16 %v1778
  %v1845 = vunpack.c.l.b16 %v1782
  %v1846 = vunpack.c.l.b16 %v1786
  %v1847 = vunpack.c.l.b16 %v1790
  %v1848 = vunpack.c.l.b16 %v1794
  %v1849 = vunpack.c.l.b16 %v1798
  %v1850 = vunpack.c.l.b16 %v1802
  %v1851 = vunpack.c.l.b16 %v1806
  %v1852 = vunpack.c.l.b16 %v1810
  %v1853 = vunpack.c.l.b16 %v1814
  %v1854 = vunpack.c.l.b16 %v1818
  %v1855 = vunpack.c.l.b16 %v1822
  %v1856 = vpack.c.b16 %v1841, %v1840
  %v1857 = vpack.c.b16 %v1843, %v1842
  %v1858 = vpack.c.b16 %v1845, %v1844
  %v1859 = vpack.c.b16 %v1847, %v1846
  %v1860 = vpack.c.b16 %v1849, %v1848
  %v1861 = vpack.c.b16 %v1851, %v1850
  %v1862 = vpack.c.b16 %v1853, %v1852
  %v1863 = vpack.c.b16 %v1855, %v1854
  %v1888 = vunpack.c.l.b16 %v1824
  %v1889 = vunpack.c.l.b16 %v1825
  %v1890 = vunpack.c.l.b16 %v1826
  %v1891 = vunpack.c.l.b16 %v1827
  %v1892 = vunpack.c.l.b16 %v1828
  %v1893 = vunpack.c.l.b16 %v1829
  %v1894 = vunpack.c.l.b16 %v1830
  %v1895 = vunpack.c.l.b16 %v1831
  %v1896 = vunpack.c.l.b16 %v1832
  %v1897 = vunpack.c.l.b16 %v1833
  %v1898 = vunpack.c.l.b16 %v1834
  %v1899 = vunpack.c.l.b16 %v1835
  %v1900 = vunpack.c.l.b16 %v1836
  %v1901 = vunpack.c.l.b16 %v1837
  %v1902 = vunpack.c.l.b16 %v1838
  %v1903 = vunpack.c.l.b16 %v1839
  %v1904 = vpack.c.b16 %v1889, %v1888
  %v1905 = vpack.c.b16 %v1891, %v1890
  %v1906 = vpack.c.b16 %v1893, %v1892
  %v1907 = vpack.c.b16 %v1895, %v1894
  %v1908 = vpack.c.b16 %v1897, %v1896
  %v1909 = vpack.c.b16 %v1899, %v1898
  %v1910 = vpack.c.b16 %v1901, %v1900
  %v1911 = vpack.c.b16 %v1903, %v1902
  %1920 = vmatprep.subr.bf16.mxu0 0
  %1921 = vmatpush1.bf16.msra.mxu0 %v1904
  %1922 = vmatprep.subr.bf16.mxu0 0
  %1923 = vmatpush1.bf16.msra.mxu0 %v1905
  %1924 = vmatprep.subr.bf16.mxu0 0
  %1925 = vmatpush1.bf16.msra.mxu0 %v1906
  %1926 = vmatprep.subr.bf16.mxu0 0
  %1927 = vmatpush1.bf16.msra.mxu0 %v1907
  %1928 = vmatprep.subr.bf16.mxu0 0
  %1929 = vmatpush1.bf16.msra.mxu0 %v1908
  %1930 = vmatprep.subr.bf16.mxu0 0
  %1931 = vmatpush1.bf16.msra.mxu0 %v1909
  %1932 = vmatprep.subr.bf16.mxu0 0
  %1933 = vmatpush1.bf16.msra.mxu0 %v1910
  %1934 = vmatprep.subr.bf16.mxu0 0
  %1935 = vmatpush1.bf16.msra.mxu0 %v1911
  %1936 = vmatprep.subr.bf16.mxu0 0
  %1937 = vmatpush1.bf16.msra.mxu0 0
  %1938 = vmatprep.subr.bf16.mxu0 0
  %1939 = vmatpush1.bf16.msra.mxu0 0
  %1940 = vmatprep.subr.bf16.mxu0 0
  %1941 = vmatpush1.bf16.msra.mxu0 0
  %1942 = vmatprep.subr.bf16.mxu0 0
  %1943 = vmatpush1.bf16.msra.mxu0 0
  %1944 = vmatprep.subr.bf16.mxu0 0
  %1945 = vmatpush1.bf16.msra.mxu0 0
  %1946 = vmatprep.subr.bf16.mxu0 0
  %1947 = vmatpush1.bf16.msra.mxu0 0
  %1948 = vmatprep.subr.bf16.mxu0 0
  %1949 = vmatpush1.bf16.msra.mxu0 0
  %1950 = vmatprep.subr.bf16.mxu0 0
  %1951 = vmatpush1.bf16.msra.mxu0 0
  %1952 = vmatprep.mubr.bf16.mxu0 0
  %1953 = vmatmul.mubr.bf16.gmra.mrb[0].mxu0 %v1856
  %v1954 = vpop.f32.mrb[0].mxu0
  %v1955 = vadd.f32 0.0, %v1954
  %v1956 = vpop.f32.mrb[0].mxu0
  %v1957 = vpop.f32.mrb[0].mxu0
  %v1958 = vadd.f32 0.0, %v1957
  %v1959 = vpop.f32.mrb[0].mxu0
  %1960 = vmatprep.mubr.bf16.mxu0 0
  %1961 = vmatmul.mubr.bf16.gmra.mrb[0].mxu0 %v1857
  %v1962 = vpop.f32.mrb[0].mxu0
  %v1963 = vadd.f32 0.0, %v1962
  %v1964 = vpop.f32.mrb[0].mxu0
  %v1965 = vpop.f32.mrb[0].mxu0
  %v1966 = vadd.f32 0.0, %v1965
  %v1967 = vpop.f32.mrb[0].mxu0
  %1968 = vmatprep.mubr.bf16.mxu0 0
  %1969 = vmatmul.mubr.bf16.gmra.mrb[0].mxu0 %v1858
  %v1970 = vpop.f32.mrb[0].mxu0
  %v1971 = vadd.f32 0.0, %v1970
  %v1972 = vpop.f32.mrb[0].mxu0
  %v1973 = vpop.f32.mrb[0].mxu0
  %v1974 = vadd.f32 0.0, %v1973
  %v1975 = vpop.f32.mrb[0].mxu0
  %1976 = vmatprep.mubr.bf16.mxu0 0
  %1977 = vmatmul.mubr.bf16.gmra.mrb[0].mxu0 %v1859
  %v1978 = vpop.f32.mrb[0].mxu0
  %v1979 = vadd.f32 0.0, %v1978
  %v1980 = vpop.f32.mrb[0].mxu0
  %v1981 = vpop.f32.mrb[0].mxu0
  %v1982 = vadd.f32 0.0, %v1981
  %v1983 = vpop.f32.mrb[0].mxu0
  %1984 = vmatprep.mubr.bf16.mxu0 0
  %1985 = vmatmul.mubr.bf16.gmra.mrb[0].mxu0 %v1860
  %v1986 = vpop.f32.mrb[0].mxu0
  %v1987 = vadd.f32 0.0, %v1986
  %v1988 = vpop.f32.mrb[0].mxu0
  %v1989 = vpop.f32.mrb[0].mxu0
  %v1990 = vadd.f32 0.0, %v1989
  %v1991 = vpop.f32.mrb[0].mxu0
  %1992 = vmatprep.mubr.bf16.mxu0 0
  %1993 = vmatmul.mubr.bf16.gmra.mrb[0].mxu0 %v1861
  %v1994 = vpop.f32.mrb[0].mxu0
  %v1995 = vadd.f32 0.0, %v1994
  %v1996 = vpop.f32.mrb[0].mxu0
  %v1997 = vpop.f32.mrb[0].mxu0
  %v1998 = vadd.f32 0.0, %v1997
  %v1999 = vpop.f32.mrb[0].mxu0
  %2000 = vmatprep.mubr.bf16.mxu0 0
  %2001 = vmatmul.mubr.bf16.gmra.mrb[0].mxu0 %v1862
  %v2002 = vpop.f32.mrb[0].mxu0
  %v2003 = vadd.f32 0.0, %v2002
  %v2004 = vpop.f32.mrb[0].mxu0
  %v2005 = vpop.f32.mrb[0].mxu0
  %v2006 = vadd.f32 0.0, %v2005
  %v2007 = vpop.f32.mrb[0].mxu0
  %2008 = vmatprep.mubr.bf16.mxu0 0
  %2009 = vmatmul.mubr.bf16.gmra.mrb[0].mxu0 %v1863
  %v2010 = vpop.f32.mrb[0].mxu0
  %v2011 = vadd.f32 0.0, %v2010
  %v2012 = vpop.f32.mrb[0].mxu0
  %v2013 = vpop.f32.mrb[0].mxu0
  %v2014 = vadd.f32 0.0, %v2013
  %v2015 = vpop.f32.mrb[0].mxu0
  %2016 = vdwg.mxu0
  %v2017 = vadd.f32 %v1695, %v1955
  %v2018 = vadd.f32 %v1696, %v1958
  %v2019 = vadd.f32 %v1697, %v1963
  %v2020 = vadd.f32 %v1698, %v1966
  %v2021 = vadd.f32 %v1699, %v1971
  %v2022 = vadd.f32 %v1700, %v1974
  %v2023 = vadd.f32 %v1701, %v1979
  %v2024 = vadd.f32 %v1702, %v1982
  %v2025 = vadd.f32 %v1703, %v1987
  %v2026 = vadd.f32 %v1704, %v1990
  %v2027 = vadd.f32 %v1705, %v1995
  %v2028 = vadd.f32 %v1706, %v1998
  %v2029 = vadd.f32 %v1707, %v2003
  %v2030 = vadd.f32 %v1708, %v2006
  %v2031 = vadd.f32 %v1709, %v2011
  %v2032 = vadd.f32 %v1710, %v2014
  %s2033 = scalar_lea.vmem %s0, 16
  %v2034 = vld [vmem:[%s2033] sm:$0xf]
  %v2035 = vld [vmem:[%s2033 + $0x8] sm:$0xf]
  %v2036 = vld [vmem:[%s2033 + $0x10] sm:$0xf]
  %v2037 = vld [vmem:[%s2033 + $0x18] sm:$0xf]
  %v2038 = vld [vmem:[%s2033 + $0x20] sm:$0xf]
  %v2039 = vld [vmem:[%s2033 + $0x28] sm:$0xf]
  %v2040 = vld [vmem:[%s2033 + $0x30] sm:$0xf]
  %v2041 = vld [vmem:[%s2033 + $0x38] sm:$0xf]
  %v2042 = vld [vmem:[%s2033 + $0x50] sm:$0xf]
  %v2043 = vld [vmem:[%s2033 + $0x58] sm:$0xf]
  %v2044 = vld [vmem:[%s2033 + $0x60] sm:$0xf]
  %v2045 = vld [vmem:[%s2033 + $0x68] sm:$0xf]
  %v2046 = vld [vmem:[%s2033 + $0x70] sm:$0xf]
  %v2047 = vld [vmem:[%s2033 + $0x78] sm:$0xf]
  %v2048 = vld [vmem:[%s2033 + $0x80] sm:$0xf]
  %v2049 = vld [vmem:[%s2033 + $0x88] sm:$0xf]
  %s2050 = scalar_lea.vmem %s1, 384
  %v2051 = vld [vmem:[%s2050] sm:$0xf]
  %v2052 = vld [vmem:[%s2050 + $0x4] sm:$0xf]
  %v2053 = vld [vmem:[%s2050 + $0x8] sm:$0xf]
  %v2054 = vld [vmem:[%s2050 + $0xc] sm:$0xf]
  %v2055 = vld [vmem:[%s2050 + $0x10] sm:$0xf]
  %v2056 = vld [vmem:[%s2050 + $0x14] sm:$0xf]
  %v2057 = vld [vmem:[%s2050 + $0x18] sm:$0xf]
  %v2058 = vld [vmem:[%s2050 + $0x1c] sm:$0xf]
  %v2059 = vld [vmem:[%s2050 + $0x20] sm:$0xf]
  %v2060 = vld [vmem:[%s2050 + $0x24] sm:$0xf]
  %v2061 = vld [vmem:[%s2050 + $0x28] sm:$0xf]
  %v2062 = vld [vmem:[%s2050 + $0x2c] sm:$0xf]
  %v2063 = vld [vmem:[%s2050 + $0x30] sm:$0xf]
  %v2064 = vld [vmem:[%s2050 + $0x34] sm:$0xf]
  %v2065 = vld [vmem:[%s2050 + $0x38] sm:$0xf]
  %v2066 = vld [vmem:[%s2050 + $0x3c] sm:$0xf]
  %v2083 = vunpack.c.l.b16 %v2034
  %v2084 = vunpack.c.l.b16 %v2035
  %v2085 = vunpack.c.l.b16 %v2036
  %v2086 = vunpack.c.l.b16 %v2037
  %v2087 = vunpack.c.l.b16 %v2038
  %v2088 = vunpack.c.l.b16 %v2039
  %v2089 = vunpack.c.l.b16 %v2040
  %v2090 = vunpack.c.l.b16 %v2041
  %v2091 = vunpack.c.l.b16 %v2042
  %v2092 = vunpack.c.l.b16 %v2043
  %v2093 = vunpack.c.l.b16 %v2044
  %v2094 = vunpack.c.l.b16 %v2045
  %v2095 = vunpack.c.l.b16 %v2046
  %v2096 = vunpack.c.l.b16 %v2047
  %v2097 = vunpack.c.l.b16 %v2048
  %v2098 = vunpack.c.l.b16 %v2049
  %v2099 = vpack.c.b16 %v2084, %v2083
  %v2100 = vpack.c.b16 %v2086, %v2085
  %v2101 = vpack.c.b16 %v2088, %v2087
  %v2102 = vpack.c.b16 %v2090, %v2089
  %v2103 = vpack.c.b16 %v2092, %v2091
  %v2104 = vpack.c.b16 %v2094, %v2093
  %v2105 = vpack.c.b16 %v2096, %v2095
  %v2106 = vpack.c.b16 %v2098, %v2097
  %v2131 = vunpack.c.l.b16 %v2051
  %v2132 = vunpack.c.l.b16 %v2052
  %v2133 = vunpack.c.l.b16 %v2053
  %v2134 = vunpack.c.l.b16 %v2054
  %v2135 = vunpack.c.l.b16 %v2055
  %v2136 = vunpack.c.l.b16 %v2056
  %v2137 = vunpack.c.l.b16 %v2057
  %v2138 = vunpack.c.l.b16 %v2058
  %v2139 = vunpack.c.l.b16 %v2059
  %v2140 = vunpack.c.l.b16 %v2060
  %v2141 = vunpack.c.l.b16 %v2061
  %v2142 = vunpack.c.l.b16 %v2062
  %v2143 = vunpack.c.l.b16 %v2063
  %v2144 = vunpack.c.l.b16 %v2064
  %v2145 = vunpack.c.l.b16 %v2065
  %v2146 = vunpack.c.l.b16 %v2066
  %v2147 = vpack.c.b16 %v2132, %v2131
  %v2148 = vpack.c.b16 %v2134, %v2133
  %v2149 = vpack.c.b16 %v2136, %v2135
  %v2150 = vpack.c.b16 %v2138, %v2137
  %v2151 = vpack.c.b16 %v2140, %v2139
  %v2152 = vpack.c.b16 %v2142, %v2141
  %v2153 = vpack.c.b16 %v2144, %v2143
  %v2154 = vpack.c.b16 %v2146, %v2145
  %2163 = vmatprep.subr.bf16.mxu0 0
  %2164 = vmatpush1.bf16.msra.mxu0 %v2147
  %2165 = vmatprep.subr.bf16.mxu0 0
  %2166 = vmatpush1.bf16.msra.mxu0 %v2148
  %2167 = vmatprep.subr.bf16.mxu0 0
  %2168 = vmatpush1.bf16.msra.mxu0 %v2149
  %2169 = vmatprep.subr.bf16.mxu0 0
  %2170 = vmatpush1.bf16.msra.mxu0 %v2150
  %2171 = vmatprep.subr.bf16.mxu0 0
  %2172 = vmatpush1.bf16.msra.mxu0 %v2151
  %2173 = vmatprep.subr.bf16.mxu0 0
  %2174 = vmatpush1.bf16.msra.mxu0 %v2152
  %2175 = vmatprep.subr.bf16.mxu0 0
  %2176 = vmatpush1.bf16.msra.mxu0 %v2153
  %2177 = vmatprep.subr.bf16.mxu0 0
  %2178 = vmatpush1.bf16.msra.mxu0 %v2154
  %2179 = vmatprep.subr.bf16.mxu0 0
  %2180 = vmatpush1.bf16.msra.mxu0 0
  %2181 = vmatprep.subr.bf16.mxu0 0
  %2182 = vmatpush1.bf16.msra.mxu0 0
  %2183 = vmatprep.subr.bf16.mxu0 0
  %2184 = vmatpush1.bf16.msra.mxu0 0
  %2185 = vmatprep.subr.bf16.mxu0 0
  %2186 = vmatpush1.bf16.msra.mxu0 0
  %2187 = vmatprep.subr.bf16.mxu0 0
  %2188 = vmatpush1.bf16.msra.mxu0 0
  %2189 = vmatprep.subr.bf16.mxu0 0
  %2190 = vmatpush1.bf16.msra.mxu0 0
  %2191 = vmatprep.subr.bf16.mxu0 0
  %2192 = vmatpush1.bf16.msra.mxu0 0
  %2193 = vmatprep.subr.bf16.mxu0 0
  %2194 = vmatpush1.bf16.msra.mxu0 0
  %2195 = vmatprep.mubr.bf16.mxu0 0
  %2196 = vmatmul.mubr.bf16.gmra.mrb[0].mxu0 %v2099
  %v2197 = vpop.f32.mrb[0].mxu0
  %v2198 = vadd.f32 0.0, %v2197
  %v2199 = vpop.f32.mrb[0].mxu0
  %v2200 = vpop.f32.mrb[0].mxu0
  %v2201 = vadd.f32 0.0, %v2200
  %v2202 = vpop.f32.mrb[0].mxu0
  %2203 = vmatprep.mubr.bf16.mxu0 0
  %2204 = vmatmul.mubr.bf16.gmra.mrb[0].mxu0 %v2100
  %v2205 = vpop.f32.mrb[0].mxu0
  %v2206 = vadd.f32 0.0, %v2205
  %v2207 = vpop.f32.mrb[0].mxu0
  %v2208 = vpop.f32.mrb[0].mxu0
  %v2209 = vadd.f32 0.0, %v2208
  %v2210 = vpop.f32.mrb[0].mxu0
  %2211 = vmatprep.mubr.bf16.mxu0 0
  %2212 = vmatmul.mubr.bf16.gmra.mrb[0].mxu0 %v2101
  %v2213 = vpop.f32.mrb[0].mxu0
  %v2214 = vadd.f32 0.0, %v2213
  %v2215 = vpop.f32.mrb[0].mxu0
  %v2216 = vpop.f32.mrb[0].mxu0
  %v2217 = vadd.f32 0.0, %v2216
  %v2218 = vpop.f32.mrb[0].mxu0
  %2219 = vmatprep.mubr.bf16.mxu0 0
  %2220 = vmatmul.mubr.bf16.gmra.mrb[0].mxu0 %v2102
  %v2221 = vpop.f32.mrb[0].mxu0
  %v2222 = vadd.f32 0.0, %v2221
  %v2223 = vpop.f32.mrb[0].mxu0
  %v2224 = vpop.f32.mrb[0].mxu0
  %v2225 = vadd.f32 0.0, %v2224
  %v2226 = vpop.f32.mrb[0].mxu0
  %2227 = vmatprep.mubr.bf16.mxu0 0
  %2228 = vmatmul.mubr.bf16.gmra.mrb[0].mxu0 %v2103
  %v2229 = vpop.f32.mrb[0].mxu0
  %v2230 = vadd.f32 0.0, %v2229
  %v2231 = vpop.f32.mrb[0].mxu0
  %v2232 = vpop.f32.mrb[0].mxu0
  %v2233 = vadd.f32 0.0, %v2232
  %v2234 = vpop.f32.mrb[0].mxu0
  %2235 = vmatprep.mubr.bf16.mxu0 0
  %2236 = vmatmul.mubr.bf16.gmra.mrb[0].mxu0 %v2104
  %v2237 = vpop.f32.mrb[0].mxu0
  %v2238 = vadd.f32 0.0, %v2237
  %v2239 = vpop.f32.mrb[0].mxu0
  %v2240 = vpop.f32.mrb[0].mxu0
  %v2241 = vadd.f32 0.0, %v2240
  %v2242 = vpop.f32.mrb[0].mxu0
  %2243 = vmatprep.mubr.bf16.mxu0 0
  %2244 = vmatmul.mubr.bf16.gmra.mrb[0].mxu0 %v2105
  %v2245 = vpop.f32.mrb[0].mxu0
  %v2246 = vadd.f32 0.0, %v2245
  %v2247 = vpop.f32.mrb[0].mxu0
  %v2248 = vpop.f32.mrb[0].mxu0
  %v2249 = vadd.f32 0.0, %v2248
  %v2250 = vpop.f32.mrb[0].mxu0
  %2251 = vmatprep.mubr.bf16.mxu0 0
  %2252 = vmatmul.mubr.bf16.gmra.mrb[0].mxu0 %v2106
  %v2253 = vpop.f32.mrb[0].mxu0
  %v2254 = vadd.f32 0.0, %v2253
  %v2255 = vpop.f32.mrb[0].mxu0
  %v2256 = vpop.f32.mrb[0].mxu0
  %v2257 = vadd.f32 0.0, %v2256
  %v2258 = vpop.f32.mrb[0].mxu0
  %2259 = vdwg.mxu0
  %v2260 = vadd.f32 %v2017, %v2198
  %v2261 = vadd.f32 %v2018, %v2201
  %v2262 = vadd.f32 %v2019, %v2206
  %v2263 = vadd.f32 %v2020, %v2209
  %v2264 = vadd.f32 %v2021, %v2214
  %v2265 = vadd.f32 %v2022, %v2217
  %v2266 = vadd.f32 %v2023, %v2222
  %v2267 = vadd.f32 %v2024, %v2225
  %v2268 = vadd.f32 %v2025, %v2230
  %v2269 = vadd.f32 %v2026, %v2233
  %v2270 = vadd.f32 %v2027, %v2238
  %v2271 = vadd.f32 %v2028, %v2241
  %v2272 = vadd.f32 %v2029, %v2246
  %v2273 = vadd.f32 %v2030, %v2249
  %v2274 = vadd.f32 %v2031, %v2254
  %v2275 = vadd.f32 %v2032, %v2257
  %v2276 = vld [vmem:[%s2033] sm:$0xf]
  %v2277 = vld [vmem:[%s2033 + $0x4] sm:$0x1]
  %v2278 = vld [vmem:[%s2033 + $0x8] sm:$0xf]
  %v2279 = vld [vmem:[%s2033 + $0xc] sm:$0x1]
  %v2280 = vld [vmem:[%s2033 + $0x10] sm:$0xf]
  %v2281 = vld [vmem:[%s2033 + $0x14] sm:$0x1]
  %v2282 = vld [vmem:[%s2033 + $0x18] sm:$0xf]
  %v2283 = vld [vmem:[%s2033 + $0x1c] sm:$0x1]
  %v2284 = vld [vmem:[%s2033 + $0x20] sm:$0xf]
  %v2285 = vld [vmem:[%s2033 + $0x24] sm:$0x1]
  %v2286 = vld [vmem:[%s2033 + $0x28] sm:$0xf]
  %v2287 = vld [vmem:[%s2033 + $0x2c] sm:$0x1]
  %v2288 = vld [vmem:[%s2033 + $0x30] sm:$0xf]
  %v2289 = vld [vmem:[%s2033 + $0x34] sm:$0x1]
  %v2290 = vld [vmem:[%s2033 + $0x38] sm:$0xf]
  %v2291 = vld [vmem:[%s2033 + $0x3c] sm:$0x1]
  %v2292 = vld [vmem:[%s2033 + $0x50] sm:$0xf]
  %v2293 = vld [vmem:[%s2033 + $0x54] sm:$0x1]
  %v2294 = vld [vmem:[%s2033 + $0x58] sm:$0xf]
  %v2295 = vld [vmem:[%s2033 + $0x5c] sm:$0x1]
  %v2296 = vld [vmem:[%s2033 + $0x60] sm:$0xf]
  %v2297 = vld [vmem:[%s2033 + $0x64] sm:$0x1]
  %v2298 = vld [vmem:[%s2033 + $0x68] sm:$0xf]
  %v2299 = vld [vmem:[%s2033 + $0x6c] sm:$0x1]
  %v2300 = vld [vmem:[%s2033 + $0x70] sm:$0xf]
  %v2301 = vld [vmem:[%s2033 + $0x74] sm:$0x1]
  %v2302 = vld [vmem:[%s2033 + $0x78] sm:$0xf]
  %v2303 = vld [vmem:[%s2033 + $0x7c] sm:$0x1]
  %v2304 = vld [vmem:[%s2033 + $0x80] sm:$0xf]
  %v2305 = vld [vmem:[%s2033 + $0x84] sm:$0x1]
  %v2306 = vld [vmem:[%s2033 + $0x88] sm:$0xf]
  %v2307 = vld [vmem:[%s2033 + $0x8c] sm:$0x1]
  %v2309 = vshrl.u32 %v2276, 16
  %v2311 = vrot.slane %v2309, 4
  %v2312 = vshll.u32 %v2276, 16
  %v2314 = vrot.slane %v2312, 5
  %v2315 = vor.u32 %v2311, %v2314
  %v2316 = vrot.slane %v2315, 4
  %v2318 = vshll.u32 %v2277, 16
  %v2320 = vrot.slane %v2318, 5
  %v2321 = vsel %vm65, %v2316, %v2320
  %v2323 = vshrl.u32 %v2278, 16
  %v2325 = vrot.slane %v2323, 4
  %v2326 = vshll.u32 %v2278, 16
  %v2328 = vrot.slane %v2326, 5
  %v2329 = vor.u32 %v2325, %v2328
  %v2330 = vrot.slane %v2329, 4
  %v2332 = vshll.u32 %v2279, 16
  %v2334 = vrot.slane %v2332, 5
  %v2335 = vsel %vm65, %v2330, %v2334
  %v2337 = vshrl.u32 %v2280, 16
  %v2339 = vrot.slane %v2337, 4
  %v2340 = vshll.u32 %v2280, 16
  %v2342 = vrot.slane %v2340, 5
  %v2343 = vor.u32 %v2339, %v2342
  %v2344 = vrot.slane %v2343, 4
  %v2346 = vshll.u32 %v2281, 16
  %v2348 = vrot.slane %v2346, 5
  %v2349 = vsel %vm65, %v2344, %v2348
  %v2351 = vshrl.u32 %v2282, 16
  %v2353 = vrot.slane %v2351, 4
  %v2354 = vshll.u32 %v2282, 16
  %v2356 = vrot.slane %v2354, 5
  %v2357 = vor.u32 %v2353, %v2356
  %v2358 = vrot.slane %v2357, 4
  %v2360 = vshll.u32 %v2283, 16
  %v2362 = vrot.slane %v2360, 5
  %v2363 = vsel %vm65, %v2358, %v2362
  %v2365 = vshrl.u32 %v2284, 16
  %v2367 = vrot.slane %v2365, 4
  %v2368 = vshll.u32 %v2284, 16
  %v2370 = vrot.slane %v2368, 5
  %v2371 = vor.u32 %v2367, %v2370
  %v2372 = vrot.slane %v2371, 4
  %v2374 = vshll.u32 %v2285, 16
  %v2376 = vrot.slane %v2374, 5
  %v2377 = vsel %vm65, %v2372, %v2376
  %v2379 = vshrl.u32 %v2286, 16
  %v2381 = vrot.slane %v2379, 4
  %v2382 = vshll.u32 %v2286, 16
  %v2384 = vrot.slane %v2382, 5
  %v2385 = vor.u32 %v2381, %v2384
  %v2386 = vrot.slane %v2385, 4
  %v2388 = vshll.u32 %v2287, 16
  %v2390 = vrot.slane %v2388, 5
  %v2391 = vsel %vm65, %v2386, %v2390
  %v2393 = vshrl.u32 %v2288, 16
  %v2395 = vrot.slane %v2393, 4
  %v2396 = vshll.u32 %v2288, 16
  %v2398 = vrot.slane %v2396, 5
  %v2399 = vor.u32 %v2395, %v2398
  %v2400 = vrot.slane %v2399, 4
  %v2402 = vshll.u32 %v2289, 16
  %v2404 = vrot.slane %v2402, 5
  %v2405 = vsel %vm65, %v2400, %v2404
  %v2407 = vshrl.u32 %v2290, 16
  %v2409 = vrot.slane %v2407, 4
  %v2410 = vshll.u32 %v2290, 16
  %v2412 = vrot.slane %v2410, 5
  %v2413 = vor.u32 %v2409, %v2412
  %v2414 = vrot.slane %v2413, 4
  %v2416 = vshll.u32 %v2291, 16
  %v2418 = vrot.slane %v2416, 5
  %v2419 = vsel %vm65, %v2414, %v2418
  %v2421 = vshrl.u32 %v2292, 16
  %v2423 = vrot.slane %v2421, 4
  %v2424 = vshll.u32 %v2292, 16
  %v2426 = vrot.slane %v2424, 5
  %v2427 = vor.u32 %v2423, %v2426
  %v2428 = vrot.slane %v2427, 4
  %v2430 = vshll.u32 %v2293, 16
  %v2432 = vrot.slane %v2430, 5
  %v2433 = vsel %vm65, %v2428, %v2432
  %v2435 = vshrl.u32 %v2294, 16
  %v2437 = vrot.slane %v2435, 4
  %v2438 = vshll.u32 %v2294, 16
  %v2440 = vrot.slane %v2438, 5
  %v2441 = vor.u32 %v2437, %v2440
  %v2442 = vrot.slane %v2441, 4
  %v2444 = vshll.u32 %v2295, 16
  %v2446 = vrot.slane %v2444, 5
  %v2447 = vsel %vm65, %v2442, %v2446
  %v2449 = vshrl.u32 %v2296, 16
  %v2451 = vrot.slane %v2449, 4
  %v2452 = vshll.u32 %v2296, 16
  %v2454 = vrot.slane %v2452, 5
  %v2455 = vor.u32 %v2451, %v2454
  %v2456 = vrot.slane %v2455, 4
  %v2458 = vshll.u32 %v2297, 16
  %v2460 = vrot.slane %v2458, 5
  %v2461 = vsel %vm65, %v2456, %v2460
  %v2463 = vshrl.u32 %v2298, 16
  %v2465 = vrot.slane %v2463, 4
  %v2466 = vshll.u32 %v2298, 16
  %v2468 = vrot.slane %v2466, 5
  %v2469 = vor.u32 %v2465, %v2468
  %v2470 = vrot.slane %v2469, 4
  %v2472 = vshll.u32 %v2299, 16
  %v2474 = vrot.slane %v2472, 5
  %v2475 = vsel %vm65, %v2470, %v2474
  %v2477 = vshrl.u32 %v2300, 16
  %v2479 = vrot.slane %v2477, 4
  %v2480 = vshll.u32 %v2300, 16
  %v2482 = vrot.slane %v2480, 5
  %v2483 = vor.u32 %v2479, %v2482
  %v2484 = vrot.slane %v2483, 4
  %v2486 = vshll.u32 %v2301, 16
  %v2488 = vrot.slane %v2486, 5
  %v2489 = vsel %vm65, %v2484, %v2488
  %v2491 = vshrl.u32 %v2302, 16
  %v2493 = vrot.slane %v2491, 4
  %v2494 = vshll.u32 %v2302, 16
  %v2496 = vrot.slane %v2494, 5
  %v2497 = vor.u32 %v2493, %v2496
  %v2498 = vrot.slane %v2497, 4
  %v2500 = vshll.u32 %v2303, 16
  %v2502 = vrot.slane %v2500, 5
  %v2503 = vsel %vm65, %v2498, %v2502
  %v2505 = vshrl.u32 %v2304, 16
  %v2507 = vrot.slane %v2505, 4
  %v2508 = vshll.u32 %v2304, 16
  %v2510 = vrot.slane %v2508, 5
  %v2511 = vor.u32 %v2507, %v2510
  %v2512 = vrot.slane %v2511, 4
  %v2514 = vshll.u32 %v2305, 16
  %v2516 = vrot.slane %v2514, 5
  %v2517 = vsel %vm65, %v2512, %v2516
  %v2519 = vshrl.u32 %v2306, 16
  %v2521 = vrot.slane %v2519, 4
  %v2522 = vshll.u32 %v2306, 16
  %v2524 = vrot.slane %v2522, 5
  %v2525 = vor.u32 %v2521, %v2524
  %v2526 = vrot.slane %v2525, 4
  %v2528 = vshll.u32 %v2307, 16
  %v2530 = vrot.slane %v2528, 5
  %v2531 = vsel %vm65, %v2526, %v2530
  %s2532 = scalar_lea.vmem %s1, 448
  %v2533 = vld [vmem:[%s2532] sm:$0xf]
  %v2534 = vld [vmem:[%s2532 + $0x4] sm:$0xf]
  %v2535 = vld [vmem:[%s2532 + $0x8] sm:$0xf]
  %v2536 = vld [vmem:[%s2532 + $0xc] sm:$0xf]
  %v2537 = vld [vmem:[%s2532 + $0x10] sm:$0xf]
  %v2538 = vld [vmem:[%s2532 + $0x14] sm:$0xf]
  %v2539 = vld [vmem:[%s2532 + $0x18] sm:$0xf]
  %v2540 = vld [vmem:[%s2532 + $0x1c] sm:$0xf]
  %v2541 = vld [vmem:[%s2532 + $0x20] sm:$0xf]
  %v2542 = vld [vmem:[%s2532 + $0x24] sm:$0xf]
  %v2543 = vld [vmem:[%s2532 + $0x28] sm:$0xf]
  %v2544 = vld [vmem:[%s2532 + $0x2c] sm:$0xf]
  %v2545 = vld [vmem:[%s2532 + $0x30] sm:$0xf]
  %v2546 = vld [vmem:[%s2532 + $0x34] sm:$0xf]
  %v2547 = vld [vmem:[%s2532 + $0x38] sm:$0xf]
  %v2548 = vld [vmem:[%s2532 + $0x3c] sm:$0xf]
  %v2549 = vunpack.c.l.b16 %v2321
  %v2550 = vunpack.c.l.b16 %v2335
  %v2551 = vunpack.c.l.b16 %v2349
  %v2552 = vunpack.c.l.b16 %v2363
  %v2553 = vunpack.c.l.b16 %v2377
  %v2554 = vunpack.c.l.b16 %v2391
  %v2555 = vunpack.c.l.b16 %v2405
  %v2556 = vunpack.c.l.b16 %v2419
  %v2557 = vunpack.c.l.b16 %v2433
  %v2558 = vunpack.c.l.b16 %v2447
  %v2559 = vunpack.c.l.b16 %v2461
  %v2560 = vunpack.c.l.b16 %v2475
  %v2561 = vunpack.c.l.b16 %v2489
  %v2562 = vunpack.c.l.b16 %v2503
  %v2563 = vunpack.c.l.b16 %v2517
  %v2564 = vunpack.c.l.b16 %v2531
  %v2565 = vpack.c.b16 %v2550, %v2549
  %v2566 = vpack.c.b16 %v2552, %v2551
  %v2567 = vpack.c.b16 %v2554, %v2553
  %v2568 = vpack.c.b16 %v2556, %v2555
  %v2569 = vpack.c.b16 %v2558, %v2557
  %v2570 = vpack.c.b16 %v2560, %v2559
  %v2571 = vpack.c.b16 %v2562, %v2561
  %v2572 = vpack.c.b16 %v2564, %v2563
  %v2597 = vunpack.c.l.b16 %v2533
  %v2598 = vunpack.c.l.b16 %v2534
  %v2599 = vunpack.c.l.b16 %v2535
  %v2600 = vunpack.c.l.b16 %v2536
  %v2601 = vunpack.c.l.b16 %v2537
  %v2602 = vunpack.c.l.b16 %v2538
  %v2603 = vunpack.c.l.b16 %v2539
  %v2604 = vunpack.c.l.b16 %v2540
  %v2605 = vunpack.c.l.b16 %v2541
  %v2606 = vunpack.c.l.b16 %v2542
  %v2607 = vunpack.c.l.b16 %v2543
  %v2608 = vunpack.c.l.b16 %v2544
  %v2609 = vunpack.c.l.b16 %v2545
  %v2610 = vunpack.c.l.b16 %v2546
  %v2611 = vunpack.c.l.b16 %v2547
  %v2612 = vunpack.c.l.b16 %v2548
  %v2613 = vpack.c.b16 %v2598, %v2597
  %v2614 = vpack.c.b16 %v2600, %v2599
  %v2615 = vpack.c.b16 %v2602, %v2601
  %v2616 = vpack.c.b16 %v2604, %v2603
  %v2617 = vpack.c.b16 %v2606, %v2605
  %v2618 = vpack.c.b16 %v2608, %v2607
  %v2619 = vpack.c.b16 %v2610, %v2609
  %v2620 = vpack.c.b16 %v2612, %v2611
  %2629 = vmatprep.subr.bf16.mxu0 0
  %2630 = vmatpush1.bf16.msra.mxu0 %v2613
  %2631 = vmatprep.subr.bf16.mxu0 0
  %2632 = vmatpush1.bf16.msra.mxu0 %v2614
  %2633 = vmatprep.subr.bf16.mxu0 0
  %2634 = vmatpush1.bf16.msra.mxu0 %v2615
  %2635 = vmatprep.subr.bf16.mxu0 0
  %2636 = vmatpush1.bf16.msra.mxu0 %v2616
  %2637 = vmatprep.subr.bf16.mxu0 0
  %2638 = vmatpush1.bf16.msra.mxu0 %v2617
  %2639 = vmatprep.subr.bf16.mxu0 0
  %2640 = vmatpush1.bf16.msra.mxu0 %v2618
  %2641 = vmatprep.subr.bf16.mxu0 0
  %2642 = vmatpush1.bf16.msra.mxu0 %v2619
  %2643 = vmatprep.subr.bf16.mxu0 0
  %2644 = vmatpush1.bf16.msra.mxu0 %v2620
  %2645 = vmatprep.subr.bf16.mxu0 0
  %2646 = vmatpush1.bf16.msra.mxu0 0
  %2647 = vmatprep.subr.bf16.mxu0 0
  %2648 = vmatpush1.bf16.msra.mxu0 0
  %2649 = vmatprep.subr.bf16.mxu0 0
  %2650 = vmatpush1.bf16.msra.mxu0 0
  %2651 = vmatprep.subr.bf16.mxu0 0
  %2652 = vmatpush1.bf16.msra.mxu0 0
  %2653 = vmatprep.subr.bf16.mxu0 0
  %2654 = vmatpush1.bf16.msra.mxu0 0
  %2655 = vmatprep.subr.bf16.mxu0 0
  %2656 = vmatpush1.bf16.msra.mxu0 0
  %2657 = vmatprep.subr.bf16.mxu0 0
  %2658 = vmatpush1.bf16.msra.mxu0 0
  %2659 = vmatprep.subr.bf16.mxu0 0
  %2660 = vmatpush1.bf16.msra.mxu0 0
  %2661 = vmatprep.mubr.bf16.mxu0 0
  %2662 = vmatmul.mubr.bf16.gmra.mrb[0].mxu0 %v2565
  %v2663 = vpop.f32.mrb[0].mxu0
  %v2664 = vadd.f32 0.0, %v2663
  %v2665 = vpop.f32.mrb[0].mxu0
  %v2666 = vpop.f32.mrb[0].mxu0
  %v2667 = vadd.f32 0.0, %v2666
  %v2668 = vpop.f32.mrb[0].mxu0
  %2669 = vmatprep.mubr.bf16.mxu0 0
  %2670 = vmatmul.mubr.bf16.gmra.mrb[0].mxu0 %v2566
  %v2671 = vpop.f32.mrb[0].mxu0
  %v2672 = vadd.f32 0.0, %v2671
  %v2673 = vpop.f32.mrb[0].mxu0
  %v2674 = vpop.f32.mrb[0].mxu0
  %v2675 = vadd.f32 0.0, %v2674
  %v2676 = vpop.f32.mrb[0].mxu0
  %2677 = vmatprep.mubr.bf16.mxu0 0
  %2678 = vmatmul.mubr.bf16.gmra.mrb[0].mxu0 %v2567
  %v2679 = vpop.f32.mrb[0].mxu0
  %v2680 = vadd.f32 0.0, %v2679
  %v2681 = vpop.f32.mrb[0].mxu0
  %v2682 = vpop.f32.mrb[0].mxu0
  %v2683 = vadd.f32 0.0, %v2682
  %v2684 = vpop.f32.mrb[0].mxu0
  %2685 = vmatprep.mubr.bf16.mxu0 0
  %2686 = vmatmul.mubr.bf16.gmra.mrb[0].mxu0 %v2568
  %v2687 = vpop.f32.mrb[0].mxu0
  %v2688 = vadd.f32 0.0, %v2687
  %v2689 = vpop.f32.mrb[0].mxu0
  %v2690 = vpop.f32.mrb[0].mxu0
  %v2691 = vadd.f32 0.0, %v2690
  %v2692 = vpop.f32.mrb[0].mxu0
  %2693 = vmatprep.mubr.bf16.mxu0 0
  %2694 = vmatmul.mubr.bf16.gmra.mrb[0].mxu0 %v2569
  %v2695 = vpop.f32.mrb[0].mxu0
  %v2696 = vadd.f32 0.0, %v2695
  %v2697 = vpop.f32.mrb[0].mxu0
  %v2698 = vpop.f32.mrb[0].mxu0
  %v2699 = vadd.f32 0.0, %v2698
  %v2700 = vpop.f32.mrb[0].mxu0
  %2701 = vmatprep.mubr.bf16.mxu0 0
  %2702 = vmatmul.mubr.bf16.gmra.mrb[0].mxu0 %v2570
  %v2703 = vpop.f32.mrb[0].mxu0
  %v2704 = vadd.f32 0.0, %v2703
  %v2705 = vpop.f32.mrb[0].mxu0
  %v2706 = vpop.f32.mrb[0].mxu0
  %v2707 = vadd.f32 0.0, %v2706
  %v2708 = vpop.f32.mrb[0].mxu0
  %2709 = vmatprep.mubr.bf16.mxu0 0
  %2710 = vmatmul.mubr.bf16.gmra.mrb[0].mxu0 %v2571
  %v2711 = vpop.f32.mrb[0].mxu0
  %v2712 = vadd.f32 0.0, %v2711
  %v2713 = vpop.f32.mrb[0].mxu0
  %v2714 = vpop.f32.mrb[0].mxu0
  %v2715 = vadd.f32 0.0, %v2714
  %v2716 = vpop.f32.mrb[0].mxu0
  %2717 = vmatprep.mubr.bf16.mxu0 0
  %2718 = vmatmul.mubr.bf16.gmra.mrb[0].mxu0 %v2572
  %v2719 = vpop.f32.mrb[0].mxu0
  %v2720 = vadd.f32 0.0, %v2719
  %v2721 = vpop.f32.mrb[0].mxu0
  %v2722 = vpop.f32.mrb[0].mxu0
  %v2723 = vadd.f32 0.0, %v2722
  %v2724 = vpop.f32.mrb[0].mxu0
  %2725 = vdwg.mxu0
  %v2726 = vadd.f32 %v2260, %v2664
  %v2727 = vadd.f32 %v2261, %v2667
  %v2728 = vadd.f32 %v2262, %v2672
  %v2729 = vadd.f32 %v2263, %v2675
  %v2730 = vadd.f32 %v2264, %v2680
  %v2731 = vadd.f32 %v2265, %v2683
  %v2732 = vadd.f32 %v2266, %v2688
  %v2733 = vadd.f32 %v2267, %v2691
  %v2734 = vadd.f32 %v2268, %v2696
  %v2735 = vadd.f32 %v2269, %v2699
  %v2736 = vadd.f32 %v2270, %v2704
  %v2737 = vadd.f32 %v2271, %v2707
  %v2738 = vadd.f32 %v2272, %v2712
  %v2739 = vadd.f32 %v2273, %v2715
  %v2740 = vadd.f32 %v2274, %v2720
  %v2741 = vadd.f32 %v2275, %v2723
  %v2742 = vld [vmem:[%s2033] sm:$0xe]
  %v2743 = vld [vmem:[%s2033 + $0x8] sm:$0xe]
  %v2744 = vld [vmem:[%s2033 + $0x10] sm:$0xe]
  %v2745 = vld [vmem:[%s2033 + $0x18] sm:$0xe]
  %v2746 = vld [vmem:[%s2033 + $0x20] sm:$0xe]
  %v2747 = vld [vmem:[%s2033 + $0x28] sm:$0xe]
  %v2748 = vld [vmem:[%s2033 + $0x30] sm:$0xe]
  %v2749 = vld [vmem:[%s2033 + $0x38] sm:$0xe]
  %v2750 = vld [vmem:[%s2033 + $0x50] sm:$0xe]
  %v2751 = vld [vmem:[%s2033 + $0x58] sm:$0xe]
  %v2752 = vld [vmem:[%s2033 + $0x60] sm:$0xe]
  %v2753 = vld [vmem:[%s2033 + $0x68] sm:$0xe]
  %v2754 = vld [vmem:[%s2033 + $0x70] sm:$0xe]
  %v2755 = vld [vmem:[%s2033 + $0x78] sm:$0xe]
  %v2756 = vld [vmem:[%s2033 + $0x80] sm:$0xe]
  %v2757 = vld [vmem:[%s2033 + $0x88] sm:$0xe]
  %v2790 = vrot.slane %v2742, 5
  %v2791 = vrot.slane %v2790, 4
  %v2792 = vrot.slane %v2277, 5
  %v2793 = vsel %vm727, %v2791, %v2792
  %v2794 = vrot.slane %v2743, 5
  %v2795 = vrot.slane %v2794, 4
  %v2796 = vrot.slane %v2279, 5
  %v2797 = vsel %vm727, %v2795, %v2796
  %v2798 = vrot.slane %v2744, 5
  %v2799 = vrot.slane %v2798, 4
  %v2800 = vrot.slane %v2281, 5
  %v2801 = vsel %vm727, %v2799, %v2800
  %v2802 = vrot.slane %v2745, 5
  %v2803 = vrot.slane %v2802, 4
  %v2804 = vrot.slane %v2283, 5
  %v2805 = vsel %vm727, %v2803, %v2804
  %v2806 = vrot.slane %v2746, 5
  %v2807 = vrot.slane %v2806, 4
  %v2808 = vrot.slane %v2285, 5
  %v2809 = vsel %vm727, %v2807, %v2808
  %v2810 = vrot.slane %v2747, 5
  %v2811 = vrot.slane %v2810, 4
  %v2812 = vrot.slane %v2287, 5
  %v2813 = vsel %vm727, %v2811, %v2812
  %v2814 = vrot.slane %v2748, 5
  %v2815 = vrot.slane %v2814, 4
  %v2816 = vrot.slane %v2289, 5
  %v2817 = vsel %vm727, %v2815, %v2816
  %v2818 = vrot.slane %v2749, 5
  %v2819 = vrot.slane %v2818, 4
  %v2820 = vrot.slane %v2291, 5
  %v2821 = vsel %vm727, %v2819, %v2820
  %v2822 = vrot.slane %v2750, 5
  %v2823 = vrot.slane %v2822, 4
  %v2824 = vrot.slane %v2293, 5
  %v2825 = vsel %vm727, %v2823, %v2824
  %v2826 = vrot.slane %v2751, 5
  %v2827 = vrot.slane %v2826, 4
  %v2828 = vrot.slane %v2295, 5
  %v2829 = vsel %vm727, %v2827, %v2828
  %v2830 = vrot.slane %v2752, 5
  %v2831 = vrot.slane %v2830, 4
  %v2832 = vrot.slane %v2297, 5
  %v2833 = vsel %vm727, %v2831, %v2832
  %v2834 = vrot.slane %v2753, 5
  %v2835 = vrot.slane %v2834, 4
  %v2836 = vrot.slane %v2299, 5
  %v2837 = vsel %vm727, %v2835, %v2836
  %v2838 = vrot.slane %v2754, 5
  %v2839 = vrot.slane %v2838, 4
  %v2840 = vrot.slane %v2301, 5
  %v2841 = vsel %vm727, %v2839, %v2840
  %v2842 = vrot.slane %v2755, 5
  %v2843 = vrot.slane %v2842, 4
  %v2844 = vrot.slane %v2303, 5
  %v2845 = vsel %vm727, %v2843, %v2844
  %v2846 = vrot.slane %v2756, 5
  %v2847 = vrot.slane %v2846, 4
  %v2848 = vrot.slane %v2305, 5
  %v2849 = vsel %vm727, %v2847, %v2848
  %v2850 = vrot.slane %v2757, 5
  %v2851 = vrot.slane %v2850, 4
  %v2852 = vrot.slane %v2307, 5
  %v2853 = vsel %vm727, %v2851, %v2852
  %s2854 = scalar_lea.vmem %s1, 512
  %v2855 = vld [vmem:[%s2854] sm:$0xf]
  %v2856 = vld [vmem:[%s2854 + $0x4] sm:$0xf]
  %v2857 = vld [vmem:[%s2854 + $0x8] sm:$0xf]
  %v2858 = vld [vmem:[%s2854 + $0xc] sm:$0xf]
  %v2859 = vld [vmem:[%s2854 + $0x10] sm:$0xf]
  %v2860 = vld [vmem:[%s2854 + $0x14] sm:$0xf]
  %v2861 = vld [vmem:[%s2854 + $0x18] sm:$0xf]
  %v2862 = vld [vmem:[%s2854 + $0x1c] sm:$0xf]
  %v2863 = vld [vmem:[%s2854 + $0x20] sm:$0xf]
  %v2864 = vld [vmem:[%s2854 + $0x24] sm:$0xf]
  %v2865 = vld [vmem:[%s2854 + $0x28] sm:$0xf]
  %v2866 = vld [vmem:[%s2854 + $0x2c] sm:$0xf]
  %v2867 = vld [vmem:[%s2854 + $0x30] sm:$0xf]
  %v2868 = vld [vmem:[%s2854 + $0x34] sm:$0xf]
  %v2869 = vld [vmem:[%s2854 + $0x38] sm:$0xf]
  %v2870 = vld [vmem:[%s2854 + $0x3c] sm:$0xf]
  %v2871 = vunpack.c.l.b16 %v2793
  %v2872 = vunpack.c.l.b16 %v2797
  %v2873 = vunpack.c.l.b16 %v2801
  %v2874 = vunpack.c.l.b16 %v2805
  %v2875 = vunpack.c.l.b16 %v2809
  %v2876 = vunpack.c.l.b16 %v2813
  %v2877 = vunpack.c.l.b16 %v2817
  %v2878 = vunpack.c.l.b16 %v2821
  %v2879 = vunpack.c.l.b16 %v2825
  %v2880 = vunpack.c.l.b16 %v2829
  %v2881 = vunpack.c.l.b16 %v2833
  %v2882 = vunpack.c.l.b16 %v2837
  %v2883 = vunpack.c.l.b16 %v2841
  %v2884 = vunpack.c.l.b16 %v2845
  %v2885 = vunpack.c.l.b16 %v2849
  %v2886 = vunpack.c.l.b16 %v2853
  %v2887 = vpack.c.b16 %v2872, %v2871
  %v2888 = vpack.c.b16 %v2874, %v2873
  %v2889 = vpack.c.b16 %v2876, %v2875
  %v2890 = vpack.c.b16 %v2878, %v2877
  %v2891 = vpack.c.b16 %v2880, %v2879
  %v2892 = vpack.c.b16 %v2882, %v2881
  %v2893 = vpack.c.b16 %v2884, %v2883
  %v2894 = vpack.c.b16 %v2886, %v2885
  %v2919 = vunpack.c.l.b16 %v2855
  %v2920 = vunpack.c.l.b16 %v2856
  %v2921 = vunpack.c.l.b16 %v2857
  %v2922 = vunpack.c.l.b16 %v2858
  %v2923 = vunpack.c.l.b16 %v2859
  %v2924 = vunpack.c.l.b16 %v2860
  %v2925 = vunpack.c.l.b16 %v2861
  %v2926 = vunpack.c.l.b16 %v2862
  %v2927 = vunpack.c.l.b16 %v2863
  %v2928 = vunpack.c.l.b16 %v2864
  %v2929 = vunpack.c.l.b16 %v2865
  %v2930 = vunpack.c.l.b16 %v2866
  %v2931 = vunpack.c.l.b16 %v2867
  %v2932 = vunpack.c.l.b16 %v2868
  %v2933 = vunpack.c.l.b16 %v2869
  %v2934 = vunpack.c.l.b16 %v2870
  %v2935 = vpack.c.b16 %v2920, %v2919
  %v2936 = vpack.c.b16 %v2922, %v2921
  %v2937 = vpack.c.b16 %v2924, %v2923
  %v2938 = vpack.c.b16 %v2926, %v2925
  %v2939 = vpack.c.b16 %v2928, %v2927
  %v2940 = vpack.c.b16 %v2930, %v2929
  %v2941 = vpack.c.b16 %v2932, %v2931
  %v2942 = vpack.c.b16 %v2934, %v2933
  %2951 = vmatprep.subr.bf16.mxu0 0
  %2952 = vmatpush1.bf16.msra.mxu0 %v2935
  %2953 = vmatprep.subr.bf16.mxu0 0
  %2954 = vmatpush1.bf16.msra.mxu0 %v2936
  %2955 = vmatprep.subr.bf16.mxu0 0
  %2956 = vmatpush1.bf16.msra.mxu0 %v2937
  %2957 = vmatprep.subr.bf16.mxu0 0
  %2958 = vmatpush1.bf16.msra.mxu0 %v2938
  %2959 = vmatprep.subr.bf16.mxu0 0
  %2960 = vmatpush1.bf16.msra.mxu0 %v2939
  %2961 = vmatprep.subr.bf16.mxu0 0
  %2962 = vmatpush1.bf16.msra.mxu0 %v2940
  %2963 = vmatprep.subr.bf16.mxu0 0
  %2964 = vmatpush1.bf16.msra.mxu0 %v2941
  %2965 = vmatprep.subr.bf16.mxu0 0
  %2966 = vmatpush1.bf16.msra.mxu0 %v2942
  %2967 = vmatprep.subr.bf16.mxu0 0
  %2968 = vmatpush1.bf16.msra.mxu0 0
  %2969 = vmatprep.subr.bf16.mxu0 0
  %2970 = vmatpush1.bf16.msra.mxu0 0
  %2971 = vmatprep.subr.bf16.mxu0 0
  %2972 = vmatpush1.bf16.msra.mxu0 0
  %2973 = vmatprep.subr.bf16.mxu0 0
  %2974 = vmatpush1.bf16.msra.mxu0 0
  %2975 = vmatprep.subr.bf16.mxu0 0
  %2976 = vmatpush1.bf16.msra.mxu0 0
  %2977 = vmatprep.subr.bf16.mxu0 0
  %2978 = vmatpush1.bf16.msra.mxu0 0
  %2979 = vmatprep.subr.bf16.mxu0 0
  %2980 = vmatpush1.bf16.msra.mxu0 0
  %2981 = vmatprep.subr.bf16.mxu0 0
  %2982 = vmatpush1.bf16.msra.mxu0 0
  %2983 = vmatprep.mubr.bf16.mxu0 0
  %2984 = vmatmul.mubr.bf16.gmra.mrb[0].mxu0 %v2887
  %v2985 = vpop.f32.mrb[0].mxu0
  %v2986 = vadd.f32 0.0, %v2985
  %v2987 = vpop.f32.mrb[0].mxu0
  %v2988 = vpop.f32.mrb[0].mxu0
  %v2989 = vadd.f32 0.0, %v2988
  %v2990 = vpop.f32.mrb[0].mxu0
  %2991 = vmatprep.mubr.bf16.mxu0 0
  %2992 = vmatmul.mubr.bf16.gmra.mrb[0].mxu0 %v2888
  %v2993 = vpop.f32.mrb[0].mxu0
  %v2994 = vadd.f32 0.0, %v2993
  %v2995 = vpop.f32.mrb[0].mxu0
  %v2996 = vpop.f32.mrb[0].mxu0
  %v2997 = vadd.f32 0.0, %v2996
  %v2998 = vpop.f32.mrb[0].mxu0
  %2999 = vmatprep.mubr.bf16.mxu0 0
  %3000 = vmatmul.mubr.bf16.gmra.mrb[0].mxu0 %v2889
  %v3001 = vpop.f32.mrb[0].mxu0
  %v3002 = vadd.f32 0.0, %v3001
  %v3003 = vpop.f32.mrb[0].mxu0
  %v3004 = vpop.f32.mrb[0].mxu0
  %v3005 = vadd.f32 0.0, %v3004
  %v3006 = vpop.f32.mrb[0].mxu0
  %3007 = vmatprep.mubr.bf16.mxu0 0
  %3008 = vmatmul.mubr.bf16.gmra.mrb[0].mxu0 %v2890
  %v3009 = vpop.f32.mrb[0].mxu0
  %v3010 = vadd.f32 0.0, %v3009
  %v3011 = vpop.f32.mrb[0].mxu0
  %v3012 = vpop.f32.mrb[0].mxu0
  %v3013 = vadd.f32 0.0, %v3012
  %v3014 = vpop.f32.mrb[0].mxu0
  %3015 = vmatprep.mubr.bf16.mxu0 0
  %3016 = vmatmul.mubr.bf16.gmra.mrb[0].mxu0 %v2891
  %v3017 = vpop.f32.mrb[0].mxu0
  %v3018 = vadd.f32 0.0, %v3017
  %v3019 = vpop.f32.mrb[0].mxu0
  %v3020 = vpop.f32.mrb[0].mxu0
  %v3021 = vadd.f32 0.0, %v3020
  %v3022 = vpop.f32.mrb[0].mxu0
  %3023 = vmatprep.mubr.bf16.mxu0 0
  %3024 = vmatmul.mubr.bf16.gmra.mrb[0].mxu0 %v2892
  %v3025 = vpop.f32.mrb[0].mxu0
  %v3026 = vadd.f32 0.0, %v3025
  %v3027 = vpop.f32.mrb[0].mxu0
  %v3028 = vpop.f32.mrb[0].mxu0
  %v3029 = vadd.f32 0.0, %v3028
  %v3030 = vpop.f32.mrb[0].mxu0
  %3031 = vmatprep.mubr.bf16.mxu0 0
  %3032 = vmatmul.mubr.bf16.gmra.mrb[0].mxu0 %v2893
  %v3033 = vpop.f32.mrb[0].mxu0
  %v3034 = vadd.f32 0.0, %v3033
  %v3035 = vpop.f32.mrb[0].mxu0
  %v3036 = vpop.f32.mrb[0].mxu0
  %v3037 = vadd.f32 0.0, %v3036
  %v3038 = vpop.f32.mrb[0].mxu0
  %3039 = vmatprep.mubr.bf16.mxu0 0
  %3040 = vmatmul.mubr.bf16.gmra.mrb[0].mxu0 %v2894
  %v3041 = vpop.f32.mrb[0].mxu0
  %v3042 = vadd.f32 0.0, %v3041
  %v3043 = vpop.f32.mrb[0].mxu0
  %v3044 = vpop.f32.mrb[0].mxu0
  %v3045 = vadd.f32 0.0, %v3044
  %v3046 = vpop.f32.mrb[0].mxu0
  %3047 = vdwg.mxu0
  %v3048 = vadd.f32 %v2726, %v2986
  %v3049 = vadd.f32 %v2727, %v2989
  %v3050 = vadd.f32 %v2728, %v2994
  %v3051 = vadd.f32 %v2729, %v2997
  %v3052 = vadd.f32 %v2730, %v3002
  %v3053 = vadd.f32 %v2731, %v3005
  %v3054 = vadd.f32 %v2732, %v3010
  %v3055 = vadd.f32 %v2733, %v3013
  %v3056 = vadd.f32 %v2734, %v3018
  %v3057 = vadd.f32 %v2735, %v3021
  %v3058 = vadd.f32 %v2736, %v3026
  %v3059 = vadd.f32 %v2737, %v3029
  %v3060 = vadd.f32 %v2738, %v3034
  %v3061 = vadd.f32 %v2739, %v3037
  %v3062 = vadd.f32 %v2740, %v3042
  %v3063 = vadd.f32 %v2741, %v3045
  %v3064 = vld [vmem:[%s2] sm:$0xf]
  %v3065 = vld [vmem:[%s2 + $0x4] sm:$0xf]
  %v3066 = vld [vmem:[%s2 + $0x8] sm:$0xf]
  %v3067 = vld [vmem:[%s2 + $0xc] sm:$0xf]
  %v3068 = vld [vmem:[%s2 + $0x10] sm:$0xf]
  %v3069 = vld [vmem:[%s2 + $0x14] sm:$0xf]
  %v3070 = vld [vmem:[%s2 + $0x18] sm:$0xf]
  %v3071 = vld [vmem:[%s2 + $0x1c] sm:$0xf]
  %v3072 = vld [vmem:[%s2 + $0x20] sm:$0xf]
  %v3073 = vld [vmem:[%s2 + $0x24] sm:$0xf]
  %v3074 = vld [vmem:[%s2 + $0x28] sm:$0xf]
  %v3075 = vld [vmem:[%s2 + $0x2c] sm:$0xf]
  %v3076 = vld [vmem:[%s2 + $0x30] sm:$0xf]
  %v3077 = vld [vmem:[%s2 + $0x34] sm:$0xf]
  %v3078 = vld [vmem:[%s2 + $0x38] sm:$0xf]
  %v3079 = vld [vmem:[%s2 + $0x3c] sm:$0xf]
  %v3080 = vunpack.c.l.bf16 %v3064
  %v3081 = vunpack.c.l.bf16 %v3065
  %v3082 = vunpack.c.l.bf16 %v3066
  %v3083 = vunpack.c.l.bf16 %v3067
  %v3084 = vunpack.c.l.bf16 %v3068
  %v3085 = vunpack.c.l.bf16 %v3069
  %v3086 = vunpack.c.l.bf16 %v3070
  %v3087 = vunpack.c.l.bf16 %v3071
  %v3088 = vunpack.c.l.bf16 %v3072
  %v3089 = vunpack.c.l.bf16 %v3073
  %v3090 = vunpack.c.l.bf16 %v3074
  %v3091 = vunpack.c.l.bf16 %v3075
  %v3092 = vunpack.c.l.bf16 %v3076
  %v3093 = vunpack.c.l.bf16 %v3077
  %v3094 = vunpack.c.l.bf16 %v3078
  %v3095 = vunpack.c.l.bf16 %v3079
  %v3096 = vadd.f32 %v3048, %v3080
  %v3097 = vadd.f32 %v3049, %v3081
  %v3098 = vadd.f32 %v3050, %v3082
  %v3099 = vadd.f32 %v3051, %v3083
  %v3100 = vadd.f32 %v3052, %v3084
  %v3101 = vadd.f32 %v3053, %v3085
  %v3102 = vadd.f32 %v3054, %v3086
  %v3103 = vadd.f32 %v3055, %v3087
  %v3104 = vadd.f32 %v3056, %v3088
  %v3105 = vadd.f32 %v3057, %v3089
  %v3106 = vadd.f32 %v3058, %v3090
  %v3107 = vadd.f32 %v3059, %v3091
  %v3108 = vadd.f32 %v3060, %v3092
  %v3109 = vadd.f32 %v3061, %v3093
  %v3110 = vadd.f32 %v3062, %v3094
  %v3111 = vadd.f32 %v3063, %v3095
  %v3112 = vpack.c.bf16 %v3097, %v3096
  %v3113 = vpack.c.bf16 %v3099, %v3098
  %v3114 = vpack.c.bf16 %v3101, %v3100
  %v3115 = vpack.c.bf16 %v3103, %v3102
  %v3116 = vpack.c.bf16 %v3105, %v3104
  %v3117 = vpack.c.bf16 %v3107, %v3106
  %v3118 = vpack.c.bf16 %v3109, %v3108
  %v3119 = vpack.c.bf16 %v3111, %v3110
  %v3128 = vunpack.c.l.b16 %v3112
  %v3129 = vunpack.c.h.b16 %v3112
  %v3130 = vunpack.c.l.b16 %v3113
  %v3131 = vunpack.c.h.b16 %v3113
  %v3132 = vunpack.c.l.b16 %v3114
  %v3133 = vunpack.c.h.b16 %v3114
  %v3134 = vunpack.c.l.b16 %v3115
  %v3135 = vunpack.c.h.b16 %v3115
  %v3136 = vunpack.c.l.b16 %v3116
  %v3137 = vunpack.c.h.b16 %v3116
  %v3138 = vunpack.c.l.b16 %v3117
  %v3139 = vunpack.c.h.b16 %v3117
  %v3140 = vunpack.c.l.b16 %v3118
  %v3141 = vunpack.c.h.b16 %v3118
  %v3142 = vunpack.c.l.b16 %v3119
  %v3143 = vunpack.c.h.b16 %v3119
  %v3144 = vpack.c.b16 %v3128, %v3128
  %v3145 = vpack.c.b16 %v3129, %v3129
  %v3146 = vpack.c.b16 %v3130, %v3130
  %v3147 = vpack.c.b16 %v3131, %v3131
  %v3148 = vpack.c.b16 %v3132, %v3132
  %v3149 = vpack.c.b16 %v3133, %v3133
  %v3150 = vpack.c.b16 %v3134, %v3134
  %v3151 = vpack.c.b16 %v3135, %v3135
  %v3152 = vpack.c.b16 %v3136, %v3136
  %v3153 = vpack.c.b16 %v3137, %v3137
  %v3154 = vpack.c.b16 %v3138, %v3138
  %v3155 = vpack.c.b16 %v3139, %v3139
  %v3156 = vpack.c.b16 %v3140, %v3140
  %v3157 = vpack.c.b16 %v3141, %v3141
  %v3158 = vpack.c.b16 %v3142, %v3142
  %v3159 = vpack.c.b16 %v3143, %v3143
  %3176 = vst [vmem:[%s3] sm:$0xf] %v3144
  %3177 = vst [vmem:[%s3 + $0x4] sm:$0xf] %v3145
  %3178 = vst [vmem:[%s3 + $0x8] sm:$0xf] %v3146
  %3179 = vst [vmem:[%s3 + $0xc] sm:$0xf] %v3147
  %3180 = vst [vmem:[%s3 + $0x10] sm:$0xf] %v3148
  %3181 = vst [vmem:[%s3 + $0x14] sm:$0xf] %v3149
  %3182 = vst [vmem:[%s3 + $0x18] sm:$0xf] %v3150
  %3183 = vst [vmem:[%s3 + $0x1c] sm:$0xf] %v3151
  %3184 = vst [vmem:[%s3 + $0x20] sm:$0xf] %v3152
  %3185 = vst [vmem:[%s3 + $0x24] sm:$0xf] %v3153
  %3186 = vst [vmem:[%s3 + $0x28] sm:$0xf] %v3154
  %3187 = vst [vmem:[%s3 + $0x2c] sm:$0xf] %v3155
  %3188 = vst [vmem:[%s3 + $0x30] sm:$0xf] %v3156
  %3189 = vst [vmem:[%s3 + $0x34] sm:$0xf] %v3157
  %3190 = vst [vmem:[%s3 + $0x38] sm:$0xf] %v3158
  %3191 = vst [vmem:[%s3 + $0x3c] sm:$0xf] %v3159
  // Predicated region
  $region14: #{_lambda_.5} parent=0 // pred_check
    _
  $region15: #{_lambda_.5} parent=0 // pred_check_branch
    %3193 = sbr.rel (0) target = $region17
  $region16: #{_lambda_.5} parent=0 // pred_region
    _
  $region17: #{_lambda_.5} parent=0 // pred_fallthru
    _
  // Predicated region
  $region18: #{_lambda_.5} parent=0 // pred_check
    _
  $region19: #{_lambda_.5} parent=0 // pred_check_branch
    %3195 = sbr.rel (0) target = $region21
  $region20: #{_lambda_.5} parent=0 // pred_region
    _
  $region21: #{_lambda_.5} parent=0 // pred_fallthru
    _

// kernel: _lambda_.4
$region0: #{_lambda_.4}
  #allocation0 [shape = 'u32[]', space=smem, size = 0x4, offset = 0x4, fixed_abs, tag = 'smem constant byte address 0x4 - core index']
  #allocation1 [shape = 'u32[144,128]{1,0:T(1,128)}', space=vmem, size = 0x12000, scoped, tag = 'internal scratch']
  %s0 = inlined_call_operand.vmem [shape: bf16[2,36,9,128], index: 0, kind: input, shape index: {}]
  %s1 = inlined_call_operand.vmem [shape: bf16[9,128,128], index: 1, kind: input, shape index: {}]
  %s2 = inlined_call_operand.vmem [shape: f32[1,128], index: 2, kind: input, shape index: {}]
  %s3 = inlined_call_operand.vmem [shape: f32[1,128], index: 3, kind: input, shape index: {}]
  %s4 = inlined_call_operand.vmem [shape: bf16[128,128], index: 4, kind: input, shape index: {}]
  %s5 = inlined_call_operand.vmem [shape: bf16[128,128], index: 5, kind: output, shape index: {0}]
  %s6 = inlined_call_operand.vmem [shape: bf16[128,128], index: 6, kind: output, shape index: {1}]
  %7 = xla_tuple %s5, %s6
  %s8 = sld [smem:[#allocation0]]
  $region38: #{_lambda_.4} parent=0
    _
  %s10 = ssub.s32 1, %s8
  %s11 = scalar_select 0, %s10, %s8
  // Predicated region
  $region2: #{_lambda_.4} parent=0 // pred_check
    _
  $region3: #{_lambda_.4} parent=0 // pred_check_branch
    %13 = sbr.rel (0) target = $region5
  $region4: #{_lambda_.4} parent=0 // pred_region
    _
  $region5: #{_lambda_.4} parent=0 // pred_fallthru
    _
  // Predicated region
  $region6: #{_lambda_.4} parent=0 // pred_check
    _
  $region7: #{_lambda_.4} parent=0 // pred_check_branch
    %15 = sbr.rel (0) target = $region9
  $region8: #{_lambda_.4} parent=0 // pred_region
    _
  $region9: #{_lambda_.4} parent=0 // pred_fallthru
    _
  // Predicated region
  $region10: #{_lambda_.4} parent=0 // pred_check
    _
  $region11: #{_lambda_.4} parent=0 // pred_check_branch
    %17 = sbr.rel (0) target = $region13
  $region12: #{_lambda_.4} parent=0 // pred_region
    _
  $region13: #{_lambda_.4} parent=0 // pred_fallthru
    _
  // Predicated region
  $region14: #{_lambda_.4} parent=0 // pred_check
    _
  $region15: #{_lambda_.4} parent=0 // pred_check_branch
    %19 = sbr.rel (0) target = $region17
  $region16: #{_lambda_.4} parent=0 // pred_region
    _
  $region17: #{_lambda_.4} parent=0 // pred_fallthru
    _
  // Predicated region
  $region18: #{_lambda_.4} parent=0 // pred_check
    _
  $region19: #{_lambda_.4} parent=0 // pred_check_branch
    %21 = sbr.rel (0) target = $region21
  $region20: #{_lambda_.4} parent=0 // pred_region
    _
  $region21: #{_lambda_.4} parent=0 // pred_fallthru
    _
  %v23 = vld [vmem:[%s0] sm:$0xf]
  %v24 = vld [vmem:[%s0 + $0x8] sm:$0xf]
  %v25 = vld [vmem:[%s0 + $0x10] sm:$0xf]
  %v26 = vld [vmem:[%s0 + $0x18] sm:$0xf]
  %v27 = vld [vmem:[%s0 + $0x20] sm:$0xf]
  %v28 = vld [vmem:[%s0 + $0x28] sm:$0xf]
  %v29 = vld [vmem:[%s0 + $0x30] sm:$0xf]
  %v30 = vld [vmem:[%s0 + $0x38] sm:$0xf]
  %v31 = vld [vmem:[%s0 + $0x120] sm:$0xf]
  %v32 = vld [vmem:[%s0 + $0x128] sm:$0xf]
  %v33 = vld [vmem:[%s0 + $0x130] sm:$0xf]
  %v34 = vld [vmem:[%s0 + $0x138] sm:$0xf]
  %v35 = vld [vmem:[%s0 + $0x140] sm:$0xf]
  %v36 = vld [vmem:[%s0 + $0x148] sm:$0xf]
  %v37 = vld [vmem:[%s0 + $0x150] sm:$0xf]
  %v38 = vld [vmem:[%s0 + $0x158] sm:$0xf]
  %v39 = vld [vmem:[%s1] sm:$0xf]
  %v40 = vld [vmem:[%s1 + $0x4] sm:$0xf]
  %v41 = vld [vmem:[%s1 + $0x8] sm:$0xf]
  %v42 = vld [vmem:[%s1 + $0xc] sm:$0xf]
  %v43 = vld [vmem:[%s1 + $0x10] sm:$0xf]
  %v44 = vld [vmem:[%s1 + $0x14] sm:$0xf]
  %v45 = vld [vmem:[%s1 + $0x18] sm:$0xf]
  %v46 = vld [vmem:[%s1 + $0x1c] sm:$0xf]
  %v47 = vld [vmem:[%s1 + $0x20] sm:$0xf]
  %v48 = vld [vmem:[%s1 + $0x24] sm:$0xf]
  %v49 = vld [vmem:[%s1 + $0x28] sm:$0xf]
  %v50 = vld [vmem:[%s1 + $0x2c] sm:$0xf]
  %v51 = vld [vmem:[%s1 + $0x30] sm:$0xf]
  %v52 = vld [vmem:[%s1 + $0x34] sm:$0xf]
  %v53 = vld [vmem:[%s1 + $0x38] sm:$0xf]
  %v54 = vld [vmem:[%s1 + $0x3c] sm:$0xf]
  %s55 = scalar_lea.vmem %s0, 72
  %v56 = vld [vmem:[%s55] sm:$0xf]
  %v57 = vld [vmem:[%s55 + $0x8] sm:$0xf]
  %v58 = vld [vmem:[%s55 + $0x10] sm:$0xf]
  %v59 = vld [vmem:[%s55 + $0x18] sm:$0xf]
  %v60 = vld [vmem:[%s55 + $0x20] sm:$0xf]
  %v61 = vld [vmem:[%s55 + $0x28] sm:$0xf]
  %v62 = vld [vmem:[%s55 + $0x30] sm:$0xf]
  %v63 = vld [vmem:[%s55 + $0x38] sm:$0xf]
  %v64 = vld [vmem:[%s55 + $0x120] sm:$0xf]
  %v65 = vld [vmem:[%s55 + $0x128] sm:$0xf]
  %v66 = vld [vmem:[%s55 + $0x130] sm:$0xf]
  %v67 = vld [vmem:[%s55 + $0x138] sm:$0xf]
  %v68 = vld [vmem:[%s55 + $0x140] sm:$0xf]
  %v69 = vld [vmem:[%s55 + $0x148] sm:$0xf]
  %v70 = vld [vmem:[%s55 + $0x150] sm:$0xf]
  %v71 = vld [vmem:[%s55 + $0x158] sm:$0xf]
  %s72 = scalar_lea.vmem %s1, 64
  %v73 = vld [vmem:[%s72] sm:$0xf]
  %v74 = vld [vmem:[%s72 + $0x4] sm:$0xf]
  %v75 = vld [vmem:[%s72 + $0x8] sm:$0xf]
  %v76 = vld [vmem:[%s72 + $0xc] sm:$0xf]
  %v77 = vld [vmem:[%s72 + $0x10] sm:$0xf]
  %v78 = vld [vmem:[%s72 + $0x14] sm:$0xf]
  %v79 = vld [vmem:[%s72 + $0x18] sm:$0xf]
  %v80 = vld [vmem:[%s72 + $0x1c] sm:$0xf]
  %v81 = vld [vmem:[%s72 + $0x20] sm:$0xf]
  %v82 = vld [vmem:[%s72 + $0x24] sm:$0xf]
  %v83 = vld [vmem:[%s72 + $0x28] sm:$0xf]
  %v84 = vld [vmem:[%s72 + $0x2c] sm:$0xf]
  %v85 = vld [vmem:[%s72 + $0x30] sm:$0xf]
  %v86 = vld [vmem:[%s72 + $0x34] sm:$0xf]
  %v87 = vld [vmem:[%s72 + $0x38] sm:$0xf]
  %v88 = vld [vmem:[%s72 + $0x3c] sm:$0xf]
  %v105 = vunpack.c.l.b16 %v56
  %v106 = vunpack.c.l.b16 %v57
  %v107 = vunpack.c.l.b16 %v58
  %v108 = vunpack.c.l.b16 %v59
  %v109 = vunpack.c.l.b16 %v60
  %v110 = vunpack.c.l.b16 %v61
  %v111 = vunpack.c.l.b16 %v62
  %v112 = vunpack.c.l.b16 %v63
  %v113 = vunpack.c.l.b16 %v64
  %v114 = vunpack.c.l.b16 %v65
  %v115 = vunpack.c.l.b16 %v66
  %v116 = vunpack.c.l.b16 %v67
  %v117 = vunpack.c.l.b16 %v68
  %v118 = vunpack.c.l.b16 %v69
  %v119 = vunpack.c.l.b16 %v70
  %v120 = vunpack.c.l.b16 %v71
  %v121 = vpack.c.b16 %v106, %v105
  %v122 = vpack.c.b16 %v108, %v107
  %v123 = vpack.c.b16 %v110, %v109
  %v124 = vpack.c.b16 %v112, %v111
  %v125 = vpack.c.b16 %v114, %v113
  %v126 = vpack.c.b16 %v116, %v115
  %v127 = vpack.c.b16 %v118, %v117
  %v128 = vpack.c.b16 %v120, %v119
  %v153 = vunpack.c.l.b16 %v73
  %v154 = vunpack.c.l.b16 %v74
  %v155 = vunpack.c.l.b16 %v75
  %v156 = vunpack.c.l.b16 %v76
  %v157 = vunpack.c.l.b16 %v77
  %v158 = vunpack.c.l.b16 %v78
  %v159 = vunpack.c.l.b16 %v79
  %v160 = vunpack.c.l.b16 %v80
  %v161 = vunpack.c.l.b16 %v81
  %v162 = vunpack.c.l.b16 %v82
  %v163 = vunpack.c.l.b16 %v83
  %v164 = vunpack.c.l.b16 %v84
  %v165 = vunpack.c.l.b16 %v85
  %v166 = vunpack.c.l.b16 %v86
  %v167 = vunpack.c.l.b16 %v87
  %v168 = vunpack.c.l.b16 %v88
  %v169 = vpack.c.b16 %v154, %v153
  %v170 = vpack.c.b16 %v156, %v155
  %v171 = vpack.c.b16 %v158, %v157
  %v172 = vpack.c.b16 %v160, %v159
  %v173 = vpack.c.b16 %v162, %v161
  %v174 = vpack.c.b16 %v164, %v163
  %v175 = vpack.c.b16 %v166, %v165
  %v176 = vpack.c.b16 %v168, %v167
  %185 = vmatprep.subr.bf16.mxu0 0
  %186 = vmatpush1.bf16.msra.mxu0 %v169
  %187 = vmatprep.subr.bf16.mxu0 0
  %188 = vmatpush1.bf16.msra.mxu0 %v170
  %189 = vmatprep.subr.bf16.mxu0 0
  %190 = vmatpush1.bf16.msra.mxu0 %v171
  %191 = vmatprep.subr.bf16.mxu0 0
  %192 = vmatpush1.bf16.msra.mxu0 %v172
  %193 = vmatprep.subr.bf16.mxu0 0
  %194 = vmatpush1.bf16.msra.mxu0 %v173
  %195 = vmatprep.subr.bf16.mxu0 0
  %196 = vmatpush1.bf16.msra.mxu0 %v174
  %197 = vmatprep.subr.bf16.mxu0 0
  %198 = vmatpush1.bf16.msra.mxu0 %v175
  %199 = vmatprep.subr.bf16.mxu0 0
  %200 = vmatpush1.bf16.msra.mxu0 %v176
  %201 = vmatprep.subr.bf16.mxu0 0
  %202 = vmatpush1.bf16.msra.mxu0 0
  %203 = vmatprep.subr.bf16.mxu0 0
  %204 = vmatpush1.bf16.msra.mxu0 0
  %205 = vmatprep.subr.bf16.mxu0 0
  %206 = vmatpush1.bf16.msra.mxu0 0
  %207 = vmatprep.subr.bf16.mxu0 0
  %208 = vmatpush1.bf16.msra.mxu0 0
  %209 = vmatprep.subr.bf16.mxu0 0
  %210 = vmatpush1.bf16.msra.mxu0 0
  %211 = vmatprep.subr.bf16.mxu0 0
  %212 = vmatpush1.bf16.msra.mxu0 0
  %213 = vmatprep.subr.bf16.mxu0 0
  %214 = vmatpush1.bf16.msra.mxu0 0
  %215 = vmatprep.subr.bf16.mxu0 0
  %216 = vmatpush1.bf16.msra.mxu0 0
  %217 = vmatprep.mubr.bf16.mxu0 0
  %218 = vmatmul.mubr.bf16.gmra.mrb[0].mxu0 %v121
  %v219 = vpop.f32.mrb[0].mxu0
  %v220 = vadd.f32 0.0, %v219
  %v221 = vpop.f32.mrb[0].mxu0
  %v222 = vpop.f32.mrb[0].mxu0
  %v223 = vadd.f32 0.0, %v222
  %v224 = vpop.f32.mrb[0].mxu0
  %225 = vmatprep.mubr.bf16.mxu0 0
  %226 = vmatmul.mubr.bf16.gmra.mrb[0].mxu0 %v122
  %v227 = vpop.f32.mrb[0].mxu0
  %v228 = vadd.f32 0.0, %v227
  %v229 = vpop.f32.mrb[0].mxu0
  %v230 = vpop.f32.mrb[0].mxu0
  %v231 = vadd.f32 0.0, %v230
  %v232 = vpop.f32.mrb[0].mxu0
  %233 = vmatprep.mubr.bf16.mxu0 0
  %234 = vmatmul.mubr.bf16.gmra.mrb[0].mxu0 %v123
  %v235 = vpop.f32.mrb[0].mxu0
  %v236 = vadd.f32 0.0, %v235
  %v237 = vpop.f32.mrb[0].mxu0
  %v238 = vpop.f32.mrb[0].mxu0
  %v239 = vadd.f32 0.0, %v238
  %v240 = vpop.f32.mrb[0].mxu0
  %241 = vmatprep.mubr.bf16.mxu0 0
  %242 = vmatmul.mubr.bf16.gmra.mrb[0].mxu0 %v124
  %v243 = vpop.f32.mrb[0].mxu0
  %v244 = vadd.f32 0.0, %v243
  %v245 = vpop.f32.mrb[0].mxu0
  %v246 = vpop.f32.mrb[0].mxu0
  %v247 = vadd.f32 0.0, %v246
  %v248 = vpop.f32.mrb[0].mxu0
  %249 = vmatprep.mubr.bf16.mxu0 0
  %250 = vmatmul.mubr.bf16.gmra.mrb[0].mxu0 %v125
  %v251 = vpop.f32.mrb[0].mxu0
  %v252 = vadd.f32 0.0, %v251
  %v253 = vpop.f32.mrb[0].mxu0
  %v254 = vpop.f32.mrb[0].mxu0
  %v255 = vadd.f32 0.0, %v254
  %v256 = vpop.f32.mrb[0].mxu0
  %257 = vmatprep.mubr.bf16.mxu0 0
  %258 = vmatmul.mubr.bf16.gmra.mrb[0].mxu0 %v126
  %v259 = vpop.f32.mrb[0].mxu0
  %v260 = vadd.f32 0.0, %v259
  %v261 = vpop.f32.mrb[0].mxu0
  %v262 = vpop.f32.mrb[0].mxu0
  %v263 = vadd.f32 0.0, %v262
  %v264 = vpop.f32.mrb[0].mxu0
  %265 = vmatprep.mubr.bf16.mxu0 0
  %266 = vmatmul.mubr.bf16.gmra.mrb[0].mxu0 %v127
  %v267 = vpop.f32.mrb[0].mxu0
  %v268 = vadd.f32 0.0, %v267
  %v269 = vpop.f32.mrb[0].mxu0
  %v270 = vpop.f32.mrb[0].mxu0
  %v271 = vadd.f32 0.0, %v270
  %v272 = vpop.f32.mrb[0].mxu0
  %273 = vmatprep.mubr.bf16.mxu0 0
  %274 = vmatmul.mubr.bf16.gmra.mrb[0].mxu0 %v128
  %v275 = vpop.f32.mrb[0].mxu0
  %v276 = vadd.f32 0.0, %v275
  %v277 = vpop.f32.mrb[0].mxu0
  %v278 = vpop.f32.mrb[0].mxu0
  %v279 = vadd.f32 0.0, %v278
  %v280 = vpop.f32.mrb[0].mxu0
  %281 = vdwg.mxu0
  %v298 = vunpack.c.l.b16 %v23
  %v299 = vunpack.c.l.b16 %v24
  %v300 = vunpack.c.l.b16 %v25
  %v301 = vunpack.c.l.b16 %v26
  %v302 = vunpack.c.l.b16 %v27
  %v303 = vunpack.c.l.b16 %v28
  %v304 = vunpack.c.l.b16 %v29
  %v305 = vunpack.c.l.b16 %v30
  %v306 = vunpack.c.l.b16 %v31
  %v307 = vunpack.c.l.b16 %v32
  %v308 = vunpack.c.l.b16 %v33
  %v309 = vunpack.c.l.b16 %v34
  %v310 = vunpack.c.l.b16 %v35
  %v311 = vunpack.c.l.b16 %v36
  %v312 = vunpack.c.l.b16 %v37
  %v313 = vunpack.c.l.b16 %v38
  %v314 = vpack.c.b16 %v299, %v298
  %v315 = vpack.c.b16 %v301, %v300
  %v316 = vpack.c.b16 %v303, %v302
  %v317 = vpack.c.b16 %v305, %v304
  %v318 = vpack.c.b16 %v307, %v306
  %v319 = vpack.c.b16 %v309, %v308
  %v320 = vpack.c.b16 %v311, %v310
  %v321 = vpack.c.b16 %v313, %v312
  %v346 = vunpack.c.l.b16 %v39
  %v347 = vunpack.c.l.b16 %v40
  %v348 = vunpack.c.l.b16 %v41
  %v349 = vunpack.c.l.b16 %v42
  %v350 = vunpack.c.l.b16 %v43
  %v351 = vunpack.c.l.b16 %v44
  %v352 = vunpack.c.l.b16 %v45
  %v353 = vunpack.c.l.b16 %v46
  %v354 = vunpack.c.l.b16 %v47
  %v355 = vunpack.c.l.b16 %v48
  %v356 = vunpack.c.l.b16 %v49
  %v357 = vunpack.c.l.b16 %v50
  %v358 = vunpack.c.l.b16 %v51
  %v359 = vunpack.c.l.b16 %v52
  %v360 = vunpack.c.l.b16 %v53
  %v361 = vunpack.c.l.b16 %v54
  %v362 = vpack.c.b16 %v347, %v346
  %v363 = vpack.c.b16 %v349, %v348
  %v364 = vpack.c.b16 %v351, %v350
  %v365 = vpack.c.b16 %v353, %v352
  %v366 = vpack.c.b16 %v355, %v354
  %v367 = vpack.c.b16 %v357, %v356
  %v368 = vpack.c.b16 %v359, %v358
  %v369 = vpack.c.b16 %v361, %v360
  %378 = vmatprep.subr.bf16.mxu0 0
  %379 = vmatpush1.bf16.msra.mxu0 %v362
  %380 = vmatprep.subr.bf16.mxu0 0
  %381 = vmatpush1.bf16.msra.mxu0 %v363
  %382 = vmatprep.subr.bf16.mxu0 0
  %383 = vmatpush1.bf16.msra.mxu0 %v364
  %384 = vmatprep.subr.bf16.mxu0 0
  %385 = vmatpush1.bf16.msra.mxu0 %v365
  %386 = vmatprep.subr.bf16.mxu0 0
  %387 = vmatpush1.bf16.msra.mxu0 %v366
  %388 = vmatprep.subr.bf16.mxu0 0
  %389 = vmatpush1.bf16.msra.mxu0 %v367
  %390 = vmatprep.subr.bf16.mxu0 0
  %391 = vmatpush1.bf16.msra.mxu0 %v368
  %392 = vmatprep.subr.bf16.mxu0 0
  %393 = vmatpush1.bf16.msra.mxu0 %v369
  %394 = vmatprep.subr.bf16.mxu0 0
  %395 = vmatpush1.bf16.msra.mxu0 0
  %396 = vmatprep.subr.bf16.mxu0 0
  %397 = vmatpush1.bf16.msra.mxu0 0
  %398 = vmatprep.subr.bf16.mxu0 0
  %399 = vmatpush1.bf16.msra.mxu0 0
  %400 = vmatprep.subr.bf16.mxu0 0
  %401 = vmatpush1.bf16.msra.mxu0 0
  %402 = vmatprep.subr.bf16.mxu0 0
  %403 = vmatpush1.bf16.msra.mxu0 0
  %404 = vmatprep.subr.bf16.mxu0 0
  %405 = vmatpush1.bf16.msra.mxu0 0
  %406 = vmatprep.subr.bf16.mxu0 0
  %407 = vmatpush1.bf16.msra.mxu0 0
  %408 = vmatprep.subr.bf16.mxu0 0
  %409 = vmatpush1.bf16.msra.mxu0 0
  %410 = vmatprep.mubr.bf16.mxu0 0
  %411 = vmatmul.mubr.bf16.gmra.mrb[0].mxu0 %v314
  %v412 = vpop.f32.mrb[0].mxu0
  %v413 = vadd.f32 %v220, %v412
  %v414 = vpop.f32.mrb[0].mxu0
  %v415 = vpop.f32.mrb[0].mxu0
  %v416 = vadd.f32 %v223, %v415
  %v417 = vpop.f32.mrb[0].mxu0
  %418 = vmatprep.mubr.bf16.mxu0 0
  %419 = vmatmul.mubr.bf16.gmra.mrb[0].mxu0 %v315
  %v420 = vpop.f32.mrb[0].mxu0
  %v421 = vadd.f32 %v228, %v420
  %v422 = vpop.f32.mrb[0].mxu0
  %v423 = vpop.f32.mrb[0].mxu0
  %v424 = vadd.f32 %v231, %v423
  %v425 = vpop.f32.mrb[0].mxu0
  %426 = vmatprep.mubr.bf16.mxu0 0
  %427 = vmatmul.mubr.bf16.gmra.mrb[0].mxu0 %v316
  %v428 = vpop.f32.mrb[0].mxu0
  %v429 = vadd.f32 %v236, %v428
  %v430 = vpop.f32.mrb[0].mxu0
  %v431 = vpop.f32.mrb[0].mxu0
  %v432 = vadd.f32 %v239, %v431
  %v433 = vpop.f32.mrb[0].mxu0
  %434 = vmatprep.mubr.bf16.mxu0 0
  %435 = vmatmul.mubr.bf16.gmra.mrb[0].mxu0 %v317
  %v436 = vpop.f32.mrb[0].mxu0
  %v437 = vadd.f32 %v244, %v436
  %v438 = vpop.f32.mrb[0].mxu0
  %v439 = vpop.f32.mrb[0].mxu0
  %v440 = vadd.f32 %v247, %v439
  %v441 = vpop.f32.mrb[0].mxu0
  %442 = vmatprep.mubr.bf16.mxu0 0
  %443 = vmatmul.mubr.bf16.gmra.mrb[0].mxu0 %v318
  %v444 = vpop.f32.mrb[0].mxu0
  %v445 = vadd.f32 %v252, %v444
  %v446 = vpop.f32.mrb[0].mxu0
  %v447 = vpop.f32.mrb[0].mxu0
  %v448 = vadd.f32 %v255, %v447
  %v449 = vpop.f32.mrb[0].mxu0
  %450 = vmatprep.mubr.bf16.mxu0 0
  %451 = vmatmul.mubr.bf16.gmra.mrb[0].mxu0 %v319
  %v452 = vpop.f32.mrb[0].mxu0
  %v453 = vadd.f32 %v260, %v452
  %v454 = vpop.f32.mrb[0].mxu0
  %v455 = vpop.f32.mrb[0].mxu0
  %v456 = vadd.f32 %v263, %v455
  %v457 = vpop.f32.mrb[0].mxu0
  %458 = vmatprep.mubr.bf16.mxu0 0
  %459 = vmatmul.mubr.bf16.gmra.mrb[0].mxu0 %v320
  %v460 = vpop.f32.mrb[0].mxu0
  %v461 = vadd.f32 %v268, %v460
  %v462 = vpop.f32.mrb[0].mxu0
  %v463 = vpop.f32.mrb[0].mxu0
  %v464 = vadd.f32 %v271, %v463
  %v465 = vpop.f32.mrb[0].mxu0
  %466 = vmatprep.mubr.bf16.mxu0 0
  %467 = vmatmul.mubr.bf16.gmra.mrb[0].mxu0 %v321
  %v468 = vpop.f32.mrb[0].mxu0
  %v469 = vadd.f32 %v276, %v468
  %v470 = vpop.f32.mrb[0].mxu0
  %v471 = vpop.f32.mrb[0].mxu0
  %v472 = vadd.f32 %v279, %v471
  %v473 = vpop.f32.mrb[0].mxu0
  %474 = vdwg.mxu0
  %v475 = vld [vmem:[%s0] sm:$0xf]
  %v476 = vld [vmem:[%s0 + $0x4] sm:$0x1]
  %v477 = vld [vmem:[%s0 + $0x8] sm:$0xf]
  %v478 = vld [vmem:[%s0 + $0xc] sm:$0x1]
  %v479 = vld [vmem:[%s0 + $0x10] sm:$0xf]
  %v480 = vld [vmem:[%s0 + $0x14] sm:$0x1]
  %v481 = vld [vmem:[%s0 + $0x18] sm:$0xf]
  %v482 = vld [vmem:[%s0 + $0x1c] sm:$0x1]
  %v483 = vld [vmem:[%s0 + $0x20] sm:$0xf]
  %v484 = vld [vmem:[%s0 + $0x24] sm:$0x1]
  %v485 = vld [vmem:[%s0 + $0x28] sm:$0xf]
  %v486 = vld [vmem:[%s0 + $0x2c] sm:$0x1]
  %v487 = vld [vmem:[%s0 + $0x30] sm:$0xf]
  %v488 = vld [vmem:[%s0 + $0x34] sm:$0x1]
  %v489 = vld [vmem:[%s0 + $0x38] sm:$0xf]
  %v490 = vld [vmem:[%s0 + $0x3c] sm:$0x1]
  %v491 = vld [vmem:[%s0 + $0x120] sm:$0xf]
  %v492 = vld [vmem:[%s0 + $0x124] sm:$0x1]
  %v493 = vld [vmem:[%s0 + $0x128] sm:$0xf]
  %v494 = vld [vmem:[%s0 + $0x12c] sm:$0x1]
  %v495 = vld [vmem:[%s0 + $0x130] sm:$0xf]
  %v496 = vld [vmem:[%s0 + $0x134] sm:$0x1]
  %v497 = vld [vmem:[%s0 + $0x138] sm:$0xf]
  %v498 = vld [vmem:[%s0 + $0x13c] sm:$0x1]
  %v499 = vld [vmem:[%s0 + $0x140] sm:$0xf]
  %v500 = vld [vmem:[%s0 + $0x144] sm:$0x1]
  %v501 = vld [vmem:[%s0 + $0x148] sm:$0xf]
  %v502 = vld [vmem:[%s0 + $0x14c] sm:$0x1]
  %v503 = vld [vmem:[%s0 + $0x150] sm:$0xf]
  %v504 = vld [vmem:[%s0 + $0x154] sm:$0x1]
  %v505 = vld [vmem:[%s0 + $0x158] sm:$0xf]
  %v506 = vld [vmem:[%s0 + $0x15c] sm:$0x1]
  %vm507 = vsmask.f32 3328
  %vm508 = vsmask.f32 7440
  %vm509 = vmor %vm507, %vm508
  %v511 = vshrl.u32 %v475, 16
  %v513 = vrot.slane %v511, 4
  %v514 = vshll.u32 %v475, 16
  %v516 = vrot.slane %v514, 5
  %v517 = vor.u32 %v513, %v516
  %v518 = vrot.slane %v517, 4
  %v520 = vshll.u32 %v476, 16
  %v522 = vrot.slane %v520, 5
  %v523 = vsel %vm509, %v518, %v522
  %v525 = vshrl.u32 %v477, 16
  %v527 = vrot.slane %v525, 4
  %v528 = vshll.u32 %v477, 16
  %v530 = vrot.slane %v528, 5
  %v531 = vor.u32 %v527, %v530
  %v532 = vrot.slane %v531, 4
  %v534 = vshll.u32 %v478, 16
  %v536 = vrot.slane %v534, 5
  %v537 = vsel %vm509, %v532, %v536
  %v539 = vshrl.u32 %v479, 16
  %v541 = vrot.slane %v539, 4
  %v542 = vshll.u32 %v479, 16
  %v544 = vrot.slane %v542, 5
  %v545 = vor.u32 %v541, %v544
  %v546 = vrot.slane %v545, 4
  %v548 = vshll.u32 %v480, 16
  %v550 = vrot.slane %v548, 5
  %v551 = vsel %vm509, %v546, %v550
  %v553 = vshrl.u32 %v481, 16
  %v555 = vrot.slane %v553, 4
  %v556 = vshll.u32 %v481, 16
  %v558 = vrot.slane %v556, 5
  %v559 = vor.u32 %v555, %v558
  %v560 = vrot.slane %v559, 4
  %v562 = vshll.u32 %v482, 16
  %v564 = vrot.slane %v562, 5
  %v565 = vsel %vm509, %v560, %v564
  %v567 = vshrl.u32 %v483, 16
  %v569 = vrot.slane %v567, 4
  %v570 = vshll.u32 %v483, 16
  %v572 = vrot.slane %v570, 5
  %v573 = vor.u32 %v569, %v572
  %v574 = vrot.slane %v573, 4
  %v576 = vshll.u32 %v484, 16
  %v578 = vrot.slane %v576, 5
  %v579 = vsel %vm509, %v574, %v578
  %v581 = vshrl.u32 %v485, 16
  %v583 = vrot.slane %v581, 4
  %v584 = vshll.u32 %v485, 16
  %v586 = vrot.slane %v584, 5
  %v587 = vor.u32 %v583, %v586
  %v588 = vrot.slane %v587, 4
  %v590 = vshll.u32 %v486, 16
  %v592 = vrot.slane %v590, 5
  %v593 = vsel %vm509, %v588, %v592
  %v595 = vshrl.u32 %v487, 16
  %v597 = vrot.slane %v595, 4
  %v598 = vshll.u32 %v487, 16
  %v600 = vrot.slane %v598, 5
  %v601 = vor.u32 %v597, %v600
  %v602 = vrot.slane %v601, 4
  %v604 = vshll.u32 %v488, 16
  %v606 = vrot.slane %v604, 5
  %v607 = vsel %vm509, %v602, %v606
  %v609 = vshrl.u32 %v489, 16
  %v611 = vrot.slane %v609, 4
  %v612 = vshll.u32 %v489, 16
  %v614 = vrot.slane %v612, 5
  %v615 = vor.u32 %v611, %v614
  %v616 = vrot.slane %v615, 4
  %v618 = vshll.u32 %v490, 16
  %v620 = vrot.slane %v618, 5
  %v621 = vsel %vm509, %v616, %v620
  %v623 = vshrl.u32 %v491, 16
  %v625 = vrot.slane %v623, 4
  %v626 = vshll.u32 %v491, 16
  %v628 = vrot.slane %v626, 5
  %v629 = vor.u32 %v625, %v628
  %v630 = vrot.slane %v629, 4
  %v632 = vshll.u32 %v492, 16
  %v634 = vrot.slane %v632, 5
  %v635 = vsel %vm509, %v630, %v634
  %v637 = vshrl.u32 %v493, 16
  %v639 = vrot.slane %v637, 4
  %v640 = vshll.u32 %v493, 16
  %v642 = vrot.slane %v640, 5
  %v643 = vor.u32 %v639, %v642
  %v644 = vrot.slane %v643, 4
  %v646 = vshll.u32 %v494, 16
  %v648 = vrot.slane %v646, 5
  %v649 = vsel %vm509, %v644, %v648
  %v651 = vshrl.u32 %v495, 16
  %v653 = vrot.slane %v651, 4
  %v654 = vshll.u32 %v495, 16
  %v656 = vrot.slane %v654, 5
  %v657 = vor.u32 %v653, %v656
  %v658 = vrot.slane %v657, 4
  %v660 = vshll.u32 %v496, 16
  %v662 = vrot.slane %v660, 5
  %v663 = vsel %vm509, %v658, %v662
  %v665 = vshrl.u32 %v497, 16
  %v667 = vrot.slane %v665, 4
  %v668 = vshll.u32 %v497, 16
  %v670 = vrot.slane %v668, 5
  %v671 = vor.u32 %v667, %v670
  %v672 = vrot.slane %v671, 4
  %v674 = vshll.u32 %v498, 16
  %v676 = vrot.slane %v674, 5
  %v677 = vsel %vm509, %v672, %v676
  %v679 = vshrl.u32 %v499, 16
  %v681 = vrot.slane %v679, 4
  %v682 = vshll.u32 %v499, 16
  %v684 = vrot.slane %v682, 5
  %v685 = vor.u32 %v681, %v684
  %v686 = vrot.slane %v685, 4
  %v688 = vshll.u32 %v500, 16
  %v690 = vrot.slane %v688, 5
  %v691 = vsel %vm509, %v686, %v690
  %v693 = vshrl.u32 %v501, 16
  %v695 = vrot.slane %v693, 4
  %v696 = vshll.u32 %v501, 16
  %v698 = vrot.slane %v696, 5
  %v699 = vor.u32 %v695, %v698
  %v700 = vrot.slane %v699, 4
  %v702 = vshll.u32 %v502, 16
  %v704 = vrot.slane %v702, 5
  %v705 = vsel %vm509, %v700, %v704
  %v707 = vshrl.u32 %v503, 16
  %v709 = vrot.slane %v707, 4
  %v710 = vshll.u32 %v503, 16
  %v712 = vrot.slane %v710, 5
  %v713 = vor.u32 %v709, %v712
  %v714 = vrot.slane %v713, 4
  %v716 = vshll.u32 %v504, 16
  %v718 = vrot.slane %v716, 5
  %v719 = vsel %vm509, %v714, %v718
  %v721 = vshrl.u32 %v505, 16
  %v723 = vrot.slane %v721, 4
  %v724 = vshll.u32 %v505, 16
  %v726 = vrot.slane %v724, 5
  %v727 = vor.u32 %v723, %v726
  %v728 = vrot.slane %v727, 4
  %v730 = vshll.u32 %v506, 16
  %v732 = vrot.slane %v730, 5
  %v733 = vsel %vm509, %v728, %v732
  %s734 = scalar_lea.vmem %s1, 128
  %v735 = vld [vmem:[%s734] sm:$0xf]
  %v736 = vld [vmem:[%s734 + $0x4] sm:$0xf]
  %v737 = vld [vmem:[%s734 + $0x8] sm:$0xf]
  %v738 = vld [vmem:[%s734 + $0xc] sm:$0xf]
  %v739 = vld [vmem:[%s734 + $0x10] sm:$0xf]
  %v740 = vld [vmem:[%s734 + $0x14] sm:$0xf]
  %v741 = vld [vmem:[%s734 + $0x18] sm:$0xf]
  %v742 = vld [vmem:[%s734 + $0x1c] sm:$0xf]
  %v743 = vld [vmem:[%s734 + $0x20] sm:$0xf]
  %v744 = vld [vmem:[%s734 + $0x24] sm:$0xf]
  %v745 = vld [vmem:[%s734 + $0x28] sm:$0xf]
  %v746 = vld [vmem:[%s734 + $0x2c] sm:$0xf]
  %v747 = vld [vmem:[%s734 + $0x30] sm:$0xf]
  %v748 = vld [vmem:[%s734 + $0x34] sm:$0xf]
  %v749 = vld [vmem:[%s734 + $0x38] sm:$0xf]
  %v750 = vld [vmem:[%s734 + $0x3c] sm:$0xf]
  %v751 = vunpack.c.l.b16 %v523
  %v752 = vunpack.c.l.b16 %v537
  %v753 = vunpack.c.l.b16 %v551
  %v754 = vunpack.c.l.b16 %v565
  %v755 = vunpack.c.l.b16 %v579
  %v756 = vunpack.c.l.b16 %v593
  %v757 = vunpack.c.l.b16 %v607
  %v758 = vunpack.c.l.b16 %v621
  %v759 = vunpack.c.l.b16 %v635
  %v760 = vunpack.c.l.b16 %v649
  %v761 = vunpack.c.l.b16 %v663
  %v762 = vunpack.c.l.b16 %v677
  %v763 = vunpack.c.l.b16 %v691
  %v764 = vunpack.c.l.b16 %v705
  %v765 = vunpack.c.l.b16 %v719
  %v766 = vunpack.c.l.b16 %v733
  %v767 = vpack.c.b16 %v752, %v751
  %v768 = vpack.c.b16 %v754, %v753
  %v769 = vpack.c.b16 %v756, %v755
  %v770 = vpack.c.b16 %v758, %v757
  %v771 = vpack.c.b16 %v760, %v759
  %v772 = vpack.c.b16 %v762, %v761
  %v773 = vpack.c.b16 %v764, %v763
  %v774 = vpack.c.b16 %v766, %v765
  %v799 = vunpack.c.l.b16 %v735
  %v800 = vunpack.c.l.b16 %v736
  %v801 = vunpack.c.l.b16 %v737
  %v802 = vunpack.c.l.b16 %v738
  %v803 = vunpack.c.l.b16 %v739
  %v804 = vunpack.c.l.b16 %v740
  %v805 = vunpack.c.l.b16 %v741
  %v806 = vunpack.c.l.b16 %v742
  %v807 = vunpack.c.l.b16 %v743
  %v808 = vunpack.c.l.b16 %v744
  %v809 = vunpack.c.l.b16 %v745
  %v810 = vunpack.c.l.b16 %v746
  %v811 = vunpack.c.l.b16 %v747
  %v812 = vunpack.c.l.b16 %v748
  %v813 = vunpack.c.l.b16 %v749
  %v814 = vunpack.c.l.b16 %v750
  %v815 = vpack.c.b16 %v800, %v799
  %v816 = vpack.c.b16 %v802, %v801
  %v817 = vpack.c.b16 %v804, %v803
  %v818 = vpack.c.b16 %v806, %v805
  %v819 = vpack.c.b16 %v808, %v807
  %v820 = vpack.c.b16 %v810, %v809
  %v821 = vpack.c.b16 %v812, %v811
  %v822 = vpack.c.b16 %v814, %v813
  %831 = vmatprep.subr.bf16.mxu0 0
  %832 = vmatpush1.bf16.msra.mxu0 %v815
  %833 = vmatprep.subr.bf16.mxu0 0
  %834 = vmatpush1.bf16.msra.mxu0 %v816
  %835 = vmatprep.subr.bf16.mxu0 0
  %836 = vmatpush1.bf16.msra.mxu0 %v817
  %837 = vmatprep.subr.bf16.mxu0 0
  %838 = vmatpush1.bf16.msra.mxu0 %v818
  %839 = vmatprep.subr.bf16.mxu0 0
  %840 = vmatpush1.bf16.msra.mxu0 %v819
  %841 = vmatprep.subr.bf16.mxu0 0
  %842 = vmatpush1.bf16.msra.mxu0 %v820
  %843 = vmatprep.subr.bf16.mxu0 0
  %844 = vmatpush1.bf16.msra.mxu0 %v821
  %845 = vmatprep.subr.bf16.mxu0 0
  %846 = vmatpush1.bf16.msra.mxu0 %v822
  %847 = vmatprep.subr.bf16.mxu0 0
  %848 = vmatpush1.bf16.msra.mxu0 0
  %849 = vmatprep.subr.bf16.mxu0 0
  %850 = vmatpush1.bf16.msra.mxu0 0
  %851 = vmatprep.subr.bf16.mxu0 0
  %852 = vmatpush1.bf16.msra.mxu0 0
  %853 = vmatprep.subr.bf16.mxu0 0
  %854 = vmatpush1.bf16.msra.mxu0 0
  %855 = vmatprep.subr.bf16.mxu0 0
  %856 = vmatpush1.bf16.msra.mxu0 0
  %857 = vmatprep.subr.bf16.mxu0 0
  %858 = vmatpush1.bf16.msra.mxu0 0
  %859 = vmatprep.subr.bf16.mxu0 0
  %860 = vmatpush1.bf16.msra.mxu0 0
  %861 = vmatprep.subr.bf16.mxu0 0
  %862 = vmatpush1.bf16.msra.mxu0 0
  %863 = vmatprep.mubr.bf16.mxu0 0
  %864 = vmatmul.mubr.bf16.gmra.mrb[0].mxu0 %v767
  %v865 = vpop.f32.mrb[0].mxu0
  %v866 = vadd.f32 0.0, %v865
  %v867 = vpop.f32.mrb[0].mxu0
  %v868 = vpop.f32.mrb[0].mxu0
  %v869 = vadd.f32 0.0, %v868
  %v870 = vpop.f32.mrb[0].mxu0
  %871 = vmatprep.mubr.bf16.mxu0 0
  %872 = vmatmul.mubr.bf16.gmra.mrb[0].mxu0 %v768
  %v873 = vpop.f32.mrb[0].mxu0
  %v874 = vadd.f32 0.0, %v873
  %v875 = vpop.f32.mrb[0].mxu0
  %v876 = vpop.f32.mrb[0].mxu0
  %v877 = vadd.f32 0.0, %v876
  %v878 = vpop.f32.mrb[0].mxu0
  %879 = vmatprep.mubr.bf16.mxu0 0
  %880 = vmatmul.mubr.bf16.gmra.mrb[0].mxu0 %v769
  %v881 = vpop.f32.mrb[0].mxu0
  %v882 = vadd.f32 0.0, %v881
  %v883 = vpop.f32.mrb[0].mxu0
  %v884 = vpop.f32.mrb[0].mxu0
  %v885 = vadd.f32 0.0, %v884
  %v886 = vpop.f32.mrb[0].mxu0
  %887 = vmatprep.mubr.bf16.mxu0 0
  %888 = vmatmul.mubr.bf16.gmra.mrb[0].mxu0 %v770
  %v889 = vpop.f32.mrb[0].mxu0
  %v890 = vadd.f32 0.0, %v889
  %v891 = vpop.f32.mrb[0].mxu0
  %v892 = vpop.f32.mrb[0].mxu0
  %v893 = vadd.f32 0.0, %v892
  %v894 = vpop.f32.mrb[0].mxu0
  %895 = vmatprep.mubr.bf16.mxu0 0
  %896 = vmatmul.mubr.bf16.gmra.mrb[0].mxu0 %v771
  %v897 = vpop.f32.mrb[0].mxu0
  %v898 = vadd.f32 0.0, %v897
  %v899 = vpop.f32.mrb[0].mxu0
  %v900 = vpop.f32.mrb[0].mxu0
  %v901 = vadd.f32 0.0, %v900
  %v902 = vpop.f32.mrb[0].mxu0
  %903 = vmatprep.mubr.bf16.mxu0 0
  %904 = vmatmul.mubr.bf16.gmra.mrb[0].mxu0 %v772
  %v905 = vpop.f32.mrb[0].mxu0
  %v906 = vadd.f32 0.0, %v905
  %v907 = vpop.f32.mrb[0].mxu0
  %v908 = vpop.f32.mrb[0].mxu0
  %v909 = vadd.f32 0.0, %v908
  %v910 = vpop.f32.mrb[0].mxu0
  %911 = vmatprep.mubr.bf16.mxu0 0
  %912 = vmatmul.mubr.bf16.gmra.mrb[0].mxu0 %v773
  %v913 = vpop.f32.mrb[0].mxu0
  %v914 = vadd.f32 0.0, %v913
  %v915 = vpop.f32.mrb[0].mxu0
  %v916 = vpop.f32.mrb[0].mxu0
  %v917 = vadd.f32 0.0, %v916
  %v918 = vpop.f32.mrb[0].mxu0
  %919 = vmatprep.mubr.bf16.mxu0 0
  %920 = vmatmul.mubr.bf16.gmra.mrb[0].mxu0 %v774
  %v921 = vpop.f32.mrb[0].mxu0
  %v922 = vadd.f32 0.0, %v921
  %v923 = vpop.f32.mrb[0].mxu0
  %v924 = vpop.f32.mrb[0].mxu0
  %v925 = vadd.f32 0.0, %v924
  %v926 = vpop.f32.mrb[0].mxu0
  %927 = vdwg.mxu0
  %v928 = vadd.f32 %v413, %v866
  %v929 = vadd.f32 %v416, %v869
  %v930 = vadd.f32 %v421, %v874
  %v931 = vadd.f32 %v424, %v877
  %v932 = vadd.f32 %v429, %v882
  %v933 = vadd.f32 %v432, %v885
  %v934 = vadd.f32 %v437, %v890
  %v935 = vadd.f32 %v440, %v893
  %v936 = vadd.f32 %v445, %v898
  %v937 = vadd.f32 %v448, %v901
  %v938 = vadd.f32 %v453, %v906
  %v939 = vadd.f32 %v456, %v909
  %v940 = vadd.f32 %v461, %v914
  %v941 = vadd.f32 %v464, %v917
  %v942 = vadd.f32 %v469, %v922
  %v943 = vadd.f32 %v472, %v925
  %s944 = scalar_lea.vmem %s0, 144
  %v945 = vld [vmem:[%s944] sm:$0xf]
  %v946 = vld [vmem:[%s944 + $0x8] sm:$0xf]
  %v947 = vld [vmem:[%s944 + $0x10] sm:$0xf]
  %v948 = vld [vmem:[%s944 + $0x18] sm:$0xf]
  %v949 = vld [vmem:[%s944 + $0x20] sm:$0xf]
  %v950 = vld [vmem:[%s944 + $0x28] sm:$0xf]
  %v951 = vld [vmem:[%s944 + $0x30] sm:$0xf]
  %v952 = vld [vmem:[%s944 + $0x38] sm:$0xf]
  %v953 = vld [vmem:[%s944 + $0x120] sm:$0xf]
  %v954 = vld [vmem:[%s944 + $0x128] sm:$0xf]
  %v955 = vld [vmem:[%s944 + $0x130] sm:$0xf]
  %v956 = vld [vmem:[%s944 + $0x138] sm:$0xf]
  %v957 = vld [vmem:[%s944 + $0x140] sm:$0xf]
  %v958 = vld [vmem:[%s944 + $0x148] sm:$0xf]
  %v959 = vld [vmem:[%s944 + $0x150] sm:$0xf]
  %v960 = vld [vmem:[%s944 + $0x158] sm:$0xf]
  %s961 = scalar_lea.vmem %s1, 192
  %v962 = vld [vmem:[%s961] sm:$0xf]
  %v963 = vld [vmem:[%s961 + $0x4] sm:$0xf]
  %v964 = vld [vmem:[%s961 + $0x8] sm:$0xf]
  %v965 = vld [vmem:[%s961 + $0xc] sm:$0xf]
  %v966 = vld [vmem:[%s961 + $0x10] sm:$0xf]
  %v967 = vld [vmem:[%s961 + $0x14] sm:$0xf]
  %v968 = vld [vmem:[%s961 + $0x18] sm:$0xf]
  %v969 = vld [vmem:[%s961 + $0x1c] sm:$0xf]
  %v970 = vld [vmem:[%s961 + $0x20] sm:$0xf]
  %v971 = vld [vmem:[%s961 + $0x24] sm:$0xf]
  %v972 = vld [vmem:[%s961 + $0x28] sm:$0xf]
  %v973 = vld [vmem:[%s961 + $0x2c] sm:$0xf]
  %v974 = vld [vmem:[%s961 + $0x30] sm:$0xf]
  %v975 = vld [vmem:[%s961 + $0x34] sm:$0xf]
  %v976 = vld [vmem:[%s961 + $0x38] sm:$0xf]
  %v977 = vld [vmem:[%s961 + $0x3c] sm:$0xf]
  %v994 = vunpack.c.l.b16 %v945
  %v995 = vunpack.c.l.b16 %v946
  %v996 = vunpack.c.l.b16 %v947
  %v997 = vunpack.c.l.b16 %v948
  %v998 = vunpack.c.l.b16 %v949
  %v999 = vunpack.c.l.b16 %v950
  %v1000 = vunpack.c.l.b16 %v951
  %v1001 = vunpack.c.l.b16 %v952
  %v1002 = vunpack.c.l.b16 %v953
  %v1003 = vunpack.c.l.b16 %v954
  %v1004 = vunpack.c.l.b16 %v955
  %v1005 = vunpack.c.l.b16 %v956
  %v1006 = vunpack.c.l.b16 %v957
  %v1007 = vunpack.c.l.b16 %v958
  %v1008 = vunpack.c.l.b16 %v959
  %v1009 = vunpack.c.l.b16 %v960
  %v1010 = vpack.c.b16 %v995, %v994
  %v1011 = vpack.c.b16 %v997, %v996
  %v1012 = vpack.c.b16 %v999, %v998
  %v1013 = vpack.c.b16 %v1001, %v1000
  %v1014 = vpack.c.b16 %v1003, %v1002
  %v1015 = vpack.c.b16 %v1005, %v1004
  %v1016 = vpack.c.b16 %v1007, %v1006
  %v1017 = vpack.c.b16 %v1009, %v1008
  %v1042 = vunpack.c.l.b16 %v962
  %v1043 = vunpack.c.l.b16 %v963
  %v1044 = vunpack.c.l.b16 %v964
  %v1045 = vunpack.c.l.b16 %v965
  %v1046 = vunpack.c.l.b16 %v966
  %v1047 = vunpack.c.l.b16 %v967
  %v1048 = vunpack.c.l.b16 %v968
  %v1049 = vunpack.c.l.b16 %v969
  %v1050 = vunpack.c.l.b16 %v970
  %v1051 = vunpack.c.l.b16 %v971
  %v1052 = vunpack.c.l.b16 %v972
  %v1053 = vunpack.c.l.b16 %v973
  %v1054 = vunpack.c.l.b16 %v974
  %v1055 = vunpack.c.l.b16 %v975
  %v1056 = vunpack.c.l.b16 %v976
  %v1057 = vunpack.c.l.b16 %v977
  %v1058 = vpack.c.b16 %v1043, %v1042
  %v1059 = vpack.c.b16 %v1045, %v1044
  %v1060 = vpack.c.b16 %v1047, %v1046
  %v1061 = vpack.c.b16 %v1049, %v1048
  %v1062 = vpack.c.b16 %v1051, %v1050
  %v1063 = vpack.c.b16 %v1053, %v1052
  %v1064 = vpack.c.b16 %v1055, %v1054
  %v1065 = vpack.c.b16 %v1057, %v1056
  %1074 = vmatprep.subr.bf16.mxu0 0
  %1075 = vmatpush1.bf16.msra.mxu0 %v1058
  %1076 = vmatprep.subr.bf16.mxu0 0
  %1077 = vmatpush1.bf16.msra.mxu0 %v1059
  %1078 = vmatprep.subr.bf16.mxu0 0
  %1079 = vmatpush1.bf16.msra.mxu0 %v1060
  %1080 = vmatprep.subr.bf16.mxu0 0
  %1081 = vmatpush1.bf16.msra.mxu0 %v1061
  %1082 = vmatprep.subr.bf16.mxu0 0
  %1083 = vmatpush1.bf16.msra.mxu0 %v1062
  %1084 = vmatprep.subr.bf16.mxu0 0
  %1085 = vmatpush1.bf16.msra.mxu0 %v1063
  %1086 = vmatprep.subr.bf16.mxu0 0
  %1087 = vmatpush1.bf16.msra.mxu0 %v1064
  %1088 = vmatprep.subr.bf16.mxu0 0
  %1089 = vmatpush1.bf16.msra.mxu0 %v1065
  %1090 = vmatprep.subr.bf16.mxu0 0
  %1091 = vmatpush1.bf16.msra.mxu0 0
  %1092 = vmatprep.subr.bf16.mxu0 0
  %1093 = vmatpush1.bf16.msra.mxu0 0
  %1094 = vmatprep.subr.bf16.mxu0 0
  %1095 = vmatpush1.bf16.msra.mxu0 0
  %1096 = vmatprep.subr.bf16.mxu0 0
  %1097 = vmatpush1.bf16.msra.mxu0 0
  %1098 = vmatprep.subr.bf16.mxu0 0
  %1099 = vmatpush1.bf16.msra.mxu0 0
  %1100 = vmatprep.subr.bf16.mxu0 0
  %1101 = vmatpush1.bf16.msra.mxu0 0
  %1102 = vmatprep.subr.bf16.mxu0 0
  %1103 = vmatpush1.bf16.msra.mxu0 0
  %1104 = vmatprep.subr.bf16.mxu0 0
  %1105 = vmatpush1.bf16.msra.mxu0 0
  %1106 = vmatprep.mubr.bf16.mxu0 0
  %1107 = vmatmul.mubr.bf16.gmra.mrb[0].mxu0 %v1010
  %v1108 = vpop.f32.mrb[0].mxu0
  %v1109 = vadd.f32 0.0, %v1108
  %v1110 = vpop.f32.mrb[0].mxu0
  %v1111 = vpop.f32.mrb[0].mxu0
  %v1112 = vadd.f32 0.0, %v1111
  %v1113 = vpop.f32.mrb[0].mxu0
  %1114 = vmatprep.mubr.bf16.mxu0 0
  %1115 = vmatmul.mubr.bf16.gmra.mrb[0].mxu0 %v1011
  %v1116 = vpop.f32.mrb[0].mxu0
  %v1117 = vadd.f32 0.0, %v1116
  %v1118 = vpop.f32.mrb[0].mxu0
  %v1119 = vpop.f32.mrb[0].mxu0
  %v1120 = vadd.f32 0.0, %v1119
  %v1121 = vpop.f32.mrb[0].mxu0
  %1122 = vmatprep.mubr.bf16.mxu0 0
  %1123 = vmatmul.mubr.bf16.gmra.mrb[0].mxu0 %v1012
  %v1124 = vpop.f32.mrb[0].mxu0
  %v1125 = vadd.f32 0.0, %v1124
  %v1126 = vpop.f32.mrb[0].mxu0
  %v1127 = vpop.f32.mrb[0].mxu0
  %v1128 = vadd.f32 0.0, %v1127
  %v1129 = vpop.f32.mrb[0].mxu0
  %1130 = vmatprep.mubr.bf16.mxu0 0
  %1131 = vmatmul.mubr.bf16.gmra.mrb[0].mxu0 %v1013
  %v1132 = vpop.f32.mrb[0].mxu0
  %v1133 = vadd.f32 0.0, %v1132
  %v1134 = vpop.f32.mrb[0].mxu0
  %v1135 = vpop.f32.mrb[0].mxu0
  %v1136 = vadd.f32 0.0, %v1135
  %v1137 = vpop.f32.mrb[0].mxu0
  %1138 = vmatprep.mubr.bf16.mxu0 0
  %1139 = vmatmul.mubr.bf16.gmra.mrb[0].mxu0 %v1014
  %v1140 = vpop.f32.mrb[0].mxu0
  %v1141 = vadd.f32 0.0, %v1140
  %v1142 = vpop.f32.mrb[0].mxu0
  %v1143 = vpop.f32.mrb[0].mxu0
  %v1144 = vadd.f32 0.0, %v1143
  %v1145 = vpop.f32.mrb[0].mxu0
  %1146 = vmatprep.mubr.bf16.mxu0 0
  %1147 = vmatmul.mubr.bf16.gmra.mrb[0].mxu0 %v1015
  %v1148 = vpop.f32.mrb[0].mxu0
  %v1149 = vadd.f32 0.0, %v1148
  %v1150 = vpop.f32.mrb[0].mxu0
  %v1151 = vpop.f32.mrb[0].mxu0
  %v1152 = vadd.f32 0.0, %v1151
  %v1153 = vpop.f32.mrb[0].mxu0
  %1154 = vmatprep.mubr.bf16.mxu0 0
  %1155 = vmatmul.mubr.bf16.gmra.mrb[0].mxu0 %v1016
  %v1156 = vpop.f32.mrb[0].mxu0
  %v1157 = vadd.f32 0.0, %v1156
  %v1158 = vpop.f32.mrb[0].mxu0
  %v1159 = vpop.f32.mrb[0].mxu0
  %v1160 = vadd.f32 0.0, %v1159
  %v1161 = vpop.f32.mrb[0].mxu0
  %1162 = vmatprep.mubr.bf16.mxu0 0
  %1163 = vmatmul.mubr.bf16.gmra.mrb[0].mxu0 %v1017
  %v1164 = vpop.f32.mrb[0].mxu0
  %v1165 = vadd.f32 0.0, %v1164
  %v1166 = vpop.f32.mrb[0].mxu0
  %v1167 = vpop.f32.mrb[0].mxu0
  %v1168 = vadd.f32 0.0, %v1167
  %v1169 = vpop.f32.mrb[0].mxu0
  %1170 = vdwg.mxu0
  %v1171 = vadd.f32 %v928, %v1109
  %v1172 = vadd.f32 %v929, %v1112
  %v1173 = vadd.f32 %v930, %v1117
  %v1174 = vadd.f32 %v931, %v1120
  %v1175 = vadd.f32 %v932, %v1125
  %v1176 = vadd.f32 %v933, %v1128
  %v1177 = vadd.f32 %v934, %v1133
  %v1178 = vadd.f32 %v935, %v1136
  %v1179 = vadd.f32 %v936, %v1141
  %v1180 = vadd.f32 %v937, %v1144
  %v1181 = vadd.f32 %v938, %v1149
  %v1182 = vadd.f32 %v939, %v1152
  %v1183 = vadd.f32 %v940, %v1157
  %v1184 = vadd.f32 %v941, %v1160
  %v1185 = vadd.f32 %v942, %v1165
  %v1186 = vadd.f32 %v943, %v1168
  %s1187 = scalar_lea.vmem %s0, 216
  %v1188 = vld [vmem:[%s1187] sm:$0xf]
  %v1189 = vld [vmem:[%s1187 + $0x8] sm:$0xf]
  %v1190 = vld [vmem:[%s1187 + $0x10] sm:$0xf]
  %v1191 = vld [vmem:[%s1187 + $0x18] sm:$0xf]
  %v1192 = vld [vmem:[%s1187 + $0x20] sm:$0xf]
  %v1193 = vld [vmem:[%s1187 + $0x28] sm:$0xf]
  %v1194 = vld [vmem:[%s1187 + $0x30] sm:$0xf]
  %v1195 = vld [vmem:[%s1187 + $0x38] sm:$0xf]
  %v1196 = vld [vmem:[%s1187 + $0x120] sm:$0xf]
  %v1197 = vld [vmem:[%s1187 + $0x128] sm:$0xf]
  %v1198 = vld [vmem:[%s1187 + $0x130] sm:$0xf]
  %v1199 = vld [vmem:[%s1187 + $0x138] sm:$0xf]
  %v1200 = vld [vmem:[%s1187 + $0x140] sm:$0xf]
  %v1201 = vld [vmem:[%s1187 + $0x148] sm:$0xf]
  %v1202 = vld [vmem:[%s1187 + $0x150] sm:$0xf]
  %v1203 = vld [vmem:[%s1187 + $0x158] sm:$0xf]
  %s1204 = scalar_lea.vmem %s1, 256
  %v1205 = vld [vmem:[%s1204] sm:$0xf]
  %v1206 = vld [vmem:[%s1204 + $0x4] sm:$0xf]
  %v1207 = vld [vmem:[%s1204 + $0x8] sm:$0xf]
  %v1208 = vld [vmem:[%s1204 + $0xc] sm:$0xf]
  %v1209 = vld [vmem:[%s1204 + $0x10] sm:$0xf]
  %v1210 = vld [vmem:[%s1204 + $0x14] sm:$0xf]
  %v1211 = vld [vmem:[%s1204 + $0x18] sm:$0xf]
  %v1212 = vld [vmem:[%s1204 + $0x1c] sm:$0xf]
  %v1213 = vld [vmem:[%s1204 + $0x20] sm:$0xf]
  %v1214 = vld [vmem:[%s1204 + $0x24] sm:$0xf]
  %v1215 = vld [vmem:[%s1204 + $0x28] sm:$0xf]
  %v1216 = vld [vmem:[%s1204 + $0x2c] sm:$0xf]
  %v1217 = vld [vmem:[%s1204 + $0x30] sm:$0xf]
  %v1218 = vld [vmem:[%s1204 + $0x34] sm:$0xf]
  %v1219 = vld [vmem:[%s1204 + $0x38] sm:$0xf]
  %v1220 = vld [vmem:[%s1204 + $0x3c] sm:$0xf]
  %v1237 = vunpack.c.l.b16 %v1188
  %v1238 = vunpack.c.l.b16 %v1189
  %v1239 = vunpack.c.l.b16 %v1190
  %v1240 = vunpack.c.l.b16 %v1191
  %v1241 = vunpack.c.l.b16 %v1192
  %v1242 = vunpack.c.l.b16 %v1193
  %v1243 = vunpack.c.l.b16 %v1194
  %v1244 = vunpack.c.l.b16 %v1195
  %v1245 = vunpack.c.l.b16 %v1196
  %v1246 = vunpack.c.l.b16 %v1197
  %v1247 = vunpack.c.l.b16 %v1198
  %v1248 = vunpack.c.l.b16 %v1199
  %v1249 = vunpack.c.l.b16 %v1200
  %v1250 = vunpack.c.l.b16 %v1201
  %v1251 = vunpack.c.l.b16 %v1202
  %v1252 = vunpack.c.l.b16 %v1203
  %v1253 = vpack.c.b16 %v1238, %v1237
  %v1254 = vpack.c.b16 %v1240, %v1239
  %v1255 = vpack.c.b16 %v1242, %v1241
  %v1256 = vpack.c.b16 %v1244, %v1243
  %v1257 = vpack.c.b16 %v1246, %v1245
  %v1258 = vpack.c.b16 %v1248, %v1247
  %v1259 = vpack.c.b16 %v1250, %v1249
  %v1260 = vpack.c.b16 %v1252, %v1251
  %v1285 = vunpack.c.l.b16 %v1205
  %v1286 = vunpack.c.l.b16 %v1206
  %v1287 = vunpack.c.l.b16 %v1207
  %v1288 = vunpack.c.l.b16 %v1208
  %v1289 = vunpack.c.l.b16 %v1209
  %v1290 = vunpack.c.l.b16 %v1210
  %v1291 = vunpack.c.l.b16 %v1211
  %v1292 = vunpack.c.l.b16 %v1212
  %v1293 = vunpack.c.l.b16 %v1213
  %v1294 = vunpack.c.l.b16 %v1214
  %v1295 = vunpack.c.l.b16 %v1215
  %v1296 = vunpack.c.l.b16 %v1216
  %v1297 = vunpack.c.l.b16 %v1217
  %v1298 = vunpack.c.l.b16 %v1218
  %v1299 = vunpack.c.l.b16 %v1219
  %v1300 = vunpack.c.l.b16 %v1220
  %v1301 = vpack.c.b16 %v1286, %v1285
  %v1302 = vpack.c.b16 %v1288, %v1287
  %v1303 = vpack.c.b16 %v1290, %v1289
  %v1304 = vpack.c.b16 %v1292, %v1291
  %v1305 = vpack.c.b16 %v1294, %v1293
  %v1306 = vpack.c.b16 %v1296, %v1295
  %v1307 = vpack.c.b16 %v1298, %v1297
  %v1308 = vpack.c.b16 %v1300, %v1299
  %1317 = vmatprep.subr.bf16.mxu0 0
  %1318 = vmatpush1.bf16.msra.mxu0 %v1301
  %1319 = vmatprep.subr.bf16.mxu0 0
  %1320 = vmatpush1.bf16.msra.mxu0 %v1302
  %1321 = vmatprep.subr.bf16.mxu0 0
  %1322 = vmatpush1.bf16.msra.mxu0 %v1303
  %1323 = vmatprep.subr.bf16.mxu0 0
  %1324 = vmatpush1.bf16.msra.mxu0 %v1304
  %1325 = vmatprep.subr.bf16.mxu0 0
  %1326 = vmatpush1.bf16.msra.mxu0 %v1305
  %1327 = vmatprep.subr.bf16.mxu0 0
  %1328 = vmatpush1.bf16.msra.mxu0 %v1306
  %1329 = vmatprep.subr.bf16.mxu0 0
  %1330 = vmatpush1.bf16.msra.mxu0 %v1307
  %1331 = vmatprep.subr.bf16.mxu0 0
  %1332 = vmatpush1.bf16.msra.mxu0 %v1308
  %1333 = vmatprep.subr.bf16.mxu0 0
  %1334 = vmatpush1.bf16.msra.mxu0 0
  %1335 = vmatprep.subr.bf16.mxu0 0
  %1336 = vmatpush1.bf16.msra.mxu0 0
  %1337 = vmatprep.subr.bf16.mxu0 0
  %1338 = vmatpush1.bf16.msra.mxu0 0
  %1339 = vmatprep.subr.bf16.mxu0 0
  %1340 = vmatpush1.bf16.msra.mxu0 0
  %1341 = vmatprep.subr.bf16.mxu0 0
  %1342 = vmatpush1.bf16.msra.mxu0 0
  %1343 = vmatprep.subr.bf16.mxu0 0
  %1344 = vmatpush1.bf16.msra.mxu0 0
  %1345 = vmatprep.subr.bf16.mxu0 0
  %1346 = vmatpush1.bf16.msra.mxu0 0
  %1347 = vmatprep.subr.bf16.mxu0 0
  %1348 = vmatpush1.bf16.msra.mxu0 0
  %1349 = vmatprep.mubr.bf16.mxu0 0
  %1350 = vmatmul.mubr.bf16.gmra.mrb[0].mxu0 %v1253
  %v1351 = vpop.f32.mrb[0].mxu0
  %v1352 = vadd.f32 0.0, %v1351
  %v1353 = vpop.f32.mrb[0].mxu0
  %v1354 = vpop.f32.mrb[0].mxu0
  %v1355 = vadd.f32 0.0, %v1354
  %v1356 = vpop.f32.mrb[0].mxu0
  %1357 = vmatprep.mubr.bf16.mxu0 0
  %1358 = vmatmul.mubr.bf16.gmra.mrb[0].mxu0 %v1254
  %v1359 = vpop.f32.mrb[0].mxu0
  %v1360 = vadd.f32 0.0, %v1359
  %v1361 = vpop.f32.mrb[0].mxu0
  %v1362 = vpop.f32.mrb[0].mxu0
  %v1363 = vadd.f32 0.0, %v1362
  %v1364 = vpop.f32.mrb[0].mxu0
  %1365 = vmatprep.mubr.bf16.mxu0 0
  %1366 = vmatmul.mubr.bf16.gmra.mrb[0].mxu0 %v1255
  %v1367 = vpop.f32.mrb[0].mxu0
  %v1368 = vadd.f32 0.0, %v1367
  %v1369 = vpop.f32.mrb[0].mxu0
  %v1370 = vpop.f32.mrb[0].mxu0
  %v1371 = vadd.f32 0.0, %v1370
  %v1372 = vpop.f32.mrb[0].mxu0
  %1373 = vmatprep.mubr.bf16.mxu0 0
  %1374 = vmatmul.mubr.bf16.gmra.mrb[0].mxu0 %v1256
  %v1375 = vpop.f32.mrb[0].mxu0
  %v1376 = vadd.f32 0.0, %v1375
  %v1377 = vpop.f32.mrb[0].mxu0
  %v1378 = vpop.f32.mrb[0].mxu0
  %v1379 = vadd.f32 0.0, %v1378
  %v1380 = vpop.f32.mrb[0].mxu0
  %1381 = vmatprep.mubr.bf16.mxu0 0
  %1382 = vmatmul.mubr.bf16.gmra.mrb[0].mxu0 %v1257
  %v1383 = vpop.f32.mrb[0].mxu0
  %v1384 = vadd.f32 0.0, %v1383
  %v1385 = vpop.f32.mrb[0].mxu0
  %v1386 = vpop.f32.mrb[0].mxu0
  %v1387 = vadd.f32 0.0, %v1386
  %v1388 = vpop.f32.mrb[0].mxu0
  %1389 = vmatprep.mubr.bf16.mxu0 0
  %1390 = vmatmul.mubr.bf16.gmra.mrb[0].mxu0 %v1258
  %v1391 = vpop.f32.mrb[0].mxu0
  %v1392 = vadd.f32 0.0, %v1391
  %v1393 = vpop.f32.mrb[0].mxu0
  %v1394 = vpop.f32.mrb[0].mxu0
  %v1395 = vadd.f32 0.0, %v1394
  %v1396 = vpop.f32.mrb[0].mxu0
  %1397 = vmatprep.mubr.bf16.mxu0 0
  %1398 = vmatmul.mubr.bf16.gmra.mrb[0].mxu0 %v1259
  %v1399 = vpop.f32.mrb[0].mxu0
  %v1400 = vadd.f32 0.0, %v1399
  %v1401 = vpop.f32.mrb[0].mxu0
  %v1402 = vpop.f32.mrb[0].mxu0
  %v1403 = vadd.f32 0.0, %v1402
  %v1404 = vpop.f32.mrb[0].mxu0
  %1405 = vmatprep.mubr.bf16.mxu0 0
  %1406 = vmatmul.mubr.bf16.gmra.mrb[0].mxu0 %v1260
  %v1407 = vpop.f32.mrb[0].mxu0
  %v1408 = vadd.f32 0.0, %v1407
  %v1409 = vpop.f32.mrb[0].mxu0
  %v1410 = vpop.f32.mrb[0].mxu0
  %v1411 = vadd.f32 0.0, %v1410
  %v1412 = vpop.f32.mrb[0].mxu0
  %1413 = vdwg.mxu0
  %v1414 = vadd.f32 %v1171, %v1352
  %v1415 = vadd.f32 %v1172, %v1355
  %v1416 = vadd.f32 %v1173, %v1360
  %v1417 = vadd.f32 %v1174, %v1363
  %v1418 = vadd.f32 %v1175, %v1368
  %v1419 = vadd.f32 %v1176, %v1371
  %v1420 = vadd.f32 %v1177, %v1376
  %v1421 = vadd.f32 %v1178, %v1379
  %v1422 = vadd.f32 %v1179, %v1384
  %v1423 = vadd.f32 %v1180, %v1387
  %v1424 = vadd.f32 %v1181, %v1392
  %v1425 = vadd.f32 %v1182, %v1395
  %v1426 = vadd.f32 %v1183, %v1400
  %v1427 = vadd.f32 %v1184, %v1403
  %v1428 = vadd.f32 %v1185, %v1408
  %v1429 = vadd.f32 %v1186, %v1411
  %v1430 = vld [vmem:[%s4] sm:$0xf]
  %v1431 = vld [vmem:[%s4 + $0x4] sm:$0xf]
  %v1432 = vld [vmem:[%s4 + $0x8] sm:$0xf]
  %v1433 = vld [vmem:[%s4 + $0xc] sm:$0xf]
  %v1434 = vld [vmem:[%s4 + $0x10] sm:$0xf]
  %v1435 = vld [vmem:[%s4 + $0x14] sm:$0xf]
  %v1436 = vld [vmem:[%s4 + $0x18] sm:$0xf]
  %v1437 = vld [vmem:[%s4 + $0x1c] sm:$0xf]
  %v1438 = vld [vmem:[%s4 + $0x20] sm:$0xf]
  %v1439 = vld [vmem:[%s4 + $0x24] sm:$0xf]
  %v1440 = vld [vmem:[%s4 + $0x28] sm:$0xf]
  %v1441 = vld [vmem:[%s4 + $0x2c] sm:$0xf]
  %v1442 = vld [vmem:[%s4 + $0x30] sm:$0xf]
  %v1443 = vld [vmem:[%s4 + $0x34] sm:$0xf]
  %v1444 = vld [vmem:[%s4 + $0x38] sm:$0xf]
  %v1445 = vld [vmem:[%s4 + $0x3c] sm:$0xf]
  %v1462 = vunpack.c.l.b16 %v1430
  %v1463 = vunpack.c.l.b16 %v1431
  %v1464 = vunpack.c.l.b16 %v1432
  %v1465 = vunpack.c.l.b16 %v1433
  %v1466 = vunpack.c.l.b16 %v1434
  %v1467 = vunpack.c.l.b16 %v1435
  %v1468 = vunpack.c.l.b16 %v1436
  %v1469 = vunpack.c.l.b16 %v1437
  %v1470 = vunpack.c.l.b16 %v1438
  %v1471 = vunpack.c.l.b16 %v1439
  %v1472 = vunpack.c.l.b16 %v1440
  %v1473 = vunpack.c.l.b16 %v1441
  %v1474 = vunpack.c.l.b16 %v1442
  %v1475 = vunpack.c.l.b16 %v1443
  %v1476 = vunpack.c.l.b16 %v1444
  %v1477 = vunpack.c.l.b16 %v1445
  %v1478 = vpack.c.b16 %v1463, %v1462
  %v1479 = vpack.c.b16 %v1465, %v1464
  %v1480 = vpack.c.b16 %v1467, %v1466
  %v1481 = vpack.c.b16 %v1469, %v1468
  %v1482 = vpack.c.b16 %v1471, %v1470
  %v1483 = vpack.c.b16 %v1473, %v1472
  %v1484 = vpack.c.b16 %v1475, %v1474
  %v1485 = vpack.c.b16 %v1477, %v1476
  %1494 = vmatprep.subr.bf16.mxu0 0
  %1495 = vmatpush1.bf16.msra.mxu0 %v1478
  %1496 = vmatprep.subr.bf16.mxu0 0
  %1497 = vmatpush1.bf16.msra.mxu0 %v1479
  %1498 = vmatprep.subr.bf16.mxu0 0
  %1499 = vmatpush1.bf16.msra.mxu0 %v1480
  %1500 = vmatprep.subr.bf16.mxu0 0
  %1501 = vmatpush1.bf16.msra.mxu0 %v1481
  %1502 = vmatprep.subr.bf16.mxu0 0
  %1503 = vmatpush1.bf16.msra.mxu0 %v1482
  %1504 = vmatprep.subr.bf16.mxu0 0
  %1505 = vmatpush1.bf16.msra.mxu0 %v1483
  %1506 = vmatprep.subr.bf16.mxu0 0
  %1507 = vmatpush1.bf16.msra.mxu0 %v1484
  %1508 = vmatprep.subr.bf16.mxu0 0
  %1509 = vmatpush1.bf16.msra.mxu0 %v1485
  %1510 = vmatprep.subr.bf16.mxu0 0
  %1511 = vmatpush1.bf16.msra.mxu0 0
  %1512 = vmatprep.subr.bf16.mxu0 0
  %1513 = vmatpush1.bf16.msra.mxu0 0
  %1514 = vmatprep.subr.bf16.mxu0 0
  %1515 = vmatpush1.bf16.msra.mxu0 0
  %1516 = vmatprep.subr.bf16.mxu0 0
  %1517 = vmatpush1.bf16.msra.mxu0 0
  %1518 = vmatprep.subr.bf16.mxu0 0
  %1519 = vmatpush1.bf16.msra.mxu0 0
  %1520 = vmatprep.subr.bf16.mxu0 0
  %1521 = vmatpush1.bf16.msra.mxu0 0
  %1522 = vmatprep.subr.bf16.mxu0 0
  %1523 = vmatpush1.bf16.msra.mxu0 0
  %1524 = vmatprep.subr.bf16.mxu0 0
  %1525 = vmatpush1.bf16.msra.mxu0 0
  %1526 = vmatprep.mubr.bf16.mxu0 0
  %1527 = vmatmul.mubr.bf16.gmra.mrb[0].mxu0 %v1253
  %v1528 = vpop.f32.mrb[0].mxu0
  %v1529 = vadd.f32 0.0, %v1528
  %v1530 = vpop.f32.mrb[0].mxu0
  %v1531 = vpop.f32.mrb[0].mxu0
  %v1532 = vadd.f32 0.0, %v1531
  %v1533 = vpop.f32.mrb[0].mxu0
  %1534 = vmatprep.mubr.bf16.mxu0 0
  %1535 = vmatmul.mubr.bf16.gmra.mrb[0].mxu0 %v1254
  %v1536 = vpop.f32.mrb[0].mxu0
  %v1537 = vadd.f32 0.0, %v1536
  %v1538 = vpop.f32.mrb[0].mxu0
  %v1539 = vpop.f32.mrb[0].mxu0
  %v1540 = vadd.f32 0.0, %v1539
  %v1541 = vpop.f32.mrb[0].mxu0
  %1542 = vmatprep.mubr.bf16.mxu0 0
  %1543 = vmatmul.mubr.bf16.gmra.mrb[0].mxu0 %v1255
  %v1544 = vpop.f32.mrb[0].mxu0
  %v1545 = vadd.f32 0.0, %v1544
  %v1546 = vpop.f32.mrb[0].mxu0
  %v1547 = vpop.f32.mrb[0].mxu0
  %v1548 = vadd.f32 0.0, %v1547
  %v1549 = vpop.f32.mrb[0].mxu0
  %1550 = vmatprep.mubr.bf16.mxu0 0
  %1551 = vmatmul.mubr.bf16.gmra.mrb[0].mxu0 %v1256
  %v1552 = vpop.f32.mrb[0].mxu0
  %v1553 = vadd.f32 0.0, %v1552
  %v1554 = vpop.f32.mrb[0].mxu0
  %v1555 = vpop.f32.mrb[0].mxu0
  %v1556 = vadd.f32 0.0, %v1555
  %v1557 = vpop.f32.mrb[0].mxu0
  %1558 = vmatprep.mubr.bf16.mxu0 0
  %1559 = vmatmul.mubr.bf16.gmra.mrb[0].mxu0 %v1257
  %v1560 = vpop.f32.mrb[0].mxu0
  %v1561 = vadd.f32 0.0, %v1560
  %v1562 = vpop.f32.mrb[0].mxu0
  %v1563 = vpop.f32.mrb[0].mxu0
  %v1564 = vadd.f32 0.0, %v1563
  %v1565 = vpop.f32.mrb[0].mxu0
  %1566 = vmatprep.mubr.bf16.mxu0 0
  %1567 = vmatmul.mubr.bf16.gmra.mrb[0].mxu0 %v1258
  %v1568 = vpop.f32.mrb[0].mxu0
  %v1569 = vadd.f32 0.0, %v1568
  %v1570 = vpop.f32.mrb[0].mxu0
  %v1571 = vpop.f32.mrb[0].mxu0
  %v1572 = vadd.f32 0.0, %v1571
  %v1573 = vpop.f32.mrb[0].mxu0
  %1574 = vmatprep.mubr.bf16.mxu0 0
  %1575 = vmatmul.mubr.bf16.gmra.mrb[0].mxu0 %v1259
  %v1576 = vpop.f32.mrb[0].mxu0
  %v1577 = vadd.f32 0.0, %v1576
  %v1578 = vpop.f32.mrb[0].mxu0
  %v1579 = vpop.f32.mrb[0].mxu0
  %v1580 = vadd.f32 0.0, %v1579
  %v1581 = vpop.f32.mrb[0].mxu0
  %1582 = vmatprep.mubr.bf16.mxu0 0
  %1583 = vmatmul.mubr.bf16.gmra.mrb[0].mxu0 %v1260
  %v1584 = vpop.f32.mrb[0].mxu0
  %v1585 = vadd.f32 0.0, %v1584
  %v1586 = vpop.f32.mrb[0].mxu0
  %v1587 = vpop.f32.mrb[0].mxu0
  %v1588 = vadd.f32 0.0, %v1587
  %v1589 = vpop.f32.mrb[0].mxu0
  %1590 = vdwg.mxu0
  %v1591 = vpack.c.bf16 %v1532, %v1529
  %v1592 = vpack.c.bf16 %v1540, %v1537
  %v1593 = vpack.c.bf16 %v1548, %v1545
  %v1594 = vpack.c.bf16 %v1556, %v1553
  %v1595 = vpack.c.bf16 %v1564, %v1561
  %v1596 = vpack.c.bf16 %v1572, %v1569
  %v1597 = vpack.c.bf16 %v1580, %v1577
  %v1598 = vpack.c.bf16 %v1588, %v1585
  %v1607 = vunpack.c.l.b16 %v1591
  %v1608 = vunpack.c.h.b16 %v1591
  %v1609 = vunpack.c.l.b16 %v1592
  %v1610 = vunpack.c.h.b16 %v1592
  %v1611 = vunpack.c.l.b16 %v1593
  %v1612 = vunpack.c.h.b16 %v1593
  %v1613 = vunpack.c.l.b16 %v1594
  %v1614 = vunpack.c.h.b16 %v1594
  %v1615 = vunpack.c.l.b16 %v1595
  %v1616 = vunpack.c.h.b16 %v1595
  %v1617 = vunpack.c.l.b16 %v1596
  %v1618 = vunpack.c.h.b16 %v1596
  %v1619 = vunpack.c.l.b16 %v1597
  %v1620 = vunpack.c.h.b16 %v1597
  %v1621 = vunpack.c.l.b16 %v1598
  %v1622 = vunpack.c.h.b16 %v1598
  %v1623 = vpack.c.b16 %v1607, %v1607
  %v1624 = vpack.c.b16 %v1608, %v1608
  %v1625 = vpack.c.b16 %v1609, %v1609
  %v1626 = vpack.c.b16 %v1610, %v1610
  %v1627 = vpack.c.b16 %v1611, %v1611
  %v1628 = vpack.c.b16 %v1612, %v1612
  %v1629 = vpack.c.b16 %v1613, %v1613
  %v1630 = vpack.c.b16 %v1614, %v1614
  %v1631 = vpack.c.b16 %v1615, %v1615
  %v1632 = vpack.c.b16 %v1616, %v1616
  %v1633 = vpack.c.b16 %v1617, %v1617
  %v1634 = vpack.c.b16 %v1618, %v1618
  %v1635 = vpack.c.b16 %v1619, %v1619
  %v1636 = vpack.c.b16 %v1620, %v1620
  %v1637 = vpack.c.b16 %v1621, %v1621
  %v1638 = vpack.c.b16 %v1622, %v1622
  %1655 = vst [vmem:[%s6] sm:$0xf] %v1623
  %1656 = vst [vmem:[%s6 + $0x4] sm:$0xf] %v1624
  %1657 = vst [vmem:[%s6 + $0x8] sm:$0xf] %v1625
  %1658 = vst [vmem:[%s6 + $0xc] sm:$0xf] %v1626
  %1659 = vst [vmem:[%s6 + $0x10] sm:$0xf] %v1627
  %1660 = vst [vmem:[%s6 + $0x14] sm:$0xf] %v1628
  %1661 = vst [vmem:[%s6 + $0x18] sm:$0xf] %v1629
  %1662 = vst [vmem:[%s6 + $0x1c] sm:$0xf] %v1630
  %1663 = vst [vmem:[%s6 + $0x20] sm:$0xf] %v1631
  %1664 = vst [vmem:[%s6 + $0x24] sm:$0xf] %v1632
  %1665 = vst [vmem:[%s6 + $0x28] sm:$0xf] %v1633
  %1666 = vst [vmem:[%s6 + $0x2c] sm:$0xf] %v1634
  %1667 = vst [vmem:[%s6 + $0x30] sm:$0xf] %v1635
  %1668 = vst [vmem:[%s6 + $0x34] sm:$0xf] %v1636
  %1669 = vst [vmem:[%s6 + $0x38] sm:$0xf] %v1637
  %1670 = vst [vmem:[%s6 + $0x3c] sm:$0xf] %v1638
  %v1671 = vld [vmem:[%s944] sm:$0xf]
  %v1672 = vld [vmem:[%s944 + $0x4] sm:$0x1]
  %v1673 = vld [vmem:[%s944 + $0x8] sm:$0xf]
  %v1674 = vld [vmem:[%s944 + $0xc] sm:$0x1]
  %v1675 = vld [vmem:[%s944 + $0x10] sm:$0xf]
  %v1676 = vld [vmem:[%s944 + $0x14] sm:$0x1]
  %v1677 = vld [vmem:[%s944 + $0x18] sm:$0xf]
  %v1678 = vld [vmem:[%s944 + $0x1c] sm:$0x1]
  %v1679 = vld [vmem:[%s944 + $0x20] sm:$0xf]
  %v1680 = vld [vmem:[%s944 + $0x24] sm:$0x1]
  %v1681 = vld [vmem:[%s944 + $0x28] sm:$0xf]
  %v1682 = vld [vmem:[%s944 + $0x2c] sm:$0x1]
  %v1683 = vld [vmem:[%s944 + $0x30] sm:$0xf]
  %v1684 = vld [vmem:[%s944 + $0x34] sm:$0x1]
  %v1685 = vld [vmem:[%s944 + $0x38] sm:$0xf]
  %v1686 = vld [vmem:[%s944 + $0x3c] sm:$0x1]
  %v1687 = vld [vmem:[%s944 + $0x120] sm:$0xf]
  %v1688 = vld [vmem:[%s944 + $0x124] sm:$0x1]
  %v1689 = vld [vmem:[%s944 + $0x128] sm:$0xf]
  %v1690 = vld [vmem:[%s944 + $0x12c] sm:$0x1]
  %v1691 = vld [vmem:[%s944 + $0x130] sm:$0xf]
  %v1692 = vld [vmem:[%s944 + $0x134] sm:$0x1]
  %v1693 = vld [vmem:[%s944 + $0x138] sm:$0xf]
  %v1694 = vld [vmem:[%s944 + $0x13c] sm:$0x1]
  %v1695 = vld [vmem:[%s944 + $0x140] sm:$0xf]
  %v1696 = vld [vmem:[%s944 + $0x144] sm:$0x1]
  %v1697 = vld [vmem:[%s944 + $0x148] sm:$0xf]
  %v1698 = vld [vmem:[%s944 + $0x14c] sm:$0x1]
  %v1699 = vld [vmem:[%s944 + $0x150] sm:$0xf]
  %v1700 = vld [vmem:[%s944 + $0x154] sm:$0x1]
  %v1701 = vld [vmem:[%s944 + $0x158] sm:$0xf]
  %v1702 = vld [vmem:[%s944 + $0x15c] sm:$0x1]
  %v1704 = vshrl.u32 %v1671, 16
  %v1706 = vrot.slane %v1704, 4
  %v1707 = vshll.u32 %v1671, 16
  %v1709 = vrot.slane %v1707, 5
  %v1710 = vor.u32 %v1706, %v1709
  %v1711 = vrot.slane %v1710, 4
  %v1713 = vshll.u32 %v1672, 16
  %v1715 = vrot.slane %v1713, 5
  %v1716 = vsel %vm509, %v1711, %v1715
  %v1718 = vshrl.u32 %v1673, 16
  %v1720 = vrot.slane %v1718, 4
  %v1721 = vshll.u32 %v1673, 16
  %v1723 = vrot.slane %v1721, 5
  %v1724 = vor.u32 %v1720, %v1723
  %v1725 = vrot.slane %v1724, 4
  %v1727 = vshll.u32 %v1674, 16
  %v1729 = vrot.slane %v1727, 5
  %v1730 = vsel %vm509, %v1725, %v1729
  %v1732 = vshrl.u32 %v1675, 16
  %v1734 = vrot.slane %v1732, 4
  %v1735 = vshll.u32 %v1675, 16
  %v1737 = vrot.slane %v1735, 5
  %v1738 = vor.u32 %v1734, %v1737
  %v1739 = vrot.slane %v1738, 4
  %v1741 = vshll.u32 %v1676, 16
  %v1743 = vrot.slane %v1741, 5
  %v1744 = vsel %vm509, %v1739, %v1743
  %v1746 = vshrl.u32 %v1677, 16
  %v1748 = vrot.slane %v1746, 4
  %v1749 = vshll.u32 %v1677, 16
  %v1751 = vrot.slane %v1749, 5
  %v1752 = vor.u32 %v1748, %v1751
  %v1753 = vrot.slane %v1752, 4
  %v1755 = vshll.u32 %v1678, 16
  %v1757 = vrot.slane %v1755, 5
  %v1758 = vsel %vm509, %v1753, %v1757
  %v1760 = vshrl.u32 %v1679, 16
  %v1762 = vrot.slane %v1760, 4
  %v1763 = vshll.u32 %v1679, 16
  %v1765 = vrot.slane %v1763, 5
  %v1766 = vor.u32 %v1762, %v1765
  %v1767 = vrot.slane %v1766, 4
  %v1769 = vshll.u32 %v1680, 16
  %v1771 = vrot.slane %v1769, 5
  %v1772 = vsel %vm509, %v1767, %v1771
  %v1774 = vshrl.u32 %v1681, 16
  %v1776 = vrot.slane %v1774, 4
  %v1777 = vshll.u32 %v1681, 16
  %v1779 = vrot.slane %v1777, 5
  %v1780 = vor.u32 %v1776, %v1779
  %v1781 = vrot.slane %v1780, 4
  %v1783 = vshll.u32 %v1682, 16
  %v1785 = vrot.slane %v1783, 5
  %v1786 = vsel %vm509, %v1781, %v1785
  %v1788 = vshrl.u32 %v1683, 16
  %v1790 = vrot.slane %v1788, 4
  %v1791 = vshll.u32 %v1683, 16
  %v1793 = vrot.slane %v1791, 5
  %v1794 = vor.u32 %v1790, %v1793
  %v1795 = vrot.slane %v1794, 4
  %v1797 = vshll.u32 %v1684, 16
  %v1799 = vrot.slane %v1797, 5
  %v1800 = vsel %vm509, %v1795, %v1799
  %v1802 = vshrl.u32 %v1685, 16
  %v1804 = vrot.slane %v1802, 4
  %v1805 = vshll.u32 %v1685, 16
  %v1807 = vrot.slane %v1805, 5
  %v1808 = vor.u32 %v1804, %v1807
  %v1809 = vrot.slane %v1808, 4
  %v1811 = vshll.u32 %v1686, 16
  %v1813 = vrot.slane %v1811, 5
  %v1814 = vsel %vm509, %v1809, %v1813
  %v1816 = vshrl.u32 %v1687, 16
  %v1818 = vrot.slane %v1816, 4
  %v1819 = vshll.u32 %v1687, 16
  %v1821 = vrot.slane %v1819, 5
  %v1822 = vor.u32 %v1818, %v1821
  %v1823 = vrot.slane %v1822, 4
  %v1825 = vshll.u32 %v1688, 16
  %v1827 = vrot.slane %v1825, 5
  %v1828 = vsel %vm509, %v1823, %v1827
  %v1830 = vshrl.u32 %v1689, 16
  %v1832 = vrot.slane %v1830, 4
  %v1833 = vshll.u32 %v1689, 16
  %v1835 = vrot.slane %v1833, 5
  %v1836 = vor.u32 %v1832, %v1835
  %v1837 = vrot.slane %v1836, 4
  %v1839 = vshll.u32 %v1690, 16
  %v1841 = vrot.slane %v1839, 5
  %v1842 = vsel %vm509, %v1837, %v1841
  %v1844 = vshrl.u32 %v1691, 16
  %v1846 = vrot.slane %v1844, 4
  %v1847 = vshll.u32 %v1691, 16
  %v1849 = vrot.slane %v1847, 5
  %v1850 = vor.u32 %v1846, %v1849
  %v1851 = vrot.slane %v1850, 4
  %v1853 = vshll.u32 %v1692, 16
  %v1855 = vrot.slane %v1853, 5
  %v1856 = vsel %vm509, %v1851, %v1855
  %v1858 = vshrl.u32 %v1693, 16
  %v1860 = vrot.slane %v1858, 4
  %v1861 = vshll.u32 %v1693, 16
  %v1863 = vrot.slane %v1861, 5
  %v1864 = vor.u32 %v1860, %v1863
  %v1865 = vrot.slane %v1864, 4
  %v1867 = vshll.u32 %v1694, 16
  %v1869 = vrot.slane %v1867, 5
  %v1870 = vsel %vm509, %v1865, %v1869
  %v1872 = vshrl.u32 %v1695, 16
  %v1874 = vrot.slane %v1872, 4
  %v1875 = vshll.u32 %v1695, 16
  %v1877 = vrot.slane %v1875, 5
  %v1878 = vor.u32 %v1874, %v1877
  %v1879 = vrot.slane %v1878, 4
  %v1881 = vshll.u32 %v1696, 16
  %v1883 = vrot.slane %v1881, 5
  %v1884 = vsel %vm509, %v1879, %v1883
  %v1886 = vshrl.u32 %v1697, 16
  %v1888 = vrot.slane %v1886, 4
  %v1889 = vshll.u32 %v1697, 16
  %v1891 = vrot.slane %v1889, 5
  %v1892 = vor.u32 %v1888, %v1891
  %v1893 = vrot.slane %v1892, 4
  %v1895 = vshll.u32 %v1698, 16
  %v1897 = vrot.slane %v1895, 5
  %v1898 = vsel %vm509, %v1893, %v1897
  %v1900 = vshrl.u32 %v1699, 16
  %v1902 = vrot.slane %v1900, 4
  %v1903 = vshll.u32 %v1699, 16
  %v1905 = vrot.slane %v1903, 5
  %v1906 = vor.u32 %v1902, %v1905
  %v1907 = vrot.slane %v1906, 4
  %v1909 = vshll.u32 %v1700, 16
  %v1911 = vrot.slane %v1909, 5
  %v1912 = vsel %vm509, %v1907, %v1911
  %v1914 = vshrl.u32 %v1701, 16
  %v1916 = vrot.slane %v1914, 4
  %v1917 = vshll.u32 %v1701, 16
  %v1919 = vrot.slane %v1917, 5
  %v1920 = vor.u32 %v1916, %v1919
  %v1921 = vrot.slane %v1920, 4
  %v1923 = vshll.u32 %v1702, 16
  %v1925 = vrot.slane %v1923, 5
  %v1926 = vsel %vm509, %v1921, %v1925
  %s1927 = scalar_lea.vmem %s1, 320
  %v1928 = vld [vmem:[%s1927] sm:$0xf]
  %v1929 = vld [vmem:[%s1927 + $0x4] sm:$0xf]
  %v1930 = vld [vmem:[%s1927 + $0x8] sm:$0xf]
  %v1931 = vld [vmem:[%s1927 + $0xc] sm:$0xf]
  %v1932 = vld [vmem:[%s1927 + $0x10] sm:$0xf]
  %v1933 = vld [vmem:[%s1927 + $0x14] sm:$0xf]
  %v1934 = vld [vmem:[%s1927 + $0x18] sm:$0xf]
  %v1935 = vld [vmem:[%s1927 + $0x1c] sm:$0xf]
  %v1936 = vld [vmem:[%s1927 + $0x20] sm:$0xf]
  %v1937 = vld [vmem:[%s1927 + $0x24] sm:$0xf]
  %v1938 = vld [vmem:[%s1927 + $0x28] sm:$0xf]
  %v1939 = vld [vmem:[%s1927 + $0x2c] sm:$0xf]
  %v1940 = vld [vmem:[%s1927 + $0x30] sm:$0xf]
  %v1941 = vld [vmem:[%s1927 + $0x34] sm:$0xf]
  %v1942 = vld [vmem:[%s1927 + $0x38] sm:$0xf]
  %v1943 = vld [vmem:[%s1927 + $0x3c] sm:$0xf]
  %v1944 = vunpack.c.l.b16 %v1716
  %v1945 = vunpack.c.l.b16 %v1730
  %v1946 = vunpack.c.l.b16 %v1744
  %v1947 = vunpack.c.l.b16 %v1758
  %v1948 = vunpack.c.l.b16 %v1772
  %v1949 = vunpack.c.l.b16 %v1786
  %v1950 = vunpack.c.l.b16 %v1800
  %v1951 = vunpack.c.l.b16 %v1814
  %v1952 = vunpack.c.l.b16 %v1828
  %v1953 = vunpack.c.l.b16 %v1842
  %v1954 = vunpack.c.l.b16 %v1856
  %v1955 = vunpack.c.l.b16 %v1870
  %v1956 = vunpack.c.l.b16 %v1884
  %v1957 = vunpack.c.l.b16 %v1898
  %v1958 = vunpack.c.l.b16 %v1912
  %v1959 = vunpack.c.l.b16 %v1926
  %v1960 = vpack.c.b16 %v1945, %v1944
  %v1961 = vpack.c.b16 %v1947, %v1946
  %v1962 = vpack.c.b16 %v1949, %v1948
  %v1963 = vpack.c.b16 %v1951, %v1950
  %v1964 = vpack.c.b16 %v1953, %v1952
  %v1965 = vpack.c.b16 %v1955, %v1954
  %v1966 = vpack.c.b16 %v1957, %v1956
  %v1967 = vpack.c.b16 %v1959, %v1958
  %v1992 = vunpack.c.l.b16 %v1928
  %v1993 = vunpack.c.l.b16 %v1929
  %v1994 = vunpack.c.l.b16 %v1930
  %v1995 = vunpack.c.l.b16 %v1931
  %v1996 = vunpack.c.l.b16 %v1932
  %v1997 = vunpack.c.l.b16 %v1933
  %v1998 = vunpack.c.l.b16 %v1934
  %v1999 = vunpack.c.l.b16 %v1935
  %v2000 = vunpack.c.l.b16 %v1936
  %v2001 = vunpack.c.l.b16 %v1937
  %v2002 = vunpack.c.l.b16 %v1938
  %v2003 = vunpack.c.l.b16 %v1939
  %v2004 = vunpack.c.l.b16 %v1940
  %v2005 = vunpack.c.l.b16 %v1941
  %v2006 = vunpack.c.l.b16 %v1942
  %v2007 = vunpack.c.l.b16 %v1943
  %v2008 = vpack.c.b16 %v1993, %v1992
  %v2009 = vpack.c.b16 %v1995, %v1994
  %v2010 = vpack.c.b16 %v1997, %v1996
  %v2011 = vpack.c.b16 %v1999, %v1998
  %v2012 = vpack.c.b16 %v2001, %v2000
  %v2013 = vpack.c.b16 %v2003, %v2002
  %v2014 = vpack.c.b16 %v2005, %v2004
  %v2015 = vpack.c.b16 %v2007, %v2006
  %2024 = vmatprep.subr.bf16.mxu0 0
  %2025 = vmatpush1.bf16.msra.mxu0 %v2008
  %2026 = vmatprep.subr.bf16.mxu0 0
  %2027 = vmatpush1.bf16.msra.mxu0 %v2009
  %2028 = vmatprep.subr.bf16.mxu0 0
  %2029 = vmatpush1.bf16.msra.mxu0 %v2010
  %2030 = vmatprep.subr.bf16.mxu0 0
  %2031 = vmatpush1.bf16.msra.mxu0 %v2011
  %2032 = vmatprep.subr.bf16.mxu0 0
  %2033 = vmatpush1.bf16.msra.mxu0 %v2012
  %2034 = vmatprep.subr.bf16.mxu0 0
  %2035 = vmatpush1.bf16.msra.mxu0 %v2013
  %2036 = vmatprep.subr.bf16.mxu0 0
  %2037 = vmatpush1.bf16.msra.mxu0 %v2014
  %2038 = vmatprep.subr.bf16.mxu0 0
  %2039 = vmatpush1.bf16.msra.mxu0 %v2015
  %2040 = vmatprep.subr.bf16.mxu0 0
  %2041 = vmatpush1.bf16.msra.mxu0 0
  %2042 = vmatprep.subr.bf16.mxu0 0
  %2043 = vmatpush1.bf16.msra.mxu0 0
  %2044 = vmatprep.subr.bf16.mxu0 0
  %2045 = vmatpush1.bf16.msra.mxu0 0
  %2046 = vmatprep.subr.bf16.mxu0 0
  %2047 = vmatpush1.bf16.msra.mxu0 0
  %2048 = vmatprep.subr.bf16.mxu0 0
  %2049 = vmatpush1.bf16.msra.mxu0 0
  %2050 = vmatprep.subr.bf16.mxu0 0
  %2051 = vmatpush1.bf16.msra.mxu0 0
  %2052 = vmatprep.subr.bf16.mxu0 0
  %2053 = vmatpush1.bf16.msra.mxu0 0
  %2054 = vmatprep.subr.bf16.mxu0 0
  %2055 = vmatpush1.bf16.msra.mxu0 0
  %2056 = vmatprep.mubr.bf16.mxu0 0
  %2057 = vmatmul.mubr.bf16.gmra.mrb[0].mxu0 %v1960
  %v2058 = vpop.f32.mrb[0].mxu0
  %v2059 = vadd.f32 0.0, %v2058
  %v2060 = vpop.f32.mrb[0].mxu0
  %v2061 = vpop.f32.mrb[0].mxu0
  %v2062 = vadd.f32 0.0, %v2061
  %v2063 = vpop.f32.mrb[0].mxu0
  %2064 = vmatprep.mubr.bf16.mxu0 0
  %2065 = vmatmul.mubr.bf16.gmra.mrb[0].mxu0 %v1961
  %v2066 = vpop.f32.mrb[0].mxu0
  %v2067 = vadd.f32 0.0, %v2066
  %v2068 = vpop.f32.mrb[0].mxu0
  %v2069 = vpop.f32.mrb[0].mxu0
  %v2070 = vadd.f32 0.0, %v2069
  %v2071 = vpop.f32.mrb[0].mxu0
  %2072 = vmatprep.mubr.bf16.mxu0 0
  %2073 = vmatmul.mubr.bf16.gmra.mrb[0].mxu0 %v1962
  %v2074 = vpop.f32.mrb[0].mxu0
  %v2075 = vadd.f32 0.0, %v2074
  %v2076 = vpop.f32.mrb[0].mxu0
  %v2077 = vpop.f32.mrb[0].mxu0
  %v2078 = vadd.f32 0.0, %v2077
  %v2079 = vpop.f32.mrb[0].mxu0
  %2080 = vmatprep.mubr.bf16.mxu0 0
  %2081 = vmatmul.mubr.bf16.gmra.mrb[0].mxu0 %v1963
  %v2082 = vpop.f32.mrb[0].mxu0
  %v2083 = vadd.f32 0.0, %v2082
  %v2084 = vpop.f32.mrb[0].mxu0
  %v2085 = vpop.f32.mrb[0].mxu0
  %v2086 = vadd.f32 0.0, %v2085
  %v2087 = vpop.f32.mrb[0].mxu0
  %2088 = vmatprep.mubr.bf16.mxu0 0
  %2089 = vmatmul.mubr.bf16.gmra.mrb[0].mxu0 %v1964
  %v2090 = vpop.f32.mrb[0].mxu0
  %v2091 = vadd.f32 0.0, %v2090
  %v2092 = vpop.f32.mrb[0].mxu0
  %v2093 = vpop.f32.mrb[0].mxu0
  %v2094 = vadd.f32 0.0, %v2093
  %v2095 = vpop.f32.mrb[0].mxu0
  %2096 = vmatprep.mubr.bf16.mxu0 0
  %2097 = vmatmul.mubr.bf16.gmra.mrb[0].mxu0 %v1965
  %v2098 = vpop.f32.mrb[0].mxu0
  %v2099 = vadd.f32 0.0, %v2098
  %v2100 = vpop.f32.mrb[0].mxu0
  %v2101 = vpop.f32.mrb[0].mxu0
  %v2102 = vadd.f32 0.0, %v2101
  %v2103 = vpop.f32.mrb[0].mxu0
  %2104 = vmatprep.mubr.bf16.mxu0 0
  %2105 = vmatmul.mubr.bf16.gmra.mrb[0].mxu0 %v1966
  %v2106 = vpop.f32.mrb[0].mxu0
  %v2107 = vadd.f32 0.0, %v2106
  %v2108 = vpop.f32.mrb[0].mxu0
  %v2109 = vpop.f32.mrb[0].mxu0
  %v2110 = vadd.f32 0.0, %v2109
  %v2111 = vpop.f32.mrb[0].mxu0
  %2112 = vmatprep.mubr.bf16.mxu0 0
  %2113 = vmatmul.mubr.bf16.gmra.mrb[0].mxu0 %v1967
  %v2114 = vpop.f32.mrb[0].mxu0
  %v2115 = vadd.f32 0.0, %v2114
  %v2116 = vpop.f32.mrb[0].mxu0
  %v2117 = vpop.f32.mrb[0].mxu0
  %v2118 = vadd.f32 0.0, %v2117
  %v2119 = vpop.f32.mrb[0].mxu0
  %2120 = vdwg.mxu0
  %v2121 = vadd.f32 %v1414, %v2059
  %v2122 = vadd.f32 %v1415, %v2062
  %v2123 = vadd.f32 %v1416, %v2067
  %v2124 = vadd.f32 %v1417, %v2070
  %v2125 = vadd.f32 %v1418, %v2075
  %v2126 = vadd.f32 %v1419, %v2078
  %v2127 = vadd.f32 %v1420, %v2083
  %v2128 = vadd.f32 %v1421, %v2086
  %v2129 = vadd.f32 %v1422, %v2091
  %v2130 = vadd.f32 %v1423, %v2094
  %v2131 = vadd.f32 %v1424, %v2099
  %v2132 = vadd.f32 %v1425, %v2102
  %v2133 = vadd.f32 %v1426, %v2107
  %v2134 = vadd.f32 %v1427, %v2110
  %v2135 = vadd.f32 %v1428, %v2115
  %v2136 = vadd.f32 %v1429, %v2118
  %s2137 = scalar_lea.vmem %s0, 8
  %v2138 = vld [vmem:[%s2137] sm:$0xf]
  %v2139 = vld [vmem:[%s2137 + $0x8] sm:$0xf]
  %v2140 = vld [vmem:[%s2137 + $0x10] sm:$0xf]
  %v2141 = vld [vmem:[%s2137 + $0x18] sm:$0xf]
  %v2142 = vld [vmem:[%s2137 + $0x20] sm:$0xf]
  %v2143 = vld [vmem:[%s2137 + $0x28] sm:$0xf]
  %v2144 = vld [vmem:[%s2137 + $0x30] sm:$0xf]
  %v2145 = vld [vmem:[%s2137 + $0x38] sm:$0xf]
  %v2146 = vld [vmem:[%s2137 + $0x120] sm:$0xf]
  %v2147 = vld [vmem:[%s2137 + $0x128] sm:$0xf]
  %v2148 = vld [vmem:[%s2137 + $0x130] sm:$0xf]
  %v2149 = vld [vmem:[%s2137 + $0x138] sm:$0xf]
  %v2150 = vld [vmem:[%s2137 + $0x140] sm:$0xf]
  %v2151 = vld [vmem:[%s2137 + $0x148] sm:$0xf]
  %v2152 = vld [vmem:[%s2137 + $0x150] sm:$0xf]
  %v2153 = vld [vmem:[%s2137 + $0x158] sm:$0xf]
  %s2154 = scalar_lea.vmem %s1, 384
  %v2155 = vld [vmem:[%s2154] sm:$0xf]
  %v2156 = vld [vmem:[%s2154 + $0x4] sm:$0xf]
  %v2157 = vld [vmem:[%s2154 + $0x8] sm:$0xf]
  %v2158 = vld [vmem:[%s2154 + $0xc] sm:$0xf]
  %v2159 = vld [vmem:[%s2154 + $0x10] sm:$0xf]
  %v2160 = vld [vmem:[%s2154 + $0x14] sm:$0xf]
  %v2161 = vld [vmem:[%s2154 + $0x18] sm:$0xf]
  %v2162 = vld [vmem:[%s2154 + $0x1c] sm:$0xf]
  %v2163 = vld [vmem:[%s2154 + $0x20] sm:$0xf]
  %v2164 = vld [vmem:[%s2154 + $0x24] sm:$0xf]
  %v2165 = vld [vmem:[%s2154 + $0x28] sm:$0xf]
  %v2166 = vld [vmem:[%s2154 + $0x2c] sm:$0xf]
  %v2167 = vld [vmem:[%s2154 + $0x30] sm:$0xf]
  %v2168 = vld [vmem:[%s2154 + $0x34] sm:$0xf]
  %v2169 = vld [vmem:[%s2154 + $0x38] sm:$0xf]
  %v2170 = vld [vmem:[%s2154 + $0x3c] sm:$0xf]
  %v2187 = vunpack.c.l.b16 %v2138
  %v2188 = vunpack.c.l.b16 %v2139
  %v2189 = vunpack.c.l.b16 %v2140
  %v2190 = vunpack.c.l.b16 %v2141
  %v2191 = vunpack.c.l.b16 %v2142
  %v2192 = vunpack.c.l.b16 %v2143
  %v2193 = vunpack.c.l.b16 %v2144
  %v2194 = vunpack.c.l.b16 %v2145
  %v2195 = vunpack.c.l.b16 %v2146
  %v2196 = vunpack.c.l.b16 %v2147
  %v2197 = vunpack.c.l.b16 %v2148
  %v2198 = vunpack.c.l.b16 %v2149
  %v2199 = vunpack.c.l.b16 %v2150
  %v2200 = vunpack.c.l.b16 %v2151
  %v2201 = vunpack.c.l.b16 %v2152
  %v2202 = vunpack.c.l.b16 %v2153
  %v2203 = vpack.c.b16 %v2188, %v2187
  %v2204 = vpack.c.b16 %v2190, %v2189
  %v2205 = vpack.c.b16 %v2192, %v2191
  %v2206 = vpack.c.b16 %v2194, %v2193
  %v2207 = vpack.c.b16 %v2196, %v2195
  %v2208 = vpack.c.b16 %v2198, %v2197
  %v2209 = vpack.c.b16 %v2200, %v2199
  %v2210 = vpack.c.b16 %v2202, %v2201
  %v2235 = vunpack.c.l.b16 %v2155
  %v2236 = vunpack.c.l.b16 %v2156
  %v2237 = vunpack.c.l.b16 %v2157
  %v2238 = vunpack.c.l.b16 %v2158
  %v2239 = vunpack.c.l.b16 %v2159
  %v2240 = vunpack.c.l.b16 %v2160
  %v2241 = vunpack.c.l.b16 %v2161
  %v2242 = vunpack.c.l.b16 %v2162
  %v2243 = vunpack.c.l.b16 %v2163
  %v2244 = vunpack.c.l.b16 %v2164
  %v2245 = vunpack.c.l.b16 %v2165
  %v2246 = vunpack.c.l.b16 %v2166
  %v2247 = vunpack.c.l.b16 %v2167
  %v2248 = vunpack.c.l.b16 %v2168
  %v2249 = vunpack.c.l.b16 %v2169
  %v2250 = vunpack.c.l.b16 %v2170
  %v2251 = vpack.c.b16 %v2236, %v2235
  %v2252 = vpack.c.b16 %v2238, %v2237
  %v2253 = vpack.c.b16 %v2240, %v2239
  %v2254 = vpack.c.b16 %v2242, %v2241
  %v2255 = vpack.c.b16 %v2244, %v2243
  %v2256 = vpack.c.b16 %v2246, %v2245
  %v2257 = vpack.c.b16 %v2248, %v2247
  %v2258 = vpack.c.b16 %v2250, %v2249
  %2267 = vmatprep.subr.bf16.mxu0 0
  %2268 = vmatpush1.bf16.msra.mxu0 %v2251
  %2269 = vmatprep.subr.bf16.mxu0 0
  %2270 = vmatpush1.bf16.msra.mxu0 %v2252
  %2271 = vmatprep.subr.bf16.mxu0 0
  %2272 = vmatpush1.bf16.msra.mxu0 %v2253
  %2273 = vmatprep.subr.bf16.mxu0 0
  %2274 = vmatpush1.bf16.msra.mxu0 %v2254
  %2275 = vmatprep.subr.bf16.mxu0 0
  %2276 = vmatpush1.bf16.msra.mxu0 %v2255
  %2277 = vmatprep.subr.bf16.mxu0 0
  %2278 = vmatpush1.bf16.msra.mxu0 %v2256
  %2279 = vmatprep.subr.bf16.mxu0 0
  %2280 = vmatpush1.bf16.msra.mxu0 %v2257
  %2281 = vmatprep.subr.bf16.mxu0 0
  %2282 = vmatpush1.bf16.msra.mxu0 %v2258
  %2283 = vmatprep.subr.bf16.mxu0 0
  %2284 = vmatpush1.bf16.msra.mxu0 0
  %2285 = vmatprep.subr.bf16.mxu0 0
  %2286 = vmatpush1.bf16.msra.mxu0 0
  %2287 = vmatprep.subr.bf16.mxu0 0
  %2288 = vmatpush1.bf16.msra.mxu0 0
  %2289 = vmatprep.subr.bf16.mxu0 0
  %2290 = vmatpush1.bf16.msra.mxu0 0
  %2291 = vmatprep.subr.bf16.mxu0 0
  %2292 = vmatpush1.bf16.msra.mxu0 0
  %2293 = vmatprep.subr.bf16.mxu0 0
  %2294 = vmatpush1.bf16.msra.mxu0 0
  %2295 = vmatprep.subr.bf16.mxu0 0
  %2296 = vmatpush1.bf16.msra.mxu0 0
  %2297 = vmatprep.subr.bf16.mxu0 0
  %2298 = vmatpush1.bf16.msra.mxu0 0
  %2299 = vmatprep.mubr.bf16.mxu0 0
  %2300 = vmatmul.mubr.bf16.gmra.mrb[0].mxu0 %v2203
  %v2301 = vpop.f32.mrb[0].mxu0
  %v2302 = vadd.f32 0.0, %v2301
  %v2303 = vpop.f32.mrb[0].mxu0
  %v2304 = vpop.f32.mrb[0].mxu0
  %v2305 = vadd.f32 0.0, %v2304
  %v2306 = vpop.f32.mrb[0].mxu0
  %2307 = vmatprep.mubr.bf16.mxu0 0
  %2308 = vmatmul.mubr.bf16.gmra.mrb[0].mxu0 %v2204
  %v2309 = vpop.f32.mrb[0].mxu0
  %v2310 = vadd.f32 0.0, %v2309
  %v2311 = vpop.f32.mrb[0].mxu0
  %v2312 = vpop.f32.mrb[0].mxu0
  %v2313 = vadd.f32 0.0, %v2312
  %v2314 = vpop.f32.mrb[0].mxu0
  %2315 = vmatprep.mubr.bf16.mxu0 0
  %2316 = vmatmul.mubr.bf16.gmra.mrb[0].mxu0 %v2205
  %v2317 = vpop.f32.mrb[0].mxu0
  %v2318 = vadd.f32 0.0, %v2317
  %v2319 = vpop.f32.mrb[0].mxu0
  %v2320 = vpop.f32.mrb[0].mxu0
  %v2321 = vadd.f32 0.0, %v2320
  %v2322 = vpop.f32.mrb[0].mxu0
  %2323 = vmatprep.mubr.bf16.mxu0 0
  %2324 = vmatmul.mubr.bf16.gmra.mrb[0].mxu0 %v2206
  %v2325 = vpop.f32.mrb[0].mxu0
  %v2326 = vadd.f32 0.0, %v2325
  %v2327 = vpop.f32.mrb[0].mxu0
  %v2328 = vpop.f32.mrb[0].mxu0
  %v2329 = vadd.f32 0.0, %v2328
  %v2330 = vpop.f32.mrb[0].mxu0
  %2331 = vmatprep.mubr.bf16.mxu0 0
  %2332 = vmatmul.mubr.bf16.gmra.mrb[0].mxu0 %v2207
  %v2333 = vpop.f32.mrb[0].mxu0
  %v2334 = vadd.f32 0.0, %v2333
  %v2335 = vpop.f32.mrb[0].mxu0
  %v2336 = vpop.f32.mrb[0].mxu0
  %v2337 = vadd.f32 0.0, %v2336
  %v2338 = vpop.f32.mrb[0].mxu0
  %2339 = vmatprep.mubr.bf16.mxu0 0
  %2340 = vmatmul.mubr.bf16.gmra.mrb[0].mxu0 %v2208
  %v2341 = vpop.f32.mrb[0].mxu0
  %v2342 = vadd.f32 0.0, %v2341
  %v2343 = vpop.f32.mrb[0].mxu0
  %v2344 = vpop.f32.mrb[0].mxu0
  %v2345 = vadd.f32 0.0, %v2344
  %v2346 = vpop.f32.mrb[0].mxu0
  %2347 = vmatprep.mubr.bf16.mxu0 0
  %2348 = vmatmul.mubr.bf16.gmra.mrb[0].mxu0 %v2209
  %v2349 = vpop.f32.mrb[0].mxu0
  %v2350 = vadd.f32 0.0, %v2349
  %v2351 = vpop.f32.mrb[0].mxu0
  %v2352 = vpop.f32.mrb[0].mxu0
  %v2353 = vadd.f32 0.0, %v2352
  %v2354 = vpop.f32.mrb[0].mxu0
  %2355 = vmatprep.mubr.bf16.mxu0 0
  %2356 = vmatmul.mubr.bf16.gmra.mrb[0].mxu0 %v2210
  %v2357 = vpop.f32.mrb[0].mxu0
  %v2358 = vadd.f32 0.0, %v2357
  %v2359 = vpop.f32.mrb[0].mxu0
  %v2360 = vpop.f32.mrb[0].mxu0
  %v2361 = vadd.f32 0.0, %v2360
  %v2362 = vpop.f32.mrb[0].mxu0
  %2363 = vdwg.mxu0
  %v2364 = vadd.f32 %v2121, %v2302
  %v2365 = vadd.f32 %v2122, %v2305
  %v2366 = vadd.f32 %v2123, %v2310
  %v2367 = vadd.f32 %v2124, %v2313
  %v2368 = vadd.f32 %v2125, %v2318
  %v2369 = vadd.f32 %v2126, %v2321
  %v2370 = vadd.f32 %v2127, %v2326
  %v2371 = vadd.f32 %v2128, %v2329
  %v2372 = vadd.f32 %v2129, %v2334
  %v2373 = vadd.f32 %v2130, %v2337
  %v2374 = vadd.f32 %v2131, %v2342
  %v2375 = vadd.f32 %v2132, %v2345
  %v2376 = vadd.f32 %v2133, %v2350
  %v2377 = vadd.f32 %v2134, %v2353
  %v2378 = vadd.f32 %v2135, %v2358
  %v2379 = vadd.f32 %v2136, %v2361
  %s2380 = scalar_lea.vmem %s0, 80
  %v2381 = vld [vmem:[%s2380] sm:$0xf]
  %v2382 = vld [vmem:[%s2380 + $0x8] sm:$0xf]
  %v2383 = vld [vmem:[%s2380 + $0x10] sm:$0xf]
  %v2384 = vld [vmem:[%s2380 + $0x18] sm:$0xf]
  %v2385 = vld [vmem:[%s2380 + $0x20] sm:$0xf]
  %v2386 = vld [vmem:[%s2380 + $0x28] sm:$0xf]
  %v2387 = vld [vmem:[%s2380 + $0x30] sm:$0xf]
  %v2388 = vld [vmem:[%s2380 + $0x38] sm:$0xf]
  %v2389 = vld [vmem:[%s2380 + $0x120] sm:$0xf]
  %v2390 = vld [vmem:[%s2380 + $0x128] sm:$0xf]
  %v2391 = vld [vmem:[%s2380 + $0x130] sm:$0xf]
  %v2392 = vld [vmem:[%s2380 + $0x138] sm:$0xf]
  %v2393 = vld [vmem:[%s2380 + $0x140] sm:$0xf]
  %v2394 = vld [vmem:[%s2380 + $0x148] sm:$0xf]
  %v2395 = vld [vmem:[%s2380 + $0x150] sm:$0xf]
  %v2396 = vld [vmem:[%s2380 + $0x158] sm:$0xf]
  %s2397 = scalar_lea.vmem %s1, 448
  %v2398 = vld [vmem:[%s2397] sm:$0xf]
  %v2399 = vld [vmem:[%s2397 + $0x4] sm:$0xf]
  %v2400 = vld [vmem:[%s2397 + $0x8] sm:$0xf]
  %v2401 = vld [vmem:[%s2397 + $0xc] sm:$0xf]
  %v2402 = vld [vmem:[%s2397 + $0x10] sm:$0xf]
  %v2403 = vld [vmem:[%s2397 + $0x14] sm:$0xf]
  %v2404 = vld [vmem:[%s2397 + $0x18] sm:$0xf]
  %v2405 = vld [vmem:[%s2397 + $0x1c] sm:$0xf]
  %v2406 = vld [vmem:[%s2397 + $0x20] sm:$0xf]
  %v2407 = vld [vmem:[%s2397 + $0x24] sm:$0xf]
  %v2408 = vld [vmem:[%s2397 + $0x28] sm:$0xf]
  %v2409 = vld [vmem:[%s2397 + $0x2c] sm:$0xf]
  %v2410 = vld [vmem:[%s2397 + $0x30] sm:$0xf]
  %v2411 = vld [vmem:[%s2397 + $0x34] sm:$0xf]
  %v2412 = vld [vmem:[%s2397 + $0x38] sm:$0xf]
  %v2413 = vld [vmem:[%s2397 + $0x3c] sm:$0xf]
  %v2430 = vunpack.c.l.b16 %v2381
  %v2431 = vunpack.c.l.b16 %v2382
  %v2432 = vunpack.c.l.b16 %v2383
  %v2433 = vunpack.c.l.b16 %v2384
  %v2434 = vunpack.c.l.b16 %v2385
  %v2435 = vunpack.c.l.b16 %v2386
  %v2436 = vunpack.c.l.b16 %v2387
  %v2437 = vunpack.c.l.b16 %v2388
  %v2438 = vunpack.c.l.b16 %v2389
  %v2439 = vunpack.c.l.b16 %v2390
  %v2440 = vunpack.c.l.b16 %v2391
  %v2441 = vunpack.c.l.b16 %v2392
  %v2442 = vunpack.c.l.b16 %v2393
  %v2443 = vunpack.c.l.b16 %v2394
  %v2444 = vunpack.c.l.b16 %v2395
  %v2445 = vunpack.c.l.b16 %v2396
  %v2446 = vpack.c.b16 %v2431, %v2430
  %v2447 = vpack.c.b16 %v2433, %v2432
  %v2448 = vpack.c.b16 %v2435, %v2434
  %v2449 = vpack.c.b16 %v2437, %v2436
  %v2450 = vpack.c.b16 %v2439, %v2438
  %v2451 = vpack.c.b16 %v2441, %v2440
  %v2452 = vpack.c.b16 %v2443, %v2442
  %v2453 = vpack.c.b16 %v2445, %v2444
  %v2478 = vunpack.c.l.b16 %v2398
  %v2479 = vunpack.c.l.b16 %v2399
  %v2480 = vunpack.c.l.b16 %v2400
  %v2481 = vunpack.c.l.b16 %v2401
  %v2482 = vunpack.c.l.b16 %v2402
  %v2483 = vunpack.c.l.b16 %v2403
  %v2484 = vunpack.c.l.b16 %v2404
  %v2485 = vunpack.c.l.b16 %v2405
  %v2486 = vunpack.c.l.b16 %v2406
  %v2487 = vunpack.c.l.b16 %v2407
  %v2488 = vunpack.c.l.b16 %v2408
  %v2489 = vunpack.c.l.b16 %v2409
  %v2490 = vunpack.c.l.b16 %v2410
  %v2491 = vunpack.c.l.b16 %v2411
  %v2492 = vunpack.c.l.b16 %v2412
  %v2493 = vunpack.c.l.b16 %v2413
  %v2494 = vpack.c.b16 %v2479, %v2478
  %v2495 = vpack.c.b16 %v2481, %v2480
  %v2496 = vpack.c.b16 %v2483, %v2482
  %v2497 = vpack.c.b16 %v2485, %v2484
  %v2498 = vpack.c.b16 %v2487, %v2486
  %v2499 = vpack.c.b16 %v2489, %v2488
  %v2500 = vpack.c.b16 %v2491, %v2490
  %v2501 = vpack.c.b16 %v2493, %v2492
  %2510 = vmatprep.subr.bf16.mxu0 0
  %2511 = vmatpush1.bf16.msra.mxu0 %v2494
  %2512 = vmatprep.subr.bf16.mxu0 0
  %2513 = vmatpush1.bf16.msra.mxu0 %v2495
  %2514 = vmatprep.subr.bf16.mxu0 0
  %2515 = vmatpush1.bf16.msra.mxu0 %v2496
  %2516 = vmatprep.subr.bf16.mxu0 0
  %2517 = vmatpush1.bf16.msra.mxu0 %v2497
  %2518 = vmatprep.subr.bf16.mxu0 0
  %2519 = vmatpush1.bf16.msra.mxu0 %v2498
  %2520 = vmatprep.subr.bf16.mxu0 0
  %2521 = vmatpush1.bf16.msra.mxu0 %v2499
  %2522 = vmatprep.subr.bf16.mxu0 0
  %2523 = vmatpush1.bf16.msra.mxu0 %v2500
  %2524 = vmatprep.subr.bf16.mxu0 0
  %2525 = vmatpush1.bf16.msra.mxu0 %v2501
  %2526 = vmatprep.subr.bf16.mxu0 0
  %2527 = vmatpush1.bf16.msra.mxu0 0
  %2528 = vmatprep.subr.bf16.mxu0 0
  %2529 = vmatpush1.bf16.msra.mxu0 0
  %2530 = vmatprep.subr.bf16.mxu0 0
  %2531 = vmatpush1.bf16.msra.mxu0 0
  %2532 = vmatprep.subr.bf16.mxu0 0
  %2533 = vmatpush1.bf16.msra.mxu0 0
  %2534 = vmatprep.subr.bf16.mxu0 0
  %2535 = vmatpush1.bf16.msra.mxu0 0
  %2536 = vmatprep.subr.bf16.mxu0 0
  %2537 = vmatpush1.bf16.msra.mxu0 0
  %2538 = vmatprep.subr.bf16.mxu0 0
  %2539 = vmatpush1.bf16.msra.mxu0 0
  %2540 = vmatprep.subr.bf16.mxu0 0
  %2541 = vmatpush1.bf16.msra.mxu0 0
  %2542 = vmatprep.mubr.bf16.mxu0 0
  %2543 = vmatmul.mubr.bf16.gmra.mrb[0].mxu0 %v2446
  %v2544 = vpop.f32.mrb[0].mxu0
  %v2545 = vadd.f32 0.0, %v2544
  %v2546 = vpop.f32.mrb[0].mxu0
  %v2547 = vpop.f32.mrb[0].mxu0
  %v2548 = vadd.f32 0.0, %v2547
  %v2549 = vpop.f32.mrb[0].mxu0
  %2550 = vmatprep.mubr.bf16.mxu0 0
  %2551 = vmatmul.mubr.bf16.gmra.mrb[0].mxu0 %v2447
  %v2552 = vpop.f32.mrb[0].mxu0
  %v2553 = vadd.f32 0.0, %v2552
  %v2554 = vpop.f32.mrb[0].mxu0
  %v2555 = vpop.f32.mrb[0].mxu0
  %v2556 = vadd.f32 0.0, %v2555
  %v2557 = vpop.f32.mrb[0].mxu0
  %2558 = vmatprep.mubr.bf16.mxu0 0
  %2559 = vmatmul.mubr.bf16.gmra.mrb[0].mxu0 %v2448
  %v2560 = vpop.f32.mrb[0].mxu0
  %v2561 = vadd.f32 0.0, %v2560
  %v2562 = vpop.f32.mrb[0].mxu0
  %v2563 = vpop.f32.mrb[0].mxu0
  %v2564 = vadd.f32 0.0, %v2563
  %v2565 = vpop.f32.mrb[0].mxu0
  %2566 = vmatprep.mubr.bf16.mxu0 0
  %2567 = vmatmul.mubr.bf16.gmra.mrb[0].mxu0 %v2449
  %v2568 = vpop.f32.mrb[0].mxu0
  %v2569 = vadd.f32 0.0, %v2568
  %v2570 = vpop.f32.mrb[0].mxu0
  %v2571 = vpop.f32.mrb[0].mxu0
  %v2572 = vadd.f32 0.0, %v2571
  %v2573 = vpop.f32.mrb[0].mxu0
  %2574 = vmatprep.mubr.bf16.mxu0 0
  %2575 = vmatmul.mubr.bf16.gmra.mrb[0].mxu0 %v2450
  %v2576 = vpop.f32.mrb[0].mxu0
  %v2577 = vadd.f32 0.0, %v2576
  %v2578 = vpop.f32.mrb[0].mxu0
  %v2579 = vpop.f32.mrb[0].mxu0
  %v2580 = vadd.f32 0.0, %v2579
  %v2581 = vpop.f32.mrb[0].mxu0
  %2582 = vmatprep.mubr.bf16.mxu0 0
  %2583 = vmatmul.mubr.bf16.gmra.mrb[0].mxu0 %v2451
  %v2584 = vpop.f32.mrb[0].mxu0
  %v2585 = vadd.f32 0.0, %v2584
  %v2586 = vpop.f32.mrb[0].mxu0
  %v2587 = vpop.f32.mrb[0].mxu0
  %v2588 = vadd.f32 0.0, %v2587
  %v2589 = vpop.f32.mrb[0].mxu0
  %2590 = vmatprep.mubr.bf16.mxu0 0
  %2591 = vmatmul.mubr.bf16.gmra.mrb[0].mxu0 %v2452
  %v2592 = vpop.f32.mrb[0].mxu0
  %v2593 = vadd.f32 0.0, %v2592
  %v2594 = vpop.f32.mrb[0].mxu0
  %v2595 = vpop.f32.mrb[0].mxu0
  %v2596 = vadd.f32 0.0, %v2595
  %v2597 = vpop.f32.mrb[0].mxu0
  %2598 = vmatprep.mubr.bf16.mxu0 0
  %2599 = vmatmul.mubr.bf16.gmra.mrb[0].mxu0 %v2453
  %v2600 = vpop.f32.mrb[0].mxu0
  %v2601 = vadd.f32 0.0, %v2600
  %v2602 = vpop.f32.mrb[0].mxu0
  %v2603 = vpop.f32.mrb[0].mxu0
  %v2604 = vadd.f32 0.0, %v2603
  %v2605 = vpop.f32.mrb[0].mxu0
  %2606 = vdwg.mxu0
  %v2607 = vadd.f32 %v2364, %v2545
  %v2608 = vadd.f32 %v2365, %v2548
  %v2609 = vadd.f32 %v2366, %v2553
  %v2610 = vadd.f32 %v2367, %v2556
  %v2611 = vadd.f32 %v2368, %v2561
  %v2612 = vadd.f32 %v2369, %v2564
  %v2613 = vadd.f32 %v2370, %v2569
  %v2614 = vadd.f32 %v2371, %v2572
  %v2615 = vadd.f32 %v2372, %v2577
  %v2616 = vadd.f32 %v2373, %v2580
  %v2617 = vadd.f32 %v2374, %v2585
  %v2618 = vadd.f32 %v2375, %v2588
  %v2619 = vadd.f32 %v2376, %v2593
  %v2620 = vadd.f32 %v2377, %v2596
  %v2621 = vadd.f32 %v2378, %v2601
  %v2622 = vadd.f32 %v2379, %v2604
  %v2623 = vld [vmem:[%s2137] sm:$0xf]
  %v2624 = vld [vmem:[%s2137 + $0x4] sm:$0x1]
  %v2625 = vld [vmem:[%s2137 + $0x8] sm:$0xf]
  %v2626 = vld [vmem:[%s2137 + $0xc] sm:$0x1]
  %v2627 = vld [vmem:[%s2137 + $0x10] sm:$0xf]
  %v2628 = vld [vmem:[%s2137 + $0x14] sm:$0x1]
  %v2629 = vld [vmem:[%s2137 + $0x18] sm:$0xf]
  %v2630 = vld [vmem:[%s2137 + $0x1c] sm:$0x1]
  %v2631 = vld [vmem:[%s2137 + $0x20] sm:$0xf]
  %v2632 = vld [vmem:[%s2137 + $0x24] sm:$0x1]
  %v2633 = vld [vmem:[%s2137 + $0x28] sm:$0xf]
  %v2634 = vld [vmem:[%s2137 + $0x2c] sm:$0x1]
  %v2635 = vld [vmem:[%s2137 + $0x30] sm:$0xf]
  %v2636 = vld [vmem:[%s2137 + $0x34] sm:$0x1]
  %v2637 = vld [vmem:[%s2137 + $0x38] sm:$0xf]
  %v2638 = vld [vmem:[%s2137 + $0x3c] sm:$0x1]
  %v2639 = vld [vmem:[%s2137 + $0x120] sm:$0xf]
  %v2640 = vld [vmem:[%s2137 + $0x124] sm:$0x1]
  %v2641 = vld [vmem:[%s2137 + $0x128] sm:$0xf]
  %v2642 = vld [vmem:[%s2137 + $0x12c] sm:$0x1]
  %v2643 = vld [vmem:[%s2137 + $0x130] sm:$0xf]
  %v2644 = vld [vmem:[%s2137 + $0x134] sm:$0x1]
  %v2645 = vld [vmem:[%s2137 + $0x138] sm:$0xf]
  %v2646 = vld [vmem:[%s2137 + $0x13c] sm:$0x1]
  %v2647 = vld [vmem:[%s2137 + $0x140] sm:$0xf]
  %v2648 = vld [vmem:[%s2137 + $0x144] sm:$0x1]
  %v2649 = vld [vmem:[%s2137 + $0x148] sm:$0xf]
  %v2650 = vld [vmem:[%s2137 + $0x14c] sm:$0x1]
  %v2651 = vld [vmem:[%s2137 + $0x150] sm:$0xf]
  %v2652 = vld [vmem:[%s2137 + $0x154] sm:$0x1]
  %v2653 = vld [vmem:[%s2137 + $0x158] sm:$0xf]
  %v2654 = vld [vmem:[%s2137 + $0x15c] sm:$0x1]
  %v2656 = vshrl.u32 %v2623, 16
  %v2658 = vrot.slane %v2656, 4
  %v2659 = vshll.u32 %v2623, 16
  %v2661 = vrot.slane %v2659, 5
  %v2662 = vor.u32 %v2658, %v2661
  %v2663 = vrot.slane %v2662, 4
  %v2665 = vshll.u32 %v2624, 16
  %v2667 = vrot.slane %v2665, 5
  %v2668 = vsel %vm509, %v2663, %v2667
  %v2670 = vshrl.u32 %v2625, 16
  %v2672 = vrot.slane %v2670, 4
  %v2673 = vshll.u32 %v2625, 16
  %v2675 = vrot.slane %v2673, 5
  %v2676 = vor.u32 %v2672, %v2675
  %v2677 = vrot.slane %v2676, 4
  %v2679 = vshll.u32 %v2626, 16
  %v2681 = vrot.slane %v2679, 5
  %v2682 = vsel %vm509, %v2677, %v2681
  %v2684 = vshrl.u32 %v2627, 16
  %v2686 = vrot.slane %v2684, 4
  %v2687 = vshll.u32 %v2627, 16
  %v2689 = vrot.slane %v2687, 5
  %v2690 = vor.u32 %v2686, %v2689
  %v2691 = vrot.slane %v2690, 4
  %v2693 = vshll.u32 %v2628, 16
  %v2695 = vrot.slane %v2693, 5
  %v2696 = vsel %vm509, %v2691, %v2695
  %v2698 = vshrl.u32 %v2629, 16
  %v2700 = vrot.slane %v2698, 4
  %v2701 = vshll.u32 %v2629, 16
  %v2703 = vrot.slane %v2701, 5
  %v2704 = vor.u32 %v2700, %v2703
  %v2705 = vrot.slane %v2704, 4
  %v2707 = vshll.u32 %v2630, 16
  %v2709 = vrot.slane %v2707, 5
  %v2710 = vsel %vm509, %v2705, %v2709
  %v2712 = vshrl.u32 %v2631, 16
  %v2714 = vrot.slane %v2712, 4
  %v2715 = vshll.u32 %v2631, 16
  %v2717 = vrot.slane %v2715, 5
  %v2718 = vor.u32 %v2714, %v2717
  %v2719 = vrot.slane %v2718, 4
  %v2721 = vshll.u32 %v2632, 16
  %v2723 = vrot.slane %v2721, 5
  %v2724 = vsel %vm509, %v2719, %v2723
  %v2726 = vshrl.u32 %v2633, 16
  %v2728 = vrot.slane %v2726, 4
  %v2729 = vshll.u32 %v2633, 16
  %v2731 = vrot.slane %v2729, 5
  %v2732 = vor.u32 %v2728, %v2731
  %v2733 = vrot.slane %v2732, 4
  %v2735 = vshll.u32 %v2634, 16
  %v2737 = vrot.slane %v2735, 5
  %v2738 = vsel %vm509, %v2733, %v2737
  %v2740 = vshrl.u32 %v2635, 16
  %v2742 = vrot.slane %v2740, 4
  %v2743 = vshll.u32 %v2635, 16
  %v2745 = vrot.slane %v2743, 5
  %v2746 = vor.u32 %v2742, %v2745
  %v2747 = vrot.slane %v2746, 4
  %v2749 = vshll.u32 %v2636, 16
  %v2751 = vrot.slane %v2749, 5
  %v2752 = vsel %vm509, %v2747, %v2751
  %v2754 = vshrl.u32 %v2637, 16
  %v2756 = vrot.slane %v2754, 4
  %v2757 = vshll.u32 %v2637, 16
  %v2759 = vrot.slane %v2757, 5
  %v2760 = vor.u32 %v2756, %v2759
  %v2761 = vrot.slane %v2760, 4
  %v2763 = vshll.u32 %v2638, 16
  %v2765 = vrot.slane %v2763, 5
  %v2766 = vsel %vm509, %v2761, %v2765
  %v2768 = vshrl.u32 %v2639, 16
  %v2770 = vrot.slane %v2768, 4
  %v2771 = vshll.u32 %v2639, 16
  %v2773 = vrot.slane %v2771, 5
  %v2774 = vor.u32 %v2770, %v2773
  %v2775 = vrot.slane %v2774, 4
  %v2777 = vshll.u32 %v2640, 16
  %v2779 = vrot.slane %v2777, 5
  %v2780 = vsel %vm509, %v2775, %v2779
  %v2782 = vshrl.u32 %v2641, 16
  %v2784 = vrot.slane %v2782, 4
  %v2785 = vshll.u32 %v2641, 16
  %v2787 = vrot.slane %v2785, 5
  %v2788 = vor.u32 %v2784, %v2787
  %v2789 = vrot.slane %v2788, 4
  %v2791 = vshll.u32 %v2642, 16
  %v2793 = vrot.slane %v2791, 5
  %v2794 = vsel %vm509, %v2789, %v2793
  %v2796 = vshrl.u32 %v2643, 16
  %v2798 = vrot.slane %v2796, 4
  %v2799 = vshll.u32 %v2643, 16
  %v2801 = vrot.slane %v2799, 5
  %v2802 = vor.u32 %v2798, %v2801
  %v2803 = vrot.slane %v2802, 4
  %v2805 = vshll.u32 %v2644, 16
  %v2807 = vrot.slane %v2805, 5
  %v2808 = vsel %vm509, %v2803, %v2807
  %v2810 = vshrl.u32 %v2645, 16
  %v2812 = vrot.slane %v2810, 4
  %v2813 = vshll.u32 %v2645, 16
  %v2815 = vrot.slane %v2813, 5
  %v2816 = vor.u32 %v2812, %v2815
  %v2817 = vrot.slane %v2816, 4
  %v2819 = vshll.u32 %v2646, 16
  %v2821 = vrot.slane %v2819, 5
  %v2822 = vsel %vm509, %v2817, %v2821
  %v2824 = vshrl.u32 %v2647, 16
  %v2826 = vrot.slane %v2824, 4
  %v2827 = vshll.u32 %v2647, 16
  %v2829 = vrot.slane %v2827, 5
  %v2830 = vor.u32 %v2826, %v2829
  %v2831 = vrot.slane %v2830, 4
  %v2833 = vshll.u32 %v2648, 16
  %v2835 = vrot.slane %v2833, 5
  %v2836 = vsel %vm509, %v2831, %v2835
  %v2838 = vshrl.u32 %v2649, 16
  %v2840 = vrot.slane %v2838, 4
  %v2841 = vshll.u32 %v2649, 16
  %v2843 = vrot.slane %v2841, 5
  %v2844 = vor.u32 %v2840, %v2843
  %v2845 = vrot.slane %v2844, 4
  %v2847 = vshll.u32 %v2650, 16
  %v2849 = vrot.slane %v2847, 5
  %v2850 = vsel %vm509, %v2845, %v2849
  %v2852 = vshrl.u32 %v2651, 16
  %v2854 = vrot.slane %v2852, 4
  %v2855 = vshll.u32 %v2651, 16
  %v2857 = vrot.slane %v2855, 5
  %v2858 = vor.u32 %v2854, %v2857
  %v2859 = vrot.slane %v2858, 4
  %v2861 = vshll.u32 %v2652, 16
  %v2863 = vrot.slane %v2861, 5
  %v2864 = vsel %vm509, %v2859, %v2863
  %v2866 = vshrl.u32 %v2653, 16
  %v2868 = vrot.slane %v2866, 4
  %v2869 = vshll.u32 %v2653, 16
  %v2871 = vrot.slane %v2869, 5
  %v2872 = vor.u32 %v2868, %v2871
  %v2873 = vrot.slane %v2872, 4
  %v2875 = vshll.u32 %v2654, 16
  %v2877 = vrot.slane %v2875, 5
  %v2878 = vsel %vm509, %v2873, %v2877
  %s2879 = scalar_lea.vmem %s1, 512
  %v2880 = vld [vmem:[%s2879] sm:$0xf]
  %v2881 = vld [vmem:[%s2879 + $0x4] sm:$0xf]
  %v2882 = vld [vmem:[%s2879 + $0x8] sm:$0xf]
  %v2883 = vld [vmem:[%s2879 + $0xc] sm:$0xf]
  %v2884 = vld [vmem:[%s2879 + $0x10] sm:$0xf]
  %v2885 = vld [vmem:[%s2879 + $0x14] sm:$0xf]
  %v2886 = vld [vmem:[%s2879 + $0x18] sm:$0xf]
  %v2887 = vld [vmem:[%s2879 + $0x1c] sm:$0xf]
  %v2888 = vld [vmem:[%s2879 + $0x20] sm:$0xf]
  %v2889 = vld [vmem:[%s2879 + $0x24] sm:$0xf]
  %v2890 = vld [vmem:[%s2879 + $0x28] sm:$0xf]
  %v2891 = vld [vmem:[%s2879 + $0x2c] sm:$0xf]
  %v2892 = vld [vmem:[%s2879 + $0x30] sm:$0xf]
  %v2893 = vld [vmem:[%s2879 + $0x34] sm:$0xf]
  %v2894 = vld [vmem:[%s2879 + $0x38] sm:$0xf]
  %v2895 = vld [vmem:[%s2879 + $0x3c] sm:$0xf]
  %v2896 = vunpack.c.l.b16 %v2668
  %v2897 = vunpack.c.l.b16 %v2682
  %v2898 = vunpack.c.l.b16 %v2696
  %v2899 = vunpack.c.l.b16 %v2710
  %v2900 = vunpack.c.l.b16 %v2724
  %v2901 = vunpack.c.l.b16 %v2738
  %v2902 = vunpack.c.l.b16 %v2752
  %v2903 = vunpack.c.l.b16 %v2766
  %v2904 = vunpack.c.l.b16 %v2780
  %v2905 = vunpack.c.l.b16 %v2794
  %v2906 = vunpack.c.l.b16 %v2808
  %v2907 = vunpack.c.l.b16 %v2822
  %v2908 = vunpack.c.l.b16 %v2836
  %v2909 = vunpack.c.l.b16 %v2850
  %v2910 = vunpack.c.l.b16 %v2864
  %v2911 = vunpack.c.l.b16 %v2878
  %v2912 = vpack.c.b16 %v2897, %v2896
  %v2913 = vpack.c.b16 %v2899, %v2898
  %v2914 = vpack.c.b16 %v2901, %v2900
  %v2915 = vpack.c.b16 %v2903, %v2902
  %v2916 = vpack.c.b16 %v2905, %v2904
  %v2917 = vpack.c.b16 %v2907, %v2906
  %v2918 = vpack.c.b16 %v2909, %v2908
  %v2919 = vpack.c.b16 %v2911, %v2910
  %v2944 = vunpack.c.l.b16 %v2880
  %v2945 = vunpack.c.l.b16 %v2881
  %v2946 = vunpack.c.l.b16 %v2882
  %v2947 = vunpack.c.l.b16 %v2883
  %v2948 = vunpack.c.l.b16 %v2884
  %v2949 = vunpack.c.l.b16 %v2885
  %v2950 = vunpack.c.l.b16 %v2886
  %v2951 = vunpack.c.l.b16 %v2887
  %v2952 = vunpack.c.l.b16 %v2888
  %v2953 = vunpack.c.l.b16 %v2889
  %v2954 = vunpack.c.l.b16 %v2890
  %v2955 = vunpack.c.l.b16 %v2891
  %v2956 = vunpack.c.l.b16 %v2892
  %v2957 = vunpack.c.l.b16 %v2893
  %v2958 = vunpack.c.l.b16 %v2894
  %v2959 = vunpack.c.l.b16 %v2895
  %v2960 = vpack.c.b16 %v2945, %v2944
  %v2961 = vpack.c.b16 %v2947, %v2946
  %v2962 = vpack.c.b16 %v2949, %v2948
  %v2963 = vpack.c.b16 %v2951, %v2950
  %v2964 = vpack.c.b16 %v2953, %v2952
  %v2965 = vpack.c.b16 %v2955, %v2954
  %v2966 = vpack.c.b16 %v2957, %v2956
  %v2967 = vpack.c.b16 %v2959, %v2958
  %2976 = vmatprep.subr.bf16.mxu0 0
  %2977 = vmatpush1.bf16.msra.mxu0 %v2960
  %2978 = vmatprep.subr.bf16.mxu0 0
  %2979 = vmatpush1.bf16.msra.mxu0 %v2961
  %2980 = vmatprep.subr.bf16.mxu0 0
  %2981 = vmatpush1.bf16.msra.mxu0 %v2962
  %2982 = vmatprep.subr.bf16.mxu0 0
  %2983 = vmatpush1.bf16.msra.mxu0 %v2963
  %2984 = vmatprep.subr.bf16.mxu0 0
  %2985 = vmatpush1.bf16.msra.mxu0 %v2964
  %2986 = vmatprep.subr.bf16.mxu0 0
  %2987 = vmatpush1.bf16.msra.mxu0 %v2965
  %2988 = vmatprep.subr.bf16.mxu0 0
  %2989 = vmatpush1.bf16.msra.mxu0 %v2966
  %2990 = vmatprep.subr.bf16.mxu0 0
  %2991 = vmatpush1.bf16.msra.mxu0 %v2967
  %2992 = vmatprep.subr.bf16.mxu0 0
  %2993 = vmatpush1.bf16.msra.mxu0 0
  %2994 = vmatprep.subr.bf16.mxu0 0
  %2995 = vmatpush1.bf16.msra.mxu0 0
  %2996 = vmatprep.subr.bf16.mxu0 0
  %2997 = vmatpush1.bf16.msra.mxu0 0
  %2998 = vmatprep.subr.bf16.mxu0 0
  %2999 = vmatpush1.bf16.msra.mxu0 0
  %3000 = vmatprep.subr.bf16.mxu0 0
  %3001 = vmatpush1.bf16.msra.mxu0 0
  %3002 = vmatprep.subr.bf16.mxu0 0
  %3003 = vmatpush1.bf16.msra.mxu0 0
  %3004 = vmatprep.subr.bf16.mxu0 0
  %3005 = vmatpush1.bf16.msra.mxu0 0
  %3006 = vmatprep.subr.bf16.mxu0 0
  %3007 = vmatpush1.bf16.msra.mxu0 0
  %3008 = vmatprep.mubr.bf16.mxu0 0
  %3009 = vmatmul.mubr.bf16.gmra.mrb[0].mxu0 %v2912
  %v3010 = vpop.f32.mrb[0].mxu0
  %v3011 = vadd.f32 0.0, %v3010
  %v3012 = vpop.f32.mrb[0].mxu0
  %v3013 = vpop.f32.mrb[0].mxu0
  %v3014 = vadd.f32 0.0, %v3013
  %v3015 = vpop.f32.mrb[0].mxu0
  %3016 = vmatprep.mubr.bf16.mxu0 0
  %3017 = vmatmul.mubr.bf16.gmra.mrb[0].mxu0 %v2913
  %v3018 = vpop.f32.mrb[0].mxu0
  %v3019 = vadd.f32 0.0, %v3018
  %v3020 = vpop.f32.mrb[0].mxu0
  %v3021 = vpop.f32.mrb[0].mxu0
  %v3022 = vadd.f32 0.0, %v3021
  %v3023 = vpop.f32.mrb[0].mxu0
  %3024 = vmatprep.mubr.bf16.mxu0 0
  %3025 = vmatmul.mubr.bf16.gmra.mrb[0].mxu0 %v2914
  %v3026 = vpop.f32.mrb[0].mxu0
  %v3027 = vadd.f32 0.0, %v3026
  %v3028 = vpop.f32.mrb[0].mxu0
  %v3029 = vpop.f32.mrb[0].mxu0
  %v3030 = vadd.f32 0.0, %v3029
  %v3031 = vpop.f32.mrb[0].mxu0
  %3032 = vmatprep.mubr.bf16.mxu0 0
  %3033 = vmatmul.mubr.bf16.gmra.mrb[0].mxu0 %v2915
  %v3034 = vpop.f32.mrb[0].mxu0
  %v3035 = vadd.f32 0.0, %v3034
  %v3036 = vpop.f32.mrb[0].mxu0
  %v3037 = vpop.f32.mrb[0].mxu0
  %v3038 = vadd.f32 0.0, %v3037
  %v3039 = vpop.f32.mrb[0].mxu0
  %3040 = vmatprep.mubr.bf16.mxu0 0
  %3041 = vmatmul.mubr.bf16.gmra.mrb[0].mxu0 %v2916
  %v3042 = vpop.f32.mrb[0].mxu0
  %v3043 = vadd.f32 0.0, %v3042
  %v3044 = vpop.f32.mrb[0].mxu0
  %v3045 = vpop.f32.mrb[0].mxu0
  %v3046 = vadd.f32 0.0, %v3045
  %v3047 = vpop.f32.mrb[0].mxu0
  %3048 = vmatprep.mubr.bf16.mxu0 0
  %3049 = vmatmul.mubr.bf16.gmra.mrb[0].mxu0 %v2917
  %v3050 = vpop.f32.mrb[0].mxu0
  %v3051 = vadd.f32 0.0, %v3050
  %v3052 = vpop.f32.mrb[0].mxu0
  %v3053 = vpop.f32.mrb[0].mxu0
  %v3054 = vadd.f32 0.0, %v3053
  %v3055 = vpop.f32.mrb[0].mxu0
  %3056 = vmatprep.mubr.bf16.mxu0 0
  %3057 = vmatmul.mubr.bf16.gmra.mrb[0].mxu0 %v2918
  %v3058 = vpop.f32.mrb[0].mxu0
  %v3059 = vadd.f32 0.0, %v3058
  %v3060 = vpop.f32.mrb[0].mxu0
  %v3061 = vpop.f32.mrb[0].mxu0
  %v3062 = vadd.f32 0.0, %v3061
  %v3063 = vpop.f32.mrb[0].mxu0
  %3064 = vmatprep.mubr.bf16.mxu0 0
  %3065 = vmatmul.mubr.bf16.gmra.mrb[0].mxu0 %v2919
  %v3066 = vpop.f32.mrb[0].mxu0
  %v3067 = vadd.f32 0.0, %v3066
  %v3068 = vpop.f32.mrb[0].mxu0
  %v3069 = vpop.f32.mrb[0].mxu0
  %v3070 = vadd.f32 0.0, %v3069
  %v3071 = vpop.f32.mrb[0].mxu0
  %3072 = vdwg.mxu0
  %v3073 = vadd.f32 %v2607, %v3011
  %v3074 = vadd.f32 %v2608, %v3014
  %v3075 = vadd.f32 %v2609, %v3019
  %v3076 = vadd.f32 %v2610, %v3022
  %v3077 = vadd.f32 %v2611, %v3027
  %v3078 = vadd.f32 %v2612, %v3030
  %v3079 = vadd.f32 %v2613, %v3035
  %v3080 = vadd.f32 %v2614, %v3038
  %v3081 = vadd.f32 %v2615, %v3043
  %v3082 = vadd.f32 %v2616, %v3046
  %v3083 = vadd.f32 %v2617, %v3051
  %v3084 = vadd.f32 %v2618, %v3054
  %v3085 = vadd.f32 %v2619, %v3059
  %v3086 = vadd.f32 %v2620, %v3062
  %v3087 = vadd.f32 %v2621, %v3067
  %v3088 = vadd.f32 %v2622, %v3070
  %v3089 = vld [vmem:[%s2] sm:$0x1]
  %v3091 = vlaneseq
  %v3092 = vshrl.u32 %v3091, 7
  %v3093 = vsub.s32 0, %v3092
  %v3094 = vrot.slane %v3089, %v3093
  %v3096 = vmul.f32 %v3073, %v3094
  %v3097 = vmul.f32 %v3074, %v3094
  %v3098 = vmul.f32 %v3075, %v3094
  %v3099 = vmul.f32 %v3076, %v3094
  %v3100 = vmul.f32 %v3077, %v3094
  %v3101 = vmul.f32 %v3078, %v3094
  %v3102 = vmul.f32 %v3079, %v3094
  %v3103 = vmul.f32 %v3080, %v3094
  %v3104 = vmul.f32 %v3081, %v3094
  %v3105 = vmul.f32 %v3082, %v3094
  %v3106 = vmul.f32 %v3083, %v3094
  %v3107 = vmul.f32 %v3084, %v3094
  %v3108 = vmul.f32 %v3085, %v3094
  %v3109 = vmul.f32 %v3086, %v3094
  %v3110 = vmul.f32 %v3087, %v3094
  %v3111 = vmul.f32 %v3088, %v3094
  %v3112 = vld [vmem:[%s3] sm:$0x1]
  %v3114 = vlaneseq
  %v3115 = vshrl.u32 %v3114, 7
  %v3116 = vsub.s32 0, %v3115
  %v3117 = vrot.slane %v3112, %v3116
  %v3119 = vadd.f32 %v3096, %v3117
  %v3120 = vadd.f32 %v3097, %v3117
  %v3121 = vadd.f32 %v3098, %v3117
  %v3122 = vadd.f32 %v3099, %v3117
  %v3123 = vadd.f32 %v3100, %v3117
  %v3124 = vadd.f32 %v3101, %v3117
  %v3125 = vadd.f32 %v3102, %v3117
  %v3126 = vadd.f32 %v3103, %v3117
  %v3127 = vadd.f32 %v3104, %v3117
  %v3128 = vadd.f32 %v3105, %v3117
  %v3129 = vadd.f32 %v3106, %v3117
  %v3130 = vadd.f32 %v3107, %v3117
  %v3131 = vadd.f32 %v3108, %v3117
  %v3132 = vadd.f32 %v3109, %v3117
  %v3133 = vadd.f32 %v3110, %v3117
  %v3134 = vadd.f32 %v3111, %v3117
  %v3135 = vmax.f32 %v3119, 0.0
  %v3136 = vmax.f32 %v3120, 0.0
  %v3137 = vmax.f32 %v3121, 0.0
  %v3138 = vmax.f32 %v3122, 0.0
  %v3139 = vmax.f32 %v3123, 0.0
  %v3140 = vmax.f32 %v3124, 0.0
  %v3141 = vmax.f32 %v3125, 0.0
  %v3142 = vmax.f32 %v3126, 0.0
  %v3143 = vmax.f32 %v3127, 0.0
  %v3144 = vmax.f32 %v3128, 0.0
  %v3145 = vmax.f32 %v3129, 0.0
  %v3146 = vmax.f32 %v3130, 0.0
  %v3147 = vmax.f32 %v3131, 0.0
  %v3148 = vmax.f32 %v3132, 0.0
  %v3149 = vmax.f32 %v3133, 0.0
  %v3150 = vmax.f32 %v3134, 0.0
  %v3151 = vpack.c.bf16 %v3136, %v3135
  %v3152 = vpack.c.bf16 %v3138, %v3137
  %v3153 = vpack.c.bf16 %v3140, %v3139
  %v3154 = vpack.c.bf16 %v3142, %v3141
  %v3155 = vpack.c.bf16 %v3144, %v3143
  %v3156 = vpack.c.bf16 %v3146, %v3145
  %v3157 = vpack.c.bf16 %v3148, %v3147
  %v3158 = vpack.c.bf16 %v3150, %v3149
  %v3167 = vunpack.c.l.b16 %v3151
  %v3168 = vunpack.c.h.b16 %v3151
  %v3169 = vunpack.c.l.b16 %v3152
  %v3170 = vunpack.c.h.b16 %v3152
  %v3171 = vunpack.c.l.b16 %v3153
  %v3172 = vunpack.c.h.b16 %v3153
  %v3173 = vunpack.c.l.b16 %v3154
  %v3174 = vunpack.c.h.b16 %v3154
  %v3175 = vunpack.c.l.b16 %v3155
  %v3176 = vunpack.c.h.b16 %v3155
  %v3177 = vunpack.c.l.b16 %v3156
  %v3178 = vunpack.c.h.b16 %v3156
  %v3179 = vunpack.c.l.b16 %v3157
  %v3180 = vunpack.c.h.b16 %v3157
  %v3181 = vunpack.c.l.b16 %v3158
  %v3182 = vunpack.c.h.b16 %v3158
  %v3183 = vpack.c.b16 %v3167, %v3167
  %v3184 = vpack.c.b16 %v3168, %v3168
  %v3185 = vpack.c.b16 %v3169, %v3169
  %v3186 = vpack.c.b16 %v3170, %v3170
  %v3187 = vpack.c.b16 %v3171, %v3171
  %v3188 = vpack.c.b16 %v3172, %v3172
  %v3189 = vpack.c.b16 %v3173, %v3173
  %v3190 = vpack.c.b16 %v3174, %v3174
  %v3191 = vpack.c.b16 %v3175, %v3175
  %v3192 = vpack.c.b16 %v3176, %v3176
  %v3193 = vpack.c.b16 %v3177, %v3177
  %v3194 = vpack.c.b16 %v3178, %v3178
  %v3195 = vpack.c.b16 %v3179, %v3179
  %v3196 = vpack.c.b16 %v3180, %v3180
  %v3197 = vpack.c.b16 %v3181, %v3181
  %v3198 = vpack.c.b16 %v3182, %v3182
  %3215 = vst [vmem:[%s5] sm:$0xf] %v3183
  %3216 = vst [vmem:[%s5 + $0x4] sm:$0xf] %v3184
  %3217 = vst [vmem:[%s5 + $0x8] sm:$0xf] %v3185
  %3218 = vst [vmem:[%s5 + $0xc] sm:$0xf] %v3186
  %3219 = vst [vmem:[%s5 + $0x10] sm:$0xf] %v3187
  %3220 = vst [vmem:[%s5 + $0x14] sm:$0xf] %v3188
  %3221 = vst [vmem:[%s5 + $0x18] sm:$0xf] %v3189
  %3222 = vst [vmem:[%s5 + $0x1c] sm:$0xf] %v3190
  %3223 = vst [vmem:[%s5 + $0x20] sm:$0xf] %v3191
  %3224 = vst [vmem:[%s5 + $0x24] sm:$0xf] %v3192
  %3225 = vst [vmem:[%s5 + $0x28] sm:$0xf] %v3193
  %3226 = vst [vmem:[%s5 + $0x2c] sm:$0xf] %v3194
  %3227 = vst [vmem:[%s5 + $0x30] sm:$0xf] %v3195
  %3228 = vst [vmem:[%s5 + $0x34] sm:$0xf] %v3196
  %3229 = vst [vmem:[%s5 + $0x38] sm:$0xf] %v3197
  %3230 = vst [vmem:[%s5 + $0x3c] sm:$0xf] %v3198
  // Predicated region
  $region22: #{_lambda_.4} parent=0 // pred_check
    _
  $region23: #{_lambda_.4} parent=0 // pred_check_branch
    %3232 = sbr.rel (0) target = $region25
  $region24: #{_lambda_.4} parent=0 // pred_region
    _
  $region25: #{_lambda_.4} parent=0 // pred_fallthru
    _
  // Predicated region
  $region26: #{_lambda_.4} parent=0 // pred_check
    _
  $region27: #{_lambda_.4} parent=0 // pred_check_branch
    %3234 = sbr.rel (0) target = $region29
  $region28: #{_lambda_.4} parent=0 // pred_region
    _
  $region29: #{_lambda_.4} parent=0 // pred_fallthru
    _
  // Predicated region
  $region30: #{_lambda_.4} parent=0 // pred_check
    _
  $region31: #{_lambda_.4} parent=0 // pred_check_branch
    %3236 = sbr.rel (0) target = $region33
  $region32: #{_lambda_.4} parent=0 // pred_region
    _
  $region33: #{_lambda_.4} parent=0 // pred_fallthru
    _
  // Predicated region
  $region34: #{_lambda_.4} parent=0 // pred_check
    _
  $region35: #{_lambda_.4} parent=0 // pred_check_branch
    %3238 = sbr.rel (0) target = $region37
  $region36: #{_lambda_.4} parent=0 // pred_region
    _
  $region37: #{_lambda_.4} parent=0 // pred_fallthru
    _

// kernel: _lambda_.6
$region0: #{_lambda_.6}
  #allocation0 [shape = 'u32[]', space=smem, size = 0x4, offset = 0x4, fixed_abs, tag = 'smem constant byte address 0x4 - core index']
  #allocation1 [shape = 'u32[144,128]{1,0:T(1,128)}', space=vmem, size = 0x12000, scoped, tag = 'internal scratch']
  %s0 = inlined_call_operand.vmem [shape: bf16[2,10,10,128], index: 0, kind: input, shape index: {}]
  %s1 = inlined_call_operand.vmem [shape: bf16[9,128,128], index: 1, kind: input, shape index: {}]
  %s2 = inlined_call_operand.vmem [shape: f32[1,128], index: 2, kind: input, shape index: {}]
  %s3 = inlined_call_operand.vmem [shape: f32[1,128], index: 3, kind: input, shape index: {}]
  %s4 = inlined_call_operand.vmem [shape: bf16[128,128], index: 4, kind: output, shape index: {}]
  %s5 = sld [smem:[#allocation0]]
  $region26: #{_lambda_.6} parent=0
    _
  %s7 = ssub.s32 1, %s5
  %s8 = scalar_select 0, %s7, %s5
  // Predicated region
  $region2: #{_lambda_.6} parent=0 // pred_check
    _
  $region3: #{_lambda_.6} parent=0 // pred_check_branch
    %10 = sbr.rel (0) target = $region5
  $region4: #{_lambda_.6} parent=0 // pred_region
    _
  $region5: #{_lambda_.6} parent=0 // pred_fallthru
    _
  // Predicated region
  $region6: #{_lambda_.6} parent=0 // pred_check
    _
  $region7: #{_lambda_.6} parent=0 // pred_check_branch
    %12 = sbr.rel (0) target = $region9
  $region8: #{_lambda_.6} parent=0 // pred_region
    _
  $region9: #{_lambda_.6} parent=0 // pred_fallthru
    _
  // Predicated region
  $region10: #{_lambda_.6} parent=0 // pred_check
    _
  $region11: #{_lambda_.6} parent=0 // pred_check_branch
    %14 = sbr.rel (0) target = $region13
  $region12: #{_lambda_.6} parent=0 // pred_region
    _
  $region13: #{_lambda_.6} parent=0 // pred_fallthru
    _
  // Predicated region
  $region14: #{_lambda_.6} parent=0 // pred_check
    _
  $region15: #{_lambda_.6} parent=0 // pred_check_branch
    %16 = sbr.rel (0) target = $region17
  $region16: #{_lambda_.6} parent=0 // pred_region
    _
  $region17: #{_lambda_.6} parent=0 // pred_fallthru
    _
  %v18 = vld [vmem:[%s0] sm:$0xf]
  %v19 = vld [vmem:[%s0 + $0x8] sm:$0xf]
  %v20 = vld [vmem:[%s0 + $0x10] sm:$0xf]
  %v21 = vld [vmem:[%s0 + $0x18] sm:$0xf]
  %v22 = vld [vmem:[%s0 + $0x20] sm:$0xf]
  %v23 = vld [vmem:[%s0 + $0x28] sm:$0xf]
  %v24 = vld [vmem:[%s0 + $0x30] sm:$0xf]
  %v25 = vld [vmem:[%s0 + $0x38] sm:$0xf]
  %v26 = vld [vmem:[%s0 + $0x50] sm:$0xf]
  %v27 = vld [vmem:[%s0 + $0x58] sm:$0xf]
  %v28 = vld [vmem:[%s0 + $0x60] sm:$0xf]
  %v29 = vld [vmem:[%s0 + $0x68] sm:$0xf]
  %v30 = vld [vmem:[%s0 + $0x70] sm:$0xf]
  %v31 = vld [vmem:[%s0 + $0x78] sm:$0xf]
  %v32 = vld [vmem:[%s0 + $0x80] sm:$0xf]
  %v33 = vld [vmem:[%s0 + $0x88] sm:$0xf]
  %v34 = vld [vmem:[%s1] sm:$0xf]
  %v35 = vld [vmem:[%s1 + $0x4] sm:$0xf]
  %v36 = vld [vmem:[%s1 + $0x8] sm:$0xf]
  %v37 = vld [vmem:[%s1 + $0xc] sm:$0xf]
  %v38 = vld [vmem:[%s1 + $0x10] sm:$0xf]
  %v39 = vld [vmem:[%s1 + $0x14] sm:$0xf]
  %v40 = vld [vmem:[%s1 + $0x18] sm:$0xf]
  %v41 = vld [vmem:[%s1 + $0x1c] sm:$0xf]
  %v42 = vld [vmem:[%s1 + $0x20] sm:$0xf]
  %v43 = vld [vmem:[%s1 + $0x24] sm:$0xf]
  %v44 = vld [vmem:[%s1 + $0x28] sm:$0xf]
  %v45 = vld [vmem:[%s1 + $0x2c] sm:$0xf]
  %v46 = vld [vmem:[%s1 + $0x30] sm:$0xf]
  %v47 = vld [vmem:[%s1 + $0x34] sm:$0xf]
  %v48 = vld [vmem:[%s1 + $0x38] sm:$0xf]
  %v49 = vld [vmem:[%s1 + $0x3c] sm:$0xf]
  %v50 = vld [vmem:[%s0 + $0x4] sm:$0x1]
  %v51 = vld [vmem:[%s0 + $0xc] sm:$0x1]
  %v52 = vld [vmem:[%s0 + $0x14] sm:$0x1]
  %v53 = vld [vmem:[%s0 + $0x1c] sm:$0x1]
  %v54 = vld [vmem:[%s0 + $0x24] sm:$0x1]
  %v55 = vld [vmem:[%s0 + $0x2c] sm:$0x1]
  %v56 = vld [vmem:[%s0 + $0x34] sm:$0x1]
  %v57 = vld [vmem:[%s0 + $0x3c] sm:$0x1]
  %v58 = vld [vmem:[%s0 + $0x54] sm:$0x1]
  %v59 = vld [vmem:[%s0 + $0x5c] sm:$0x1]
  %v60 = vld [vmem:[%s0 + $0x64] sm:$0x1]
  %v61 = vld [vmem:[%s0 + $0x6c] sm:$0x1]
  %v62 = vld [vmem:[%s0 + $0x74] sm:$0x1]
  %v63 = vld [vmem:[%s0 + $0x7c] sm:$0x1]
  %v64 = vld [vmem:[%s0 + $0x84] sm:$0x1]
  %v65 = vld [vmem:[%s0 + $0x8c] sm:$0x1]
  %vm66 = vsmask.f32 3328
  %vm67 = vsmask.f32 7440
  %vm68 = vmor %vm66, %vm67
  %v70 = vshrl.u32 %v18, 16
  %v72 = vrot.slane %v70, 4
  %v73 = vshll.u32 %v18, 16
  %v75 = vrot.slane %v73, 5
  %v76 = vor.u32 %v72, %v75
  %v77 = vrot.slane %v76, 4
  %v79 = vshll.u32 %v50, 16
  %v81 = vrot.slane %v79, 5
  %v82 = vsel %vm68, %v77, %v81
  %v84 = vshrl.u32 %v19, 16
  %v86 = vrot.slane %v84, 4
  %v87 = vshll.u32 %v19, 16
  %v89 = vrot.slane %v87, 5
  %v90 = vor.u32 %v86, %v89
  %v91 = vrot.slane %v90, 4
  %v93 = vshll.u32 %v51, 16
  %v95 = vrot.slane %v93, 5
  %v96 = vsel %vm68, %v91, %v95
  %v98 = vshrl.u32 %v20, 16
  %v100 = vrot.slane %v98, 4
  %v101 = vshll.u32 %v20, 16
  %v103 = vrot.slane %v101, 5
  %v104 = vor.u32 %v100, %v103
  %v105 = vrot.slane %v104, 4
  %v107 = vshll.u32 %v52, 16
  %v109 = vrot.slane %v107, 5
  %v110 = vsel %vm68, %v105, %v109
  %v112 = vshrl.u32 %v21, 16
  %v114 = vrot.slane %v112, 4
  %v115 = vshll.u32 %v21, 16
  %v117 = vrot.slane %v115, 5
  %v118 = vor.u32 %v114, %v117
  %v119 = vrot.slane %v118, 4
  %v121 = vshll.u32 %v53, 16
  %v123 = vrot.slane %v121, 5
  %v124 = vsel %vm68, %v119, %v123
  %v126 = vshrl.u32 %v22, 16
  %v128 = vrot.slane %v126, 4
  %v129 = vshll.u32 %v22, 16
  %v131 = vrot.slane %v129, 5
  %v132 = vor.u32 %v128, %v131
  %v133 = vrot.slane %v132, 4
  %v135 = vshll.u32 %v54, 16
  %v137 = vrot.slane %v135, 5
  %v138 = vsel %vm68, %v133, %v137
  %v140 = vshrl.u32 %v23, 16
  %v142 = vrot.slane %v140, 4
  %v143 = vshll.u32 %v23, 16
  %v145 = vrot.slane %v143, 5
  %v146 = vor.u32 %v142, %v145
  %v147 = vrot.slane %v146, 4
  %v149 = vshll.u32 %v55, 16
  %v151 = vrot.slane %v149, 5
  %v152 = vsel %vm68, %v147, %v151
  %v154 = vshrl.u32 %v24, 16
  %v156 = vrot.slane %v154, 4
  %v157 = vshll.u32 %v24, 16
  %v159 = vrot.slane %v157, 5
  %v160 = vor.u32 %v156, %v159
  %v161 = vrot.slane %v160, 4
  %v163 = vshll.u32 %v56, 16
  %v165 = vrot.slane %v163, 5
  %v166 = vsel %vm68, %v161, %v165
  %v168 = vshrl.u32 %v25, 16
  %v170 = vrot.slane %v168, 4
  %v171 = vshll.u32 %v25, 16
  %v173 = vrot.slane %v171, 5
  %v174 = vor.u32 %v170, %v173
  %v175 = vrot.slane %v174, 4
  %v177 = vshll.u32 %v57, 16
  %v179 = vrot.slane %v177, 5
  %v180 = vsel %vm68, %v175, %v179
  %v182 = vshrl.u32 %v26, 16
  %v184 = vrot.slane %v182, 4
  %v185 = vshll.u32 %v26, 16
  %v187 = vrot.slane %v185, 5
  %v188 = vor.u32 %v184, %v187
  %v189 = vrot.slane %v188, 4
  %v191 = vshll.u32 %v58, 16
  %v193 = vrot.slane %v191, 5
  %v194 = vsel %vm68, %v189, %v193
  %v196 = vshrl.u32 %v27, 16
  %v198 = vrot.slane %v196, 4
  %v199 = vshll.u32 %v27, 16
  %v201 = vrot.slane %v199, 5
  %v202 = vor.u32 %v198, %v201
  %v203 = vrot.slane %v202, 4
  %v205 = vshll.u32 %v59, 16
  %v207 = vrot.slane %v205, 5
  %v208 = vsel %vm68, %v203, %v207
  %v210 = vshrl.u32 %v28, 16
  %v212 = vrot.slane %v210, 4
  %v213 = vshll.u32 %v28, 16
  %v215 = vrot.slane %v213, 5
  %v216 = vor.u32 %v212, %v215
  %v217 = vrot.slane %v216, 4
  %v219 = vshll.u32 %v60, 16
  %v221 = vrot.slane %v219, 5
  %v222 = vsel %vm68, %v217, %v221
  %v224 = vshrl.u32 %v29, 16
  %v226 = vrot.slane %v224, 4
  %v227 = vshll.u32 %v29, 16
  %v229 = vrot.slane %v227, 5
  %v230 = vor.u32 %v226, %v229
  %v231 = vrot.slane %v230, 4
  %v233 = vshll.u32 %v61, 16
  %v235 = vrot.slane %v233, 5
  %v236 = vsel %vm68, %v231, %v235
  %v238 = vshrl.u32 %v30, 16
  %v240 = vrot.slane %v238, 4
  %v241 = vshll.u32 %v30, 16
  %v243 = vrot.slane %v241, 5
  %v244 = vor.u32 %v240, %v243
  %v245 = vrot.slane %v244, 4
  %v247 = vshll.u32 %v62, 16
  %v249 = vrot.slane %v247, 5
  %v250 = vsel %vm68, %v245, %v249
  %v252 = vshrl.u32 %v31, 16
  %v254 = vrot.slane %v252, 4
  %v255 = vshll.u32 %v31, 16
  %v257 = vrot.slane %v255, 5
  %v258 = vor.u32 %v254, %v257
  %v259 = vrot.slane %v258, 4
  %v261 = vshll.u32 %v63, 16
  %v263 = vrot.slane %v261, 5
  %v264 = vsel %vm68, %v259, %v263
  %v266 = vshrl.u32 %v32, 16
  %v268 = vrot.slane %v266, 4
  %v269 = vshll.u32 %v32, 16
  %v271 = vrot.slane %v269, 5
  %v272 = vor.u32 %v268, %v271
  %v273 = vrot.slane %v272, 4
  %v275 = vshll.u32 %v64, 16
  %v277 = vrot.slane %v275, 5
  %v278 = vsel %vm68, %v273, %v277
  %v280 = vshrl.u32 %v33, 16
  %v282 = vrot.slane %v280, 4
  %v283 = vshll.u32 %v33, 16
  %v285 = vrot.slane %v283, 5
  %v286 = vor.u32 %v282, %v285
  %v287 = vrot.slane %v286, 4
  %v289 = vshll.u32 %v65, 16
  %v291 = vrot.slane %v289, 5
  %v292 = vsel %vm68, %v287, %v291
  %s293 = scalar_lea.vmem %s1, 64
  %v294 = vld [vmem:[%s293] sm:$0xf]
  %v295 = vld [vmem:[%s293 + $0x4] sm:$0xf]
  %v296 = vld [vmem:[%s293 + $0x8] sm:$0xf]
  %v297 = vld [vmem:[%s293 + $0xc] sm:$0xf]
  %v298 = vld [vmem:[%s293 + $0x10] sm:$0xf]
  %v299 = vld [vmem:[%s293 + $0x14] sm:$0xf]
  %v300 = vld [vmem:[%s293 + $0x18] sm:$0xf]
  %v301 = vld [vmem:[%s293 + $0x1c] sm:$0xf]
  %v302 = vld [vmem:[%s293 + $0x20] sm:$0xf]
  %v303 = vld [vmem:[%s293 + $0x24] sm:$0xf]
  %v304 = vld [vmem:[%s293 + $0x28] sm:$0xf]
  %v305 = vld [vmem:[%s293 + $0x2c] sm:$0xf]
  %v306 = vld [vmem:[%s293 + $0x30] sm:$0xf]
  %v307 = vld [vmem:[%s293 + $0x34] sm:$0xf]
  %v308 = vld [vmem:[%s293 + $0x38] sm:$0xf]
  %v309 = vld [vmem:[%s293 + $0x3c] sm:$0xf]
  %v310 = vunpack.c.l.b16 %v82
  %v311 = vunpack.c.l.b16 %v96
  %v312 = vunpack.c.l.b16 %v110
  %v313 = vunpack.c.l.b16 %v124
  %v314 = vunpack.c.l.b16 %v138
  %v315 = vunpack.c.l.b16 %v152
  %v316 = vunpack.c.l.b16 %v166
  %v317 = vunpack.c.l.b16 %v180
  %v318 = vunpack.c.l.b16 %v194
  %v319 = vunpack.c.l.b16 %v208
  %v320 = vunpack.c.l.b16 %v222
  %v321 = vunpack.c.l.b16 %v236
  %v322 = vunpack.c.l.b16 %v250
  %v323 = vunpack.c.l.b16 %v264
  %v324 = vunpack.c.l.b16 %v278
  %v325 = vunpack.c.l.b16 %v292
  %v326 = vpack.c.b16 %v311, %v310
  %v327 = vpack.c.b16 %v313, %v312
  %v328 = vpack.c.b16 %v315, %v314
  %v329 = vpack.c.b16 %v317, %v316
  %v330 = vpack.c.b16 %v319, %v318
  %v331 = vpack.c.b16 %v321, %v320
  %v332 = vpack.c.b16 %v323, %v322
  %v333 = vpack.c.b16 %v325, %v324
  %v358 = vunpack.c.l.b16 %v294
  %v359 = vunpack.c.l.b16 %v295
  %v360 = vunpack.c.l.b16 %v296
  %v361 = vunpack.c.l.b16 %v297
  %v362 = vunpack.c.l.b16 %v298
  %v363 = vunpack.c.l.b16 %v299
  %v364 = vunpack.c.l.b16 %v300
  %v365 = vunpack.c.l.b16 %v301
  %v366 = vunpack.c.l.b16 %v302
  %v367 = vunpack.c.l.b16 %v303
  %v368 = vunpack.c.l.b16 %v304
  %v369 = vunpack.c.l.b16 %v305
  %v370 = vunpack.c.l.b16 %v306
  %v371 = vunpack.c.l.b16 %v307
  %v372 = vunpack.c.l.b16 %v308
  %v373 = vunpack.c.l.b16 %v309
  %v374 = vpack.c.b16 %v359, %v358
  %v375 = vpack.c.b16 %v361, %v360
  %v376 = vpack.c.b16 %v363, %v362
  %v377 = vpack.c.b16 %v365, %v364
  %v378 = vpack.c.b16 %v367, %v366
  %v379 = vpack.c.b16 %v369, %v368
  %v380 = vpack.c.b16 %v371, %v370
  %v381 = vpack.c.b16 %v373, %v372
  %390 = vmatprep.subr.bf16.mxu0 0
  %391 = vmatpush1.bf16.msra.mxu0 %v374
  %392 = vmatprep.subr.bf16.mxu0 0
  %393 = vmatpush1.bf16.msra.mxu0 %v375
  %394 = vmatprep.subr.bf16.mxu0 0
  %395 = vmatpush1.bf16.msra.mxu0 %v376
  %396 = vmatprep.subr.bf16.mxu0 0
  %397 = vmatpush1.bf16.msra.mxu0 %v377
  %398 = vmatprep.subr.bf16.mxu0 0
  %399 = vmatpush1.bf16.msra.mxu0 %v378
  %400 = vmatprep.subr.bf16.mxu0 0
  %401 = vmatpush1.bf16.msra.mxu0 %v379
  %402 = vmatprep.subr.bf16.mxu0 0
  %403 = vmatpush1.bf16.msra.mxu0 %v380
  %404 = vmatprep.subr.bf16.mxu0 0
  %405 = vmatpush1.bf16.msra.mxu0 %v381
  %406 = vmatprep.subr.bf16.mxu0 0
  %407 = vmatpush1.bf16.msra.mxu0 0
  %408 = vmatprep.subr.bf16.mxu0 0
  %409 = vmatpush1.bf16.msra.mxu0 0
  %410 = vmatprep.subr.bf16.mxu0 0
  %411 = vmatpush1.bf16.msra.mxu0 0
  %412 = vmatprep.subr.bf16.mxu0 0
  %413 = vmatpush1.bf16.msra.mxu0 0
  %414 = vmatprep.subr.bf16.mxu0 0
  %415 = vmatpush1.bf16.msra.mxu0 0
  %416 = vmatprep.subr.bf16.mxu0 0
  %417 = vmatpush1.bf16.msra.mxu0 0
  %418 = vmatprep.subr.bf16.mxu0 0
  %419 = vmatpush1.bf16.msra.mxu0 0
  %420 = vmatprep.subr.bf16.mxu0 0
  %421 = vmatpush1.bf16.msra.mxu0 0
  %422 = vmatprep.mubr.bf16.mxu0 0
  %423 = vmatmul.mubr.bf16.gmra.mrb[0].mxu0 %v326
  %v424 = vpop.f32.mrb[0].mxu0
  %v425 = vadd.f32 0.0, %v424
  %v426 = vpop.f32.mrb[0].mxu0
  %v427 = vpop.f32.mrb[0].mxu0
  %v428 = vadd.f32 0.0, %v427
  %v429 = vpop.f32.mrb[0].mxu0
  %430 = vmatprep.mubr.bf16.mxu0 0
  %431 = vmatmul.mubr.bf16.gmra.mrb[0].mxu0 %v327
  %v432 = vpop.f32.mrb[0].mxu0
  %v433 = vadd.f32 0.0, %v432
  %v434 = vpop.f32.mrb[0].mxu0
  %v435 = vpop.f32.mrb[0].mxu0
  %v436 = vadd.f32 0.0, %v435
  %v437 = vpop.f32.mrb[0].mxu0
  %438 = vmatprep.mubr.bf16.mxu0 0
  %439 = vmatmul.mubr.bf16.gmra.mrb[0].mxu0 %v328
  %v440 = vpop.f32.mrb[0].mxu0
  %v441 = vadd.f32 0.0, %v440
  %v442 = vpop.f32.mrb[0].mxu0
  %v443 = vpop.f32.mrb[0].mxu0
  %v444 = vadd.f32 0.0, %v443
  %v445 = vpop.f32.mrb[0].mxu0
  %446 = vmatprep.mubr.bf16.mxu0 0
  %447 = vmatmul.mubr.bf16.gmra.mrb[0].mxu0 %v329
  %v448 = vpop.f32.mrb[0].mxu0
  %v449 = vadd.f32 0.0, %v448
  %v450 = vpop.f32.mrb[0].mxu0
  %v451 = vpop.f32.mrb[0].mxu0
  %v452 = vadd.f32 0.0, %v451
  %v453 = vpop.f32.mrb[0].mxu0
  %454 = vmatprep.mubr.bf16.mxu0 0
  %455 = vmatmul.mubr.bf16.gmra.mrb[0].mxu0 %v330
  %v456 = vpop.f32.mrb[0].mxu0
  %v457 = vadd.f32 0.0, %v456
  %v458 = vpop.f32.mrb[0].mxu0
  %v459 = vpop.f32.mrb[0].mxu0
  %v460 = vadd.f32 0.0, %v459
  %v461 = vpop.f32.mrb[0].mxu0
  %462 = vmatprep.mubr.bf16.mxu0 0
  %463 = vmatmul.mubr.bf16.gmra.mrb[0].mxu0 %v331
  %v464 = vpop.f32.mrb[0].mxu0
  %v465 = vadd.f32 0.0, %v464
  %v466 = vpop.f32.mrb[0].mxu0
  %v467 = vpop.f32.mrb[0].mxu0
  %v468 = vadd.f32 0.0, %v467
  %v469 = vpop.f32.mrb[0].mxu0
  %470 = vmatprep.mubr.bf16.mxu0 0
  %471 = vmatmul.mubr.bf16.gmra.mrb[0].mxu0 %v332
  %v472 = vpop.f32.mrb[0].mxu0
  %v473 = vadd.f32 0.0, %v472
  %v474 = vpop.f32.mrb[0].mxu0
  %v475 = vpop.f32.mrb[0].mxu0
  %v476 = vadd.f32 0.0, %v475
  %v477 = vpop.f32.mrb[0].mxu0
  %478 = vmatprep.mubr.bf16.mxu0 0
  %479 = vmatmul.mubr.bf16.gmra.mrb[0].mxu0 %v333
  %v480 = vpop.f32.mrb[0].mxu0
  %v481 = vadd.f32 0.0, %v480
  %v482 = vpop.f32.mrb[0].mxu0
  %v483 = vpop.f32.mrb[0].mxu0
  %v484 = vadd.f32 0.0, %v483
  %v485 = vpop.f32.mrb[0].mxu0
  %486 = vdwg.mxu0
  %v503 = vunpack.c.l.b16 %v18
  %v504 = vunpack.c.l.b16 %v19
  %v505 = vunpack.c.l.b16 %v20
  %v506 = vunpack.c.l.b16 %v21
  %v507 = vunpack.c.l.b16 %v22
  %v508 = vunpack.c.l.b16 %v23
  %v509 = vunpack.c.l.b16 %v24
  %v510 = vunpack.c.l.b16 %v25
  %v511 = vunpack.c.l.b16 %v26
  %v512 = vunpack.c.l.b16 %v27
  %v513 = vunpack.c.l.b16 %v28
  %v514 = vunpack.c.l.b16 %v29
  %v515 = vunpack.c.l.b16 %v30
  %v516 = vunpack.c.l.b16 %v31
  %v517 = vunpack.c.l.b16 %v32
  %v518 = vunpack.c.l.b16 %v33
  %v519 = vpack.c.b16 %v504, %v503
  %v520 = vpack.c.b16 %v506, %v505
  %v521 = vpack.c.b16 %v508, %v507
  %v522 = vpack.c.b16 %v510, %v509
  %v523 = vpack.c.b16 %v512, %v511
  %v524 = vpack.c.b16 %v514, %v513
  %v525 = vpack.c.b16 %v516, %v515
  %v526 = vpack.c.b16 %v518, %v517
  %v551 = vunpack.c.l.b16 %v34
  %v552 = vunpack.c.l.b16 %v35
  %v553 = vunpack.c.l.b16 %v36
  %v554 = vunpack.c.l.b16 %v37
  %v555 = vunpack.c.l.b16 %v38
  %v556 = vunpack.c.l.b16 %v39
  %v557 = vunpack.c.l.b16 %v40
  %v558 = vunpack.c.l.b16 %v41
  %v559 = vunpack.c.l.b16 %v42
  %v560 = vunpack.c.l.b16 %v43
  %v561 = vunpack.c.l.b16 %v44
  %v562 = vunpack.c.l.b16 %v45
  %v563 = vunpack.c.l.b16 %v46
  %v564 = vunpack.c.l.b16 %v47
  %v565 = vunpack.c.l.b16 %v48
  %v566 = vunpack.c.l.b16 %v49
  %v567 = vpack.c.b16 %v552, %v551
  %v568 = vpack.c.b16 %v554, %v553
  %v569 = vpack.c.b16 %v556, %v555
  %v570 = vpack.c.b16 %v558, %v557
  %v571 = vpack.c.b16 %v560, %v559
  %v572 = vpack.c.b16 %v562, %v561
  %v573 = vpack.c.b16 %v564, %v563
  %v574 = vpack.c.b16 %v566, %v565
  %583 = vmatprep.subr.bf16.mxu0 0
  %584 = vmatpush1.bf16.msra.mxu0 %v567
  %585 = vmatprep.subr.bf16.mxu0 0
  %586 = vmatpush1.bf16.msra.mxu0 %v568
  %587 = vmatprep.subr.bf16.mxu0 0
  %588 = vmatpush1.bf16.msra.mxu0 %v569
  %589 = vmatprep.subr.bf16.mxu0 0
  %590 = vmatpush1.bf16.msra.mxu0 %v570
  %591 = vmatprep.subr.bf16.mxu0 0
  %592 = vmatpush1.bf16.msra.mxu0 %v571
  %593 = vmatprep.subr.bf16.mxu0 0
  %594 = vmatpush1.bf16.msra.mxu0 %v572
  %595 = vmatprep.subr.bf16.mxu0 0
  %596 = vmatpush1.bf16.msra.mxu0 %v573
  %597 = vmatprep.subr.bf16.mxu0 0
  %598 = vmatpush1.bf16.msra.mxu0 %v574
  %599 = vmatprep.subr.bf16.mxu0 0
  %600 = vmatpush1.bf16.msra.mxu0 0
  %601 = vmatprep.subr.bf16.mxu0 0
  %602 = vmatpush1.bf16.msra.mxu0 0
  %603 = vmatprep.subr.bf16.mxu0 0
  %604 = vmatpush1.bf16.msra.mxu0 0
  %605 = vmatprep.subr.bf16.mxu0 0
  %606 = vmatpush1.bf16.msra.mxu0 0
  %607 = vmatprep.subr.bf16.mxu0 0
  %608 = vmatpush1.bf16.msra.mxu0 0
  %609 = vmatprep.subr.bf16.mxu0 0
  %610 = vmatpush1.bf16.msra.mxu0 0
  %611 = vmatprep.subr.bf16.mxu0 0
  %612 = vmatpush1.bf16.msra.mxu0 0
  %613 = vmatprep.subr.bf16.mxu0 0
  %614 = vmatpush1.bf16.msra.mxu0 0
  %615 = vmatprep.mubr.bf16.mxu0 0
  %616 = vmatmul.mubr.bf16.gmra.mrb[0].mxu0 %v519
  %v617 = vpop.f32.mrb[0].mxu0
  %v618 = vadd.f32 %v425, %v617
  %v619 = vpop.f32.mrb[0].mxu0
  %v620 = vpop.f32.mrb[0].mxu0
  %v621 = vadd.f32 %v428, %v620
  %v622 = vpop.f32.mrb[0].mxu0
  %623 = vmatprep.mubr.bf16.mxu0 0
  %624 = vmatmul.mubr.bf16.gmra.mrb[0].mxu0 %v520
  %v625 = vpop.f32.mrb[0].mxu0
  %v626 = vadd.f32 %v433, %v625
  %v627 = vpop.f32.mrb[0].mxu0
  %v628 = vpop.f32.mrb[0].mxu0
  %v629 = vadd.f32 %v436, %v628
  %v630 = vpop.f32.mrb[0].mxu0
  %631 = vmatprep.mubr.bf16.mxu0 0
  %632 = vmatmul.mubr.bf16.gmra.mrb[0].mxu0 %v521
  %v633 = vpop.f32.mrb[0].mxu0
  %v634 = vadd.f32 %v441, %v633
  %v635 = vpop.f32.mrb[0].mxu0
  %v636 = vpop.f32.mrb[0].mxu0
  %v637 = vadd.f32 %v444, %v636
  %v638 = vpop.f32.mrb[0].mxu0
  %639 = vmatprep.mubr.bf16.mxu0 0
  %640 = vmatmul.mubr.bf16.gmra.mrb[0].mxu0 %v522
  %v641 = vpop.f32.mrb[0].mxu0
  %v642 = vadd.f32 %v449, %v641
  %v643 = vpop.f32.mrb[0].mxu0
  %v644 = vpop.f32.mrb[0].mxu0
  %v645 = vadd.f32 %v452, %v644
  %v646 = vpop.f32.mrb[0].mxu0
  %647 = vmatprep.mubr.bf16.mxu0 0
  %648 = vmatmul.mubr.bf16.gmra.mrb[0].mxu0 %v523
  %v649 = vpop.f32.mrb[0].mxu0
  %v650 = vadd.f32 %v457, %v649
  %v651 = vpop.f32.mrb[0].mxu0
  %v652 = vpop.f32.mrb[0].mxu0
  %v653 = vadd.f32 %v460, %v652
  %v654 = vpop.f32.mrb[0].mxu0
  %655 = vmatprep.mubr.bf16.mxu0 0
  %656 = vmatmul.mubr.bf16.gmra.mrb[0].mxu0 %v524
  %v657 = vpop.f32.mrb[0].mxu0
  %v658 = vadd.f32 %v465, %v657
  %v659 = vpop.f32.mrb[0].mxu0
  %v660 = vpop.f32.mrb[0].mxu0
  %v661 = vadd.f32 %v468, %v660
  %v662 = vpop.f32.mrb[0].mxu0
  %663 = vmatprep.mubr.bf16.mxu0 0
  %664 = vmatmul.mubr.bf16.gmra.mrb[0].mxu0 %v525
  %v665 = vpop.f32.mrb[0].mxu0
  %v666 = vadd.f32 %v473, %v665
  %v667 = vpop.f32.mrb[0].mxu0
  %v668 = vpop.f32.mrb[0].mxu0
  %v669 = vadd.f32 %v476, %v668
  %v670 = vpop.f32.mrb[0].mxu0
  %671 = vmatprep.mubr.bf16.mxu0 0
  %672 = vmatmul.mubr.bf16.gmra.mrb[0].mxu0 %v526
  %v673 = vpop.f32.mrb[0].mxu0
  %v674 = vadd.f32 %v481, %v673
  %v675 = vpop.f32.mrb[0].mxu0
  %v676 = vpop.f32.mrb[0].mxu0
  %v677 = vadd.f32 %v484, %v676
  %v678 = vpop.f32.mrb[0].mxu0
  %679 = vdwg.mxu0
  %v680 = vld [vmem:[%s0] sm:$0xe]
  %v681 = vld [vmem:[%s0 + $0x8] sm:$0xe]
  %v682 = vld [vmem:[%s0 + $0x10] sm:$0xe]
  %v683 = vld [vmem:[%s0 + $0x18] sm:$0xe]
  %v684 = vld [vmem:[%s0 + $0x20] sm:$0xe]
  %v685 = vld [vmem:[%s0 + $0x28] sm:$0xe]
  %v686 = vld [vmem:[%s0 + $0x30] sm:$0xe]
  %v687 = vld [vmem:[%s0 + $0x38] sm:$0xe]
  %v688 = vld [vmem:[%s0 + $0x50] sm:$0xe]
  %v689 = vld [vmem:[%s0 + $0x58] sm:$0xe]
  %v690 = vld [vmem:[%s0 + $0x60] sm:$0xe]
  %v691 = vld [vmem:[%s0 + $0x68] sm:$0xe]
  %v692 = vld [vmem:[%s0 + $0x70] sm:$0xe]
  %v693 = vld [vmem:[%s0 + $0x78] sm:$0xe]
  %v694 = vld [vmem:[%s0 + $0x80] sm:$0xe]
  %v695 = vld [vmem:[%s0 + $0x88] sm:$0xe]
  %vm728 = vcmask 1042432
  %vm729 = vcmask 1046532
  %vm730 = vmor %vm728, %vm729
  %v731 = vrot.slane %v680, 5
  %v732 = vrot.slane %v731, 4
  %v733 = vrot.slane %v50, 5
  %v734 = vsel %vm730, %v732, %v733
  %v735 = vrot.slane %v681, 5
  %v736 = vrot.slane %v735, 4
  %v737 = vrot.slane %v51, 5
  %v738 = vsel %vm730, %v736, %v737
  %v739 = vrot.slane %v682, 5
  %v740 = vrot.slane %v739, 4
  %v741 = vrot.slane %v52, 5
  %v742 = vsel %vm730, %v740, %v741
  %v743 = vrot.slane %v683, 5
  %v744 = vrot.slane %v743, 4
  %v745 = vrot.slane %v53, 5
  %v746 = vsel %vm730, %v744, %v745
  %v747 = vrot.slane %v684, 5
  %v748 = vrot.slane %v747, 4
  %v749 = vrot.slane %v54, 5
  %v750 = vsel %vm730, %v748, %v749
  %v751 = vrot.slane %v685, 5
  %v752 = vrot.slane %v751, 4
  %v753 = vrot.slane %v55, 5
  %v754 = vsel %vm730, %v752, %v753
  %v755 = vrot.slane %v686, 5
  %v756 = vrot.slane %v755, 4
  %v757 = vrot.slane %v56, 5
  %v758 = vsel %vm730, %v756, %v757
  %v759 = vrot.slane %v687, 5
  %v760 = vrot.slane %v759, 4
  %v761 = vrot.slane %v57, 5
  %v762 = vsel %vm730, %v760, %v761
  %v763 = vrot.slane %v688, 5
  %v764 = vrot.slane %v763, 4
  %v765 = vrot.slane %v58, 5
  %v766 = vsel %vm730, %v764, %v765
  %v767 = vrot.slane %v689, 5
  %v768 = vrot.slane %v767, 4
  %v769 = vrot.slane %v59, 5
  %v770 = vsel %vm730, %v768, %v769
  %v771 = vrot.slane %v690, 5
  %v772 = vrot.slane %v771, 4
  %v773 = vrot.slane %v60, 5
  %v774 = vsel %vm730, %v772, %v773
  %v775 = vrot.slane %v691, 5
  %v776 = vrot.slane %v775, 4
  %v777 = vrot.slane %v61, 5
  %v778 = vsel %vm730, %v776, %v777
  %v779 = vrot.slane %v692, 5
  %v780 = vrot.slane %v779, 4
  %v781 = vrot.slane %v62, 5
  %v782 = vsel %vm730, %v780, %v781
  %v783 = vrot.slane %v693, 5
  %v784 = vrot.slane %v783, 4
  %v785 = vrot.slane %v63, 5
  %v786 = vsel %vm730, %v784, %v785
  %v787 = vrot.slane %v694, 5
  %v788 = vrot.slane %v787, 4
  %v789 = vrot.slane %v64, 5
  %v790 = vsel %vm730, %v788, %v789
  %v791 = vrot.slane %v695, 5
  %v792 = vrot.slane %v791, 4
  %v793 = vrot.slane %v65, 5
  %v794 = vsel %vm730, %v792, %v793
  %s795 = scalar_lea.vmem %s1, 128
  %v796 = vld [vmem:[%s795] sm:$0xf]
  %v797 = vld [vmem:[%s795 + $0x4] sm:$0xf]
  %v798 = vld [vmem:[%s795 + $0x8] sm:$0xf]
  %v799 = vld [vmem:[%s795 + $0xc] sm:$0xf]
  %v800 = vld [vmem:[%s795 + $0x10] sm:$0xf]
  %v801 = vld [vmem:[%s795 + $0x14] sm:$0xf]
  %v802 = vld [vmem:[%s795 + $0x18] sm:$0xf]
  %v803 = vld [vmem:[%s795 + $0x1c] sm:$0xf]
  %v804 = vld [vmem:[%s795 + $0x20] sm:$0xf]
  %v805 = vld [vmem:[%s795 + $0x24] sm:$0xf]
  %v806 = vld [vmem:[%s795 + $0x28] sm:$0xf]
  %v807 = vld [vmem:[%s795 + $0x2c] sm:$0xf]
  %v808 = vld [vmem:[%s795 + $0x30] sm:$0xf]
  %v809 = vld [vmem:[%s795 + $0x34] sm:$0xf]
  %v810 = vld [vmem:[%s795 + $0x38] sm:$0xf]
  %v811 = vld [vmem:[%s795 + $0x3c] sm:$0xf]
  %v812 = vunpack.c.l.b16 %v734
  %v813 = vunpack.c.l.b16 %v738
  %v814 = vunpack.c.l.b16 %v742
  %v815 = vunpack.c.l.b16 %v746
  %v816 = vunpack.c.l.b16 %v750
  %v817 = vunpack.c.l.b16 %v754
  %v818 = vunpack.c.l.b16 %v758
  %v819 = vunpack.c.l.b16 %v762
  %v820 = vunpack.c.l.b16 %v766
  %v821 = vunpack.c.l.b16 %v770
  %v822 = vunpack.c.l.b16 %v774
  %v823 = vunpack.c.l.b16 %v778
  %v824 = vunpack.c.l.b16 %v782
  %v825 = vunpack.c.l.b16 %v786
  %v826 = vunpack.c.l.b16 %v790
  %v827 = vunpack.c.l.b16 %v794
  %v828 = vpack.c.b16 %v813, %v812
  %v829 = vpack.c.b16 %v815, %v814
  %v830 = vpack.c.b16 %v817, %v816
  %v831 = vpack.c.b16 %v819, %v818
  %v832 = vpack.c.b16 %v821, %v820
  %v833 = vpack.c.b16 %v823, %v822
  %v834 = vpack.c.b16 %v825, %v824
  %v835 = vpack.c.b16 %v827, %v826
  %v860 = vunpack.c.l.b16 %v796
  %v861 = vunpack.c.l.b16 %v797
  %v862 = vunpack.c.l.b16 %v798
  %v863 = vunpack.c.l.b16 %v799
  %v864 = vunpack.c.l.b16 %v800
  %v865 = vunpack.c.l.b16 %v801
  %v866 = vunpack.c.l.b16 %v802
  %v867 = vunpack.c.l.b16 %v803
  %v868 = vunpack.c.l.b16 %v804
  %v869 = vunpack.c.l.b16 %v805
  %v870 = vunpack.c.l.b16 %v806
  %v871 = vunpack.c.l.b16 %v807
  %v872 = vunpack.c.l.b16 %v808
  %v873 = vunpack.c.l.b16 %v809
  %v874 = vunpack.c.l.b16 %v810
  %v875 = vunpack.c.l.b16 %v811
  %v876 = vpack.c.b16 %v861, %v860
  %v877 = vpack.c.b16 %v863, %v862
  %v878 = vpack.c.b16 %v865, %v864
  %v879 = vpack.c.b16 %v867, %v866
  %v880 = vpack.c.b16 %v869, %v868
  %v881 = vpack.c.b16 %v871, %v870
  %v882 = vpack.c.b16 %v873, %v872
  %v883 = vpack.c.b16 %v875, %v874
  %892 = vmatprep.subr.bf16.mxu0 0
  %893 = vmatpush1.bf16.msra.mxu0 %v876
  %894 = vmatprep.subr.bf16.mxu0 0
  %895 = vmatpush1.bf16.msra.mxu0 %v877
  %896 = vmatprep.subr.bf16.mxu0 0
  %897 = vmatpush1.bf16.msra.mxu0 %v878
  %898 = vmatprep.subr.bf16.mxu0 0
  %899 = vmatpush1.bf16.msra.mxu0 %v879
  %900 = vmatprep.subr.bf16.mxu0 0
  %901 = vmatpush1.bf16.msra.mxu0 %v880
  %902 = vmatprep.subr.bf16.mxu0 0
  %903 = vmatpush1.bf16.msra.mxu0 %v881
  %904 = vmatprep.subr.bf16.mxu0 0
  %905 = vmatpush1.bf16.msra.mxu0 %v882
  %906 = vmatprep.subr.bf16.mxu0 0
  %907 = vmatpush1.bf16.msra.mxu0 %v883
  %908 = vmatprep.subr.bf16.mxu0 0
  %909 = vmatpush1.bf16.msra.mxu0 0
  %910 = vmatprep.subr.bf16.mxu0 0
  %911 = vmatpush1.bf16.msra.mxu0 0
  %912 = vmatprep.subr.bf16.mxu0 0
  %913 = vmatpush1.bf16.msra.mxu0 0
  %914 = vmatprep.subr.bf16.mxu0 0
  %915 = vmatpush1.bf16.msra.mxu0 0
  %916 = vmatprep.subr.bf16.mxu0 0
  %917 = vmatpush1.bf16.msra.mxu0 0
  %918 = vmatprep.subr.bf16.mxu0 0
  %919 = vmatpush1.bf16.msra.mxu0 0
  %920 = vmatprep.subr.bf16.mxu0 0
  %921 = vmatpush1.bf16.msra.mxu0 0
  %922 = vmatprep.subr.bf16.mxu0 0
  %923 = vmatpush1.bf16.msra.mxu0 0
  %924 = vmatprep.mubr.bf16.mxu0 0
  %925 = vmatmul.mubr.bf16.gmra.mrb[0].mxu0 %v828
  %v926 = vpop.f32.mrb[0].mxu0
  %v927 = vadd.f32 0.0, %v926
  %v928 = vpop.f32.mrb[0].mxu0
  %v929 = vpop.f32.mrb[0].mxu0
  %v930 = vadd.f32 0.0, %v929
  %v931 = vpop.f32.mrb[0].mxu0
  %932 = vmatprep.mubr.bf16.mxu0 0
  %933 = vmatmul.mubr.bf16.gmra.mrb[0].mxu0 %v829
  %v934 = vpop.f32.mrb[0].mxu0
  %v935 = vadd.f32 0.0, %v934
  %v936 = vpop.f32.mrb[0].mxu0
  %v937 = vpop.f32.mrb[0].mxu0
  %v938 = vadd.f32 0.0, %v937
  %v939 = vpop.f32.mrb[0].mxu0
  %940 = vmatprep.mubr.bf16.mxu0 0
  %941 = vmatmul.mubr.bf16.gmra.mrb[0].mxu0 %v830
  %v942 = vpop.f32.mrb[0].mxu0
  %v943 = vadd.f32 0.0, %v942
  %v944 = vpop.f32.mrb[0].mxu0
  %v945 = vpop.f32.mrb[0].mxu0
  %v946 = vadd.f32 0.0, %v945
  %v947 = vpop.f32.mrb[0].mxu0
  %948 = vmatprep.mubr.bf16.mxu0 0
  %949 = vmatmul.mubr.bf16.gmra.mrb[0].mxu0 %v831
  %v950 = vpop.f32.mrb[0].mxu0
  %v951 = vadd.f32 0.0, %v950
  %v952 = vpop.f32.mrb[0].mxu0
  %v953 = vpop.f32.mrb[0].mxu0
  %v954 = vadd.f32 0.0, %v953
  %v955 = vpop.f32.mrb[0].mxu0
  %956 = vmatprep.mubr.bf16.mxu0 0
  %957 = vmatmul.mubr.bf16.gmra.mrb[0].mxu0 %v832
  %v958 = vpop.f32.mrb[0].mxu0
  %v959 = vadd.f32 0.0, %v958
  %v960 = vpop.f32.mrb[0].mxu0
  %v961 = vpop.f32.mrb[0].mxu0
  %v962 = vadd.f32 0.0, %v961
  %v963 = vpop.f32.mrb[0].mxu0
  %964 = vmatprep.mubr.bf16.mxu0 0
  %965 = vmatmul.mubr.bf16.gmra.mrb[0].mxu0 %v833
  %v966 = vpop.f32.mrb[0].mxu0
  %v967 = vadd.f32 0.0, %v966
  %v968 = vpop.f32.mrb[0].mxu0
  %v969 = vpop.f32.mrb[0].mxu0
  %v970 = vadd.f32 0.0, %v969
  %v971 = vpop.f32.mrb[0].mxu0
  %972 = vmatprep.mubr.bf16.mxu0 0
  %973 = vmatmul.mubr.bf16.gmra.mrb[0].mxu0 %v834
  %v974 = vpop.f32.mrb[0].mxu0
  %v975 = vadd.f32 0.0, %v974
  %v976 = vpop.f32.mrb[0].mxu0
  %v977 = vpop.f32.mrb[0].mxu0
  %v978 = vadd.f32 0.0, %v977
  %v979 = vpop.f32.mrb[0].mxu0
  %980 = vmatprep.mubr.bf16.mxu0 0
  %981 = vmatmul.mubr.bf16.gmra.mrb[0].mxu0 %v835
  %v982 = vpop.f32.mrb[0].mxu0
  %v983 = vadd.f32 0.0, %v982
  %v984 = vpop.f32.mrb[0].mxu0
  %v985 = vpop.f32.mrb[0].mxu0
  %v986 = vadd.f32 0.0, %v985
  %v987 = vpop.f32.mrb[0].mxu0
  %988 = vdwg.mxu0
  %v989 = vadd.f32 %v618, %v927
  %v990 = vadd.f32 %v621, %v930
  %v991 = vadd.f32 %v626, %v935
  %v992 = vadd.f32 %v629, %v938
  %v993 = vadd.f32 %v634, %v943
  %v994 = vadd.f32 %v637, %v946
  %v995 = vadd.f32 %v642, %v951
  %v996 = vadd.f32 %v645, %v954
  %v997 = vadd.f32 %v650, %v959
  %v998 = vadd.f32 %v653, %v962
  %v999 = vadd.f32 %v658, %v967
  %v1000 = vadd.f32 %v661, %v970
  %v1001 = vadd.f32 %v666, %v975
  %v1002 = vadd.f32 %v669, %v978
  %v1003 = vadd.f32 %v674, %v983
  %v1004 = vadd.f32 %v677, %v986
  %s1005 = scalar_lea.vmem %s0, 8
  %v1006 = vld [vmem:[%s1005] sm:$0xf]
  %v1007 = vld [vmem:[%s1005 + $0x8] sm:$0xf]
  %v1008 = vld [vmem:[%s1005 + $0x10] sm:$0xf]
  %v1009 = vld [vmem:[%s1005 + $0x18] sm:$0xf]
  %v1010 = vld [vmem:[%s1005 + $0x20] sm:$0xf]
  %v1011 = vld [vmem:[%s1005 + $0x28] sm:$0xf]
  %v1012 = vld [vmem:[%s1005 + $0x30] sm:$0xf]
  %v1013 = vld [vmem:[%s1005 + $0x38] sm:$0xf]
  %v1014 = vld [vmem:[%s1005 + $0x50] sm:$0xf]
  %v1015 = vld [vmem:[%s1005 + $0x58] sm:$0xf]
  %v1016 = vld [vmem:[%s1005 + $0x60] sm:$0xf]
  %v1017 = vld [vmem:[%s1005 + $0x68] sm:$0xf]
  %v1018 = vld [vmem:[%s1005 + $0x70] sm:$0xf]
  %v1019 = vld [vmem:[%s1005 + $0x78] sm:$0xf]
  %v1020 = vld [vmem:[%s1005 + $0x80] sm:$0xf]
  %v1021 = vld [vmem:[%s1005 + $0x88] sm:$0xf]
  %s1022 = scalar_lea.vmem %s1, 192
  %v1023 = vld [vmem:[%s1022] sm:$0xf]
  %v1024 = vld [vmem:[%s1022 + $0x4] sm:$0xf]
  %v1025 = vld [vmem:[%s1022 + $0x8] sm:$0xf]
  %v1026 = vld [vmem:[%s1022 + $0xc] sm:$0xf]
  %v1027 = vld [vmem:[%s1022 + $0x10] sm:$0xf]
  %v1028 = vld [vmem:[%s1022 + $0x14] sm:$0xf]
  %v1029 = vld [vmem:[%s1022 + $0x18] sm:$0xf]
  %v1030 = vld [vmem:[%s1022 + $0x1c] sm:$0xf]
  %v1031 = vld [vmem:[%s1022 + $0x20] sm:$0xf]
  %v1032 = vld [vmem:[%s1022 + $0x24] sm:$0xf]
  %v1033 = vld [vmem:[%s1022 + $0x28] sm:$0xf]
  %v1034 = vld [vmem:[%s1022 + $0x2c] sm:$0xf]
  %v1035 = vld [vmem:[%s1022 + $0x30] sm:$0xf]
  %v1036 = vld [vmem:[%s1022 + $0x34] sm:$0xf]
  %v1037 = vld [vmem:[%s1022 + $0x38] sm:$0xf]
  %v1038 = vld [vmem:[%s1022 + $0x3c] sm:$0xf]
  %v1055 = vunpack.c.l.b16 %v1006
  %v1056 = vunpack.c.l.b16 %v1007
  %v1057 = vunpack.c.l.b16 %v1008
  %v1058 = vunpack.c.l.b16 %v1009
  %v1059 = vunpack.c.l.b16 %v1010
  %v1060 = vunpack.c.l.b16 %v1011
  %v1061 = vunpack.c.l.b16 %v1012
  %v1062 = vunpack.c.l.b16 %v1013
  %v1063 = vunpack.c.l.b16 %v1014
  %v1064 = vunpack.c.l.b16 %v1015
  %v1065 = vunpack.c.l.b16 %v1016
  %v1066 = vunpack.c.l.b16 %v1017
  %v1067 = vunpack.c.l.b16 %v1018
  %v1068 = vunpack.c.l.b16 %v1019
  %v1069 = vunpack.c.l.b16 %v1020
  %v1070 = vunpack.c.l.b16 %v1021
  %v1071 = vpack.c.b16 %v1056, %v1055
  %v1072 = vpack.c.b16 %v1058, %v1057
  %v1073 = vpack.c.b16 %v1060, %v1059
  %v1074 = vpack.c.b16 %v1062, %v1061
  %v1075 = vpack.c.b16 %v1064, %v1063
  %v1076 = vpack.c.b16 %v1066, %v1065
  %v1077 = vpack.c.b16 %v1068, %v1067
  %v1078 = vpack.c.b16 %v1070, %v1069
  %v1103 = vunpack.c.l.b16 %v1023
  %v1104 = vunpack.c.l.b16 %v1024
  %v1105 = vunpack.c.l.b16 %v1025
  %v1106 = vunpack.c.l.b16 %v1026
  %v1107 = vunpack.c.l.b16 %v1027
  %v1108 = vunpack.c.l.b16 %v1028
  %v1109 = vunpack.c.l.b16 %v1029
  %v1110 = vunpack.c.l.b16 %v1030
  %v1111 = vunpack.c.l.b16 %v1031
  %v1112 = vunpack.c.l.b16 %v1032
  %v1113 = vunpack.c.l.b16 %v1033
  %v1114 = vunpack.c.l.b16 %v1034
  %v1115 = vunpack.c.l.b16 %v1035
  %v1116 = vunpack.c.l.b16 %v1036
  %v1117 = vunpack.c.l.b16 %v1037
  %v1118 = vunpack.c.l.b16 %v1038
  %v1119 = vpack.c.b16 %v1104, %v1103
  %v1120 = vpack.c.b16 %v1106, %v1105
  %v1121 = vpack.c.b16 %v1108, %v1107
  %v1122 = vpack.c.b16 %v1110, %v1109
  %v1123 = vpack.c.b16 %v1112, %v1111
  %v1124 = vpack.c.b16 %v1114, %v1113
  %v1125 = vpack.c.b16 %v1116, %v1115
  %v1126 = vpack.c.b16 %v1118, %v1117
  %1135 = vmatprep.subr.bf16.mxu0 0
  %1136 = vmatpush1.bf16.msra.mxu0 %v1119
  %1137 = vmatprep.subr.bf16.mxu0 0
  %1138 = vmatpush1.bf16.msra.mxu0 %v1120
  %1139 = vmatprep.subr.bf16.mxu0 0
  %1140 = vmatpush1.bf16.msra.mxu0 %v1121
  %1141 = vmatprep.subr.bf16.mxu0 0
  %1142 = vmatpush1.bf16.msra.mxu0 %v1122
  %1143 = vmatprep.subr.bf16.mxu0 0
  %1144 = vmatpush1.bf16.msra.mxu0 %v1123
  %1145 = vmatprep.subr.bf16.mxu0 0
  %1146 = vmatpush1.bf16.msra.mxu0 %v1124
  %1147 = vmatprep.subr.bf16.mxu0 0
  %1148 = vmatpush1.bf16.msra.mxu0 %v1125
  %1149 = vmatprep.subr.bf16.mxu0 0
  %1150 = vmatpush1.bf16.msra.mxu0 %v1126
  %1151 = vmatprep.subr.bf16.mxu0 0
  %1152 = vmatpush1.bf16.msra.mxu0 0
  %1153 = vmatprep.subr.bf16.mxu0 0
  %1154 = vmatpush1.bf16.msra.mxu0 0
  %1155 = vmatprep.subr.bf16.mxu0 0
  %1156 = vmatpush1.bf16.msra.mxu0 0
  %1157 = vmatprep.subr.bf16.mxu0 0
  %1158 = vmatpush1.bf16.msra.mxu0 0
  %1159 = vmatprep.subr.bf16.mxu0 0
  %1160 = vmatpush1.bf16.msra.mxu0 0
  %1161 = vmatprep.subr.bf16.mxu0 0
  %1162 = vmatpush1.bf16.msra.mxu0 0
  %1163 = vmatprep.subr.bf16.mxu0 0
  %1164 = vmatpush1.bf16.msra.mxu0 0
  %1165 = vmatprep.subr.bf16.mxu0 0
  %1166 = vmatpush1.bf16.msra.mxu0 0
  %1167 = vmatprep.mubr.bf16.mxu0 0
  %1168 = vmatmul.mubr.bf16.gmra.mrb[0].mxu0 %v1071
  %v1169 = vpop.f32.mrb[0].mxu0
  %v1170 = vadd.f32 0.0, %v1169
  %v1171 = vpop.f32.mrb[0].mxu0
  %v1172 = vpop.f32.mrb[0].mxu0
  %v1173 = vadd.f32 0.0, %v1172
  %v1174 = vpop.f32.mrb[0].mxu0
  %1175 = vmatprep.mubr.bf16.mxu0 0
  %1176 = vmatmul.mubr.bf16.gmra.mrb[0].mxu0 %v1072
  %v1177 = vpop.f32.mrb[0].mxu0
  %v1178 = vadd.f32 0.0, %v1177
  %v1179 = vpop.f32.mrb[0].mxu0
  %v1180 = vpop.f32.mrb[0].mxu0
  %v1181 = vadd.f32 0.0, %v1180
  %v1182 = vpop.f32.mrb[0].mxu0
  %1183 = vmatprep.mubr.bf16.mxu0 0
  %1184 = vmatmul.mubr.bf16.gmra.mrb[0].mxu0 %v1073
  %v1185 = vpop.f32.mrb[0].mxu0
  %v1186 = vadd.f32 0.0, %v1185
  %v1187 = vpop.f32.mrb[0].mxu0
  %v1188 = vpop.f32.mrb[0].mxu0
  %v1189 = vadd.f32 0.0, %v1188
  %v1190 = vpop.f32.mrb[0].mxu0
  %1191 = vmatprep.mubr.bf16.mxu0 0
  %1192 = vmatmul.mubr.bf16.gmra.mrb[0].mxu0 %v1074
  %v1193 = vpop.f32.mrb[0].mxu0
  %v1194 = vadd.f32 0.0, %v1193
  %v1195 = vpop.f32.mrb[0].mxu0
  %v1196 = vpop.f32.mrb[0].mxu0
  %v1197 = vadd.f32 0.0, %v1196
  %v1198 = vpop.f32.mrb[0].mxu0
  %1199 = vmatprep.mubr.bf16.mxu0 0
  %1200 = vmatmul.mubr.bf16.gmra.mrb[0].mxu0 %v1075
  %v1201 = vpop.f32.mrb[0].mxu0
  %v1202 = vadd.f32 0.0, %v1201
  %v1203 = vpop.f32.mrb[0].mxu0
  %v1204 = vpop.f32.mrb[0].mxu0
  %v1205 = vadd.f32 0.0, %v1204
  %v1206 = vpop.f32.mrb[0].mxu0
  %1207 = vmatprep.mubr.bf16.mxu0 0
  %1208 = vmatmul.mubr.bf16.gmra.mrb[0].mxu0 %v1076
  %v1209 = vpop.f32.mrb[0].mxu0
  %v1210 = vadd.f32 0.0, %v1209
  %v1211 = vpop.f32.mrb[0].mxu0
  %v1212 = vpop.f32.mrb[0].mxu0
  %v1213 = vadd.f32 0.0, %v1212
  %v1214 = vpop.f32.mrb[0].mxu0
  %1215 = vmatprep.mubr.bf16.mxu0 0
  %1216 = vmatmul.mubr.bf16.gmra.mrb[0].mxu0 %v1077
  %v1217 = vpop.f32.mrb[0].mxu0
  %v1218 = vadd.f32 0.0, %v1217
  %v1219 = vpop.f32.mrb[0].mxu0
  %v1220 = vpop.f32.mrb[0].mxu0
  %v1221 = vadd.f32 0.0, %v1220
  %v1222 = vpop.f32.mrb[0].mxu0
  %1223 = vmatprep.mubr.bf16.mxu0 0
  %1224 = vmatmul.mubr.bf16.gmra.mrb[0].mxu0 %v1078
  %v1225 = vpop.f32.mrb[0].mxu0
  %v1226 = vadd.f32 0.0, %v1225
  %v1227 = vpop.f32.mrb[0].mxu0
  %v1228 = vpop.f32.mrb[0].mxu0
  %v1229 = vadd.f32 0.0, %v1228
  %v1230 = vpop.f32.mrb[0].mxu0
  %1231 = vdwg.mxu0
  %v1232 = vadd.f32 %v989, %v1170
  %v1233 = vadd.f32 %v990, %v1173
  %v1234 = vadd.f32 %v991, %v1178
  %v1235 = vadd.f32 %v992, %v1181
  %v1236 = vadd.f32 %v993, %v1186
  %v1237 = vadd.f32 %v994, %v1189
  %v1238 = vadd.f32 %v995, %v1194
  %v1239 = vadd.f32 %v996, %v1197
  %v1240 = vadd.f32 %v997, %v1202
  %v1241 = vadd.f32 %v998, %v1205
  %v1242 = vadd.f32 %v999, %v1210
  %v1243 = vadd.f32 %v1000, %v1213
  %v1244 = vadd.f32 %v1001, %v1218
  %v1245 = vadd.f32 %v1002, %v1221
  %v1246 = vadd.f32 %v1003, %v1226
  %v1247 = vadd.f32 %v1004, %v1229
  %v1248 = vld [vmem:[%s1005] sm:$0xf]
  %v1249 = vld [vmem:[%s1005 + $0x4] sm:$0x1]
  %v1250 = vld [vmem:[%s1005 + $0x8] sm:$0xf]
  %v1251 = vld [vmem:[%s1005 + $0xc] sm:$0x1]
  %v1252 = vld [vmem:[%s1005 + $0x10] sm:$0xf]
  %v1253 = vld [vmem:[%s1005 + $0x14] sm:$0x1]
  %v1254 = vld [vmem:[%s1005 + $0x18] sm:$0xf]
  %v1255 = vld [vmem:[%s1005 + $0x1c] sm:$0x1]
  %v1256 = vld [vmem:[%s1005 + $0x20] sm:$0xf]
  %v1257 = vld [vmem:[%s1005 + $0x24] sm:$0x1]
  %v1258 = vld [vmem:[%s1005 + $0x28] sm:$0xf]
  %v1259 = vld [vmem:[%s1005 + $0x2c] sm:$0x1]
  %v1260 = vld [vmem:[%s1005 + $0x30] sm:$0xf]
  %v1261 = vld [vmem:[%s1005 + $0x34] sm:$0x1]
  %v1262 = vld [vmem:[%s1005 + $0x38] sm:$0xf]
  %v1263 = vld [vmem:[%s1005 + $0x3c] sm:$0x1]
  %v1264 = vld [vmem:[%s1005 + $0x50] sm:$0xf]
  %v1265 = vld [vmem:[%s1005 + $0x54] sm:$0x1]
  %v1266 = vld [vmem:[%s1005 + $0x58] sm:$0xf]
  %v1267 = vld [vmem:[%s1005 + $0x5c] sm:$0x1]
  %v1268 = vld [vmem:[%s1005 + $0x60] sm:$0xf]
  %v1269 = vld [vmem:[%s1005 + $0x64] sm:$0x1]
  %v1270 = vld [vmem:[%s1005 + $0x68] sm:$0xf]
  %v1271 = vld [vmem:[%s1005 + $0x6c] sm:$0x1]
  %v1272 = vld [vmem:[%s1005 + $0x70] sm:$0xf]
  %v1273 = vld [vmem:[%s1005 + $0x74] sm:$0x1]
  %v1274 = vld [vmem:[%s1005 + $0x78] sm:$0xf]
  %v1275 = vld [vmem:[%s1005 + $0x7c] sm:$0x1]
  %v1276 = vld [vmem:[%s1005 + $0x80] sm:$0xf]
  %v1277 = vld [vmem:[%s1005 + $0x84] sm:$0x1]
  %v1278 = vld [vmem:[%s1005 + $0x88] sm:$0xf]
  %v1279 = vld [vmem:[%s1005 + $0x8c] sm:$0x1]
  %v1281 = vshrl.u32 %v1248, 16
  %v1283 = vrot.slane %v1281, 4
  %v1284 = vshll.u32 %v1248, 16
  %v1286 = vrot.slane %v1284, 5
  %v1287 = vor.u32 %v1283, %v1286
  %v1288 = vrot.slane %v1287, 4
  %v1290 = vshll.u32 %v1249, 16
  %v1292 = vrot.slane %v1290, 5
  %v1293 = vsel %vm68, %v1288, %v1292
  %v1295 = vshrl.u32 %v1250, 16
  %v1297 = vrot.slane %v1295, 4
  %v1298 = vshll.u32 %v1250, 16
  %v1300 = vrot.slane %v1298, 5
  %v1301 = vor.u32 %v1297, %v1300
  %v1302 = vrot.slane %v1301, 4
  %v1304 = vshll.u32 %v1251, 16
  %v1306 = vrot.slane %v1304, 5
  %v1307 = vsel %vm68, %v1302, %v1306
  %v1309 = vshrl.u32 %v1252, 16
  %v1311 = vrot.slane %v1309, 4
  %v1312 = vshll.u32 %v1252, 16
  %v1314 = vrot.slane %v1312, 5
  %v1315 = vor.u32 %v1311, %v1314
  %v1316 = vrot.slane %v1315, 4
  %v1318 = vshll.u32 %v1253, 16
  %v1320 = vrot.slane %v1318, 5
  %v1321 = vsel %vm68, %v1316, %v1320
  %v1323 = vshrl.u32 %v1254, 16
  %v1325 = vrot.slane %v1323, 4
  %v1326 = vshll.u32 %v1254, 16
  %v1328 = vrot.slane %v1326, 5
  %v1329 = vor.u32 %v1325, %v1328
  %v1330 = vrot.slane %v1329, 4
  %v1332 = vshll.u32 %v1255, 16
  %v1334 = vrot.slane %v1332, 5
  %v1335 = vsel %vm68, %v1330, %v1334
  %v1337 = vshrl.u32 %v1256, 16
  %v1339 = vrot.slane %v1337, 4
  %v1340 = vshll.u32 %v1256, 16
  %v1342 = vrot.slane %v1340, 5
  %v1343 = vor.u32 %v1339, %v1342
  %v1344 = vrot.slane %v1343, 4
  %v1346 = vshll.u32 %v1257, 16
  %v1348 = vrot.slane %v1346, 5
  %v1349 = vsel %vm68, %v1344, %v1348
  %v1351 = vshrl.u32 %v1258, 16
  %v1353 = vrot.slane %v1351, 4
  %v1354 = vshll.u32 %v1258, 16
  %v1356 = vrot.slane %v1354, 5
  %v1357 = vor.u32 %v1353, %v1356
  %v1358 = vrot.slane %v1357, 4
  %v1360 = vshll.u32 %v1259, 16
  %v1362 = vrot.slane %v1360, 5
  %v1363 = vsel %vm68, %v1358, %v1362
  %v1365 = vshrl.u32 %v1260, 16
  %v1367 = vrot.slane %v1365, 4
  %v1368 = vshll.u32 %v1260, 16
  %v1370 = vrot.slane %v1368, 5
  %v1371 = vor.u32 %v1367, %v1370
  %v1372 = vrot.slane %v1371, 4
  %v1374 = vshll.u32 %v1261, 16
  %v1376 = vrot.slane %v1374, 5
  %v1377 = vsel %vm68, %v1372, %v1376
  %v1379 = vshrl.u32 %v1262, 16
  %v1381 = vrot.slane %v1379, 4
  %v1382 = vshll.u32 %v1262, 16
  %v1384 = vrot.slane %v1382, 5
  %v1385 = vor.u32 %v1381, %v1384
  %v1386 = vrot.slane %v1385, 4
  %v1388 = vshll.u32 %v1263, 16
  %v1390 = vrot.slane %v1388, 5
  %v1391 = vsel %vm68, %v1386, %v1390
  %v1393 = vshrl.u32 %v1264, 16
  %v1395 = vrot.slane %v1393, 4
  %v1396 = vshll.u32 %v1264, 16
  %v1398 = vrot.slane %v1396, 5
  %v1399 = vor.u32 %v1395, %v1398
  %v1400 = vrot.slane %v1399, 4
  %v1402 = vshll.u32 %v1265, 16
  %v1404 = vrot.slane %v1402, 5
  %v1405 = vsel %vm68, %v1400, %v1404
  %v1407 = vshrl.u32 %v1266, 16
  %v1409 = vrot.slane %v1407, 4
  %v1410 = vshll.u32 %v1266, 16
  %v1412 = vrot.slane %v1410, 5
  %v1413 = vor.u32 %v1409, %v1412
  %v1414 = vrot.slane %v1413, 4
  %v1416 = vshll.u32 %v1267, 16
  %v1418 = vrot.slane %v1416, 5
  %v1419 = vsel %vm68, %v1414, %v1418
  %v1421 = vshrl.u32 %v1268, 16
  %v1423 = vrot.slane %v1421, 4
  %v1424 = vshll.u32 %v1268, 16
  %v1426 = vrot.slane %v1424, 5
  %v1427 = vor.u32 %v1423, %v1426
  %v1428 = vrot.slane %v1427, 4
  %v1430 = vshll.u32 %v1269, 16
  %v1432 = vrot.slane %v1430, 5
  %v1433 = vsel %vm68, %v1428, %v1432
  %v1435 = vshrl.u32 %v1270, 16
  %v1437 = vrot.slane %v1435, 4
  %v1438 = vshll.u32 %v1270, 16
  %v1440 = vrot.slane %v1438, 5
  %v1441 = vor.u32 %v1437, %v1440
  %v1442 = vrot.slane %v1441, 4
  %v1444 = vshll.u32 %v1271, 16
  %v1446 = vrot.slane %v1444, 5
  %v1447 = vsel %vm68, %v1442, %v1446
  %v1449 = vshrl.u32 %v1272, 16
  %v1451 = vrot.slane %v1449, 4
  %v1452 = vshll.u32 %v1272, 16
  %v1454 = vrot.slane %v1452, 5
  %v1455 = vor.u32 %v1451, %v1454
  %v1456 = vrot.slane %v1455, 4
  %v1458 = vshll.u32 %v1273, 16
  %v1460 = vrot.slane %v1458, 5
  %v1461 = vsel %vm68, %v1456, %v1460
  %v1463 = vshrl.u32 %v1274, 16
  %v1465 = vrot.slane %v1463, 4
  %v1466 = vshll.u32 %v1274, 16
  %v1468 = vrot.slane %v1466, 5
  %v1469 = vor.u32 %v1465, %v1468
  %v1470 = vrot.slane %v1469, 4
  %v1472 = vshll.u32 %v1275, 16
  %v1474 = vrot.slane %v1472, 5
  %v1475 = vsel %vm68, %v1470, %v1474
  %v1477 = vshrl.u32 %v1276, 16
  %v1479 = vrot.slane %v1477, 4
  %v1480 = vshll.u32 %v1276, 16
  %v1482 = vrot.slane %v1480, 5
  %v1483 = vor.u32 %v1479, %v1482
  %v1484 = vrot.slane %v1483, 4
  %v1486 = vshll.u32 %v1277, 16
  %v1488 = vrot.slane %v1486, 5
  %v1489 = vsel %vm68, %v1484, %v1488
  %v1491 = vshrl.u32 %v1278, 16
  %v1493 = vrot.slane %v1491, 4
  %v1494 = vshll.u32 %v1278, 16
  %v1496 = vrot.slane %v1494, 5
  %v1497 = vor.u32 %v1493, %v1496
  %v1498 = vrot.slane %v1497, 4
  %v1500 = vshll.u32 %v1279, 16
  %v1502 = vrot.slane %v1500, 5
  %v1503 = vsel %vm68, %v1498, %v1502
  %s1504 = scalar_lea.vmem %s1, 256
  %v1505 = vld [vmem:[%s1504] sm:$0xf]
  %v1506 = vld [vmem:[%s1504 + $0x4] sm:$0xf]
  %v1507 = vld [vmem:[%s1504 + $0x8] sm:$0xf]
  %v1508 = vld [vmem:[%s1504 + $0xc] sm:$0xf]
  %v1509 = vld [vmem:[%s1504 + $0x10] sm:$0xf]
  %v1510 = vld [vmem:[%s1504 + $0x14] sm:$0xf]
  %v1511 = vld [vmem:[%s1504 + $0x18] sm:$0xf]
  %v1512 = vld [vmem:[%s1504 + $0x1c] sm:$0xf]
  %v1513 = vld [vmem:[%s1504 + $0x20] sm:$0xf]
  %v1514 = vld [vmem:[%s1504 + $0x24] sm:$0xf]
  %v1515 = vld [vmem:[%s1504 + $0x28] sm:$0xf]
  %v1516 = vld [vmem:[%s1504 + $0x2c] sm:$0xf]
  %v1517 = vld [vmem:[%s1504 + $0x30] sm:$0xf]
  %v1518 = vld [vmem:[%s1504 + $0x34] sm:$0xf]
  %v1519 = vld [vmem:[%s1504 + $0x38] sm:$0xf]
  %v1520 = vld [vmem:[%s1504 + $0x3c] sm:$0xf]
  %v1521 = vunpack.c.l.b16 %v1293
  %v1522 = vunpack.c.l.b16 %v1307
  %v1523 = vunpack.c.l.b16 %v1321
  %v1524 = vunpack.c.l.b16 %v1335
  %v1525 = vunpack.c.l.b16 %v1349
  %v1526 = vunpack.c.l.b16 %v1363
  %v1527 = vunpack.c.l.b16 %v1377
  %v1528 = vunpack.c.l.b16 %v1391
  %v1529 = vunpack.c.l.b16 %v1405
  %v1530 = vunpack.c.l.b16 %v1419
  %v1531 = vunpack.c.l.b16 %v1433
  %v1532 = vunpack.c.l.b16 %v1447
  %v1533 = vunpack.c.l.b16 %v1461
  %v1534 = vunpack.c.l.b16 %v1475
  %v1535 = vunpack.c.l.b16 %v1489
  %v1536 = vunpack.c.l.b16 %v1503
  %v1537 = vpack.c.b16 %v1522, %v1521
  %v1538 = vpack.c.b16 %v1524, %v1523
  %v1539 = vpack.c.b16 %v1526, %v1525
  %v1540 = vpack.c.b16 %v1528, %v1527
  %v1541 = vpack.c.b16 %v1530, %v1529
  %v1542 = vpack.c.b16 %v1532, %v1531
  %v1543 = vpack.c.b16 %v1534, %v1533
  %v1544 = vpack.c.b16 %v1536, %v1535
  %v1569 = vunpack.c.l.b16 %v1505
  %v1570 = vunpack.c.l.b16 %v1506
  %v1571 = vunpack.c.l.b16 %v1507
  %v1572 = vunpack.c.l.b16 %v1508
  %v1573 = vunpack.c.l.b16 %v1509
  %v1574 = vunpack.c.l.b16 %v1510
  %v1575 = vunpack.c.l.b16 %v1511
  %v1576 = vunpack.c.l.b16 %v1512
  %v1577 = vunpack.c.l.b16 %v1513
  %v1578 = vunpack.c.l.b16 %v1514
  %v1579 = vunpack.c.l.b16 %v1515
  %v1580 = vunpack.c.l.b16 %v1516
  %v1581 = vunpack.c.l.b16 %v1517
  %v1582 = vunpack.c.l.b16 %v1518
  %v1583 = vunpack.c.l.b16 %v1519
  %v1584 = vunpack.c.l.b16 %v1520
  %v1585 = vpack.c.b16 %v1570, %v1569
  %v1586 = vpack.c.b16 %v1572, %v1571
  %v1587 = vpack.c.b16 %v1574, %v1573
  %v1588 = vpack.c.b16 %v1576, %v1575
  %v1589 = vpack.c.b16 %v1578, %v1577
  %v1590 = vpack.c.b16 %v1580, %v1579
  %v1591 = vpack.c.b16 %v1582, %v1581
  %v1592 = vpack.c.b16 %v1584, %v1583
  %1601 = vmatprep.subr.bf16.mxu0 0
  %1602 = vmatpush1.bf16.msra.mxu0 %v1585
  %1603 = vmatprep.subr.bf16.mxu0 0
  %1604 = vmatpush1.bf16.msra.mxu0 %v1586
  %1605 = vmatprep.subr.bf16.mxu0 0
  %1606 = vmatpush1.bf16.msra.mxu0 %v1587
  %1607 = vmatprep.subr.bf16.mxu0 0
  %1608 = vmatpush1.bf16.msra.mxu0 %v1588
  %1609 = vmatprep.subr.bf16.mxu0 0
  %1610 = vmatpush1.bf16.msra.mxu0 %v1589
  %1611 = vmatprep.subr.bf16.mxu0 0
  %1612 = vmatpush1.bf16.msra.mxu0 %v1590
  %1613 = vmatprep.subr.bf16.mxu0 0
  %1614 = vmatpush1.bf16.msra.mxu0 %v1591
  %1615 = vmatprep.subr.bf16.mxu0 0
  %1616 = vmatpush1.bf16.msra.mxu0 %v1592
  %1617 = vmatprep.subr.bf16.mxu0 0
  %1618 = vmatpush1.bf16.msra.mxu0 0
  %1619 = vmatprep.subr.bf16.mxu0 0
  %1620 = vmatpush1.bf16.msra.mxu0 0
  %1621 = vmatprep.subr.bf16.mxu0 0
  %1622 = vmatpush1.bf16.msra.mxu0 0
  %1623 = vmatprep.subr.bf16.mxu0 0
  %1624 = vmatpush1.bf16.msra.mxu0 0
  %1625 = vmatprep.subr.bf16.mxu0 0
  %1626 = vmatpush1.bf16.msra.mxu0 0
  %1627 = vmatprep.subr.bf16.mxu0 0
  %1628 = vmatpush1.bf16.msra.mxu0 0
  %1629 = vmatprep.subr.bf16.mxu0 0
  %1630 = vmatpush1.bf16.msra.mxu0 0
  %1631 = vmatprep.subr.bf16.mxu0 0
  %1632 = vmatpush1.bf16.msra.mxu0 0
  %1633 = vmatprep.mubr.bf16.mxu0 0
  %1634 = vmatmul.mubr.bf16.gmra.mrb[0].mxu0 %v1537
  %v1635 = vpop.f32.mrb[0].mxu0
  %v1636 = vadd.f32 0.0, %v1635
  %v1637 = vpop.f32.mrb[0].mxu0
  %v1638 = vpop.f32.mrb[0].mxu0
  %v1639 = vadd.f32 0.0, %v1638
  %v1640 = vpop.f32.mrb[0].mxu0
  %1641 = vmatprep.mubr.bf16.mxu0 0
  %1642 = vmatmul.mubr.bf16.gmra.mrb[0].mxu0 %v1538
  %v1643 = vpop.f32.mrb[0].mxu0
  %v1644 = vadd.f32 0.0, %v1643
  %v1645 = vpop.f32.mrb[0].mxu0
  %v1646 = vpop.f32.mrb[0].mxu0
  %v1647 = vadd.f32 0.0, %v1646
  %v1648 = vpop.f32.mrb[0].mxu0
  %1649 = vmatprep.mubr.bf16.mxu0 0
  %1650 = vmatmul.mubr.bf16.gmra.mrb[0].mxu0 %v1539
  %v1651 = vpop.f32.mrb[0].mxu0
  %v1652 = vadd.f32 0.0, %v1651
  %v1653 = vpop.f32.mrb[0].mxu0
  %v1654 = vpop.f32.mrb[0].mxu0
  %v1655 = vadd.f32 0.0, %v1654
  %v1656 = vpop.f32.mrb[0].mxu0
  %1657 = vmatprep.mubr.bf16.mxu0 0
  %1658 = vmatmul.mubr.bf16.gmra.mrb[0].mxu0 %v1540
  %v1659 = vpop.f32.mrb[0].mxu0
  %v1660 = vadd.f32 0.0, %v1659
  %v1661 = vpop.f32.mrb[0].mxu0
  %v1662 = vpop.f32.mrb[0].mxu0
  %v1663 = vadd.f32 0.0, %v1662
  %v1664 = vpop.f32.mrb[0].mxu0
  %1665 = vmatprep.mubr.bf16.mxu0 0
  %1666 = vmatmul.mubr.bf16.gmra.mrb[0].mxu0 %v1541
  %v1667 = vpop.f32.mrb[0].mxu0
  %v1668 = vadd.f32 0.0, %v1667
  %v1669 = vpop.f32.mrb[0].mxu0
  %v1670 = vpop.f32.mrb[0].mxu0
  %v1671 = vadd.f32 0.0, %v1670
  %v1672 = vpop.f32.mrb[0].mxu0
  %1673 = vmatprep.mubr.bf16.mxu0 0
  %1674 = vmatmul.mubr.bf16.gmra.mrb[0].mxu0 %v1542
  %v1675 = vpop.f32.mrb[0].mxu0
  %v1676 = vadd.f32 0.0, %v1675
  %v1677 = vpop.f32.mrb[0].mxu0
  %v1678 = vpop.f32.mrb[0].mxu0
  %v1679 = vadd.f32 0.0, %v1678
  %v1680 = vpop.f32.mrb[0].mxu0
  %1681 = vmatprep.mubr.bf16.mxu0 0
  %1682 = vmatmul.mubr.bf16.gmra.mrb[0].mxu0 %v1543
  %v1683 = vpop.f32.mrb[0].mxu0
  %v1684 = vadd.f32 0.0, %v1683
  %v1685 = vpop.f32.mrb[0].mxu0
  %v1686 = vpop.f32.mrb[0].mxu0
  %v1687 = vadd.f32 0.0, %v1686
  %v1688 = vpop.f32.mrb[0].mxu0
  %1689 = vmatprep.mubr.bf16.mxu0 0
  %1690 = vmatmul.mubr.bf16.gmra.mrb[0].mxu0 %v1544
  %v1691 = vpop.f32.mrb[0].mxu0
  %v1692 = vadd.f32 0.0, %v1691
  %v1693 = vpop.f32.mrb[0].mxu0
  %v1694 = vpop.f32.mrb[0].mxu0
  %v1695 = vadd.f32 0.0, %v1694
  %v1696 = vpop.f32.mrb[0].mxu0
  %1697 = vdwg.mxu0
  %v1698 = vadd.f32 %v1232, %v1636
  %v1699 = vadd.f32 %v1233, %v1639
  %v1700 = vadd.f32 %v1234, %v1644
  %v1701 = vadd.f32 %v1235, %v1647
  %v1702 = vadd.f32 %v1236, %v1652
  %v1703 = vadd.f32 %v1237, %v1655
  %v1704 = vadd.f32 %v1238, %v1660
  %v1705 = vadd.f32 %v1239, %v1663
  %v1706 = vadd.f32 %v1240, %v1668
  %v1707 = vadd.f32 %v1241, %v1671
  %v1708 = vadd.f32 %v1242, %v1676
  %v1709 = vadd.f32 %v1243, %v1679
  %v1710 = vadd.f32 %v1244, %v1684
  %v1711 = vadd.f32 %v1245, %v1687
  %v1712 = vadd.f32 %v1246, %v1692
  %v1713 = vadd.f32 %v1247, %v1695
  %v1714 = vld [vmem:[%s1005] sm:$0xe]
  %v1715 = vld [vmem:[%s1005 + $0x8] sm:$0xe]
  %v1716 = vld [vmem:[%s1005 + $0x10] sm:$0xe]
  %v1717 = vld [vmem:[%s1005 + $0x18] sm:$0xe]
  %v1718 = vld [vmem:[%s1005 + $0x20] sm:$0xe]
  %v1719 = vld [vmem:[%s1005 + $0x28] sm:$0xe]
  %v1720 = vld [vmem:[%s1005 + $0x30] sm:$0xe]
  %v1721 = vld [vmem:[%s1005 + $0x38] sm:$0xe]
  %v1722 = vld [vmem:[%s1005 + $0x50] sm:$0xe]
  %v1723 = vld [vmem:[%s1005 + $0x58] sm:$0xe]
  %v1724 = vld [vmem:[%s1005 + $0x60] sm:$0xe]
  %v1725 = vld [vmem:[%s1005 + $0x68] sm:$0xe]
  %v1726 = vld [vmem:[%s1005 + $0x70] sm:$0xe]
  %v1727 = vld [vmem:[%s1005 + $0x78] sm:$0xe]
  %v1728 = vld [vmem:[%s1005 + $0x80] sm:$0xe]
  %v1729 = vld [vmem:[%s1005 + $0x88] sm:$0xe]
  %v1762 = vrot.slane %v1714, 5
  %v1763 = vrot.slane %v1762, 4
  %v1764 = vrot.slane %v1249, 5
  %v1765 = vsel %vm730, %v1763, %v1764
  %v1766 = vrot.slane %v1715, 5
  %v1767 = vrot.slane %v1766, 4
  %v1768 = vrot.slane %v1251, 5
  %v1769 = vsel %vm730, %v1767, %v1768
  %v1770 = vrot.slane %v1716, 5
  %v1771 = vrot.slane %v1770, 4
  %v1772 = vrot.slane %v1253, 5
  %v1773 = vsel %vm730, %v1771, %v1772
  %v1774 = vrot.slane %v1717, 5
  %v1775 = vrot.slane %v1774, 4
  %v1776 = vrot.slane %v1255, 5
  %v1777 = vsel %vm730, %v1775, %v1776
  %v1778 = vrot.slane %v1718, 5
  %v1779 = vrot.slane %v1778, 4
  %v1780 = vrot.slane %v1257, 5
  %v1781 = vsel %vm730, %v1779, %v1780
  %v1782 = vrot.slane %v1719, 5
  %v1783 = vrot.slane %v1782, 4
  %v1784 = vrot.slane %v1259, 5
  %v1785 = vsel %vm730, %v1783, %v1784
  %v1786 = vrot.slane %v1720, 5
  %v1787 = vrot.slane %v1786, 4
  %v1788 = vrot.slane %v1261, 5
  %v1789 = vsel %vm730, %v1787, %v1788
  %v1790 = vrot.slane %v1721, 5
  %v1791 = vrot.slane %v1790, 4
  %v1792 = vrot.slane %v1263, 5
  %v1793 = vsel %vm730, %v1791, %v1792
  %v1794 = vrot.slane %v1722, 5
  %v1795 = vrot.slane %v1794, 4
  %v1796 = vrot.slane %v1265, 5
  %v1797 = vsel %vm730, %v1795, %v1796
  %v1798 = vrot.slane %v1723, 5
  %v1799 = vrot.slane %v1798, 4
  %v1800 = vrot.slane %v1267, 5
  %v1801 = vsel %vm730, %v1799, %v1800
  %v1802 = vrot.slane %v1724, 5
  %v1803 = vrot.slane %v1802, 4
  %v1804 = vrot.slane %v1269, 5
  %v1805 = vsel %vm730, %v1803, %v1804
  %v1806 = vrot.slane %v1725, 5
  %v1807 = vrot.slane %v1806, 4
  %v1808 = vrot.slane %v1271, 5
  %v1809 = vsel %vm730, %v1807, %v1808
  %v1810 = vrot.slane %v1726, 5
  %v1811 = vrot.slane %v1810, 4
  %v1812 = vrot.slane %v1273, 5
  %v1813 = vsel %vm730, %v1811, %v1812
  %v1814 = vrot.slane %v1727, 5
  %v1815 = vrot.slane %v1814, 4
  %v1816 = vrot.slane %v1275, 5
  %v1817 = vsel %vm730, %v1815, %v1816
  %v1818 = vrot.slane %v1728, 5
  %v1819 = vrot.slane %v1818, 4
  %v1820 = vrot.slane %v1277, 5
  %v1821 = vsel %vm730, %v1819, %v1820
  %v1822 = vrot.slane %v1729, 5
  %v1823 = vrot.slane %v1822, 4
  %v1824 = vrot.slane %v1279, 5
  %v1825 = vsel %vm730, %v1823, %v1824
  %s1826 = scalar_lea.vmem %s1, 320
  %v1827 = vld [vmem:[%s1826] sm:$0xf]
  %v1828 = vld [vmem:[%s1826 + $0x4] sm:$0xf]
  %v1829 = vld [vmem:[%s1826 + $0x8] sm:$0xf]
  %v1830 = vld [vmem:[%s1826 + $0xc] sm:$0xf]
  %v1831 = vld [vmem:[%s1826 + $0x10] sm:$0xf]
  %v1832 = vld [vmem:[%s1826 + $0x14] sm:$0xf]
  %v1833 = vld [vmem:[%s1826 + $0x18] sm:$0xf]
  %v1834 = vld [vmem:[%s1826 + $0x1c] sm:$0xf]
  %v1835 = vld [vmem:[%s1826 + $0x20] sm:$0xf]
  %v1836 = vld [vmem:[%s1826 + $0x24] sm:$0xf]
  %v1837 = vld [vmem:[%s1826 + $0x28] sm:$0xf]
  %v1838 = vld [vmem:[%s1826 + $0x2c] sm:$0xf]
  %v1839 = vld [vmem:[%s1826 + $0x30] sm:$0xf]
  %v1840 = vld [vmem:[%s1826 + $0x34] sm:$0xf]
  %v1841 = vld [vmem:[%s1826 + $0x38] sm:$0xf]
  %v1842 = vld [vmem:[%s1826 + $0x3c] sm:$0xf]
  %v1843 = vunpack.c.l.b16 %v1765
  %v1844 = vunpack.c.l.b16 %v1769
  %v1845 = vunpack.c.l.b16 %v1773
  %v1846 = vunpack.c.l.b16 %v1777
  %v1847 = vunpack.c.l.b16 %v1781
  %v1848 = vunpack.c.l.b16 %v1785
  %v1849 = vunpack.c.l.b16 %v1789
  %v1850 = vunpack.c.l.b16 %v1793
  %v1851 = vunpack.c.l.b16 %v1797
  %v1852 = vunpack.c.l.b16 %v1801
  %v1853 = vunpack.c.l.b16 %v1805
  %v1854 = vunpack.c.l.b16 %v1809
  %v1855 = vunpack.c.l.b16 %v1813
  %v1856 = vunpack.c.l.b16 %v1817
  %v1857 = vunpack.c.l.b16 %v1821
  %v1858 = vunpack.c.l.b16 %v1825
  %v1859 = vpack.c.b16 %v1844, %v1843
  %v1860 = vpack.c.b16 %v1846, %v1845
  %v1861 = vpack.c.b16 %v1848, %v1847
  %v1862 = vpack.c.b16 %v1850, %v1849
  %v1863 = vpack.c.b16 %v1852, %v1851
  %v1864 = vpack.c.b16 %v1854, %v1853
  %v1865 = vpack.c.b16 %v1856, %v1855
  %v1866 = vpack.c.b16 %v1858, %v1857
  %v1891 = vunpack.c.l.b16 %v1827
  %v1892 = vunpack.c.l.b16 %v1828
  %v1893 = vunpack.c.l.b16 %v1829
  %v1894 = vunpack.c.l.b16 %v1830
  %v1895 = vunpack.c.l.b16 %v1831
  %v1896 = vunpack.c.l.b16 %v1832
  %v1897 = vunpack.c.l.b16 %v1833
  %v1898 = vunpack.c.l.b16 %v1834
  %v1899 = vunpack.c.l.b16 %v1835
  %v1900 = vunpack.c.l.b16 %v1836
  %v1901 = vunpack.c.l.b16 %v1837
  %v1902 = vunpack.c.l.b16 %v1838
  %v1903 = vunpack.c.l.b16 %v1839
  %v1904 = vunpack.c.l.b16 %v1840
  %v1905 = vunpack.c.l.b16 %v1841
  %v1906 = vunpack.c.l.b16 %v1842
  %v1907 = vpack.c.b16 %v1892, %v1891
  %v1908 = vpack.c.b16 %v1894, %v1893
  %v1909 = vpack.c.b16 %v1896, %v1895
  %v1910 = vpack.c.b16 %v1898, %v1897
  %v1911 = vpack.c.b16 %v1900, %v1899
  %v1912 = vpack.c.b16 %v1902, %v1901
  %v1913 = vpack.c.b16 %v1904, %v1903
  %v1914 = vpack.c.b16 %v1906, %v1905
  %1923 = vmatprep.subr.bf16.mxu0 0
  %1924 = vmatpush1.bf16.msra.mxu0 %v1907
  %1925 = vmatprep.subr.bf16.mxu0 0
  %1926 = vmatpush1.bf16.msra.mxu0 %v1908
  %1927 = vmatprep.subr.bf16.mxu0 0
  %1928 = vmatpush1.bf16.msra.mxu0 %v1909
  %1929 = vmatprep.subr.bf16.mxu0 0
  %1930 = vmatpush1.bf16.msra.mxu0 %v1910
  %1931 = vmatprep.subr.bf16.mxu0 0
  %1932 = vmatpush1.bf16.msra.mxu0 %v1911
  %1933 = vmatprep.subr.bf16.mxu0 0
  %1934 = vmatpush1.bf16.msra.mxu0 %v1912
  %1935 = vmatprep.subr.bf16.mxu0 0
  %1936 = vmatpush1.bf16.msra.mxu0 %v1913
  %1937 = vmatprep.subr.bf16.mxu0 0
  %1938 = vmatpush1.bf16.msra.mxu0 %v1914
  %1939 = vmatprep.subr.bf16.mxu0 0
  %1940 = vmatpush1.bf16.msra.mxu0 0
  %1941 = vmatprep.subr.bf16.mxu0 0
  %1942 = vmatpush1.bf16.msra.mxu0 0
  %1943 = vmatprep.subr.bf16.mxu0 0
  %1944 = vmatpush1.bf16.msra.mxu0 0
  %1945 = vmatprep.subr.bf16.mxu0 0
  %1946 = vmatpush1.bf16.msra.mxu0 0
  %1947 = vmatprep.subr.bf16.mxu0 0
  %1948 = vmatpush1.bf16.msra.mxu0 0
  %1949 = vmatprep.subr.bf16.mxu0 0
  %1950 = vmatpush1.bf16.msra.mxu0 0
  %1951 = vmatprep.subr.bf16.mxu0 0
  %1952 = vmatpush1.bf16.msra.mxu0 0
  %1953 = vmatprep.subr.bf16.mxu0 0
  %1954 = vmatpush1.bf16.msra.mxu0 0
  %1955 = vmatprep.mubr.bf16.mxu0 0
  %1956 = vmatmul.mubr.bf16.gmra.mrb[0].mxu0 %v1859
  %v1957 = vpop.f32.mrb[0].mxu0
  %v1958 = vadd.f32 0.0, %v1957
  %v1959 = vpop.f32.mrb[0].mxu0
  %v1960 = vpop.f32.mrb[0].mxu0
  %v1961 = vadd.f32 0.0, %v1960
  %v1962 = vpop.f32.mrb[0].mxu0
  %1963 = vmatprep.mubr.bf16.mxu0 0
  %1964 = vmatmul.mubr.bf16.gmra.mrb[0].mxu0 %v1860
  %v1965 = vpop.f32.mrb[0].mxu0
  %v1966 = vadd.f32 0.0, %v1965
  %v1967 = vpop.f32.mrb[0].mxu0
  %v1968 = vpop.f32.mrb[0].mxu0
  %v1969 = vadd.f32 0.0, %v1968
  %v1970 = vpop.f32.mrb[0].mxu0
  %1971 = vmatprep.mubr.bf16.mxu0 0
  %1972 = vmatmul.mubr.bf16.gmra.mrb[0].mxu0 %v1861
  %v1973 = vpop.f32.mrb[0].mxu0
  %v1974 = vadd.f32 0.0, %v1973
  %v1975 = vpop.f32.mrb[0].mxu0
  %v1976 = vpop.f32.mrb[0].mxu0
  %v1977 = vadd.f32 0.0, %v1976
  %v1978 = vpop.f32.mrb[0].mxu0
  %1979 = vmatprep.mubr.bf16.mxu0 0
  %1980 = vmatmul.mubr.bf16.gmra.mrb[0].mxu0 %v1862
  %v1981 = vpop.f32.mrb[0].mxu0
  %v1982 = vadd.f32 0.0, %v1981
  %v1983 = vpop.f32.mrb[0].mxu0
  %v1984 = vpop.f32.mrb[0].mxu0
  %v1985 = vadd.f32 0.0, %v1984
  %v1986 = vpop.f32.mrb[0].mxu0
  %1987 = vmatprep.mubr.bf16.mxu0 0
  %1988 = vmatmul.mubr.bf16.gmra.mrb[0].mxu0 %v1863
  %v1989 = vpop.f32.mrb[0].mxu0
  %v1990 = vadd.f32 0.0, %v1989
  %v1991 = vpop.f32.mrb[0].mxu0
  %v1992 = vpop.f32.mrb[0].mxu0
  %v1993 = vadd.f32 0.0, %v1992
  %v1994 = vpop.f32.mrb[0].mxu0
  %1995 = vmatprep.mubr.bf16.mxu0 0
  %1996 = vmatmul.mubr.bf16.gmra.mrb[0].mxu0 %v1864
  %v1997 = vpop.f32.mrb[0].mxu0
  %v1998 = vadd.f32 0.0, %v1997
  %v1999 = vpop.f32.mrb[0].mxu0
  %v2000 = vpop.f32.mrb[0].mxu0
  %v2001 = vadd.f32 0.0, %v2000
  %v2002 = vpop.f32.mrb[0].mxu0
  %2003 = vmatprep.mubr.bf16.mxu0 0
  %2004 = vmatmul.mubr.bf16.gmra.mrb[0].mxu0 %v1865
  %v2005 = vpop.f32.mrb[0].mxu0
  %v2006 = vadd.f32 0.0, %v2005
  %v2007 = vpop.f32.mrb[0].mxu0
  %v2008 = vpop.f32.mrb[0].mxu0
  %v2009 = vadd.f32 0.0, %v2008
  %v2010 = vpop.f32.mrb[0].mxu0
  %2011 = vmatprep.mubr.bf16.mxu0 0
  %2012 = vmatmul.mubr.bf16.gmra.mrb[0].mxu0 %v1866
  %v2013 = vpop.f32.mrb[0].mxu0
  %v2014 = vadd.f32 0.0, %v2013
  %v2015 = vpop.f32.mrb[0].mxu0
  %v2016 = vpop.f32.mrb[0].mxu0
  %v2017 = vadd.f32 0.0, %v2016
  %v2018 = vpop.f32.mrb[0].mxu0
  %2019 = vdwg.mxu0
  %v2020 = vadd.f32 %v1698, %v1958
  %v2021 = vadd.f32 %v1699, %v1961
  %v2022 = vadd.f32 %v1700, %v1966
  %v2023 = vadd.f32 %v1701, %v1969
  %v2024 = vadd.f32 %v1702, %v1974
  %v2025 = vadd.f32 %v1703, %v1977
  %v2026 = vadd.f32 %v1704, %v1982
  %v2027 = vadd.f32 %v1705, %v1985
  %v2028 = vadd.f32 %v1706, %v1990
  %v2029 = vadd.f32 %v1707, %v1993
  %v2030 = vadd.f32 %v1708, %v1998
  %v2031 = vadd.f32 %v1709, %v2001
  %v2032 = vadd.f32 %v1710, %v2006
  %v2033 = vadd.f32 %v1711, %v2009
  %v2034 = vadd.f32 %v1712, %v2014
  %v2035 = vadd.f32 %v1713, %v2017
  %s2036 = scalar_lea.vmem %s0, 16
  %v2037 = vld [vmem:[%s2036] sm:$0xf]
  %v2038 = vld [vmem:[%s2036 + $0x8] sm:$0xf]
  %v2039 = vld [vmem:[%s2036 + $0x10] sm:$0xf]
  %v2040 = vld [vmem:[%s2036 + $0x18] sm:$0xf]
  %v2041 = vld [vmem:[%s2036 + $0x20] sm:$0xf]
  %v2042 = vld [vmem:[%s2036 + $0x28] sm:$0xf]
  %v2043 = vld [vmem:[%s2036 + $0x30] sm:$0xf]
  %v2044 = vld [vmem:[%s2036 + $0x38] sm:$0xf]
  %v2045 = vld [vmem:[%s2036 + $0x50] sm:$0xf]
  %v2046 = vld [vmem:[%s2036 + $0x58] sm:$0xf]
  %v2047 = vld [vmem:[%s2036 + $0x60] sm:$0xf]
  %v2048 = vld [vmem:[%s2036 + $0x68] sm:$0xf]
  %v2049 = vld [vmem:[%s2036 + $0x70] sm:$0xf]
  %v2050 = vld [vmem:[%s2036 + $0x78] sm:$0xf]
  %v2051 = vld [vmem:[%s2036 + $0x80] sm:$0xf]
  %v2052 = vld [vmem:[%s2036 + $0x88] sm:$0xf]
  %s2053 = scalar_lea.vmem %s1, 384
  %v2054 = vld [vmem:[%s2053] sm:$0xf]
  %v2055 = vld [vmem:[%s2053 + $0x4] sm:$0xf]
  %v2056 = vld [vmem:[%s2053 + $0x8] sm:$0xf]
  %v2057 = vld [vmem:[%s2053 + $0xc] sm:$0xf]
  %v2058 = vld [vmem:[%s2053 + $0x10] sm:$0xf]
  %v2059 = vld [vmem:[%s2053 + $0x14] sm:$0xf]
  %v2060 = vld [vmem:[%s2053 + $0x18] sm:$0xf]
  %v2061 = vld [vmem:[%s2053 + $0x1c] sm:$0xf]
  %v2062 = vld [vmem:[%s2053 + $0x20] sm:$0xf]
  %v2063 = vld [vmem:[%s2053 + $0x24] sm:$0xf]
  %v2064 = vld [vmem:[%s2053 + $0x28] sm:$0xf]
  %v2065 = vld [vmem:[%s2053 + $0x2c] sm:$0xf]
  %v2066 = vld [vmem:[%s2053 + $0x30] sm:$0xf]
  %v2067 = vld [vmem:[%s2053 + $0x34] sm:$0xf]
  %v2068 = vld [vmem:[%s2053 + $0x38] sm:$0xf]
  %v2069 = vld [vmem:[%s2053 + $0x3c] sm:$0xf]
  %v2086 = vunpack.c.l.b16 %v2037
  %v2087 = vunpack.c.l.b16 %v2038
  %v2088 = vunpack.c.l.b16 %v2039
  %v2089 = vunpack.c.l.b16 %v2040
  %v2090 = vunpack.c.l.b16 %v2041
  %v2091 = vunpack.c.l.b16 %v2042
  %v2092 = vunpack.c.l.b16 %v2043
  %v2093 = vunpack.c.l.b16 %v2044
  %v2094 = vunpack.c.l.b16 %v2045
  %v2095 = vunpack.c.l.b16 %v2046
  %v2096 = vunpack.c.l.b16 %v2047
  %v2097 = vunpack.c.l.b16 %v2048
  %v2098 = vunpack.c.l.b16 %v2049
  %v2099 = vunpack.c.l.b16 %v2050
  %v2100 = vunpack.c.l.b16 %v2051
  %v2101 = vunpack.c.l.b16 %v2052
  %v2102 = vpack.c.b16 %v2087, %v2086
  %v2103 = vpack.c.b16 %v2089, %v2088
  %v2104 = vpack.c.b16 %v2091, %v2090
  %v2105 = vpack.c.b16 %v2093, %v2092
  %v2106 = vpack.c.b16 %v2095, %v2094
  %v2107 = vpack.c.b16 %v2097, %v2096
  %v2108 = vpack.c.b16 %v2099, %v2098
  %v2109 = vpack.c.b16 %v2101, %v2100
  %v2134 = vunpack.c.l.b16 %v2054
  %v2135 = vunpack.c.l.b16 %v2055
  %v2136 = vunpack.c.l.b16 %v2056
  %v2137 = vunpack.c.l.b16 %v2057
  %v2138 = vunpack.c.l.b16 %v2058
  %v2139 = vunpack.c.l.b16 %v2059
  %v2140 = vunpack.c.l.b16 %v2060
  %v2141 = vunpack.c.l.b16 %v2061
  %v2142 = vunpack.c.l.b16 %v2062
  %v2143 = vunpack.c.l.b16 %v2063
  %v2144 = vunpack.c.l.b16 %v2064
  %v2145 = vunpack.c.l.b16 %v2065
  %v2146 = vunpack.c.l.b16 %v2066
  %v2147 = vunpack.c.l.b16 %v2067
  %v2148 = vunpack.c.l.b16 %v2068
  %v2149 = vunpack.c.l.b16 %v2069
  %v2150 = vpack.c.b16 %v2135, %v2134
  %v2151 = vpack.c.b16 %v2137, %v2136
  %v2152 = vpack.c.b16 %v2139, %v2138
  %v2153 = vpack.c.b16 %v2141, %v2140
  %v2154 = vpack.c.b16 %v2143, %v2142
  %v2155 = vpack.c.b16 %v2145, %v2144
  %v2156 = vpack.c.b16 %v2147, %v2146
  %v2157 = vpack.c.b16 %v2149, %v2148
  %2166 = vmatprep.subr.bf16.mxu0 0
  %2167 = vmatpush1.bf16.msra.mxu0 %v2150
  %2168 = vmatprep.subr.bf16.mxu0 0
  %2169 = vmatpush1.bf16.msra.mxu0 %v2151
  %2170 = vmatprep.subr.bf16.mxu0 0
  %2171 = vmatpush1.bf16.msra.mxu0 %v2152
  %2172 = vmatprep.subr.bf16.mxu0 0
  %2173 = vmatpush1.bf16.msra.mxu0 %v2153
  %2174 = vmatprep.subr.bf16.mxu0 0
  %2175 = vmatpush1.bf16.msra.mxu0 %v2154
  %2176 = vmatprep.subr.bf16.mxu0 0
  %2177 = vmatpush1.bf16.msra.mxu0 %v2155
  %2178 = vmatprep.subr.bf16.mxu0 0
  %2179 = vmatpush1.bf16.msra.mxu0 %v2156
  %2180 = vmatprep.subr.bf16.mxu0 0
  %2181 = vmatpush1.bf16.msra.mxu0 %v2157
  %2182 = vmatprep.subr.bf16.mxu0 0
  %2183 = vmatpush1.bf16.msra.mxu0 0
  %2184 = vmatprep.subr.bf16.mxu0 0
  %2185 = vmatpush1.bf16.msra.mxu0 0
  %2186 = vmatprep.subr.bf16.mxu0 0
  %2187 = vmatpush1.bf16.msra.mxu0 0
  %2188 = vmatprep.subr.bf16.mxu0 0
  %2189 = vmatpush1.bf16.msra.mxu0 0
  %2190 = vmatprep.subr.bf16.mxu0 0
  %2191 = vmatpush1.bf16.msra.mxu0 0
  %2192 = vmatprep.subr.bf16.mxu0 0
  %2193 = vmatpush1.bf16.msra.mxu0 0
  %2194 = vmatprep.subr.bf16.mxu0 0
  %2195 = vmatpush1.bf16.msra.mxu0 0
  %2196 = vmatprep.subr.bf16.mxu0 0
  %2197 = vmatpush1.bf16.msra.mxu0 0
  %2198 = vmatprep.mubr.bf16.mxu0 0
  %2199 = vmatmul.mubr.bf16.gmra.mrb[0].mxu0 %v2102
  %v2200 = vpop.f32.mrb[0].mxu0
  %v2201 = vadd.f32 0.0, %v2200
  %v2202 = vpop.f32.mrb[0].mxu0
  %v2203 = vpop.f32.mrb[0].mxu0
  %v2204 = vadd.f32 0.0, %v2203
  %v2205 = vpop.f32.mrb[0].mxu0
  %2206 = vmatprep.mubr.bf16.mxu0 0
  %2207 = vmatmul.mubr.bf16.gmra.mrb[0].mxu0 %v2103
  %v2208 = vpop.f32.mrb[0].mxu0
  %v2209 = vadd.f32 0.0, %v2208
  %v2210 = vpop.f32.mrb[0].mxu0
  %v2211 = vpop.f32.mrb[0].mxu0
  %v2212 = vadd.f32 0.0, %v2211
  %v2213 = vpop.f32.mrb[0].mxu0
  %2214 = vmatprep.mubr.bf16.mxu0 0
  %2215 = vmatmul.mubr.bf16.gmra.mrb[0].mxu0 %v2104
  %v2216 = vpop.f32.mrb[0].mxu0
  %v2217 = vadd.f32 0.0, %v2216
  %v2218 = vpop.f32.mrb[0].mxu0
  %v2219 = vpop.f32.mrb[0].mxu0
  %v2220 = vadd.f32 0.0, %v2219
  %v2221 = vpop.f32.mrb[0].mxu0
  %2222 = vmatprep.mubr.bf16.mxu0 0
  %2223 = vmatmul.mubr.bf16.gmra.mrb[0].mxu0 %v2105
  %v2224 = vpop.f32.mrb[0].mxu0
  %v2225 = vadd.f32 0.0, %v2224
  %v2226 = vpop.f32.mrb[0].mxu0
  %v2227 = vpop.f32.mrb[0].mxu0
  %v2228 = vadd.f32 0.0, %v2227
  %v2229 = vpop.f32.mrb[0].mxu0
  %2230 = vmatprep.mubr.bf16.mxu0 0
  %2231 = vmatmul.mubr.bf16.gmra.mrb[0].mxu0 %v2106
  %v2232 = vpop.f32.mrb[0].mxu0
  %v2233 = vadd.f32 0.0, %v2232
  %v2234 = vpop.f32.mrb[0].mxu0
  %v2235 = vpop.f32.mrb[0].mxu0
  %v2236 = vadd.f32 0.0, %v2235
  %v2237 = vpop.f32.mrb[0].mxu0
  %2238 = vmatprep.mubr.bf16.mxu0 0
  %2239 = vmatmul.mubr.bf16.gmra.mrb[0].mxu0 %v2107
  %v2240 = vpop.f32.mrb[0].mxu0
  %v2241 = vadd.f32 0.0, %v2240
  %v2242 = vpop.f32.mrb[0].mxu0
  %v2243 = vpop.f32.mrb[0].mxu0
  %v2244 = vadd.f32 0.0, %v2243
  %v2245 = vpop.f32.mrb[0].mxu0
  %2246 = vmatprep.mubr.bf16.mxu0 0
  %2247 = vmatmul.mubr.bf16.gmra.mrb[0].mxu0 %v2108
  %v2248 = vpop.f32.mrb[0].mxu0
  %v2249 = vadd.f32 0.0, %v2248
  %v2250 = vpop.f32.mrb[0].mxu0
  %v2251 = vpop.f32.mrb[0].mxu0
  %v2252 = vadd.f32 0.0, %v2251
  %v2253 = vpop.f32.mrb[0].mxu0
  %2254 = vmatprep.mubr.bf16.mxu0 0
  %2255 = vmatmul.mubr.bf16.gmra.mrb[0].mxu0 %v2109
  %v2256 = vpop.f32.mrb[0].mxu0
  %v2257 = vadd.f32 0.0, %v2256
  %v2258 = vpop.f32.mrb[0].mxu0
  %v2259 = vpop.f32.mrb[0].mxu0
  %v2260 = vadd.f32 0.0, %v2259
  %v2261 = vpop.f32.mrb[0].mxu0
  %2262 = vdwg.mxu0
  %v2263 = vadd.f32 %v2020, %v2201
  %v2264 = vadd.f32 %v2021, %v2204
  %v2265 = vadd.f32 %v2022, %v2209
  %v2266 = vadd.f32 %v2023, %v2212
  %v2267 = vadd.f32 %v2024, %v2217
  %v2268 = vadd.f32 %v2025, %v2220
  %v2269 = vadd.f32 %v2026, %v2225
  %v2270 = vadd.f32 %v2027, %v2228
  %v2271 = vadd.f32 %v2028, %v2233
  %v2272 = vadd.f32 %v2029, %v2236
  %v2273 = vadd.f32 %v2030, %v2241
  %v2274 = vadd.f32 %v2031, %v2244
  %v2275 = vadd.f32 %v2032, %v2249
  %v2276 = vadd.f32 %v2033, %v2252
  %v2277 = vadd.f32 %v2034, %v2257
  %v2278 = vadd.f32 %v2035, %v2260
  %v2279 = vld [vmem:[%s2036] sm:$0xf]
  %v2280 = vld [vmem:[%s2036 + $0x4] sm:$0x1]
  %v2281 = vld [vmem:[%s2036 + $0x8] sm:$0xf]
  %v2282 = vld [vmem:[%s2036 + $0xc] sm:$0x1]
  %v2283 = vld [vmem:[%s2036 + $0x10] sm:$0xf]
  %v2284 = vld [vmem:[%s2036 + $0x14] sm:$0x1]
  %v2285 = vld [vmem:[%s2036 + $0x18] sm:$0xf]
  %v2286 = vld [vmem:[%s2036 + $0x1c] sm:$0x1]
  %v2287 = vld [vmem:[%s2036 + $0x20] sm:$0xf]
  %v2288 = vld [vmem:[%s2036 + $0x24] sm:$0x1]
  %v2289 = vld [vmem:[%s2036 + $0x28] sm:$0xf]
  %v2290 = vld [vmem:[%s2036 + $0x2c] sm:$0x1]
  %v2291 = vld [vmem:[%s2036 + $0x30] sm:$0xf]
  %v2292 = vld [vmem:[%s2036 + $0x34] sm:$0x1]
  %v2293 = vld [vmem:[%s2036 + $0x38] sm:$0xf]
  %v2294 = vld [vmem:[%s2036 + $0x3c] sm:$0x1]
  %v2295 = vld [vmem:[%s2036 + $0x50] sm:$0xf]
  %v2296 = vld [vmem:[%s2036 + $0x54] sm:$0x1]
  %v2297 = vld [vmem:[%s2036 + $0x58] sm:$0xf]
  %v2298 = vld [vmem:[%s2036 + $0x5c] sm:$0x1]
  %v2299 = vld [vmem:[%s2036 + $0x60] sm:$0xf]
  %v2300 = vld [vmem:[%s2036 + $0x64] sm:$0x1]
  %v2301 = vld [vmem:[%s2036 + $0x68] sm:$0xf]
  %v2302 = vld [vmem:[%s2036 + $0x6c] sm:$0x1]
  %v2303 = vld [vmem:[%s2036 + $0x70] sm:$0xf]
  %v2304 = vld [vmem:[%s2036 + $0x74] sm:$0x1]
  %v2305 = vld [vmem:[%s2036 + $0x78] sm:$0xf]
  %v2306 = vld [vmem:[%s2036 + $0x7c] sm:$0x1]
  %v2307 = vld [vmem:[%s2036 + $0x80] sm:$0xf]
  %v2308 = vld [vmem:[%s2036 + $0x84] sm:$0x1]
  %v2309 = vld [vmem:[%s2036 + $0x88] sm:$0xf]
  %v2310 = vld [vmem:[%s2036 + $0x8c] sm:$0x1]
  %v2312 = vshrl.u32 %v2279, 16
  %v2314 = vrot.slane %v2312, 4
  %v2315 = vshll.u32 %v2279, 16
  %v2317 = vrot.slane %v2315, 5
  %v2318 = vor.u32 %v2314, %v2317
  %v2319 = vrot.slane %v2318, 4
  %v2321 = vshll.u32 %v2280, 16
  %v2323 = vrot.slane %v2321, 5
  %v2324 = vsel %vm68, %v2319, %v2323
  %v2326 = vshrl.u32 %v2281, 16
  %v2328 = vrot.slane %v2326, 4
  %v2329 = vshll.u32 %v2281, 16
  %v2331 = vrot.slane %v2329, 5
  %v2332 = vor.u32 %v2328, %v2331
  %v2333 = vrot.slane %v2332, 4
  %v2335 = vshll.u32 %v2282, 16
  %v2337 = vrot.slane %v2335, 5
  %v2338 = vsel %vm68, %v2333, %v2337
  %v2340 = vshrl.u32 %v2283, 16
  %v2342 = vrot.slane %v2340, 4
  %v2343 = vshll.u32 %v2283, 16
  %v2345 = vrot.slane %v2343, 5
  %v2346 = vor.u32 %v2342, %v2345
  %v2347 = vrot.slane %v2346, 4
  %v2349 = vshll.u32 %v2284, 16
  %v2351 = vrot.slane %v2349, 5
  %v2352 = vsel %vm68, %v2347, %v2351
  %v2354 = vshrl.u32 %v2285, 16
  %v2356 = vrot.slane %v2354, 4
  %v2357 = vshll.u32 %v2285, 16
  %v2359 = vrot.slane %v2357, 5
  %v2360 = vor.u32 %v2356, %v2359
  %v2361 = vrot.slane %v2360, 4
  %v2363 = vshll.u32 %v2286, 16
  %v2365 = vrot.slane %v2363, 5
  %v2366 = vsel %vm68, %v2361, %v2365
  %v2368 = vshrl.u32 %v2287, 16
  %v2370 = vrot.slane %v2368, 4
  %v2371 = vshll.u32 %v2287, 16
  %v2373 = vrot.slane %v2371, 5
  %v2374 = vor.u32 %v2370, %v2373
  %v2375 = vrot.slane %v2374, 4
  %v2377 = vshll.u32 %v2288, 16
  %v2379 = vrot.slane %v2377, 5
  %v2380 = vsel %vm68, %v2375, %v2379
  %v2382 = vshrl.u32 %v2289, 16
  %v2384 = vrot.slane %v2382, 4
  %v2385 = vshll.u32 %v2289, 16
  %v2387 = vrot.slane %v2385, 5
  %v2388 = vor.u32 %v2384, %v2387
  %v2389 = vrot.slane %v2388, 4
  %v2391 = vshll.u32 %v2290, 16
  %v2393 = vrot.slane %v2391, 5
  %v2394 = vsel %vm68, %v2389, %v2393
  %v2396 = vshrl.u32 %v2291, 16
  %v2398 = vrot.slane %v2396, 4
  %v2399 = vshll.u32 %v2291, 16
  %v2401 = vrot.slane %v2399, 5
  %v2402 = vor.u32 %v2398, %v2401
  %v2403 = vrot.slane %v2402, 4
  %v2405 = vshll.u32 %v2292, 16
  %v2407 = vrot.slane %v2405, 5
  %v2408 = vsel %vm68, %v2403, %v2407
  %v2410 = vshrl.u32 %v2293, 16
  %v2412 = vrot.slane %v2410, 4
  %v2413 = vshll.u32 %v2293, 16
  %v2415 = vrot.slane %v2413, 5
  %v2416 = vor.u32 %v2412, %v2415
  %v2417 = vrot.slane %v2416, 4
  %v2419 = vshll.u32 %v2294, 16
  %v2421 = vrot.slane %v2419, 5
  %v2422 = vsel %vm68, %v2417, %v2421
  %v2424 = vshrl.u32 %v2295, 16
  %v2426 = vrot.slane %v2424, 4
  %v2427 = vshll.u32 %v2295, 16
  %v2429 = vrot.slane %v2427, 5
  %v2430 = vor.u32 %v2426, %v2429
  %v2431 = vrot.slane %v2430, 4
  %v2433 = vshll.u32 %v2296, 16
  %v2435 = vrot.slane %v2433, 5
  %v2436 = vsel %vm68, %v2431, %v2435
  %v2438 = vshrl.u32 %v2297, 16
  %v2440 = vrot.slane %v2438, 4
  %v2441 = vshll.u32 %v2297, 16
  %v2443 = vrot.slane %v2441, 5
  %v2444 = vor.u32 %v2440, %v2443
  %v2445 = vrot.slane %v2444, 4
  %v2447 = vshll.u32 %v2298, 16
  %v2449 = vrot.slane %v2447, 5
  %v2450 = vsel %vm68, %v2445, %v2449
  %v2452 = vshrl.u32 %v2299, 16
  %v2454 = vrot.slane %v2452, 4
  %v2455 = vshll.u32 %v2299, 16
  %v2457 = vrot.slane %v2455, 5
  %v2458 = vor.u32 %v2454, %v2457
  %v2459 = vrot.slane %v2458, 4
  %v2461 = vshll.u32 %v2300, 16
  %v2463 = vrot.slane %v2461, 5
  %v2464 = vsel %vm68, %v2459, %v2463
  %v2466 = vshrl.u32 %v2301, 16
  %v2468 = vrot.slane %v2466, 4
  %v2469 = vshll.u32 %v2301, 16
  %v2471 = vrot.slane %v2469, 5
  %v2472 = vor.u32 %v2468, %v2471
  %v2473 = vrot.slane %v2472, 4
  %v2475 = vshll.u32 %v2302, 16
  %v2477 = vrot.slane %v2475, 5
  %v2478 = vsel %vm68, %v2473, %v2477
  %v2480 = vshrl.u32 %v2303, 16
  %v2482 = vrot.slane %v2480, 4
  %v2483 = vshll.u32 %v2303, 16
  %v2485 = vrot.slane %v2483, 5
  %v2486 = vor.u32 %v2482, %v2485
  %v2487 = vrot.slane %v2486, 4
  %v2489 = vshll.u32 %v2304, 16
  %v2491 = vrot.slane %v2489, 5
  %v2492 = vsel %vm68, %v2487, %v2491
  %v2494 = vshrl.u32 %v2305, 16
  %v2496 = vrot.slane %v2494, 4
  %v2497 = vshll.u32 %v2305, 16
  %v2499 = vrot.slane %v2497, 5
  %v2500 = vor.u32 %v2496, %v2499
  %v2501 = vrot.slane %v2500, 4
  %v2503 = vshll.u32 %v2306, 16
  %v2505 = vrot.slane %v2503, 5
  %v2506 = vsel %vm68, %v2501, %v2505
  %v2508 = vshrl.u32 %v2307, 16
  %v2510 = vrot.slane %v2508, 4
  %v2511 = vshll.u32 %v2307, 16
  %v2513 = vrot.slane %v2511, 5
  %v2514 = vor.u32 %v2510, %v2513
  %v2515 = vrot.slane %v2514, 4
  %v2517 = vshll.u32 %v2308, 16
  %v2519 = vrot.slane %v2517, 5
  %v2520 = vsel %vm68, %v2515, %v2519
  %v2522 = vshrl.u32 %v2309, 16
  %v2524 = vrot.slane %v2522, 4
  %v2525 = vshll.u32 %v2309, 16
  %v2527 = vrot.slane %v2525, 5
  %v2528 = vor.u32 %v2524, %v2527
  %v2529 = vrot.slane %v2528, 4
  %v2531 = vshll.u32 %v2310, 16
  %v2533 = vrot.slane %v2531, 5
  %v2534 = vsel %vm68, %v2529, %v2533
  %s2535 = scalar_lea.vmem %s1, 448
  %v2536 = vld [vmem:[%s2535] sm:$0xf]
  %v2537 = vld [vmem:[%s2535 + $0x4] sm:$0xf]
  %v2538 = vld [vmem:[%s2535 + $0x8] sm:$0xf]
  %v2539 = vld [vmem:[%s2535 + $0xc] sm:$0xf]
  %v2540 = vld [vmem:[%s2535 + $0x10] sm:$0xf]
  %v2541 = vld [vmem:[%s2535 + $0x14] sm:$0xf]
  %v2542 = vld [vmem:[%s2535 + $0x18] sm:$0xf]
  %v2543 = vld [vmem:[%s2535 + $0x1c] sm:$0xf]
  %v2544 = vld [vmem:[%s2535 + $0x20] sm:$0xf]
  %v2545 = vld [vmem:[%s2535 + $0x24] sm:$0xf]
  %v2546 = vld [vmem:[%s2535 + $0x28] sm:$0xf]
  %v2547 = vld [vmem:[%s2535 + $0x2c] sm:$0xf]
  %v2548 = vld [vmem:[%s2535 + $0x30] sm:$0xf]
  %v2549 = vld [vmem:[%s2535 + $0x34] sm:$0xf]
  %v2550 = vld [vmem:[%s2535 + $0x38] sm:$0xf]
  %v2551 = vld [vmem:[%s2535 + $0x3c] sm:$0xf]
  %v2552 = vunpack.c.l.b16 %v2324
  %v2553 = vunpack.c.l.b16 %v2338
  %v2554 = vunpack.c.l.b16 %v2352
  %v2555 = vunpack.c.l.b16 %v2366
  %v2556 = vunpack.c.l.b16 %v2380
  %v2557 = vunpack.c.l.b16 %v2394
  %v2558 = vunpack.c.l.b16 %v2408
  %v2559 = vunpack.c.l.b16 %v2422
  %v2560 = vunpack.c.l.b16 %v2436
  %v2561 = vunpack.c.l.b16 %v2450
  %v2562 = vunpack.c.l.b16 %v2464
  %v2563 = vunpack.c.l.b16 %v2478
  %v2564 = vunpack.c.l.b16 %v2492
  %v2565 = vunpack.c.l.b16 %v2506
  %v2566 = vunpack.c.l.b16 %v2520
  %v2567 = vunpack.c.l.b16 %v2534
  %v2568 = vpack.c.b16 %v2553, %v2552
  %v2569 = vpack.c.b16 %v2555, %v2554
  %v2570 = vpack.c.b16 %v2557, %v2556
  %v2571 = vpack.c.b16 %v2559, %v2558
  %v2572 = vpack.c.b16 %v2561, %v2560
  %v2573 = vpack.c.b16 %v2563, %v2562
  %v2574 = vpack.c.b16 %v2565, %v2564
  %v2575 = vpack.c.b16 %v2567, %v2566
  %v2600 = vunpack.c.l.b16 %v2536
  %v2601 = vunpack.c.l.b16 %v2537
  %v2602 = vunpack.c.l.b16 %v2538
  %v2603 = vunpack.c.l.b16 %v2539
  %v2604 = vunpack.c.l.b16 %v2540
  %v2605 = vunpack.c.l.b16 %v2541
  %v2606 = vunpack.c.l.b16 %v2542
  %v2607 = vunpack.c.l.b16 %v2543
  %v2608 = vunpack.c.l.b16 %v2544
  %v2609 = vunpack.c.l.b16 %v2545
  %v2610 = vunpack.c.l.b16 %v2546
  %v2611 = vunpack.c.l.b16 %v2547
  %v2612 = vunpack.c.l.b16 %v2548
  %v2613 = vunpack.c.l.b16 %v2549
  %v2614 = vunpack.c.l.b16 %v2550
  %v2615 = vunpack.c.l.b16 %v2551
  %v2616 = vpack.c.b16 %v2601, %v2600
  %v2617 = vpack.c.b16 %v2603, %v2602
  %v2618 = vpack.c.b16 %v2605, %v2604
  %v2619 = vpack.c.b16 %v2607, %v2606
  %v2620 = vpack.c.b16 %v2609, %v2608
  %v2621 = vpack.c.b16 %v2611, %v2610
  %v2622 = vpack.c.b16 %v2613, %v2612
  %v2623 = vpack.c.b16 %v2615, %v2614
  %2632 = vmatprep.subr.bf16.mxu0 0
  %2633 = vmatpush1.bf16.msra.mxu0 %v2616
  %2634 = vmatprep.subr.bf16.mxu0 0
  %2635 = vmatpush1.bf16.msra.mxu0 %v2617
  %2636 = vmatprep.subr.bf16.mxu0 0
  %2637 = vmatpush1.bf16.msra.mxu0 %v2618
  %2638 = vmatprep.subr.bf16.mxu0 0
  %2639 = vmatpush1.bf16.msra.mxu0 %v2619
  %2640 = vmatprep.subr.bf16.mxu0 0
  %2641 = vmatpush1.bf16.msra.mxu0 %v2620
  %2642 = vmatprep.subr.bf16.mxu0 0
  %2643 = vmatpush1.bf16.msra.mxu0 %v2621
  %2644 = vmatprep.subr.bf16.mxu0 0
  %2645 = vmatpush1.bf16.msra.mxu0 %v2622
  %2646 = vmatprep.subr.bf16.mxu0 0
  %2647 = vmatpush1.bf16.msra.mxu0 %v2623
  %2648 = vmatprep.subr.bf16.mxu0 0
  %2649 = vmatpush1.bf16.msra.mxu0 0
  %2650 = vmatprep.subr.bf16.mxu0 0
  %2651 = vmatpush1.bf16.msra.mxu0 0
  %2652 = vmatprep.subr.bf16.mxu0 0
  %2653 = vmatpush1.bf16.msra.mxu0 0
  %2654 = vmatprep.subr.bf16.mxu0 0
  %2655 = vmatpush1.bf16.msra.mxu0 0
  %2656 = vmatprep.subr.bf16.mxu0 0
  %2657 = vmatpush1.bf16.msra.mxu0 0
  %2658 = vmatprep.subr.bf16.mxu0 0
  %2659 = vmatpush1.bf16.msra.mxu0 0
  %2660 = vmatprep.subr.bf16.mxu0 0
  %2661 = vmatpush1.bf16.msra.mxu0 0
  %2662 = vmatprep.subr.bf16.mxu0 0
  %2663 = vmatpush1.bf16.msra.mxu0 0
  %2664 = vmatprep.mubr.bf16.mxu0 0
  %2665 = vmatmul.mubr.bf16.gmra.mrb[0].mxu0 %v2568
  %v2666 = vpop.f32.mrb[0].mxu0
  %v2667 = vadd.f32 0.0, %v2666
  %v2668 = vpop.f32.mrb[0].mxu0
  %v2669 = vpop.f32.mrb[0].mxu0
  %v2670 = vadd.f32 0.0, %v2669
  %v2671 = vpop.f32.mrb[0].mxu0
  %2672 = vmatprep.mubr.bf16.mxu0 0
  %2673 = vmatmul.mubr.bf16.gmra.mrb[0].mxu0 %v2569
  %v2674 = vpop.f32.mrb[0].mxu0
  %v2675 = vadd.f32 0.0, %v2674
  %v2676 = vpop.f32.mrb[0].mxu0
  %v2677 = vpop.f32.mrb[0].mxu0
  %v2678 = vadd.f32 0.0, %v2677
  %v2679 = vpop.f32.mrb[0].mxu0
  %2680 = vmatprep.mubr.bf16.mxu0 0
  %2681 = vmatmul.mubr.bf16.gmra.mrb[0].mxu0 %v2570
  %v2682 = vpop.f32.mrb[0].mxu0
  %v2683 = vadd.f32 0.0, %v2682
  %v2684 = vpop.f32.mrb[0].mxu0
  %v2685 = vpop.f32.mrb[0].mxu0
  %v2686 = vadd.f32 0.0, %v2685
  %v2687 = vpop.f32.mrb[0].mxu0
  %2688 = vmatprep.mubr.bf16.mxu0 0
  %2689 = vmatmul.mubr.bf16.gmra.mrb[0].mxu0 %v2571
  %v2690 = vpop.f32.mrb[0].mxu0
  %v2691 = vadd.f32 0.0, %v2690
  %v2692 = vpop.f32.mrb[0].mxu0
  %v2693 = vpop.f32.mrb[0].mxu0
  %v2694 = vadd.f32 0.0, %v2693
  %v2695 = vpop.f32.mrb[0].mxu0
  %2696 = vmatprep.mubr.bf16.mxu0 0
  %2697 = vmatmul.mubr.bf16.gmra.mrb[0].mxu0 %v2572
  %v2698 = vpop.f32.mrb[0].mxu0
  %v2699 = vadd.f32 0.0, %v2698
  %v2700 = vpop.f32.mrb[0].mxu0
  %v2701 = vpop.f32.mrb[0].mxu0
  %v2702 = vadd.f32 0.0, %v2701
  %v2703 = vpop.f32.mrb[0].mxu0
  %2704 = vmatprep.mubr.bf16.mxu0 0
  %2705 = vmatmul.mubr.bf16.gmra.mrb[0].mxu0 %v2573
  %v2706 = vpop.f32.mrb[0].mxu0
  %v2707 = vadd.f32 0.0, %v2706
  %v2708 = vpop.f32.mrb[0].mxu0
  %v2709 = vpop.f32.mrb[0].mxu0
  %v2710 = vadd.f32 0.0, %v2709
  %v2711 = vpop.f32.mrb[0].mxu0
  %2712 = vmatprep.mubr.bf16.mxu0 0
  %2713 = vmatmul.mubr.bf16.gmra.mrb[0].mxu0 %v2574
  %v2714 = vpop.f32.mrb[0].mxu0
  %v2715 = vadd.f32 0.0, %v2714
  %v2716 = vpop.f32.mrb[0].mxu0
  %v2717 = vpop.f32.mrb[0].mxu0
  %v2718 = vadd.f32 0.0, %v2717
  %v2719 = vpop.f32.mrb[0].mxu0
  %2720 = vmatprep.mubr.bf16.mxu0 0
  %2721 = vmatmul.mubr.bf16.gmra.mrb[0].mxu0 %v2575
  %v2722 = vpop.f32.mrb[0].mxu0
  %v2723 = vadd.f32 0.0, %v2722
  %v2724 = vpop.f32.mrb[0].mxu0
  %v2725 = vpop.f32.mrb[0].mxu0
  %v2726 = vadd.f32 0.0, %v2725
  %v2727 = vpop.f32.mrb[0].mxu0
  %2728 = vdwg.mxu0
  %v2729 = vadd.f32 %v2263, %v2667
  %v2730 = vadd.f32 %v2264, %v2670
  %v2731 = vadd.f32 %v2265, %v2675
  %v2732 = vadd.f32 %v2266, %v2678
  %v2733 = vadd.f32 %v2267, %v2683
  %v2734 = vadd.f32 %v2268, %v2686
  %v2735 = vadd.f32 %v2269, %v2691
  %v2736 = vadd.f32 %v2270, %v2694
  %v2737 = vadd.f32 %v2271, %v2699
  %v2738 = vadd.f32 %v2272, %v2702
  %v2739 = vadd.f32 %v2273, %v2707
  %v2740 = vadd.f32 %v2274, %v2710
  %v2741 = vadd.f32 %v2275, %v2715
  %v2742 = vadd.f32 %v2276, %v2718
  %v2743 = vadd.f32 %v2277, %v2723
  %v2744 = vadd.f32 %v2278, %v2726
  %v2745 = vld [vmem:[%s2036] sm:$0xe]
  %v2746 = vld [vmem:[%s2036 + $0x8] sm:$0xe]
  %v2747 = vld [vmem:[%s2036 + $0x10] sm:$0xe]
  %v2748 = vld [vmem:[%s2036 + $0x18] sm:$0xe]
  %v2749 = vld [vmem:[%s2036 + $0x20] sm:$0xe]
  %v2750 = vld [vmem:[%s2036 + $0x28] sm:$0xe]
  %v2751 = vld [vmem:[%s2036 + $0x30] sm:$0xe]
  %v2752 = vld [vmem:[%s2036 + $0x38] sm:$0xe]
  %v2753 = vld [vmem:[%s2036 + $0x50] sm:$0xe]
  %v2754 = vld [vmem:[%s2036 + $0x58] sm:$0xe]
  %v2755 = vld [vmem:[%s2036 + $0x60] sm:$0xe]
  %v2756 = vld [vmem:[%s2036 + $0x68] sm:$0xe]
  %v2757 = vld [vmem:[%s2036 + $0x70] sm:$0xe]
  %v2758 = vld [vmem:[%s2036 + $0x78] sm:$0xe]
  %v2759 = vld [vmem:[%s2036 + $0x80] sm:$0xe]
  %v2760 = vld [vmem:[%s2036 + $0x88] sm:$0xe]
  %v2793 = vrot.slane %v2745, 5
  %v2794 = vrot.slane %v2793, 4
  %v2795 = vrot.slane %v2280, 5
  %v2796 = vsel %vm730, %v2794, %v2795
  %v2797 = vrot.slane %v2746, 5
  %v2798 = vrot.slane %v2797, 4
  %v2799 = vrot.slane %v2282, 5
  %v2800 = vsel %vm730, %v2798, %v2799
  %v2801 = vrot.slane %v2747, 5
  %v2802 = vrot.slane %v2801, 4
  %v2803 = vrot.slane %v2284, 5
  %v2804 = vsel %vm730, %v2802, %v2803
  %v2805 = vrot.slane %v2748, 5
  %v2806 = vrot.slane %v2805, 4
  %v2807 = vrot.slane %v2286, 5
  %v2808 = vsel %vm730, %v2806, %v2807
  %v2809 = vrot.slane %v2749, 5
  %v2810 = vrot.slane %v2809, 4
  %v2811 = vrot.slane %v2288, 5
  %v2812 = vsel %vm730, %v2810, %v2811
  %v2813 = vrot.slane %v2750, 5
  %v2814 = vrot.slane %v2813, 4
  %v2815 = vrot.slane %v2290, 5
  %v2816 = vsel %vm730, %v2814, %v2815
  %v2817 = vrot.slane %v2751, 5
  %v2818 = vrot.slane %v2817, 4
  %v2819 = vrot.slane %v2292, 5
  %v2820 = vsel %vm730, %v2818, %v2819
  %v2821 = vrot.slane %v2752, 5
  %v2822 = vrot.slane %v2821, 4
  %v2823 = vrot.slane %v2294, 5
  %v2824 = vsel %vm730, %v2822, %v2823
  %v2825 = vrot.slane %v2753, 5
  %v2826 = vrot.slane %v2825, 4
  %v2827 = vrot.slane %v2296, 5
  %v2828 = vsel %vm730, %v2826, %v2827
  %v2829 = vrot.slane %v2754, 5
  %v2830 = vrot.slane %v2829, 4
  %v2831 = vrot.slane %v2298, 5
  %v2832 = vsel %vm730, %v2830, %v2831
  %v2833 = vrot.slane %v2755, 5
  %v2834 = vrot.slane %v2833, 4
  %v2835 = vrot.slane %v2300, 5
  %v2836 = vsel %vm730, %v2834, %v2835
  %v2837 = vrot.slane %v2756, 5
  %v2838 = vrot.slane %v2837, 4
  %v2839 = vrot.slane %v2302, 5
  %v2840 = vsel %vm730, %v2838, %v2839
  %v2841 = vrot.slane %v2757, 5
  %v2842 = vrot.slane %v2841, 4
  %v2843 = vrot.slane %v2304, 5
  %v2844 = vsel %vm730, %v2842, %v2843
  %v2845 = vrot.slane %v2758, 5
  %v2846 = vrot.slane %v2845, 4
  %v2847 = vrot.slane %v2306, 5
  %v2848 = vsel %vm730, %v2846, %v2847
  %v2849 = vrot.slane %v2759, 5
  %v2850 = vrot.slane %v2849, 4
  %v2851 = vrot.slane %v2308, 5
  %v2852 = vsel %vm730, %v2850, %v2851
  %v2853 = vrot.slane %v2760, 5
  %v2854 = vrot.slane %v2853, 4
  %v2855 = vrot.slane %v2310, 5
  %v2856 = vsel %vm730, %v2854, %v2855
  %s2857 = scalar_lea.vmem %s1, 512
  %v2858 = vld [vmem:[%s2857] sm:$0xf]
  %v2859 = vld [vmem:[%s2857 + $0x4] sm:$0xf]
  %v2860 = vld [vmem:[%s2857 + $0x8] sm:$0xf]
  %v2861 = vld [vmem:[%s2857 + $0xc] sm:$0xf]
  %v2862 = vld [vmem:[%s2857 + $0x10] sm:$0xf]
  %v2863 = vld [vmem:[%s2857 + $0x14] sm:$0xf]
  %v2864 = vld [vmem:[%s2857 + $0x18] sm:$0xf]
  %v2865 = vld [vmem:[%s2857 + $0x1c] sm:$0xf]
  %v2866 = vld [vmem:[%s2857 + $0x20] sm:$0xf]
  %v2867 = vld [vmem:[%s2857 + $0x24] sm:$0xf]
  %v2868 = vld [vmem:[%s2857 + $0x28] sm:$0xf]
  %v2869 = vld [vmem:[%s2857 + $0x2c] sm:$0xf]
  %v2870 = vld [vmem:[%s2857 + $0x30] sm:$0xf]
  %v2871 = vld [vmem:[%s2857 + $0x34] sm:$0xf]
  %v2872 = vld [vmem:[%s2857 + $0x38] sm:$0xf]
  %v2873 = vld [vmem:[%s2857 + $0x3c] sm:$0xf]
  %v2874 = vunpack.c.l.b16 %v2796
  %v2875 = vunpack.c.l.b16 %v2800
  %v2876 = vunpack.c.l.b16 %v2804
  %v2877 = vunpack.c.l.b16 %v2808
  %v2878 = vunpack.c.l.b16 %v2812
  %v2879 = vunpack.c.l.b16 %v2816
  %v2880 = vunpack.c.l.b16 %v2820
  %v2881 = vunpack.c.l.b16 %v2824
  %v2882 = vunpack.c.l.b16 %v2828
  %v2883 = vunpack.c.l.b16 %v2832
  %v2884 = vunpack.c.l.b16 %v2836
  %v2885 = vunpack.c.l.b16 %v2840
  %v2886 = vunpack.c.l.b16 %v2844
  %v2887 = vunpack.c.l.b16 %v2848
  %v2888 = vunpack.c.l.b16 %v2852
  %v2889 = vunpack.c.l.b16 %v2856
  %v2890 = vpack.c.b16 %v2875, %v2874
  %v2891 = vpack.c.b16 %v2877, %v2876
  %v2892 = vpack.c.b16 %v2879, %v2878
  %v2893 = vpack.c.b16 %v2881, %v2880
  %v2894 = vpack.c.b16 %v2883, %v2882
  %v2895 = vpack.c.b16 %v2885, %v2884
  %v2896 = vpack.c.b16 %v2887, %v2886
  %v2897 = vpack.c.b16 %v2889, %v2888
  %v2922 = vunpack.c.l.b16 %v2858
  %v2923 = vunpack.c.l.b16 %v2859
  %v2924 = vunpack.c.l.b16 %v2860
  %v2925 = vunpack.c.l.b16 %v2861
  %v2926 = vunpack.c.l.b16 %v2862
  %v2927 = vunpack.c.l.b16 %v2863
  %v2928 = vunpack.c.l.b16 %v2864
  %v2929 = vunpack.c.l.b16 %v2865
  %v2930 = vunpack.c.l.b16 %v2866
  %v2931 = vunpack.c.l.b16 %v2867
  %v2932 = vunpack.c.l.b16 %v2868
  %v2933 = vunpack.c.l.b16 %v2869
  %v2934 = vunpack.c.l.b16 %v2870
  %v2935 = vunpack.c.l.b16 %v2871
  %v2936 = vunpack.c.l.b16 %v2872
  %v2937 = vunpack.c.l.b16 %v2873
  %v2938 = vpack.c.b16 %v2923, %v2922
  %v2939 = vpack.c.b16 %v2925, %v2924
  %v2940 = vpack.c.b16 %v2927, %v2926
  %v2941 = vpack.c.b16 %v2929, %v2928
  %v2942 = vpack.c.b16 %v2931, %v2930
  %v2943 = vpack.c.b16 %v2933, %v2932
  %v2944 = vpack.c.b16 %v2935, %v2934
  %v2945 = vpack.c.b16 %v2937, %v2936
  %2954 = vmatprep.subr.bf16.mxu0 0
  %2955 = vmatpush1.bf16.msra.mxu0 %v2938
  %2956 = vmatprep.subr.bf16.mxu0 0
  %2957 = vmatpush1.bf16.msra.mxu0 %v2939
  %2958 = vmatprep.subr.bf16.mxu0 0
  %2959 = vmatpush1.bf16.msra.mxu0 %v2940
  %2960 = vmatprep.subr.bf16.mxu0 0
  %2961 = vmatpush1.bf16.msra.mxu0 %v2941
  %2962 = vmatprep.subr.bf16.mxu0 0
  %2963 = vmatpush1.bf16.msra.mxu0 %v2942
  %2964 = vmatprep.subr.bf16.mxu0 0
  %2965 = vmatpush1.bf16.msra.mxu0 %v2943
  %2966 = vmatprep.subr.bf16.mxu0 0
  %2967 = vmatpush1.bf16.msra.mxu0 %v2944
  %2968 = vmatprep.subr.bf16.mxu0 0
  %2969 = vmatpush1.bf16.msra.mxu0 %v2945
  %2970 = vmatprep.subr.bf16.mxu0 0
  %2971 = vmatpush1.bf16.msra.mxu0 0
  %2972 = vmatprep.subr.bf16.mxu0 0
  %2973 = vmatpush1.bf16.msra.mxu0 0
  %2974 = vmatprep.subr.bf16.mxu0 0
  %2975 = vmatpush1.bf16.msra.mxu0 0
  %2976 = vmatprep.subr.bf16.mxu0 0
  %2977 = vmatpush1.bf16.msra.mxu0 0
  %2978 = vmatprep.subr.bf16.mxu0 0
  %2979 = vmatpush1.bf16.msra.mxu0 0
  %2980 = vmatprep.subr.bf16.mxu0 0
  %2981 = vmatpush1.bf16.msra.mxu0 0
  %2982 = vmatprep.subr.bf16.mxu0 0
  %2983 = vmatpush1.bf16.msra.mxu0 0
  %2984 = vmatprep.subr.bf16.mxu0 0
  %2985 = vmatpush1.bf16.msra.mxu0 0
  %2986 = vmatprep.mubr.bf16.mxu0 0
  %2987 = vmatmul.mubr.bf16.gmra.mrb[0].mxu0 %v2890
  %v2988 = vpop.f32.mrb[0].mxu0
  %v2989 = vadd.f32 0.0, %v2988
  %v2990 = vpop.f32.mrb[0].mxu0
  %v2991 = vpop.f32.mrb[0].mxu0
  %v2992 = vadd.f32 0.0, %v2991
  %v2993 = vpop.f32.mrb[0].mxu0
  %2994 = vmatprep.mubr.bf16.mxu0 0
  %2995 = vmatmul.mubr.bf16.gmra.mrb[0].mxu0 %v2891
  %v2996 = vpop.f32.mrb[0].mxu0
  %v2997 = vadd.f32 0.0, %v2996
  %v2998 = vpop.f32.mrb[0].mxu0
  %v2999 = vpop.f32.mrb[0].mxu0
  %v3000 = vadd.f32 0.0, %v2999
  %v3001 = vpop.f32.mrb[0].mxu0
  %3002 = vmatprep.mubr.bf16.mxu0 0
  %3003 = vmatmul.mubr.bf16.gmra.mrb[0].mxu0 %v2892
  %v3004 = vpop.f32.mrb[0].mxu0
  %v3005 = vadd.f32 0.0, %v3004
  %v3006 = vpop.f32.mrb[0].mxu0
  %v3007 = vpop.f32.mrb[0].mxu0
  %v3008 = vadd.f32 0.0, %v3007
  %v3009 = vpop.f32.mrb[0].mxu0
  %3010 = vmatprep.mubr.bf16.mxu0 0
  %3011 = vmatmul.mubr.bf16.gmra.mrb[0].mxu0 %v2893
  %v3012 = vpop.f32.mrb[0].mxu0
  %v3013 = vadd.f32 0.0, %v3012
  %v3014 = vpop.f32.mrb[0].mxu0
  %v3015 = vpop.f32.mrb[0].mxu0
  %v3016 = vadd.f32 0.0, %v3015
  %v3017 = vpop.f32.mrb[0].mxu0
  %3018 = vmatprep.mubr.bf16.mxu0 0
  %3019 = vmatmul.mubr.bf16.gmra.mrb[0].mxu0 %v2894
  %v3020 = vpop.f32.mrb[0].mxu0
  %v3021 = vadd.f32 0.0, %v3020
  %v3022 = vpop.f32.mrb[0].mxu0
  %v3023 = vpop.f32.mrb[0].mxu0
  %v3024 = vadd.f32 0.0, %v3023
  %v3025 = vpop.f32.mrb[0].mxu0
  %3026 = vmatprep.mubr.bf16.mxu0 0
  %3027 = vmatmul.mubr.bf16.gmra.mrb[0].mxu0 %v2895
  %v3028 = vpop.f32.mrb[0].mxu0
  %v3029 = vadd.f32 0.0, %v3028
  %v3030 = vpop.f32.mrb[0].mxu0
  %v3031 = vpop.f32.mrb[0].mxu0
  %v3032 = vadd.f32 0.0, %v3031
  %v3033 = vpop.f32.mrb[0].mxu0
  %3034 = vmatprep.mubr.bf16.mxu0 0
  %3035 = vmatmul.mubr.bf16.gmra.mrb[0].mxu0 %v2896
  %v3036 = vpop.f32.mrb[0].mxu0
  %v3037 = vadd.f32 0.0, %v3036
  %v3038 = vpop.f32.mrb[0].mxu0
  %v3039 = vpop.f32.mrb[0].mxu0
  %v3040 = vadd.f32 0.0, %v3039
  %v3041 = vpop.f32.mrb[0].mxu0
  %3042 = vmatprep.mubr.bf16.mxu0 0
  %3043 = vmatmul.mubr.bf16.gmra.mrb[0].mxu0 %v2897
  %v3044 = vpop.f32.mrb[0].mxu0
  %v3045 = vadd.f32 0.0, %v3044
  %v3046 = vpop.f32.mrb[0].mxu0
  %v3047 = vpop.f32.mrb[0].mxu0
  %v3048 = vadd.f32 0.0, %v3047
  %v3049 = vpop.f32.mrb[0].mxu0
  %3050 = vdwg.mxu0
  %v3051 = vadd.f32 %v2729, %v2989
  %v3052 = vadd.f32 %v2730, %v2992
  %v3053 = vadd.f32 %v2731, %v2997
  %v3054 = vadd.f32 %v2732, %v3000
  %v3055 = vadd.f32 %v2733, %v3005
  %v3056 = vadd.f32 %v2734, %v3008
  %v3057 = vadd.f32 %v2735, %v3013
  %v3058 = vadd.f32 %v2736, %v3016
  %v3059 = vadd.f32 %v2737, %v3021
  %v3060 = vadd.f32 %v2738, %v3024
  %v3061 = vadd.f32 %v2739, %v3029
  %v3062 = vadd.f32 %v2740, %v3032
  %v3063 = vadd.f32 %v2741, %v3037
  %v3064 = vadd.f32 %v2742, %v3040
  %v3065 = vadd.f32 %v2743, %v3045
  %v3066 = vadd.f32 %v2744, %v3048
  %v3067 = vld [vmem:[%s2] sm:$0x1]
  %v3069 = vlaneseq
  %v3070 = vshrl.u32 %v3069, 7
  %v3071 = vsub.s32 0, %v3070
  %v3072 = vrot.slane %v3067, %v3071
  %v3074 = vmul.f32 %v3051, %v3072
  %v3075 = vmul.f32 %v3052, %v3072
  %v3076 = vmul.f32 %v3053, %v3072
  %v3077 = vmul.f32 %v3054, %v3072
  %v3078 = vmul.f32 %v3055, %v3072
  %v3079 = vmul.f32 %v3056, %v3072
  %v3080 = vmul.f32 %v3057, %v3072
  %v3081 = vmul.f32 %v3058, %v3072
  %v3082 = vmul.f32 %v3059, %v3072
  %v3083 = vmul.f32 %v3060, %v3072
  %v3084 = vmul.f32 %v3061, %v3072
  %v3085 = vmul.f32 %v3062, %v3072
  %v3086 = vmul.f32 %v3063, %v3072
  %v3087 = vmul.f32 %v3064, %v3072
  %v3088 = vmul.f32 %v3065, %v3072
  %v3089 = vmul.f32 %v3066, %v3072
  %v3090 = vld [vmem:[%s3] sm:$0x1]
  %v3092 = vlaneseq
  %v3093 = vshrl.u32 %v3092, 7
  %v3094 = vsub.s32 0, %v3093
  %v3095 = vrot.slane %v3090, %v3094
  %v3097 = vadd.f32 %v3074, %v3095
  %v3098 = vadd.f32 %v3075, %v3095
  %v3099 = vadd.f32 %v3076, %v3095
  %v3100 = vadd.f32 %v3077, %v3095
  %v3101 = vadd.f32 %v3078, %v3095
  %v3102 = vadd.f32 %v3079, %v3095
  %v3103 = vadd.f32 %v3080, %v3095
  %v3104 = vadd.f32 %v3081, %v3095
  %v3105 = vadd.f32 %v3082, %v3095
  %v3106 = vadd.f32 %v3083, %v3095
  %v3107 = vadd.f32 %v3084, %v3095
  %v3108 = vadd.f32 %v3085, %v3095
  %v3109 = vadd.f32 %v3086, %v3095
  %v3110 = vadd.f32 %v3087, %v3095
  %v3111 = vadd.f32 %v3088, %v3095
  %v3112 = vadd.f32 %v3089, %v3095
  %v3113 = vmax.f32 %v3097, 0.0
  %v3114 = vmax.f32 %v3098, 0.0
  %v3115 = vmax.f32 %v3099, 0.0
  %v3116 = vmax.f32 %v3100, 0.0
  %v3117 = vmax.f32 %v3101, 0.0
  %v3118 = vmax.f32 %v3102, 0.0
  %v3119 = vmax.f32 %v3103, 0.0
  %v3120 = vmax.f32 %v3104, 0.0
  %v3121 = vmax.f32 %v3105, 0.0
  %v3122 = vmax.f32 %v3106, 0.0
  %v3123 = vmax.f32 %v3107, 0.0
  %v3124 = vmax.f32 %v3108, 0.0
  %v3125 = vmax.f32 %v3109, 0.0
  %v3126 = vmax.f32 %v3110, 0.0
  %v3127 = vmax.f32 %v3111, 0.0
  %v3128 = vmax.f32 %v3112, 0.0
  %v3129 = vpack.c.bf16 %v3114, %v3113
  %v3130 = vpack.c.bf16 %v3116, %v3115
  %v3131 = vpack.c.bf16 %v3118, %v3117
  %v3132 = vpack.c.bf16 %v3120, %v3119
  %v3133 = vpack.c.bf16 %v3122, %v3121
  %v3134 = vpack.c.bf16 %v3124, %v3123
  %v3135 = vpack.c.bf16 %v3126, %v3125
  %v3136 = vpack.c.bf16 %v3128, %v3127
  %v3145 = vunpack.c.l.b16 %v3129
  %v3146 = vunpack.c.h.b16 %v3129
  %v3147 = vunpack.c.l.b16 %v3130
  %v3148 = vunpack.c.h.b16 %v3130
  %v3149 = vunpack.c.l.b16 %v3131
  %v3150 = vunpack.c.h.b16 %v3131
  %v3151 = vunpack.c.l.b16 %v3132
  %v3152 = vunpack.c.h.b16 %v3132
  %v3153 = vunpack.c.l.b16 %v3133
  %v3154 = vunpack.c.h.b16 %v3133
  %v3155 = vunpack.c.l.b16 %v3134
  %v3156 = vunpack.c.h.b16 %v3134
  %v3157 = vunpack.c.l.b16 %v3135
  %v3158 = vunpack.c.h.b16 %v3135
  %v3159 = vunpack.c.l.b16 %v3136
  %v3160 = vunpack.c.h.b16 %v3136
  %v3161 = vpack.c.b16 %v3145, %v3145
  %v3162 = vpack.c.b16 %v3146, %v3146
  %v3163 = vpack.c.b16 %v3147, %v3147
  %v3164 = vpack.c.b16 %v3148, %v3148
  %v3165 = vpack.c.b16 %v3149, %v3149
  %v3166 = vpack.c.b16 %v3150, %v3150
  %v3167 = vpack.c.b16 %v3151, %v3151
  %v3168 = vpack.c.b16 %v3152, %v3152
  %v3169 = vpack.c.b16 %v3153, %v3153
  %v3170 = vpack.c.b16 %v3154, %v3154
  %v3171 = vpack.c.b16 %v3155, %v3155
  %v3172 = vpack.c.b16 %v3156, %v3156
  %v3173 = vpack.c.b16 %v3157, %v3157
  %v3174 = vpack.c.b16 %v3158, %v3158
  %v3175 = vpack.c.b16 %v3159, %v3159
  %v3176 = vpack.c.b16 %v3160, %v3160
  %3193 = vst [vmem:[%s4] sm:$0xf] %v3161
  %3194 = vst [vmem:[%s4 + $0x4] sm:$0xf] %v3162
  %3195 = vst [vmem:[%s4 + $0x8] sm:$0xf] %v3163
  %3196 = vst [vmem:[%s4 + $0xc] sm:$0xf] %v3164
  %3197 = vst [vmem:[%s4 + $0x10] sm:$0xf] %v3165
  %3198 = vst [vmem:[%s4 + $0x14] sm:$0xf] %v3166
  %3199 = vst [vmem:[%s4 + $0x18] sm:$0xf] %v3167
  %3200 = vst [vmem:[%s4 + $0x1c] sm:$0xf] %v3168
  %3201 = vst [vmem:[%s4 + $0x20] sm:$0xf] %v3169
  %3202 = vst [vmem:[%s4 + $0x24] sm:$0xf] %v3170
  %3203 = vst [vmem:[%s4 + $0x28] sm:$0xf] %v3171
  %3204 = vst [vmem:[%s4 + $0x2c] sm:$0xf] %v3172
  %3205 = vst [vmem:[%s4 + $0x30] sm:$0xf] %v3173
  %3206 = vst [vmem:[%s4 + $0x34] sm:$0xf] %v3174
  %3207 = vst [vmem:[%s4 + $0x38] sm:$0xf] %v3175
  %3208 = vst [vmem:[%s4 + $0x3c] sm:$0xf] %v3176
  // Predicated region
  $region18: #{_lambda_.6} parent=0 // pred_check
    _
  $region19: #{_lambda_.6} parent=0 // pred_check_branch
    %3210 = sbr.rel (0) target = $region21
  $region20: #{_lambda_.6} parent=0 // pred_region
    _
  $region21: #{_lambda_.6} parent=0 // pred_fallthru
    _
  // Predicated region
  $region22: #{_lambda_.6} parent=0 // pred_check
    _
  $region23: #{_lambda_.6} parent=0 // pred_check_branch
    %3212 = sbr.rel (0) target = $region25
  $region24: #{_lambda_.6} parent=0 // pred_region
    _
  $region25: #{_lambda_.6} parent=0 // pred_fallthru
    _

</llo_original>
